<compile_context>
chip_gen: v7x
topology: tpu7x:2x2x1
jax: 0.10.0
libtpu: 0.0.40
codegen_flags: <defaults>
</compile_context>

<pallas_src>
import functools
import math

import jax
import jax.numpy as jnp
import numpy as np
from jax.experimental import pallas as pl
from jax.experimental.pallas import tpu as pltpu

LANE_PAD = 128  # lane-dense width for the (S, 1) MLP-head output


# ---------------------------------------------------------------------------
# In-kernel helpers
# ---------------------------------------------------------------------------
def _layer_norm(x, w, b, eps=1e-5):
    mu = jnp.mean(x, axis=-1, keepdims=True)
    var = jnp.mean((x - mu) ** 2, axis=-1, keepdims=True)
    return (x - mu) * jax.lax.rsqrt(var + eps) * w + b


# ---------------------------------------------------------------------------
# Fused kernel: all encoder layers + MLP head, one grid step, VMEM-resident.
# ---------------------------------------------------------------------------
def fused_transformer_kernel(x_ref, *refs, n_layers, n_heads, batch, seq):
    o_ref = refs[-1]
    params = refs[:-1]

    x = x_ref[...]                                  # (B*S, E) f32
    E = x.shape[-1]
    dh = E // n_heads

    for l in range(n_layers):
        (in_w, in_b, out_w, out_b, ln1_w, ln1_b,
         lin1_w, lin1_b, lin2_w, lin2_b, ln2_w, ln2_b) = params[12 * l:12 * (l + 1)]

        # Fused QKV projection: bf16 MXU inputs, f32 accumulation.
        xb = x.astype(jnp.bfloat16)
        qkv = jnp.dot(xb, in_w[...], preferred_element_type=jnp.float32) + in_b[...]
        # 1/sqrt(dh) already folded into the Q rows of in_w / in_b on the host.
        q = qkv[:, :E].astype(jnp.bfloat16)
        k = qkv[:, E:2 * E].astype(jnp.bfloat16)
        v = qkv[:, 2 * E:].astype(jnp.bfloat16)

        ow = out_w[...]                             # (E, E) bf16, loaded once

        # Per-batch / per-head attention (static loops; B*H is tiny).  Each head
        # accumulates straight into the E-wide output projection — no lane concat.
        attn_rows = []
        for b in range(batch):
            r0 = b * seq
            acc_b = jnp.zeros((seq, E), jnp.float32)
            for h in range(n_heads):
                c0 = h * dh
                qh = q[r0:r0 + seq, c0:c0 + dh]
                kh = k[r0:r0 + seq, c0:c0 + dh]
                vh = v[r0:r0 + seq, c0:c0 + dh]
                # scores = q @ k^T via dot_general (no explicit transpose materialized)
                s = jax.lax.dot_general(qh, kh, (((1,), (1,)), ((), ())),
                                        preferred_element_type=jnp.float32)
                s = s - jnp.max(s, axis=-1, keepdims=True)
                p = jnp.exp(s)
                p = p * pl.reciprocal(jnp.sum(p, axis=-1, keepdims=True), approx=True)
                oh = jnp.dot(p.astype(jnp.bfloat16), vh,
                             preferred_element_type=jnp.float32)            # (S, dh)
                acc_b = acc_b + jnp.dot(oh.astype(jnp.bfloat16), ow[c0:c0 + dh, :],
                                        preferred_element_type=jnp.float32)  # (S, E)
            attn_rows.append(acc_b)
        attn = jnp.concatenate(attn_rows, axis=0) + out_b[...]   # sublane concat only

        # Residual + LayerNorm 1 (post-norm, PyTorch default norm_first=False)
        x1 = _layer_norm(x + attn, ln1_w[...], ln1_b[...])

        # Feed-forward: Linear -> ReLU -> Linear
        h1 = jnp.dot(x1.astype(jnp.bfloat16), lin1_w[...],
                     preferred_element_type=jnp.float32) + lin1_b[...]
        h1 = jnp.maximum(h1, 0.0)
        ff = jnp.dot(h1.astype(jnp.bfloat16), lin2_w[...],
                     preferred_element_type=jnp.float32) + lin2_b[...]

        # Residual + LayerNorm 2
        x = _layer_norm(x1 + ff, ln2_w[...], ln2_b[...])

    # MLP head on encoder_out[:, 0, :]  == rows of batch index 0.
    w1, b1, w2p, b2p = params[12 * n_layers:]
    feat = x[:seq, :]                                             # (S, E)
    h = jnp.dot(feat.astype(jnp.bfloat16), w1[...],
                preferred_element_type=jnp.float32) + b1[...]
    h = jnp.maximum(h, 0.0)
    # Lane-dense (S, 128) output slab; the real scalar output lives in column 0.
    o_ref[...] = jnp.dot(h.astype(jnp.bfloat16), w2p[...],
                         preferred_element_type=jnp.float32) + b2p[...]


# ---------------------------------------------------------------------------
# Host-side parameter preparation (one-time transform):
#   transpose to x@W form, fold 1/sqrt(dh) into Q, cast matmul weights to bf16,
#   pad the head's w2/b2 to 128 lanes.
# ---------------------------------------------------------------------------
def prepare_params(params):
    layers = params["layers"]
    n_heads = params["n_heads"]
    E = layers[0]["in_w"].shape[1]
    dh = E // n_heads
    scale = 1.0 / math.sqrt(dh)
    q_scale = jnp.concatenate([jnp.full((E,), scale, jnp.float32),
                               jnp.ones((2 * E,), jnp.float32)])

    flat = []
    for lp in layers:
        in_w = lp["in_w"] * q_scale[:, None]     # fold 1/sqrt(dh) into Q rows
        in_b = lp["in_b"] * q_scale
        flat += [
            in_w.T.astype(jnp.bfloat16),          in_b[None, :].astype(jnp.float32),
            lp["out_w"].T.astype(jnp.bfloat16),   lp["out_b"][None, :].astype(jnp.float32),
            lp["ln1_w"][None, :].astype(jnp.float32), lp["ln1_b"][None, :].astype(jnp.float32),
            lp["lin1_w"].T.astype(jnp.bfloat16),  lp["lin1_b"][None, :].astype(jnp.float32),
            lp["lin2_w"].T.astype(jnp.bfloat16),  lp["lin2_b"][None, :].astype(jnp.float32),
            lp["ln2_w"][None, :].astype(jnp.float32), lp["ln2_b"][None, :].astype(jnp.float32),
        ]

    mp = params["mlp"]
    hidden = mp["w1"].shape[0]
    w2_pad = jnp.zeros((hidden, LANE_PAD), jnp.float32).at[:, 0].set(mp["w2"][0])
    b2_pad = jnp.zeros((1, LANE_PAD), jnp.float32).at[0, 0].set(mp["b2"][0])
    flat += [mp["w1"].T.astype(jnp.bfloat16), mp["b1"][None, :].astype(jnp.float32),
             w2_pad.astype(jnp.bfloat16), b2_pad]
    return flat


# ---------------------------------------------------------------------------
# Full forward (mirrors TransformerFlashAttention.forward)
# ---------------------------------------------------------------------------
def transformer_flash_attention_forward(x_sbe, params):
    # x_sbe: (S, B, E), PyTorch seq-first convention (batch_first=False).
    S, B, E = x_sbe.shape
    n_layers = len(params["layers"])
    n_heads = params["n_heads"]

    flat = prepare_params(params)
    x = jnp.transpose(x_sbe, (1, 0, 2)).reshape(B * S, E).astype(jnp.float32)

    args = (x, *flat)
    kernel = functools.partial(fused_transformer_kernel, n_layers=n_layers,
                               n_heads=n_heads, batch=B, seq=S)
    out_pad = pl.pallas_call(
        kernel,
        out_shape=jax.ShapeDtypeStruct((S, LANE_PAD), jnp.float32),
        grid=(1,),
        in_specs=[pl.BlockSpec(a.shape, lambda i, nd=a.ndim: (0,) * nd) for a in args],
        out_specs=pl.BlockSpec((S, LANE_PAD), lambda i: (0, 0)),
        compiler_params=pltpu.CompilerParams(
            dimension_semantics=("arbitrary",),
            vmem_limit_bytes=32 * 1024 * 1024),
    )(*args)
    return out_pad[:, :1]                                          # (S, 1)


# ---------------------------------------------------------------------------
# Deterministic parameter init (PyTorch-shaped weights)
# ---------------------------------------------------------------------------
def init_params(key, embed_dim, n_heads, num_layers, ff_dim, expansion_factor):
    def nrm(k, shape, scale=0.02):
        return (scale * jax.random.normal(k, shape)).astype(jnp.float32)

    keys = jax.random.split(key, num_layers + 2)
    layers = []
    for l in range(num_layers):
        ks = jax.random.split(keys[l], 12)
        layers.append(dict(
            in_w=nrm(ks[0], (3 * embed_dim, embed_dim)),   # MHA in_proj_weight
            in_b=nrm(ks[1], (3 * embed_dim,)),
            out_w=nrm(ks[2], (embed_dim, embed_dim)),      # MHA out_proj
            out_b=nrm(ks[3], (embed_dim,)),
            ln1_w=jnp.ones((embed_dim,), jnp.float32) + nrm(ks[4], (embed_dim,), 0.01),
            ln1_b=nrm(ks[5], (embed_dim,), 0.01),
            lin1_w=nrm(ks[6], (ff_dim, embed_dim)),        # FFN linear1
            lin1_b=nrm(ks[7], (ff_dim,)),
            lin2_w=nrm(ks[8], (embed_dim, ff_dim)),        # FFN linear2
            lin2_b=nrm(ks[9], (embed_dim,)),
            ln2_w=jnp.ones((embed_dim,), jnp.float32) + nrm(ks[10], (embed_dim,), 0.01),
            ln2_b=nrm(ks[11], (embed_dim,), 0.01),
        ))
    mk = jax.random.split(keys[num_layers], 4)
    hidden = embed_dim * expansion_factor
    mlp = dict(w1=nrm(mk[0], (hidden, embed_dim)), b1=nrm(mk[1], (hidden,)),
               w2=nrm(mk[2], (1, hidden)), b2=nrm(mk[3], (1,)))
    cls_token = nrm(keys[num_layers + 1], (1, 1, embed_dim))  # unused in forward
    return dict(layers=layers, mlp=mlp, cls_token=cls_token, n_heads=n_heads)


# ---------------------------------------------------------------------------
# Pure-JAX f32 reference (eval-mode PyTorch semantics) for a sanity check
# ---------------------------------------------------------------------------
def _ref_ln(x, w, b, eps=1e-5):
    mu = jnp.mean(x, axis=-1, keepdims=True)
    var = jnp.mean((x - mu) ** 2, axis=-1, keepdims=True)
    return (x - mu) * jax.lax.rsqrt(var + eps) * w + b


def _ref_layer(x, lp, H):
    B, S, E = x.shape
    dh = E // H
    qkv = x @ lp["in_w"].T + lp["in_b"]
    q, k, v = jnp.split(qkv, 3, axis=-1)
    sh = lambda t: t.reshape(B, S, H, dh).transpose(0, 2, 1, 3)
    q, k, v = sh(q), sh(k), sh(v)
    s = jnp.einsum("bhqd,bhkd->bhqk", q, k) / np.sqrt(dh)
    p = jax.nn.softmax(s, axis=-1)
    a = jnp.einsum("bhqk,bhkd->bhqd", p, v).transpose(0, 2, 1, 3).reshape(B, S, E)
    a = a @ lp["out_w"].T + lp["out_b"]
    x1 = _ref_ln(x + a, lp["ln1_w"], lp["ln1_b"])
    ff = jax.nn.relu(x1 @ lp["lin1_w"].T + lp["lin1_b"]) @ lp["lin2_w"].T + lp["lin2_b"]
    return _ref_ln(x1 + ff, lp["ln2_w"], lp["ln2_b"])


def reference_forward(x_sbe, params):
    x = jnp.transpose(x_sbe, (1, 0, 2))
    for lp in params["layers"]:
        x = _ref_layer(x, lp, params["n_heads"])
    feat = x[0]
    h = jax.nn.relu(feat @ params["mlp"]["w1"].T + params["mlp"]["b1"])
    return h @ params["mlp"]["w2"].T + params["mlp"]["b2"]


# ---------------------------------------------------------------------------
if __name__ == "__main__":
    # Small config consistent with the module (embed_dim % n_heads == 0).
    EMBED_DIM, N_HEADS, NUM_LAYERS, EXPANSION = 128, 4, 2, 4
    FF_DIM = 512          # transformer FFN width (scaled down from PyTorch's 2048 default)
    SEQ, BATCH = 8, 2

    key = jax.random.PRNGKey(0)
    pkey, xkey = jax.random.split(key)
    params = init_params(pkey, EMBED_DIM, N_HEADS, NUM_LAYERS, FF_DIM, EXPANSION)

    # Input follows PyTorch's default seq-first layout (S, B, E).
    x = jax.random.normal(xkey, (SEQ, BATCH, EMBED_DIM), dtype=jnp.float32)

    out = transformer_flash_attention_forward(x, params)
    out = jax.block_until_ready(out)
    assert out.shape == (SEQ, 1), out.shape

    ref = jax.block_until_ready(reference_forward(x, params))
    np.testing.assert_allclose(np.asarray(out), np.asarray(ref), rtol=5e-2, atol=5e-2)

    print("KERNEL_OK")
</pallas_src>

<mosaic_0001>
module attributes {stable_mosaic.version = 11 : i64} {
  func.func @fused_transformer_kernel(%arg0: i32, %arg1: memref<16x128xf32, #tpu.memory_space<vmem>>, %arg2: memref<128x384xbf16, #tpu.memory_space<vmem>>, %arg3: memref<1x384xf32, #tpu.memory_space<vmem>>, %arg4: memref<128x128xbf16, #tpu.memory_space<vmem>>, %arg5: memref<1x128xf32, #tpu.memory_space<vmem>>, %arg6: memref<1x128xf32, #tpu.memory_space<vmem>>, %arg7: memref<1x128xf32, #tpu.memory_space<vmem>>, %arg8: memref<128x512xbf16, #tpu.memory_space<vmem>>, %arg9: memref<1x512xf32, #tpu.memory_space<vmem>>, %arg10: memref<512x128xbf16, #tpu.memory_space<vmem>>, %arg11: memref<1x128xf32, #tpu.memory_space<vmem>>, %arg12: memref<1x128xf32, #tpu.memory_space<vmem>>, %arg13: memref<1x128xf32, #tpu.memory_space<vmem>>, %arg14: memref<128x384xbf16, #tpu.memory_space<vmem>>, %arg15: memref<1x384xf32, #tpu.memory_space<vmem>>, %arg16: memref<128x128xbf16, #tpu.memory_space<vmem>>, %arg17: memref<1x128xf32, #tpu.memory_space<vmem>>, %arg18: memref<1x128xf32, #tpu.memory_space<vmem>>, %arg19: memref<1x128xf32, #tpu.memory_space<vmem>>, %arg20: memref<128x512xbf16, #tpu.memory_space<vmem>>, %arg21: memref<1x512xf32, #tpu.memory_space<vmem>>, %arg22: memref<512x128xbf16, #tpu.memory_space<vmem>>, %arg23: memref<1x128xf32, #tpu.memory_space<vmem>>, %arg24: memref<1x128xf32, #tpu.memory_space<vmem>>, %arg25: memref<1x128xf32, #tpu.memory_space<vmem>>, %arg26: memref<128x512xbf16, #tpu.memory_space<vmem>>, %arg27: memref<1x512xf32, #tpu.memory_space<vmem>>, %arg28: memref<512x128xbf16, #tpu.memory_space<vmem>>, %arg29: memref<1x128xf32, #tpu.memory_space<vmem>>, %arg30: memref<8x128xf32, #tpu.memory_space<vmem>>) attributes {dimension_semantics = [#tpu.dimension_semantics<arbitrary>], iteration_bounds = array<i64: 1>, scalar_prefetch = 0 : i64, scratch_operands = 0 : i64, tpu.core_type = #tpu.core_type<tc>, window_params = [{pipeline_mode = #tpu.pipeline_mode<synchronous>, transform_indices = @transform_0, window_bounds = array<i64: 16, 128>}, {pipeline_mode = #tpu.pipeline_mode<synchronous>, transform_indices = @transform_1, window_bounds = array<i64: 128, 384>}, {pipeline_mode = #tpu.pipeline_mode<synchronous>, transform_indices = @transform_2, window_bounds = array<i64: 1, 384>}, {pipeline_mode = #tpu.pipeline_mode<synchronous>, transform_indices = @transform_3, window_bounds = array<i64: 128, 128>}, {pipeline_mode = #tpu.pipeline_mode<synchronous>, transform_indices = @transform_4, window_bounds = array<i64: 1, 128>}, {pipeline_mode = #tpu.pipeline_mode<synchronous>, transform_indices = @transform_5, window_bounds = array<i64: 1, 128>}, {pipeline_mode = #tpu.pipeline_mode<synchronous>, transform_indices = @transform_6, window_bounds = array<i64: 1, 128>}, {pipeline_mode = #tpu.pipeline_mode<synchronous>, transform_indices = @transform_7, window_bounds = array<i64: 128, 512>}, {pipeline_mode = #tpu.pipeline_mode<synchronous>, transform_indices = @transform_8, window_bounds = array<i64: 1, 512>}, {pipeline_mode = #tpu.pipeline_mode<synchronous>, transform_indices = @transform_9, window_bounds = array<i64: 512, 128>}, {pipeline_mode = #tpu.pipeline_mode<synchronous>, transform_indices = @transform_10, window_bounds = array<i64: 1, 128>}, {pipeline_mode = #tpu.pipeline_mode<synchronous>, transform_indices = @transform_11, window_bounds = array<i64: 1, 128>}, {pipeline_mode = #tpu.pipeline_mode<synchronous>, transform_indices = @transform_12, window_bounds = array<i64: 1, 128>}, {pipeline_mode = #tpu.pipeline_mode<synchronous>, transform_indices = @transform_13, window_bounds = array<i64: 128, 384>}, {pipeline_mode = #tpu.pipeline_mode<synchronous>, transform_indices = @transform_14, window_bounds = array<i64: 1, 384>}, {pipeline_mode = #tpu.pipeline_mode<synchronous>, transform_indices = @transform_15, window_bounds = array<i64: 128, 128>}, {pipeline_mode = #tpu.pipeline_mode<synchronous>, transform_indices = @transform_16, window_bounds = array<i64: 1, 128>}, {pipeline_mode = #tpu.pipeline_mode<synchronous>, transform_indices = @transform_17, window_bounds = array<i64: 1, 128>}, {pipeline_mode = #tpu.pipeline_mode<synchronous>, transform_indices = @transform_18, window_bounds = array<i64: 1, 128>}, {pipeline_mode = #tpu.pipeline_mode<synchronous>, transform_indices = @transform_19, window_bounds = array<i64: 128, 512>}, {pipeline_mode = #tpu.pipeline_mode<synchronous>, transform_indices = @transform_20, window_bounds = array<i64: 1, 512>}, {pipeline_mode = #tpu.pipeline_mode<synchronous>, transform_indices = @transform_21, window_bounds = array<i64: 512, 128>}, {pipeline_mode = #tpu.pipeline_mode<synchronous>, transform_indices = @transform_22, window_bounds = array<i64: 1, 128>}, {pipeline_mode = #tpu.pipeline_mode<synchronous>, transform_indices = @transform_23, window_bounds = array<i64: 1, 128>}, {pipeline_mode = #tpu.pipeline_mode<synchronous>, transform_indices = @transform_24, window_bounds = array<i64: 1, 128>}, {pipeline_mode = #tpu.pipeline_mode<synchronous>, transform_indices = @transform_25, window_bounds = array<i64: 128, 512>}, {pipeline_mode = #tpu.pipeline_mode<synchronous>, transform_indices = @transform_26, window_bounds = array<i64: 1, 512>}, {pipeline_mode = #tpu.pipeline_mode<synchronous>, transform_indices = @transform_27, window_bounds = array<i64: 512, 128>}, {pipeline_mode = #tpu.pipeline_mode<synchronous>, transform_indices = @transform_28, window_bounds = array<i64: 1, 128>}, {pipeline_mode = #tpu.pipeline_mode<synchronous>, transform_indices = @transform_29, window_bounds = array<i64: 8, 128>}]} {
    %c0 = arith.constant 0 : index
    %c0_0 = arith.constant 0 : index
    %0 = vector.load %arg1[%c0, %c0_0] : memref<16x128xf32, #tpu.memory_space<vmem>>, vector<16x128xf32>
    %1 = arith.truncf %0 : vector<16x128xf32> to vector<16x128xbf16>
    %c0_1 = arith.constant 0 : index
    %c0_2 = arith.constant 0 : index
    %2 = vector.load %arg2[%c0_1, %c0_2] : memref<128x384xbf16, #tpu.memory_space<vmem>>, vector<128x384xbf16>
    %cst = arith.constant dense<0.000000e+00> : vector<16x384xf32>
    %3 = tpu.matmul %1, %2, %cst {dimension_numbers = #tpu.dot_dimension_numbers<[1], [0], [0], [1], [0, 0, 1, 1], [], []>} : vector<16x128xbf16>, vector<128x384xbf16>, vector<16x384xf32> -> vector<16x384xf32>
    %c0_3 = arith.constant 0 : index
    %c0_4 = arith.constant 0 : index
    %4 = vector.load %arg3[%c0_3, %c0_4] : memref<1x384xf32, #tpu.memory_space<vmem>>, vector<1x384xf32>
    %5 = vector.broadcast %4 : vector<1x384xf32> to vector<16x384xf32>
    %6 = arith.addf %3, %5 : vector<16x384xf32>
    %7 = vector.extract_strided_slice %6 {offsets = [0, 0], sizes = [16, 128], strides = [1, 1]} : vector<16x384xf32> to vector<16x128xf32>
    %8 = arith.truncf %7 : vector<16x128xf32> to vector<16x128xbf16>
    %9 = vector.extract_strided_slice %6 {offsets = [0, 128], sizes = [16, 128], strides = [1, 1]} : vector<16x384xf32> to vector<16x128xf32>
    %10 = arith.truncf %9 : vector<16x128xf32> to vector<16x128xbf16>
    %11 = vector.extract_strided_slice %6 {offsets = [0, 256], sizes = [16, 128], strides = [1, 1]} : vector<16x384xf32> to vector<16x128xf32>
    %12 = arith.truncf %11 : vector<16x128xf32> to vector<16x128xbf16>
    %c0_5 = arith.constant 0 : index
    %c0_6 = arith.constant 0 : index
    %13 = vector.load %arg4[%c0_5, %c0_6] : memref<128x128xbf16, #tpu.memory_space<vmem>>, vector<128x128xbf16>
    %cst_7 = arith.constant 0.000000e+00 : f32
    %14 = vector.broadcast %cst_7 : f32 to vector<8x128xf32>
    %15 = vector.extract_strided_slice %8 {offsets = [0, 0], sizes = [8, 32], strides = [1, 1]} : vector<16x128xbf16> to vector<8x32xbf16>
    %16 = vector.extract_strided_slice %10 {offsets = [0, 0], sizes = [8, 32], strides = [1, 1]} : vector<16x128xbf16> to vector<8x32xbf16>
    %17 = vector.extract_strided_slice %12 {offsets = [0, 0], sizes = [8, 32], strides = [1, 1]} : vector<16x128xbf16> to vector<8x32xbf16>
    %cst_8 = arith.constant dense<0.000000e+00> : vector<8x8xf32>
    %18 = tpu.matmul %15, %16, %cst_8 {dimension_numbers = #tpu.dot_dimension_numbers<[1], [1], [0], [0], [0, 0, 1, 0], [], []>} : vector<8x32xbf16>, vector<8x32xbf16>, vector<8x8xf32> -> vector<8x8xf32>
    %cst_9 = arith.constant dense<0xFF800000> : vector<8xf32>
    %19 = vector.multi_reduction <maximumf>, %18, %cst_9 [1] : vector<8x8xf32> to vector<8xf32>
    %20 = vector.shape_cast %19 : vector<8xf32> to vector<8x1xf32>
    %21 = vector.broadcast %20 : vector<8x1xf32> to vector<8x8xf32>
    %22 = arith.subf %18, %21 : vector<8x8xf32>
    %23 = math.exp %22 : vector<8x8xf32>
    %cst_10 = arith.constant dense<0.000000e+00> : vector<8xf32>
    %24 = vector.multi_reduction <add>, %23, %cst_10 [1] : vector<8x8xf32> to vector<8xf32>
    %25 = vector.shape_cast %24 : vector<8xf32> to vector<8x1xf32>
    %26 = tpu.reciprocal %25 {approx = true} : vector<8x1xf32> -> vector<8x1xf32>
    %27 = vector.broadcast %26 : vector<8x1xf32> to vector<8x8xf32>
    %28 = arith.mulf %23, %27 : vector<8x8xf32>
    %29 = arith.truncf %28 : vector<8x8xf32> to vector<8x8xbf16>
    %cst_11 = arith.constant dense<0.000000e+00> : vector<8x32xf32>
    %30 = tpu.matmul %29, %17, %cst_11 {dimension_numbers = #tpu.dot_dimension_numbers<[1], [0], [0], [1], [0, 0, 1, 1], [], []>} : vector<8x8xbf16>, vector<8x32xbf16>, vector<8x32xf32> -> vector<8x32xf32>
    %31 = arith.truncf %30 : vector<8x32xf32> to vector<8x32xbf16>
    %32 = vector.extract_strided_slice %13 {offsets = [0, 0], sizes = [32, 128], strides = [1, 1]} : vector<128x128xbf16> to vector<32x128xbf16>
    %cst_12 = arith.constant dense<0.000000e+00> : vector<8x128xf32>
    %33 = tpu.matmul %31, %32, %cst_12 {dimension_numbers = #tpu.dot_dimension_numbers<[1], [0], [0], [1], [0, 0, 1, 1], [], []>} : vector<8x32xbf16>, vector<32x128xbf16>, vector<8x128xf32> -> vector<8x128xf32>
    %34 = arith.addf %14, %33 : vector<8x128xf32>
    %35 = vector.extract_strided_slice %8 {offsets = [0, 32], sizes = [8, 32], strides = [1, 1]} : vector<16x128xbf16> to vector<8x32xbf16>
    %36 = vector.extract_strided_slice %10 {offsets = [0, 32], sizes = [8, 32], strides = [1, 1]} : vector<16x128xbf16> to vector<8x32xbf16>
    %37 = vector.extract_strided_slice %12 {offsets = [0, 32], sizes = [8, 32], strides = [1, 1]} : vector<16x128xbf16> to vector<8x32xbf16>
    %cst_13 = arith.constant dense<0.000000e+00> : vector<8x8xf32>
    %38 = tpu.matmul %35, %36, %cst_13 {dimension_numbers = #tpu.dot_dimension_numbers<[1], [1], [0], [0], [0, 0, 1, 0], [], []>} : vector<8x32xbf16>, vector<8x32xbf16>, vector<8x8xf32> -> vector<8x8xf32>
    %cst_14 = arith.constant dense<0xFF800000> : vector<8xf32>
    %39 = vector.multi_reduction <maximumf>, %38, %cst_14 [1] : vector<8x8xf32> to vector<8xf32>
    %40 = vector.shape_cast %39 : vector<8xf32> to vector<8x1xf32>
    %41 = vector.broadcast %40 : vector<8x1xf32> to vector<8x8xf32>
    %42 = arith.subf %38, %41 : vector<8x8xf32>
    %43 = math.exp %42 : vector<8x8xf32>
    %cst_15 = arith.constant dense<0.000000e+00> : vector<8xf32>
    %44 = vector.multi_reduction <add>, %43, %cst_15 [1] : vector<8x8xf32> to vector<8xf32>
    %45 = vector.shape_cast %44 : vector<8xf32> to vector<8x1xf32>
    %46 = tpu.reciprocal %45 {approx = true} : vector<8x1xf32> -> vector<8x1xf32>
    %47 = vector.broadcast %46 : vector<8x1xf32> to vector<8x8xf32>
    %48 = arith.mulf %43, %47 : vector<8x8xf32>
    %49 = arith.truncf %48 : vector<8x8xf32> to vector<8x8xbf16>
    %cst_16 = arith.constant dense<0.000000e+00> : vector<8x32xf32>
    %50 = tpu.matmul %49, %37, %cst_16 {dimension_numbers = #tpu.dot_dimension_numbers<[1], [0], [0], [1], [0, 0, 1, 1], [], []>} : vector<8x8xbf16>, vector<8x32xbf16>, vector<8x32xf32> -> vector<8x32xf32>
    %51 = arith.truncf %50 : vector<8x32xf32> to vector<8x32xbf16>
    %52 = vector.extract_strided_slice %13 {offsets = [32, 0], sizes = [32, 128], strides = [1, 1]} : vector<128x128xbf16> to vector<32x128xbf16>
    %cst_17 = arith.constant dense<0.000000e+00> : vector<8x128xf32>
    %53 = tpu.matmul %51, %52, %cst_17 {dimension_numbers = #tpu.dot_dimension_numbers<[1], [0], [0], [1], [0, 0, 1, 1], [], []>} : vector<8x32xbf16>, vector<32x128xbf16>, vector<8x128xf32> -> vector<8x128xf32>
    %54 = arith.addf %34, %53 : vector<8x128xf32>
    %55 = vector.extract_strided_slice %8 {offsets = [0, 64], sizes = [8, 32], strides = [1, 1]} : vector<16x128xbf16> to vector<8x32xbf16>
    %56 = vector.extract_strided_slice %10 {offsets = [0, 64], sizes = [8, 32], strides = [1, 1]} : vector<16x128xbf16> to vector<8x32xbf16>
    %57 = vector.extract_strided_slice %12 {offsets = [0, 64], sizes = [8, 32], strides = [1, 1]} : vector<16x128xbf16> to vector<8x32xbf16>
    %cst_18 = arith.constant dense<0.000000e+00> : vector<8x8xf32>
    %58 = tpu.matmul %55, %56, %cst_18 {dimension_numbers = #tpu.dot_dimension_numbers<[1], [1], [0], [0], [0, 0, 1, 0], [], []>} : vector<8x32xbf16>, vector<8x32xbf16>, vector<8x8xf32> -> vector<8x8xf32>
    %cst_19 = arith.constant dense<0xFF800000> : vector<8xf32>
    %59 = vector.multi_reduction <maximumf>, %58, %cst_19 [1] : vector<8x8xf32> to vector<8xf32>
    %60 = vector.shape_cast %59 : vector<8xf32> to vector<8x1xf32>
    %61 = vector.broadcast %60 : vector<8x1xf32> to vector<8x8xf32>
    %62 = arith.subf %58, %61 : vector<8x8xf32>
    %63 = math.exp %62 : vector<8x8xf32>
    %cst_20 = arith.constant dense<0.000000e+00> : vector<8xf32>
    %64 = vector.multi_reduction <add>, %63, %cst_20 [1] : vector<8x8xf32> to vector<8xf32>
    %65 = vector.shape_cast %64 : vector<8xf32> to vector<8x1xf32>
    %66 = tpu.reciprocal %65 {approx = true} : vector<8x1xf32> -> vector<8x1xf32>
    %67 = vector.broadcast %66 : vector<8x1xf32> to vector<8x8xf32>
    %68 = arith.mulf %63, %67 : vector<8x8xf32>
    %69 = arith.truncf %68 : vector<8x8xf32> to vector<8x8xbf16>
    %cst_21 = arith.constant dense<0.000000e+00> : vector<8x32xf32>
    %70 = tpu.matmul %69, %57, %cst_21 {dimension_numbers = #tpu.dot_dimension_numbers<[1], [0], [0], [1], [0, 0, 1, 1], [], []>} : vector<8x8xbf16>, vector<8x32xbf16>, vector<8x32xf32> -> vector<8x32xf32>
    %71 = arith.truncf %70 : vector<8x32xf32> to vector<8x32xbf16>
    %72 = vector.extract_strided_slice %13 {offsets = [64, 0], sizes = [32, 128], strides = [1, 1]} : vector<128x128xbf16> to vector<32x128xbf16>
    %cst_22 = arith.constant dense<0.000000e+00> : vector<8x128xf32>
    %73 = tpu.matmul %71, %72, %cst_22 {dimension_numbers = #tpu.dot_dimension_numbers<[1], [0], [0], [1], [0, 0, 1, 1], [], []>} : vector<8x32xbf16>, vector<32x128xbf16>, vector<8x128xf32> -> vector<8x128xf32>
    %74 = arith.addf %54, %73 : vector<8x128xf32>
    %75 = vector.extract_strided_slice %8 {offsets = [0, 96], sizes = [8, 32], strides = [1, 1]} : vector<16x128xbf16> to vector<8x32xbf16>
    %76 = vector.extract_strided_slice %10 {offsets = [0, 96], sizes = [8, 32], strides = [1, 1]} : vector<16x128xbf16> to vector<8x32xbf16>
    %77 = vector.extract_strided_slice %12 {offsets = [0, 96], sizes = [8, 32], strides = [1, 1]} : vector<16x128xbf16> to vector<8x32xbf16>
    %cst_23 = arith.constant dense<0.000000e+00> : vector<8x8xf32>
    %78 = tpu.matmul %75, %76, %cst_23 {dimension_numbers = #tpu.dot_dimension_numbers<[1], [1], [0], [0], [0, 0, 1, 0], [], []>} : vector<8x32xbf16>, vector<8x32xbf16>, vector<8x8xf32> -> vector<8x8xf32>
    %cst_24 = arith.constant dense<0xFF800000> : vector<8xf32>
    %79 = vector.multi_reduction <maximumf>, %78, %cst_24 [1] : vector<8x8xf32> to vector<8xf32>
    %80 = vector.shape_cast %79 : vector<8xf32> to vector<8x1xf32>
    %81 = vector.broadcast %80 : vector<8x1xf32> to vector<8x8xf32>
    %82 = arith.subf %78, %81 : vector<8x8xf32>
    %83 = math.exp %82 : vector<8x8xf32>
    %cst_25 = arith.constant dense<0.000000e+00> : vector<8xf32>
    %84 = vector.multi_reduction <add>, %83, %cst_25 [1] : vector<8x8xf32> to vector<8xf32>
    %85 = vector.shape_cast %84 : vector<8xf32> to vector<8x1xf32>
    %86 = tpu.reciprocal %85 {approx = true} : vector<8x1xf32> -> vector<8x1xf32>
    %87 = vector.broadcast %86 : vector<8x1xf32> to vector<8x8xf32>
    %88 = arith.mulf %83, %87 : vector<8x8xf32>
    %89 = arith.truncf %88 : vector<8x8xf32> to vector<8x8xbf16>
    %cst_26 = arith.constant dense<0.000000e+00> : vector<8x32xf32>
    %90 = tpu.matmul %89, %77, %cst_26 {dimension_numbers = #tpu.dot_dimension_numbers<[1], [0], [0], [1], [0, 0, 1, 1], [], []>} : vector<8x8xbf16>, vector<8x32xbf16>, vector<8x32xf32> -> vector<8x32xf32>
    %91 = arith.truncf %90 : vector<8x32xf32> to vector<8x32xbf16>
    %92 = vector.extract_strided_slice %13 {offsets = [96, 0], sizes = [32, 128], strides = [1, 1]} : vector<128x128xbf16> to vector<32x128xbf16>
    %cst_27 = arith.constant dense<0.000000e+00> : vector<8x128xf32>
    %93 = tpu.matmul %91, %92, %cst_27 {dimension_numbers = #tpu.dot_dimension_numbers<[1], [0], [0], [1], [0, 0, 1, 1], [], []>} : vector<8x32xbf16>, vector<32x128xbf16>, vector<8x128xf32> -> vector<8x128xf32>
    %94 = arith.addf %74, %93 : vector<8x128xf32>
    %cst_28 = arith.constant 0.000000e+00 : f32
    %95 = vector.broadcast %cst_28 : f32 to vector<8x128xf32>
    %96 = vector.extract_strided_slice %8 {offsets = [8, 0], sizes = [8, 32], strides = [1, 1]} : vector<16x128xbf16> to vector<8x32xbf16>
    %97 = vector.extract_strided_slice %10 {offsets = [8, 0], sizes = [8, 32], strides = [1, 1]} : vector<16x128xbf16> to vector<8x32xbf16>
    %98 = vector.extract_strided_slice %12 {offsets = [8, 0], sizes = [8, 32], strides = [1, 1]} : vector<16x128xbf16> to vector<8x32xbf16>
    %cst_29 = arith.constant dense<0.000000e+00> : vector<8x8xf32>
    %99 = tpu.matmul %96, %97, %cst_29 {dimension_numbers = #tpu.dot_dimension_numbers<[1], [1], [0], [0], [0, 0, 1, 0], [], []>} : vector<8x32xbf16>, vector<8x32xbf16>, vector<8x8xf32> -> vector<8x8xf32>
    %cst_30 = arith.constant dense<0xFF800000> : vector<8xf32>
    %100 = vector.multi_reduction <maximumf>, %99, %cst_30 [1] : vector<8x8xf32> to vector<8xf32>
    %101 = vector.shape_cast %100 : vector<8xf32> to vector<8x1xf32>
    %102 = vector.broadcast %101 : vector<8x1xf32> to vector<8x8xf32>
    %103 = arith.subf %99, %102 : vector<8x8xf32>
    %104 = math.exp %103 : vector<8x8xf32>
    %cst_31 = arith.constant dense<0.000000e+00> : vector<8xf32>
    %105 = vector.multi_reduction <add>, %104, %cst_31 [1] : vector<8x8xf32> to vector<8xf32>
    %106 = vector.shape_cast %105 : vector<8xf32> to vector<8x1xf32>
    %107 = tpu.reciprocal %106 {approx = true} : vector<8x1xf32> -> vector<8x1xf32>
    %108 = vector.broadcast %107 : vector<8x1xf32> to vector<8x8xf32>
    %109 = arith.mulf %104, %108 : vector<8x8xf32>
    %110 = arith.truncf %109 : vector<8x8xf32> to vector<8x8xbf16>
    %cst_32 = arith.constant dense<0.000000e+00> : vector<8x32xf32>
    %111 = tpu.matmul %110, %98, %cst_32 {dimension_numbers = #tpu.dot_dimension_numbers<[1], [0], [0], [1], [0, 0, 1, 1], [], []>} : vector<8x8xbf16>, vector<8x32xbf16>, vector<8x32xf32> -> vector<8x32xf32>
    %112 = arith.truncf %111 : vector<8x32xf32> to vector<8x32xbf16>
    %113 = vector.extract_strided_slice %13 {offsets = [0, 0], sizes = [32, 128], strides = [1, 1]} : vector<128x128xbf16> to vector<32x128xbf16>
    %cst_33 = arith.constant dense<0.000000e+00> : vector<8x128xf32>
    %114 = tpu.matmul %112, %113, %cst_33 {dimension_numbers = #tpu.dot_dimension_numbers<[1], [0], [0], [1], [0, 0, 1, 1], [], []>} : vector<8x32xbf16>, vector<32x128xbf16>, vector<8x128xf32> -> vector<8x128xf32>
    %115 = arith.addf %95, %114 : vector<8x128xf32>
    %116 = vector.extract_strided_slice %8 {offsets = [8, 32], sizes = [8, 32], strides = [1, 1]} : vector<16x128xbf16> to vector<8x32xbf16>
    %117 = vector.extract_strided_slice %10 {offsets = [8, 32], sizes = [8, 32], strides = [1, 1]} : vector<16x128xbf16> to vector<8x32xbf16>
    %118 = vector.extract_strided_slice %12 {offsets = [8, 32], sizes = [8, 32], strides = [1, 1]} : vector<16x128xbf16> to vector<8x32xbf16>
    %cst_34 = arith.constant dense<0.000000e+00> : vector<8x8xf32>
    %119 = tpu.matmul %116, %117, %cst_34 {dimension_numbers = #tpu.dot_dimension_numbers<[1], [1], [0], [0], [0, 0, 1, 0], [], []>} : vector<8x32xbf16>, vector<8x32xbf16>, vector<8x8xf32> -> vector<8x8xf32>
    %cst_35 = arith.constant dense<0xFF800000> : vector<8xf32>
    %120 = vector.multi_reduction <maximumf>, %119, %cst_35 [1] : vector<8x8xf32> to vector<8xf32>
    %121 = vector.shape_cast %120 : vector<8xf32> to vector<8x1xf32>
    %122 = vector.broadcast %121 : vector<8x1xf32> to vector<8x8xf32>
    %123 = arith.subf %119, %122 : vector<8x8xf32>
    %124 = math.exp %123 : vector<8x8xf32>
    %cst_36 = arith.constant dense<0.000000e+00> : vector<8xf32>
    %125 = vector.multi_reduction <add>, %124, %cst_36 [1] : vector<8x8xf32> to vector<8xf32>
    %126 = vector.shape_cast %125 : vector<8xf32> to vector<8x1xf32>
    %127 = tpu.reciprocal %126 {approx = true} : vector<8x1xf32> -> vector<8x1xf32>
    %128 = vector.broadcast %127 : vector<8x1xf32> to vector<8x8xf32>
    %129 = arith.mulf %124, %128 : vector<8x8xf32>
    %130 = arith.truncf %129 : vector<8x8xf32> to vector<8x8xbf16>
    %cst_37 = arith.constant dense<0.000000e+00> : vector<8x32xf32>
    %131 = tpu.matmul %130, %118, %cst_37 {dimension_numbers = #tpu.dot_dimension_numbers<[1], [0], [0], [1], [0, 0, 1, 1], [], []>} : vector<8x8xbf16>, vector<8x32xbf16>, vector<8x32xf32> -> vector<8x32xf32>
    %132 = arith.truncf %131 : vector<8x32xf32> to vector<8x32xbf16>
    %133 = vector.extract_strided_slice %13 {offsets = [32, 0], sizes = [32, 128], strides = [1, 1]} : vector<128x128xbf16> to vector<32x128xbf16>
    %cst_38 = arith.constant dense<0.000000e+00> : vector<8x128xf32>
    %134 = tpu.matmul %132, %133, %cst_38 {dimension_numbers = #tpu.dot_dimension_numbers<[1], [0], [0], [1], [0, 0, 1, 1], [], []>} : vector<8x32xbf16>, vector<32x128xbf16>, vector<8x128xf32> -> vector<8x128xf32>
    %135 = arith.addf %115, %134 : vector<8x128xf32>
    %136 = vector.extract_strided_slice %8 {offsets = [8, 64], sizes = [8, 32], strides = [1, 1]} : vector<16x128xbf16> to vector<8x32xbf16>
    %137 = vector.extract_strided_slice %10 {offsets = [8, 64], sizes = [8, 32], strides = [1, 1]} : vector<16x128xbf16> to vector<8x32xbf16>
    %138 = vector.extract_strided_slice %12 {offsets = [8, 64], sizes = [8, 32], strides = [1, 1]} : vector<16x128xbf16> to vector<8x32xbf16>
    %cst_39 = arith.constant dense<0.000000e+00> : vector<8x8xf32>
    %139 = tpu.matmul %136, %137, %cst_39 {dimension_numbers = #tpu.dot_dimension_numbers<[1], [1], [0], [0], [0, 0, 1, 0], [], []>} : vector<8x32xbf16>, vector<8x32xbf16>, vector<8x8xf32> -> vector<8x8xf32>
    %cst_40 = arith.constant dense<0xFF800000> : vector<8xf32>
    %140 = vector.multi_reduction <maximumf>, %139, %cst_40 [1] : vector<8x8xf32> to vector<8xf32>
    %141 = vector.shape_cast %140 : vector<8xf32> to vector<8x1xf32>
    %142 = vector.broadcast %141 : vector<8x1xf32> to vector<8x8xf32>
    %143 = arith.subf %139, %142 : vector<8x8xf32>
    %144 = math.exp %143 : vector<8x8xf32>
    %cst_41 = arith.constant dense<0.000000e+00> : vector<8xf32>
    %145 = vector.multi_reduction <add>, %144, %cst_41 [1] : vector<8x8xf32> to vector<8xf32>
    %146 = vector.shape_cast %145 : vector<8xf32> to vector<8x1xf32>
    %147 = tpu.reciprocal %146 {approx = true} : vector<8x1xf32> -> vector<8x1xf32>
    %148 = vector.broadcast %147 : vector<8x1xf32> to vector<8x8xf32>
    %149 = arith.mulf %144, %148 : vector<8x8xf32>
    %150 = arith.truncf %149 : vector<8x8xf32> to vector<8x8xbf16>
    %cst_42 = arith.constant dense<0.000000e+00> : vector<8x32xf32>
    %151 = tpu.matmul %150, %138, %cst_42 {dimension_numbers = #tpu.dot_dimension_numbers<[1], [0], [0], [1], [0, 0, 1, 1], [], []>} : vector<8x8xbf16>, vector<8x32xbf16>, vector<8x32xf32> -> vector<8x32xf32>
    %152 = arith.truncf %151 : vector<8x32xf32> to vector<8x32xbf16>
    %153 = vector.extract_strided_slice %13 {offsets = [64, 0], sizes = [32, 128], strides = [1, 1]} : vector<128x128xbf16> to vector<32x128xbf16>
    %cst_43 = arith.constant dense<0.000000e+00> : vector<8x128xf32>
    %154 = tpu.matmul %152, %153, %cst_43 {dimension_numbers = #tpu.dot_dimension_numbers<[1], [0], [0], [1], [0, 0, 1, 1], [], []>} : vector<8x32xbf16>, vector<32x128xbf16>, vector<8x128xf32> -> vector<8x128xf32>
    %155 = arith.addf %135, %154 : vector<8x128xf32>
    %156 = vector.extract_strided_slice %8 {offsets = [8, 96], sizes = [8, 32], strides = [1, 1]} : vector<16x128xbf16> to vector<8x32xbf16>
    %157 = vector.extract_strided_slice %10 {offsets = [8, 96], sizes = [8, 32], strides = [1, 1]} : vector<16x128xbf16> to vector<8x32xbf16>
    %158 = vector.extract_strided_slice %12 {offsets = [8, 96], sizes = [8, 32], strides = [1, 1]} : vector<16x128xbf16> to vector<8x32xbf16>
    %cst_44 = arith.constant dense<0.000000e+00> : vector<8x8xf32>
    %159 = tpu.matmul %156, %157, %cst_44 {dimension_numbers = #tpu.dot_dimension_numbers<[1], [1], [0], [0], [0, 0, 1, 0], [], []>} : vector<8x32xbf16>, vector<8x32xbf16>, vector<8x8xf32> -> vector<8x8xf32>
    %cst_45 = arith.constant dense<0xFF800000> : vector<8xf32>
    %160 = vector.multi_reduction <maximumf>, %159, %cst_45 [1] : vector<8x8xf32> to vector<8xf32>
    %161 = vector.shape_cast %160 : vector<8xf32> to vector<8x1xf32>
    %162 = vector.broadcast %161 : vector<8x1xf32> to vector<8x8xf32>
    %163 = arith.subf %159, %162 : vector<8x8xf32>
    %164 = math.exp %163 : vector<8x8xf32>
    %cst_46 = arith.constant dense<0.000000e+00> : vector<8xf32>
    %165 = vector.multi_reduction <add>, %164, %cst_46 [1] : vector<8x8xf32> to vector<8xf32>
    %166 = vector.shape_cast %165 : vector<8xf32> to vector<8x1xf32>
    %167 = tpu.reciprocal %166 {approx = true} : vector<8x1xf32> -> vector<8x1xf32>
    %168 = vector.broadcast %167 : vector<8x1xf32> to vector<8x8xf32>
    %169 = arith.mulf %164, %168 : vector<8x8xf32>
    %170 = arith.truncf %169 : vector<8x8xf32> to vector<8x8xbf16>
    %cst_47 = arith.constant dense<0.000000e+00> : vector<8x32xf32>
    %171 = tpu.matmul %170, %158, %cst_47 {dimension_numbers = #tpu.dot_dimension_numbers<[1], [0], [0], [1], [0, 0, 1, 1], [], []>} : vector<8x8xbf16>, vector<8x32xbf16>, vector<8x32xf32> -> vector<8x32xf32>
    %172 = arith.truncf %171 : vector<8x32xf32> to vector<8x32xbf16>
    %173 = vector.extract_strided_slice %13 {offsets = [96, 0], sizes = [32, 128], strides = [1, 1]} : vector<128x128xbf16> to vector<32x128xbf16>
    %cst_48 = arith.constant dense<0.000000e+00> : vector<8x128xf32>
    %174 = tpu.matmul %172, %173, %cst_48 {dimension_numbers = #tpu.dot_dimension_numbers<[1], [0], [0], [1], [0, 0, 1, 1], [], []>} : vector<8x32xbf16>, vector<32x128xbf16>, vector<8x128xf32> -> vector<8x128xf32>
    %175 = arith.addf %155, %174 : vector<8x128xf32>
    %176 = tpu.concatenate %94, %175 in 0 : vector<8x128xf32>, vector<8x128xf32> -> vector<16x128xf32>
    %c0_49 = arith.constant 0 : index
    %c0_50 = arith.constant 0 : index
    %177 = vector.load %arg5[%c0_49, %c0_50] : memref<1x128xf32, #tpu.memory_space<vmem>>, vector<1x128xf32>
    %178 = vector.broadcast %177 : vector<1x128xf32> to vector<16x128xf32>
    %179 = arith.addf %176, %178 : vector<16x128xf32>
    %180 = arith.addf %0, %179 : vector<16x128xf32>
    %c0_51 = arith.constant 0 : index
    %c0_52 = arith.constant 0 : index
    %181 = vector.load %arg6[%c0_51, %c0_52] : memref<1x128xf32, #tpu.memory_space<vmem>>, vector<1x128xf32>
    %c0_53 = arith.constant 0 : index
    %c0_54 = arith.constant 0 : index
    %182 = vector.load %arg7[%c0_53, %c0_54] : memref<1x128xf32, #tpu.memory_space<vmem>>, vector<1x128xf32>
    %cst_55 = arith.constant dense<0.000000e+00> : vector<16xf32>
    %183 = vector.multi_reduction <add>, %180, %cst_55 [1] : vector<16x128xf32> to vector<16xf32>
    %184 = vector.shape_cast %183 : vector<16xf32> to vector<16x1xf32>
    %cst_56 = arith.constant 1.280000e+02 : f32
    %185 = vector.broadcast %cst_56 : f32 to vector<16x1xf32>
    %186 = arith.divf %184, %185 : vector<16x1xf32>
    %187 = vector.broadcast %186 : vector<16x1xf32> to vector<16x128xf32>
    %188 = arith.subf %180, %187 : vector<16x128xf32>
    %189 = arith.mulf %188, %188 : vector<16x128xf32>
    %cst_57 = arith.constant dense<0.000000e+00> : vector<16xf32>
    %190 = vector.multi_reduction <add>, %189, %cst_57 [1] : vector<16x128xf32> to vector<16xf32>
    %191 = vector.shape_cast %190 : vector<16xf32> to vector<16x1xf32>
    %cst_58 = arith.constant 1.280000e+02 : f32
    %192 = vector.broadcast %cst_58 : f32 to vector<16x1xf32>
    %193 = arith.divf %191, %192 : vector<16x1xf32>
    %194 = vector.broadcast %186 : vector<16x1xf32> to vector<16x128xf32>
    %195 = arith.subf %180, %194 : vector<16x128xf32>
    %cst_59 = arith.constant 9.99999974E-6 : f32
    %196 = vector.broadcast %cst_59 : f32 to vector<16x1xf32>
    %197 = arith.addf %193, %196 : vector<16x1xf32>
    %198 = math.rsqrt %197 : vector<16x1xf32>
    %199 = vector.broadcast %198 : vector<16x1xf32> to vector<16x128xf32>
    %200 = arith.mulf %195, %199 : vector<16x128xf32>
    %201 = vector.broadcast %181 : vector<1x128xf32> to vector<16x128xf32>
    %202 = arith.mulf %200, %201 : vector<16x128xf32>
    %203 = vector.broadcast %182 : vector<1x128xf32> to vector<16x128xf32>
    %204 = arith.addf %202, %203 : vector<16x128xf32>
    %205 = arith.truncf %204 : vector<16x128xf32> to vector<16x128xbf16>
    %c0_60 = arith.constant 0 : index
    %c0_61 = arith.constant 0 : index
    %206 = vector.load %arg8[%c0_60, %c0_61] : memref<128x512xbf16, #tpu.memory_space<vmem>>, vector<128x512xbf16>
    %cst_62 = arith.constant dense<0.000000e+00> : vector<16x512xf32>
    %207 = tpu.matmul %205, %206, %cst_62 {dimension_numbers = #tpu.dot_dimension_numbers<[1], [0], [0], [1], [0, 0, 1, 1], [], []>} : vector<16x128xbf16>, vector<128x512xbf16>, vector<16x512xf32> -> vector<16x512xf32>
    %c0_63 = arith.constant 0 : index
    %c0_64 = arith.constant 0 : index
    %208 = vector.load %arg9[%c0_63, %c0_64] : memref<1x512xf32, #tpu.memory_space<vmem>>, vector<1x512xf32>
    %209 = vector.broadcast %208 : vector<1x512xf32> to vector<16x512xf32>
    %210 = arith.addf %207, %209 : vector<16x512xf32>
    %cst_65 = arith.constant 0.000000e+00 : f32
    %211 = vector.broadcast %cst_65 : f32 to vector<16x512xf32>
    %212 = arith.maximumf %210, %211 : vector<16x512xf32>
    %213 = arith.truncf %212 : vector<16x512xf32> to vector<16x512xbf16>
    %c0_66 = arith.constant 0 : index
    %c0_67 = arith.constant 0 : index
    %214 = vector.load %arg10[%c0_66, %c0_67] : memref<512x128xbf16, #tpu.memory_space<vmem>>, vector<512x128xbf16>
    %cst_68 = arith.constant dense<0.000000e+00> : vector<16x128xf32>
    %215 = tpu.matmul %213, %214, %cst_68 {dimension_numbers = #tpu.dot_dimension_numbers<[1], [0], [0], [1], [0, 0, 1, 1], [], []>} : vector<16x512xbf16>, vector<512x128xbf16>, vector<16x128xf32> -> vector<16x128xf32>
    %c0_69 = arith.constant 0 : index
    %c0_70 = arith.constant 0 : index
    %216 = vector.load %arg11[%c0_69, %c0_70] : memref<1x128xf32, #tpu.memory_space<vmem>>, vector<1x128xf32>
    %217 = vector.broadcast %216 : vector<1x128xf32> to vector<16x128xf32>
    %218 = arith.addf %215, %217 : vector<16x128xf32>
    %219 = arith.addf %204, %218 : vector<16x128xf32>
    %c0_71 = arith.constant 0 : index
    %c0_72 = arith.constant 0 : index
    %220 = vector.load %arg12[%c0_71, %c0_72] : memref<1x128xf32, #tpu.memory_space<vmem>>, vector<1x128xf32>
    %c0_73 = arith.constant 0 : index
    %c0_74 = arith.constant 0 : index
    %221 = vector.load %arg13[%c0_73, %c0_74] : memref<1x128xf32, #tpu.memory_space<vmem>>, vector<1x128xf32>
    %cst_75 = arith.constant dense<0.000000e+00> : vector<16xf32>
    %222 = vector.multi_reduction <add>, %219, %cst_75 [1] : vector<16x128xf32> to vector<16xf32>
    %223 = vector.shape_cast %222 : vector<16xf32> to vector<16x1xf32>
    %cst_76 = arith.constant 1.280000e+02 : f32
    %224 = vector.broadcast %cst_76 : f32 to vector<16x1xf32>
    %225 = arith.divf %223, %224 : vector<16x1xf32>
    %226 = vector.broadcast %225 : vector<16x1xf32> to vector<16x128xf32>
    %227 = arith.subf %219, %226 : vector<16x128xf32>
    %228 = arith.mulf %227, %227 : vector<16x128xf32>
    %cst_77 = arith.constant dense<0.000000e+00> : vector<16xf32>
    %229 = vector.multi_reduction <add>, %228, %cst_77 [1] : vector<16x128xf32> to vector<16xf32>
    %230 = vector.shape_cast %229 : vector<16xf32> to vector<16x1xf32>
    %cst_78 = arith.constant 1.280000e+02 : f32
    %231 = vector.broadcast %cst_78 : f32 to vector<16x1xf32>
    %232 = arith.divf %230, %231 : vector<16x1xf32>
    %233 = vector.broadcast %225 : vector<16x1xf32> to vector<16x128xf32>
    %234 = arith.subf %219, %233 : vector<16x128xf32>
    %cst_79 = arith.constant 9.99999974E-6 : f32
    %235 = vector.broadcast %cst_79 : f32 to vector<16x1xf32>
    %236 = arith.addf %232, %235 : vector<16x1xf32>
    %237 = math.rsqrt %236 : vector<16x1xf32>
    %238 = vector.broadcast %237 : vector<16x1xf32> to vector<16x128xf32>
    %239 = arith.mulf %234, %238 : vector<16x128xf32>
    %240 = vector.broadcast %220 : vector<1x128xf32> to vector<16x128xf32>
    %241 = arith.mulf %239, %240 : vector<16x128xf32>
    %242 = vector.broadcast %221 : vector<1x128xf32> to vector<16x128xf32>
    %243 = arith.addf %241, %242 : vector<16x128xf32>
    %244 = arith.truncf %243 : vector<16x128xf32> to vector<16x128xbf16>
    %c0_80 = arith.constant 0 : index
    %c0_81 = arith.constant 0 : index
    %245 = vector.load %arg14[%c0_80, %c0_81] : memref<128x384xbf16, #tpu.memory_space<vmem>>, vector<128x384xbf16>
    %cst_82 = arith.constant dense<0.000000e+00> : vector<16x384xf32>
    %246 = tpu.matmul %244, %245, %cst_82 {dimension_numbers = #tpu.dot_dimension_numbers<[1], [0], [0], [1], [0, 0, 1, 1], [], []>} : vector<16x128xbf16>, vector<128x384xbf16>, vector<16x384xf32> -> vector<16x384xf32>
    %c0_83 = arith.constant 0 : index
    %c0_84 = arith.constant 0 : index
    %247 = vector.load %arg15[%c0_83, %c0_84] : memref<1x384xf32, #tpu.memory_space<vmem>>, vector<1x384xf32>
    %248 = vector.broadcast %247 : vector<1x384xf32> to vector<16x384xf32>
    %249 = arith.addf %246, %248 : vector<16x384xf32>
    %250 = vector.extract_strided_slice %249 {offsets = [0, 0], sizes = [16, 128], strides = [1, 1]} : vector<16x384xf32> to vector<16x128xf32>
    %251 = arith.truncf %250 : vector<16x128xf32> to vector<16x128xbf16>
    %252 = vector.extract_strided_slice %249 {offsets = [0, 128], sizes = [16, 128], strides = [1, 1]} : vector<16x384xf32> to vector<16x128xf32>
    %253 = arith.truncf %252 : vector<16x128xf32> to vector<16x128xbf16>
    %254 = vector.extract_strided_slice %249 {offsets = [0, 256], sizes = [16, 128], strides = [1, 1]} : vector<16x384xf32> to vector<16x128xf32>
    %255 = arith.truncf %254 : vector<16x128xf32> to vector<16x128xbf16>
    %c0_85 = arith.constant 0 : index
    %c0_86 = arith.constant 0 : index
    %256 = vector.load %arg16[%c0_85, %c0_86] : memref<128x128xbf16, #tpu.memory_space<vmem>>, vector<128x128xbf16>
    %cst_87 = arith.constant 0.000000e+00 : f32
    %257 = vector.broadcast %cst_87 : f32 to vector<8x128xf32>
    %258 = vector.extract_strided_slice %251 {offsets = [0, 0], sizes = [8, 32], strides = [1, 1]} : vector<16x128xbf16> to vector<8x32xbf16>
    %259 = vector.extract_strided_slice %253 {offsets = [0, 0], sizes = [8, 32], strides = [1, 1]} : vector<16x128xbf16> to vector<8x32xbf16>
    %260 = vector.extract_strided_slice %255 {offsets = [0, 0], sizes = [8, 32], strides = [1, 1]} : vector<16x128xbf16> to vector<8x32xbf16>
    %cst_88 = arith.constant dense<0.000000e+00> : vector<8x8xf32>
    %261 = tpu.matmul %258, %259, %cst_88 {dimension_numbers = #tpu.dot_dimension_numbers<[1], [1], [0], [0], [0, 0, 1, 0], [], []>} : vector<8x32xbf16>, vector<8x32xbf16>, vector<8x8xf32> -> vector<8x8xf32>
    %cst_89 = arith.constant dense<0xFF800000> : vector<8xf32>
    %262 = vector.multi_reduction <maximumf>, %261, %cst_89 [1] : vector<8x8xf32> to vector<8xf32>
    %263 = vector.shape_cast %262 : vector<8xf32> to vector<8x1xf32>
    %264 = vector.broadcast %263 : vector<8x1xf32> to vector<8x8xf32>
    %265 = arith.subf %261, %264 : vector<8x8xf32>
    %266 = math.exp %265 : vector<8x8xf32>
    %cst_90 = arith.constant dense<0.000000e+00> : vector<8xf32>
    %267 = vector.multi_reduction <add>, %266, %cst_90 [1] : vector<8x8xf32> to vector<8xf32>
    %268 = vector.shape_cast %267 : vector<8xf32> to vector<8x1xf32>
    %269 = tpu.reciprocal %268 {approx = true} : vector<8x1xf32> -> vector<8x1xf32>
    %270 = vector.broadcast %269 : vector<8x1xf32> to vector<8x8xf32>
    %271 = arith.mulf %266, %270 : vector<8x8xf32>
    %272 = arith.truncf %271 : vector<8x8xf32> to vector<8x8xbf16>
    %cst_91 = arith.constant dense<0.000000e+00> : vector<8x32xf32>
    %273 = tpu.matmul %272, %260, %cst_91 {dimension_numbers = #tpu.dot_dimension_numbers<[1], [0], [0], [1], [0, 0, 1, 1], [], []>} : vector<8x8xbf16>, vector<8x32xbf16>, vector<8x32xf32> -> vector<8x32xf32>
    %274 = arith.truncf %273 : vector<8x32xf32> to vector<8x32xbf16>
    %275 = vector.extract_strided_slice %256 {offsets = [0, 0], sizes = [32, 128], strides = [1, 1]} : vector<128x128xbf16> to vector<32x128xbf16>
    %cst_92 = arith.constant dense<0.000000e+00> : vector<8x128xf32>
    %276 = tpu.matmul %274, %275, %cst_92 {dimension_numbers = #tpu.dot_dimension_numbers<[1], [0], [0], [1], [0, 0, 1, 1], [], []>} : vector<8x32xbf16>, vector<32x128xbf16>, vector<8x128xf32> -> vector<8x128xf32>
    %277 = arith.addf %257, %276 : vector<8x128xf32>
    %278 = vector.extract_strided_slice %251 {offsets = [0, 32], sizes = [8, 32], strides = [1, 1]} : vector<16x128xbf16> to vector<8x32xbf16>
    %279 = vector.extract_strided_slice %253 {offsets = [0, 32], sizes = [8, 32], strides = [1, 1]} : vector<16x128xbf16> to vector<8x32xbf16>
    %280 = vector.extract_strided_slice %255 {offsets = [0, 32], sizes = [8, 32], strides = [1, 1]} : vector<16x128xbf16> to vector<8x32xbf16>
    %cst_93 = arith.constant dense<0.000000e+00> : vector<8x8xf32>
    %281 = tpu.matmul %278, %279, %cst_93 {dimension_numbers = #tpu.dot_dimension_numbers<[1], [1], [0], [0], [0, 0, 1, 0], [], []>} : vector<8x32xbf16>, vector<8x32xbf16>, vector<8x8xf32> -> vector<8x8xf32>
    %cst_94 = arith.constant dense<0xFF800000> : vector<8xf32>
    %282 = vector.multi_reduction <maximumf>, %281, %cst_94 [1] : vector<8x8xf32> to vector<8xf32>
    %283 = vector.shape_cast %282 : vector<8xf32> to vector<8x1xf32>
    %284 = vector.broadcast %283 : vector<8x1xf32> to vector<8x8xf32>
    %285 = arith.subf %281, %284 : vector<8x8xf32>
    %286 = math.exp %285 : vector<8x8xf32>
    %cst_95 = arith.constant dense<0.000000e+00> : vector<8xf32>
    %287 = vector.multi_reduction <add>, %286, %cst_95 [1] : vector<8x8xf32> to vector<8xf32>
    %288 = vector.shape_cast %287 : vector<8xf32> to vector<8x1xf32>
    %289 = tpu.reciprocal %288 {approx = true} : vector<8x1xf32> -> vector<8x1xf32>
    %290 = vector.broadcast %289 : vector<8x1xf32> to vector<8x8xf32>
    %291 = arith.mulf %286, %290 : vector<8x8xf32>
    %292 = arith.truncf %291 : vector<8x8xf32> to vector<8x8xbf16>
    %cst_96 = arith.constant dense<0.000000e+00> : vector<8x32xf32>
    %293 = tpu.matmul %292, %280, %cst_96 {dimension_numbers = #tpu.dot_dimension_numbers<[1], [0], [0], [1], [0, 0, 1, 1], [], []>} : vector<8x8xbf16>, vector<8x32xbf16>, vector<8x32xf32> -> vector<8x32xf32>
    %294 = arith.truncf %293 : vector<8x32xf32> to vector<8x32xbf16>
    %295 = vector.extract_strided_slice %256 {offsets = [32, 0], sizes = [32, 128], strides = [1, 1]} : vector<128x128xbf16> to vector<32x128xbf16>
    %cst_97 = arith.constant dense<0.000000e+00> : vector<8x128xf32>
    %296 = tpu.matmul %294, %295, %cst_97 {dimension_numbers = #tpu.dot_dimension_numbers<[1], [0], [0], [1], [0, 0, 1, 1], [], []>} : vector<8x32xbf16>, vector<32x128xbf16>, vector<8x128xf32> -> vector<8x128xf32>
    %297 = arith.addf %277, %296 : vector<8x128xf32>
    %298 = vector.extract_strided_slice %251 {offsets = [0, 64], sizes = [8, 32], strides = [1, 1]} : vector<16x128xbf16> to vector<8x32xbf16>
    %299 = vector.extract_strided_slice %253 {offsets = [0, 64], sizes = [8, 32], strides = [1, 1]} : vector<16x128xbf16> to vector<8x32xbf16>
    %300 = vector.extract_strided_slice %255 {offsets = [0, 64], sizes = [8, 32], strides = [1, 1]} : vector<16x128xbf16> to vector<8x32xbf16>
    %cst_98 = arith.constant dense<0.000000e+00> : vector<8x8xf32>
    %301 = tpu.matmul %298, %299, %cst_98 {dimension_numbers = #tpu.dot_dimension_numbers<[1], [1], [0], [0], [0, 0, 1, 0], [], []>} : vector<8x32xbf16>, vector<8x32xbf16>, vector<8x8xf32> -> vector<8x8xf32>
    %cst_99 = arith.constant dense<0xFF800000> : vector<8xf32>
    %302 = vector.multi_reduction <maximumf>, %301, %cst_99 [1] : vector<8x8xf32> to vector<8xf32>
    %303 = vector.shape_cast %302 : vector<8xf32> to vector<8x1xf32>
    %304 = vector.broadcast %303 : vector<8x1xf32> to vector<8x8xf32>
    %305 = arith.subf %301, %304 : vector<8x8xf32>
    %306 = math.exp %305 : vector<8x8xf32>
    %cst_100 = arith.constant dense<0.000000e+00> : vector<8xf32>
    %307 = vector.multi_reduction <add>, %306, %cst_100 [1] : vector<8x8xf32> to vector<8xf32>
    %308 = vector.shape_cast %307 : vector<8xf32> to vector<8x1xf32>
    %309 = tpu.reciprocal %308 {approx = true} : vector<8x1xf32> -> vector<8x1xf32>
    %310 = vector.broadcast %309 : vector<8x1xf32> to vector<8x8xf32>
    %311 = arith.mulf %306, %310 : vector<8x8xf32>
    %312 = arith.truncf %311 : vector<8x8xf32> to vector<8x8xbf16>
    %cst_101 = arith.constant dense<0.000000e+00> : vector<8x32xf32>
    %313 = tpu.matmul %312, %300, %cst_101 {dimension_numbers = #tpu.dot_dimension_numbers<[1], [0], [0], [1], [0, 0, 1, 1], [], []>} : vector<8x8xbf16>, vector<8x32xbf16>, vector<8x32xf32> -> vector<8x32xf32>
    %314 = arith.truncf %313 : vector<8x32xf32> to vector<8x32xbf16>
    %315 = vector.extract_strided_slice %256 {offsets = [64, 0], sizes = [32, 128], strides = [1, 1]} : vector<128x128xbf16> to vector<32x128xbf16>
    %cst_102 = arith.constant dense<0.000000e+00> : vector<8x128xf32>
    %316 = tpu.matmul %314, %315, %cst_102 {dimension_numbers = #tpu.dot_dimension_numbers<[1], [0], [0], [1], [0, 0, 1, 1], [], []>} : vector<8x32xbf16>, vector<32x128xbf16>, vector<8x128xf32> -> vector<8x128xf32>
    %317 = arith.addf %297, %316 : vector<8x128xf32>
    %318 = vector.extract_strided_slice %251 {offsets = [0, 96], sizes = [8, 32], strides = [1, 1]} : vector<16x128xbf16> to vector<8x32xbf16>
    %319 = vector.extract_strided_slice %253 {offsets = [0, 96], sizes = [8, 32], strides = [1, 1]} : vector<16x128xbf16> to vector<8x32xbf16>
    %320 = vector.extract_strided_slice %255 {offsets = [0, 96], sizes = [8, 32], strides = [1, 1]} : vector<16x128xbf16> to vector<8x32xbf16>
    %cst_103 = arith.constant dense<0.000000e+00> : vector<8x8xf32>
    %321 = tpu.matmul %318, %319, %cst_103 {dimension_numbers = #tpu.dot_dimension_numbers<[1], [1], [0], [0], [0, 0, 1, 0], [], []>} : vector<8x32xbf16>, vector<8x32xbf16>, vector<8x8xf32> -> vector<8x8xf32>
    %cst_104 = arith.constant dense<0xFF800000> : vector<8xf32>
    %322 = vector.multi_reduction <maximumf>, %321, %cst_104 [1] : vector<8x8xf32> to vector<8xf32>
    %323 = vector.shape_cast %322 : vector<8xf32> to vector<8x1xf32>
    %324 = vector.broadcast %323 : vector<8x1xf32> to vector<8x8xf32>
    %325 = arith.subf %321, %324 : vector<8x8xf32>
    %326 = math.exp %325 : vector<8x8xf32>
    %cst_105 = arith.constant dense<0.000000e+00> : vector<8xf32>
    %327 = vector.multi_reduction <add>, %326, %cst_105 [1] : vector<8x8xf32> to vector<8xf32>
    %328 = vector.shape_cast %327 : vector<8xf32> to vector<8x1xf32>
    %329 = tpu.reciprocal %328 {approx = true} : vector<8x1xf32> -> vector<8x1xf32>
    %330 = vector.broadcast %329 : vector<8x1xf32> to vector<8x8xf32>
    %331 = arith.mulf %326, %330 : vector<8x8xf32>
    %332 = arith.truncf %331 : vector<8x8xf32> to vector<8x8xbf16>
    %cst_106 = arith.constant dense<0.000000e+00> : vector<8x32xf32>
    %333 = tpu.matmul %332, %320, %cst_106 {dimension_numbers = #tpu.dot_dimension_numbers<[1], [0], [0], [1], [0, 0, 1, 1], [], []>} : vector<8x8xbf16>, vector<8x32xbf16>, vector<8x32xf32> -> vector<8x32xf32>
    %334 = arith.truncf %333 : vector<8x32xf32> to vector<8x32xbf16>
    %335 = vector.extract_strided_slice %256 {offsets = [96, 0], sizes = [32, 128], strides = [1, 1]} : vector<128x128xbf16> to vector<32x128xbf16>
    %cst_107 = arith.constant dense<0.000000e+00> : vector<8x128xf32>
    %336 = tpu.matmul %334, %335, %cst_107 {dimension_numbers = #tpu.dot_dimension_numbers<[1], [0], [0], [1], [0, 0, 1, 1], [], []>} : vector<8x32xbf16>, vector<32x128xbf16>, vector<8x128xf32> -> vector<8x128xf32>
    %337 = arith.addf %317, %336 : vector<8x128xf32>
    %cst_108 = arith.constant 0.000000e+00 : f32
    %338 = vector.broadcast %cst_108 : f32 to vector<8x128xf32>
    %339 = vector.extract_strided_slice %251 {offsets = [8, 0], sizes = [8, 32], strides = [1, 1]} : vector<16x128xbf16> to vector<8x32xbf16>
    %340 = vector.extract_strided_slice %253 {offsets = [8, 0], sizes = [8, 32], strides = [1, 1]} : vector<16x128xbf16> to vector<8x32xbf16>
    %341 = vector.extract_strided_slice %255 {offsets = [8, 0], sizes = [8, 32], strides = [1, 1]} : vector<16x128xbf16> to vector<8x32xbf16>
    %cst_109 = arith.constant dense<0.000000e+00> : vector<8x8xf32>
    %342 = tpu.matmul %339, %340, %cst_109 {dimension_numbers = #tpu.dot_dimension_numbers<[1], [1], [0], [0], [0, 0, 1, 0], [], []>} : vector<8x32xbf16>, vector<8x32xbf16>, vector<8x8xf32> -> vector<8x8xf32>
    %cst_110 = arith.constant dense<0xFF800000> : vector<8xf32>
    %343 = vector.multi_reduction <maximumf>, %342, %cst_110 [1] : vector<8x8xf32> to vector<8xf32>
    %344 = vector.shape_cast %343 : vector<8xf32> to vector<8x1xf32>
    %345 = vector.broadcast %344 : vector<8x1xf32> to vector<8x8xf32>
    %346 = arith.subf %342, %345 : vector<8x8xf32>
    %347 = math.exp %346 : vector<8x8xf32>
    %cst_111 = arith.constant dense<0.000000e+00> : vector<8xf32>
    %348 = vector.multi_reduction <add>, %347, %cst_111 [1] : vector<8x8xf32> to vector<8xf32>
    %349 = vector.shape_cast %348 : vector<8xf32> to vector<8x1xf32>
    %350 = tpu.reciprocal %349 {approx = true} : vector<8x1xf32> -> vector<8x1xf32>
    %351 = vector.broadcast %350 : vector<8x1xf32> to vector<8x8xf32>
    %352 = arith.mulf %347, %351 : vector<8x8xf32>
    %353 = arith.truncf %352 : vector<8x8xf32> to vector<8x8xbf16>
    %cst_112 = arith.constant dense<0.000000e+00> : vector<8x32xf32>
    %354 = tpu.matmul %353, %341, %cst_112 {dimension_numbers = #tpu.dot_dimension_numbers<[1], [0], [0], [1], [0, 0, 1, 1], [], []>} : vector<8x8xbf16>, vector<8x32xbf16>, vector<8x32xf32> -> vector<8x32xf32>
    %355 = arith.truncf %354 : vector<8x32xf32> to vector<8x32xbf16>
    %356 = vector.extract_strided_slice %256 {offsets = [0, 0], sizes = [32, 128], strides = [1, 1]} : vector<128x128xbf16> to vector<32x128xbf16>
    %cst_113 = arith.constant dense<0.000000e+00> : vector<8x128xf32>
    %357 = tpu.matmul %355, %356, %cst_113 {dimension_numbers = #tpu.dot_dimension_numbers<[1], [0], [0], [1], [0, 0, 1, 1], [], []>} : vector<8x32xbf16>, vector<32x128xbf16>, vector<8x128xf32> -> vector<8x128xf32>
    %358 = arith.addf %338, %357 : vector<8x128xf32>
    %359 = vector.extract_strided_slice %251 {offsets = [8, 32], sizes = [8, 32], strides = [1, 1]} : vector<16x128xbf16> to vector<8x32xbf16>
    %360 = vector.extract_strided_slice %253 {offsets = [8, 32], sizes = [8, 32], strides = [1, 1]} : vector<16x128xbf16> to vector<8x32xbf16>
    %361 = vector.extract_strided_slice %255 {offsets = [8, 32], sizes = [8, 32], strides = [1, 1]} : vector<16x128xbf16> to vector<8x32xbf16>
    %cst_114 = arith.constant dense<0.000000e+00> : vector<8x8xf32>
    %362 = tpu.matmul %359, %360, %cst_114 {dimension_numbers = #tpu.dot_dimension_numbers<[1], [1], [0], [0], [0, 0, 1, 0], [], []>} : vector<8x32xbf16>, vector<8x32xbf16>, vector<8x8xf32> -> vector<8x8xf32>
    %cst_115 = arith.constant dense<0xFF800000> : vector<8xf32>
    %363 = vector.multi_reduction <maximumf>, %362, %cst_115 [1] : vector<8x8xf32> to vector<8xf32>
    %364 = vector.shape_cast %363 : vector<8xf32> to vector<8x1xf32>
    %365 = vector.broadcast %364 : vector<8x1xf32> to vector<8x8xf32>
    %366 = arith.subf %362, %365 : vector<8x8xf32>
    %367 = math.exp %366 : vector<8x8xf32>
    %cst_116 = arith.constant dense<0.000000e+00> : vector<8xf32>
    %368 = vector.multi_reduction <add>, %367, %cst_116 [1] : vector<8x8xf32> to vector<8xf32>
    %369 = vector.shape_cast %368 : vector<8xf32> to vector<8x1xf32>
    %370 = tpu.reciprocal %369 {approx = true} : vector<8x1xf32> -> vector<8x1xf32>
    %371 = vector.broadcast %370 : vector<8x1xf32> to vector<8x8xf32>
    %372 = arith.mulf %367, %371 : vector<8x8xf32>
    %373 = arith.truncf %372 : vector<8x8xf32> to vector<8x8xbf16>
    %cst_117 = arith.constant dense<0.000000e+00> : vector<8x32xf32>
    %374 = tpu.matmul %373, %361, %cst_117 {dimension_numbers = #tpu.dot_dimension_numbers<[1], [0], [0], [1], [0, 0, 1, 1], [], []>} : vector<8x8xbf16>, vector<8x32xbf16>, vector<8x32xf32> -> vector<8x32xf32>
    %375 = arith.truncf %374 : vector<8x32xf32> to vector<8x32xbf16>
    %376 = vector.extract_strided_slice %256 {offsets = [32, 0], sizes = [32, 128], strides = [1, 1]} : vector<128x128xbf16> to vector<32x128xbf16>
    %cst_118 = arith.constant dense<0.000000e+00> : vector<8x128xf32>
    %377 = tpu.matmul %375, %376, %cst_118 {dimension_numbers = #tpu.dot_dimension_numbers<[1], [0], [0], [1], [0, 0, 1, 1], [], []>} : vector<8x32xbf16>, vector<32x128xbf16>, vector<8x128xf32> -> vector<8x128xf32>
    %378 = arith.addf %358, %377 : vector<8x128xf32>
    %379 = vector.extract_strided_slice %251 {offsets = [8, 64], sizes = [8, 32], strides = [1, 1]} : vector<16x128xbf16> to vector<8x32xbf16>
    %380 = vector.extract_strided_slice %253 {offsets = [8, 64], sizes = [8, 32], strides = [1, 1]} : vector<16x128xbf16> to vector<8x32xbf16>
    %381 = vector.extract_strided_slice %255 {offsets = [8, 64], sizes = [8, 32], strides = [1, 1]} : vector<16x128xbf16> to vector<8x32xbf16>
    %cst_119 = arith.constant dense<0.000000e+00> : vector<8x8xf32>
    %382 = tpu.matmul %379, %380, %cst_119 {dimension_numbers = #tpu.dot_dimension_numbers<[1], [1], [0], [0], [0, 0, 1, 0], [], []>} : vector<8x32xbf16>, vector<8x32xbf16>, vector<8x8xf32> -> vector<8x8xf32>
    %cst_120 = arith.constant dense<0xFF800000> : vector<8xf32>
    %383 = vector.multi_reduction <maximumf>, %382, %cst_120 [1] : vector<8x8xf32> to vector<8xf32>
    %384 = vector.shape_cast %383 : vector<8xf32> to vector<8x1xf32>
    %385 = vector.broadcast %384 : vector<8x1xf32> to vector<8x8xf32>
    %386 = arith.subf %382, %385 : vector<8x8xf32>
    %387 = math.exp %386 : vector<8x8xf32>
    %cst_121 = arith.constant dense<0.000000e+00> : vector<8xf32>
    %388 = vector.multi_reduction <add>, %387, %cst_121 [1] : vector<8x8xf32> to vector<8xf32>
    %389 = vector.shape_cast %388 : vector<8xf32> to vector<8x1xf32>
    %390 = tpu.reciprocal %389 {approx = true} : vector<8x1xf32> -> vector<8x1xf32>
    %391 = vector.broadcast %390 : vector<8x1xf32> to vector<8x8xf32>
    %392 = arith.mulf %387, %391 : vector<8x8xf32>
    %393 = arith.truncf %392 : vector<8x8xf32> to vector<8x8xbf16>
    %cst_122 = arith.constant dense<0.000000e+00> : vector<8x32xf32>
    %394 = tpu.matmul %393, %381, %cst_122 {dimension_numbers = #tpu.dot_dimension_numbers<[1], [0], [0], [1], [0, 0, 1, 1], [], []>} : vector<8x8xbf16>, vector<8x32xbf16>, vector<8x32xf32> -> vector<8x32xf32>
    %395 = arith.truncf %394 : vector<8x32xf32> to vector<8x32xbf16>
    %396 = vector.extract_strided_slice %256 {offsets = [64, 0], sizes = [32, 128], strides = [1, 1]} : vector<128x128xbf16> to vector<32x128xbf16>
    %cst_123 = arith.constant dense<0.000000e+00> : vector<8x128xf32>
    %397 = tpu.matmul %395, %396, %cst_123 {dimension_numbers = #tpu.dot_dimension_numbers<[1], [0], [0], [1], [0, 0, 1, 1], [], []>} : vector<8x32xbf16>, vector<32x128xbf16>, vector<8x128xf32> -> vector<8x128xf32>
    %398 = arith.addf %378, %397 : vector<8x128xf32>
    %399 = vector.extract_strided_slice %251 {offsets = [8, 96], sizes = [8, 32], strides = [1, 1]} : vector<16x128xbf16> to vector<8x32xbf16>
    %400 = vector.extract_strided_slice %253 {offsets = [8, 96], sizes = [8, 32], strides = [1, 1]} : vector<16x128xbf16> to vector<8x32xbf16>
    %401 = vector.extract_strided_slice %255 {offsets = [8, 96], sizes = [8, 32], strides = [1, 1]} : vector<16x128xbf16> to vector<8x32xbf16>
    %cst_124 = arith.constant dense<0.000000e+00> : vector<8x8xf32>
    %402 = tpu.matmul %399, %400, %cst_124 {dimension_numbers = #tpu.dot_dimension_numbers<[1], [1], [0], [0], [0, 0, 1, 0], [], []>} : vector<8x32xbf16>, vector<8x32xbf16>, vector<8x8xf32> -> vector<8x8xf32>
    %cst_125 = arith.constant dense<0xFF800000> : vector<8xf32>
    %403 = vector.multi_reduction <maximumf>, %402, %cst_125 [1] : vector<8x8xf32> to vector<8xf32>
    %404 = vector.shape_cast %403 : vector<8xf32> to vector<8x1xf32>
    %405 = vector.broadcast %404 : vector<8x1xf32> to vector<8x8xf32>
    %406 = arith.subf %402, %405 : vector<8x8xf32>
    %407 = math.exp %406 : vector<8x8xf32>
    %cst_126 = arith.constant dense<0.000000e+00> : vector<8xf32>
    %408 = vector.multi_reduction <add>, %407, %cst_126 [1] : vector<8x8xf32> to vector<8xf32>
    %409 = vector.shape_cast %408 : vector<8xf32> to vector<8x1xf32>
    %410 = tpu.reciprocal %409 {approx = true} : vector<8x1xf32> -> vector<8x1xf32>
    %411 = vector.broadcast %410 : vector<8x1xf32> to vector<8x8xf32>
    %412 = arith.mulf %407, %411 : vector<8x8xf32>
    %413 = arith.truncf %412 : vector<8x8xf32> to vector<8x8xbf16>
    %cst_127 = arith.constant dense<0.000000e+00> : vector<8x32xf32>
    %414 = tpu.matmul %413, %401, %cst_127 {dimension_numbers = #tpu.dot_dimension_numbers<[1], [0], [0], [1], [0, 0, 1, 1], [], []>} : vector<8x8xbf16>, vector<8x32xbf16>, vector<8x32xf32> -> vector<8x32xf32>
    %415 = arith.truncf %414 : vector<8x32xf32> to vector<8x32xbf16>
    %416 = vector.extract_strided_slice %256 {offsets = [96, 0], sizes = [32, 128], strides = [1, 1]} : vector<128x128xbf16> to vector<32x128xbf16>
    %cst_128 = arith.constant dense<0.000000e+00> : vector<8x128xf32>
    %417 = tpu.matmul %415, %416, %cst_128 {dimension_numbers = #tpu.dot_dimension_numbers<[1], [0], [0], [1], [0, 0, 1, 1], [], []>} : vector<8x32xbf16>, vector<32x128xbf16>, vector<8x128xf32> -> vector<8x128xf32>
    %418 = arith.addf %398, %417 : vector<8x128xf32>
    %419 = tpu.concatenate %337, %418 in 0 : vector<8x128xf32>, vector<8x128xf32> -> vector<16x128xf32>
    %c0_129 = arith.constant 0 : index
    %c0_130 = arith.constant 0 : index
    %420 = vector.load %arg17[%c0_129, %c0_130] : memref<1x128xf32, #tpu.memory_space<vmem>>, vector<1x128xf32>
    %421 = vector.broadcast %420 : vector<1x128xf32> to vector<16x128xf32>
    %422 = arith.addf %419, %421 : vector<16x128xf32>
    %423 = arith.addf %243, %422 : vector<16x128xf32>
    %c0_131 = arith.constant 0 : index
    %c0_132 = arith.constant 0 : index
    %424 = vector.load %arg18[%c0_131, %c0_132] : memref<1x128xf32, #tpu.memory_space<vmem>>, vector<1x128xf32>
    %c0_133 = arith.constant 0 : index
    %c0_134 = arith.constant 0 : index
    %425 = vector.load %arg19[%c0_133, %c0_134] : memref<1x128xf32, #tpu.memory_space<vmem>>, vector<1x128xf32>
    %cst_135 = arith.constant dense<0.000000e+00> : vector<16xf32>
    %426 = vector.multi_reduction <add>, %423, %cst_135 [1] : vector<16x128xf32> to vector<16xf32>
    %427 = vector.shape_cast %426 : vector<16xf32> to vector<16x1xf32>
    %cst_136 = arith.constant 1.280000e+02 : f32
    %428 = vector.broadcast %cst_136 : f32 to vector<16x1xf32>
    %429 = arith.divf %427, %428 : vector<16x1xf32>
    %430 = vector.broadcast %429 : vector<16x1xf32> to vector<16x128xf32>
    %431 = arith.subf %423, %430 : vector<16x128xf32>
    %432 = arith.mulf %431, %431 : vector<16x128xf32>
    %cst_137 = arith.constant dense<0.000000e+00> : vector<16xf32>
    %433 = vector.multi_reduction <add>, %432, %cst_137 [1] : vector<16x128xf32> to vector<16xf32>
    %434 = vector.shape_cast %433 : vector<16xf32> to vector<16x1xf32>
    %cst_138 = arith.constant 1.280000e+02 : f32
    %435 = vector.broadcast %cst_138 : f32 to vector<16x1xf32>
    %436 = arith.divf %434, %435 : vector<16x1xf32>
    %437 = vector.broadcast %429 : vector<16x1xf32> to vector<16x128xf32>
    %438 = arith.subf %423, %437 : vector<16x128xf32>
    %cst_139 = arith.constant 9.99999974E-6 : f32
    %439 = vector.broadcast %cst_139 : f32 to vector<16x1xf32>
    %440 = arith.addf %436, %439 : vector<16x1xf32>
    %441 = math.rsqrt %440 : vector<16x1xf32>
    %442 = vector.broadcast %441 : vector<16x1xf32> to vector<16x128xf32>
    %443 = arith.mulf %438, %442 : vector<16x128xf32>
    %444 = vector.broadcast %424 : vector<1x128xf32> to vector<16x128xf32>
    %445 = arith.mulf %443, %444 : vector<16x128xf32>
    %446 = vector.broadcast %425 : vector<1x128xf32> to vector<16x128xf32>
    %447 = arith.addf %445, %446 : vector<16x128xf32>
    %448 = arith.truncf %447 : vector<16x128xf32> to vector<16x128xbf16>
    %c0_140 = arith.constant 0 : index
    %c0_141 = arith.constant 0 : index
    %449 = vector.load %arg20[%c0_140, %c0_141] : memref<128x512xbf16, #tpu.memory_space<vmem>>, vector<128x512xbf16>
    %cst_142 = arith.constant dense<0.000000e+00> : vector<16x512xf32>
    %450 = tpu.matmul %448, %449, %cst_142 {dimension_numbers = #tpu.dot_dimension_numbers<[1], [0], [0], [1], [0, 0, 1, 1], [], []>} : vector<16x128xbf16>, vector<128x512xbf16>, vector<16x512xf32> -> vector<16x512xf32>
    %c0_143 = arith.constant 0 : index
    %c0_144 = arith.constant 0 : index
    %451 = vector.load %arg21[%c0_143, %c0_144] : memref<1x512xf32, #tpu.memory_space<vmem>>, vector<1x512xf32>
    %452 = vector.broadcast %451 : vector<1x512xf32> to vector<16x512xf32>
    %453 = arith.addf %450, %452 : vector<16x512xf32>
    %cst_145 = arith.constant 0.000000e+00 : f32
    %454 = vector.broadcast %cst_145 : f32 to vector<16x512xf32>
    %455 = arith.maximumf %453, %454 : vector<16x512xf32>
    %456 = arith.truncf %455 : vector<16x512xf32> to vector<16x512xbf16>
    %c0_146 = arith.constant 0 : index
    %c0_147 = arith.constant 0 : index
    %457 = vector.load %arg22[%c0_146, %c0_147] : memref<512x128xbf16, #tpu.memory_space<vmem>>, vector<512x128xbf16>
    %cst_148 = arith.constant dense<0.000000e+00> : vector<16x128xf32>
    %458 = tpu.matmul %456, %457, %cst_148 {dimension_numbers = #tpu.dot_dimension_numbers<[1], [0], [0], [1], [0, 0, 1, 1], [], []>} : vector<16x512xbf16>, vector<512x128xbf16>, vector<16x128xf32> -> vector<16x128xf32>
    %c0_149 = arith.constant 0 : index
    %c0_150 = arith.constant 0 : index
    %459 = vector.load %arg23[%c0_149, %c0_150] : memref<1x128xf32, #tpu.memory_space<vmem>>, vector<1x128xf32>
    %460 = vector.broadcast %459 : vector<1x128xf32> to vector<16x128xf32>
    %461 = arith.addf %458, %460 : vector<16x128xf32>
    %462 = arith.addf %447, %461 : vector<16x128xf32>
    %c0_151 = arith.constant 0 : index
    %c0_152 = arith.constant 0 : index
    %463 = vector.load %arg24[%c0_151, %c0_152] : memref<1x128xf32, #tpu.memory_space<vmem>>, vector<1x128xf32>
    %c0_153 = arith.constant 0 : index
    %c0_154 = arith.constant 0 : index
    %464 = vector.load %arg25[%c0_153, %c0_154] : memref<1x128xf32, #tpu.memory_space<vmem>>, vector<1x128xf32>
    %cst_155 = arith.constant dense<0.000000e+00> : vector<16xf32>
    %465 = vector.multi_reduction <add>, %462, %cst_155 [1] : vector<16x128xf32> to vector<16xf32>
    %466 = vector.shape_cast %465 : vector<16xf32> to vector<16x1xf32>
    %cst_156 = arith.constant 1.280000e+02 : f32
    %467 = vector.broadcast %cst_156 : f32 to vector<16x1xf32>
    %468 = arith.divf %466, %467 : vector<16x1xf32>
    %469 = vector.broadcast %468 : vector<16x1xf32> to vector<16x128xf32>
    %470 = arith.subf %462, %469 : vector<16x128xf32>
    %471 = arith.mulf %470, %470 : vector<16x128xf32>
    %cst_157 = arith.constant dense<0.000000e+00> : vector<16xf32>
    %472 = vector.multi_reduction <add>, %471, %cst_157 [1] : vector<16x128xf32> to vector<16xf32>
    %473 = vector.shape_cast %472 : vector<16xf32> to vector<16x1xf32>
    %cst_158 = arith.constant 1.280000e+02 : f32
    %474 = vector.broadcast %cst_158 : f32 to vector<16x1xf32>
    %475 = arith.divf %473, %474 : vector<16x1xf32>
    %476 = vector.broadcast %468 : vector<16x1xf32> to vector<16x128xf32>
    %477 = arith.subf %462, %476 : vector<16x128xf32>
    %cst_159 = arith.constant 9.99999974E-6 : f32
    %478 = vector.broadcast %cst_159 : f32 to vector<16x1xf32>
    %479 = arith.addf %475, %478 : vector<16x1xf32>
    %480 = math.rsqrt %479 : vector<16x1xf32>
    %481 = vector.broadcast %480 : vector<16x1xf32> to vector<16x128xf32>
    %482 = arith.mulf %477, %481 : vector<16x128xf32>
    %483 = vector.broadcast %463 : vector<1x128xf32> to vector<16x128xf32>
    %484 = arith.mulf %482, %483 : vector<16x128xf32>
    %485 = vector.broadcast %464 : vector<1x128xf32> to vector<16x128xf32>
    %486 = arith.addf %484, %485 : vector<16x128xf32>
    %487 = vector.extract_strided_slice %486 {offsets = [0, 0], sizes = [8, 128], strides = [1, 1]} : vector<16x128xf32> to vector<8x128xf32>
    %488 = arith.truncf %487 : vector<8x128xf32> to vector<8x128xbf16>
    %c0_160 = arith.constant 0 : index
    %c0_161 = arith.constant 0 : index
    %489 = vector.load %arg26[%c0_160, %c0_161] : memref<128x512xbf16, #tpu.memory_space<vmem>>, vector<128x512xbf16>
    %cst_162 = arith.constant dense<0.000000e+00> : vector<8x512xf32>
    %490 = tpu.matmul %488, %489, %cst_162 {dimension_numbers = #tpu.dot_dimension_numbers<[1], [0], [0], [1], [0, 0, 1, 1], [], []>} : vector<8x128xbf16>, vector<128x512xbf16>, vector<8x512xf32> -> vector<8x512xf32>
    %c0_163 = arith.constant 0 : index
    %c0_164 = arith.constant 0 : index
    %491 = vector.load %arg27[%c0_163, %c0_164] : memref<1x512xf32, #tpu.memory_space<vmem>>, vector<1x512xf32>
    %492 = vector.broadcast %491 : vector<1x512xf32> to vector<8x512xf32>
    %493 = arith.addf %490, %492 : vector<8x512xf32>
    %cst_165 = arith.constant 0.000000e+00 : f32
    %494 = vector.broadcast %cst_165 : f32 to vector<8x512xf32>
    %495 = arith.maximumf %493, %494 : vector<8x512xf32>
    %496 = arith.truncf %495 : vector<8x512xf32> to vector<8x512xbf16>
    %c0_166 = arith.constant 0 : index
    %c0_167 = arith.constant 0 : index
    %497 = vector.load %arg28[%c0_166, %c0_167] : memref<512x128xbf16, #tpu.memory_space<vmem>>, vector<512x128xbf16>
    %cst_168 = arith.constant dense<0.000000e+00> : vector<8x128xf32>
    %498 = tpu.matmul %496, %497, %cst_168 {dimension_numbers = #tpu.dot_dimension_numbers<[1], [0], [0], [1], [0, 0, 1, 1], [], []>} : vector<8x512xbf16>, vector<512x128xbf16>, vector<8x128xf32> -> vector<8x128xf32>
    %c0_169 = arith.constant 0 : index
    %c0_170 = arith.constant 0 : index
    %499 = vector.load %arg29[%c0_169, %c0_170] : memref<1x128xf32, #tpu.memory_space<vmem>>, vector<1x128xf32>
    %500 = vector.broadcast %499 : vector<1x128xf32> to vector<8x128xf32>
    %501 = arith.addf %498, %500 : vector<8x128xf32>
    %c0_171 = arith.constant 0 : index
    %c0_172 = arith.constant 0 : index
    %502 = vector.load %arg30[%c0_171, %c0_172] : memref<8x128xf32, #tpu.memory_space<vmem>>, vector<8x128xf32>
    tpu.vector_store %arg30[%c0_171, %c0_172], %501 {strides = array<i32>} : memref<8x128xf32, #tpu.memory_space<vmem>>, vector<8x128xf32>,
    return
  }
  func.func @transform_0(%arg0: i32) -> (i32, i32) {
    %c0_i32 = arith.constant 0 : i32
    %c0_i32_0 = arith.constant 0 : i32
    %c0_i32_1 = arith.constant 0 : i32
    return %c0_i32, %c0_i32_0 : i32, i32
  }
  func.func @transform_1(%arg0: i32) -> (i32, i32) {
    %c0_i32 = arith.constant 0 : i32
    %c0_i32_0 = arith.constant 0 : i32
    %c0_i32_1 = arith.constant 0 : i32
    return %c0_i32, %c0_i32_0 : i32, i32
  }
  func.func @transform_2(%arg0: i32) -> (i32, i32) {
    %c0_i32 = arith.constant 0 : i32
    %c0_i32_0 = arith.constant 0 : i32
    %c0_i32_1 = arith.constant 0 : i32
    return %c0_i32, %c0_i32_0 : i32, i32
  }
  func.func @transform_3(%arg0: i32) -> (i32, i32) {
    %c0_i32 = arith.constant 0 : i32
    %c0_i32_0 = arith.constant 0 : i32
    %c0_i32_1 = arith.constant 0 : i32
    return %c0_i32, %c0_i32_0 : i32, i32
  }
  func.func @transform_4(%arg0: i32) -> (i32, i32) {
    %c0_i32 = arith.constant 0 : i32
    %c0_i32_0 = arith.constant 0 : i32
    %c0_i32_1 = arith.constant 0 : i32
    return %c0_i32, %c0_i32_0 : i32, i32
  }
  func.func @transform_5(%arg0: i32) -> (i32, i32) {
    %c0_i32 = arith.constant 0 : i32
    %c0_i32_0 = arith.constant 0 : i32
    %c0_i32_1 = arith.constant 0 : i32
    return %c0_i32, %c0_i32_0 : i32, i32
  }
  func.func @transform_6(%arg0: i32) -> (i32, i32) {
    %c0_i32 = arith.constant 0 : i32
    %c0_i32_0 = arith.constant 0 : i32
    %c0_i32_1 = arith.constant 0 : i32
    return %c0_i32, %c0_i32_0 : i32, i32
  }
  func.func @transform_7(%arg0: i32) -> (i32, i32) {
    %c0_i32 = arith.constant 0 : i32
    %c0_i32_0 = arith.constant 0 : i32
    %c0_i32_1 = arith.constant 0 : i32
    return %c0_i32, %c0_i32_0 : i32, i32
  }
  func.func @transform_8(%arg0: i32) -> (i32, i32) {
    %c0_i32 = arith.constant 0 : i32
    %c0_i32_0 = arith.constant 0 : i32
    %c0_i32_1 = arith.constant 0 : i32
    return %c0_i32, %c0_i32_0 : i32, i32
  }
  func.func @transform_9(%arg0: i32) -> (i32, i32) {
    %c0_i32 = arith.constant 0 : i32
    %c0_i32_0 = arith.constant 0 : i32
    %c0_i32_1 = arith.constant 0 : i32
    return %c0_i32, %c0_i32_0 : i32, i32
  }
  func.func @transform_10(%arg0: i32) -> (i32, i32) {
    %c0_i32 = arith.constant 0 : i32
    %c0_i32_0 = arith.constant 0 : i32
    %c0_i32_1 = arith.constant 0 : i32
    return %c0_i32, %c0_i32_0 : i32, i32
  }
  func.func @transform_11(%arg0: i32) -> (i32, i32) {
    %c0_i32 = arith.constant 0 : i32
    %c0_i32_0 = arith.constant 0 : i32
    %c0_i32_1 = arith.constant 0 : i32
    return %c0_i32, %c0_i32_0 : i32, i32
  }
  func.func @transform_12(%arg0: i32) -> (i32, i32) {
    %c0_i32 = arith.constant 0 : i32
    %c0_i32_0 = arith.constant 0 : i32
    %c0_i32_1 = arith.constant 0 : i32
    return %c0_i32, %c0_i32_0 : i32, i32
  }
  func.func @transform_13(%arg0: i32) -> (i32, i32) {
    %c0_i32 = arith.constant 0 : i32
    %c0_i32_0 = arith.constant 0 : i32
    %c0_i32_1 = arith.constant 0 : i32
    return %c0_i32, %c0_i32_0 : i32, i32
  }
  func.func @transform_14(%arg0: i32) -> (i32, i32) {
    %c0_i32 = arith.constant 0 : i32
    %c0_i32_0 = arith.constant 0 : i32
    %c0_i32_1 = arith.constant 0 : i32
    return %c0_i32, %c0_i32_0 : i32, i32
  }
  func.func @transform_15(%arg0: i32) -> (i32, i32) {
    %c0_i32 = arith.constant 0 : i32
    %c0_i32_0 = arith.constant 0 : i32
    %c0_i32_1 = arith.constant 0 : i32
    return %c0_i32, %c0_i32_0 : i32, i32
  }
  func.func @transform_16(%arg0: i32) -> (i32, i32) {
    %c0_i32 = arith.constant 0 : i32
    %c0_i32_0 = arith.constant 0 : i32
    %c0_i32_1 = arith.constant 0 : i32
    return %c0_i32, %c0_i32_0 : i32, i32
  }
  func.func @transform_17(%arg0: i32) -> (i32, i32) {
    %c0_i32 = arith.constant 0 : i32
    %c0_i32_0 = arith.constant 0 : i32
    %c0_i32_1 = arith.constant 0 : i32
    return %c0_i32, %c0_i32_0 : i32, i32
  }
  func.func @transform_18(%arg0: i32) -> (i32, i32) {
    %c0_i32 = arith.constant 0 : i32
    %c0_i32_0 = arith.constant 0 : i32
    %c0_i32_1 = arith.constant 0 : i32
    return %c0_i32, %c0_i32_0 : i32, i32
  }
  func.func @transform_19(%arg0: i32) -> (i32, i32) {
    %c0_i32 = arith.constant 0 : i32
    %c0_i32_0 = arith.constant 0 : i32
    %c0_i32_1 = arith.constant 0 : i32
    return %c0_i32, %c0_i32_0 : i32, i32
  }
  func.func @transform_20(%arg0: i32) -> (i32, i32) {
    %c0_i32 = arith.constant 0 : i32
    %c0_i32_0 = arith.constant 0 : i32
    %c0_i32_1 = arith.constant 0 : i32
    return %c0_i32, %c0_i32_0 : i32, i32
  }
  func.func @transform_21(%arg0: i32) -> (i32, i32) {
    %c0_i32 = arith.constant 0 : i32
    %c0_i32_0 = arith.constant 0 : i32
    %c0_i32_1 = arith.constant 0 : i32
    return %c0_i32, %c0_i32_0 : i32, i32
  }
  func.func @transform_22(%arg0: i32) -> (i32, i32) {
    %c0_i32 = arith.constant 0 : i32
    %c0_i32_0 = arith.constant 0 : i32
    %c0_i32_1 = arith.constant 0 : i32
    return %c0_i32, %c0_i32_0 : i32, i32
  }
  func.func @transform_23(%arg0: i32) -> (i32, i32) {
    %c0_i32 = arith.constant 0 : i32
    %c0_i32_0 = arith.constant 0 : i32
    %c0_i32_1 = arith.constant 0 : i32
    return %c0_i32, %c0_i32_0 : i32, i32
  }
  func.func @transform_24(%arg0: i32) -> (i32, i32) {
    %c0_i32 = arith.constant 0 : i32
    %c0_i32_0 = arith.constant 0 : i32
    %c0_i32_1 = arith.constant 0 : i32
    return %c0_i32, %c0_i32_0 : i32, i32
  }
  func.func @transform_25(%arg0: i32) -> (i32, i32) {
    %c0_i32 = arith.constant 0 : i32
    %c0_i32_0 = arith.constant 0 : i32
    %c0_i32_1 = arith.constant 0 : i32
    return %c0_i32, %c0_i32_0 : i32, i32
  }
  func.func @transform_26(%arg0: i32) -> (i32, i32) {
    %c0_i32 = arith.constant 0 : i32
    %c0_i32_0 = arith.constant 0 : i32
    %c0_i32_1 = arith.constant 0 : i32
    return %c0_i32, %c0_i32_0 : i32, i32
  }
  func.func @transform_27(%arg0: i32) -> (i32, i32) {
    %c0_i32 = arith.constant 0 : i32
    %c0_i32_0 = arith.constant 0 : i32
    %c0_i32_1 = arith.constant 0 : i32
    return %c0_i32, %c0_i32_0 : i32, i32
  }
  func.func @transform_28(%arg0: i32) -> (i32, i32) {
    %c0_i32 = arith.constant 0 : i32
    %c0_i32_0 = arith.constant 0 : i32
    %c0_i32_1 = arith.constant 0 : i32
    return %c0_i32, %c0_i32_0 : i32, i32
  }
  func.func @transform_29(%arg0: i32) -> (i32, i32) {
    %c0_i32 = arith.constant 0 : i32
    %c0_i32_0 = arith.constant 0 : i32
    %c0_i32_1 = arith.constant 0 : i32
    return %c0_i32, %c0_i32_0 : i32, i32
  }
}

</mosaic_0001>

<llo_original>
// kernel: tpu_custom_call.1
$region0: #{tpu_custom_call.1}
  #allocation0 [shape = 'u32[]', space=smem, size = 0x4, offset = 0x4, fixed_abs, tag = 'smem constant byte address 0x4 - core index']
  #allocation1 [shape = 'u32[144,128]{1,0:T(1,128)}', space=vmem, size = 0x12000, scoped, tag = 'internal scratch']
  %s0 = inlined_call_operand.smem [shape: u32[30], index: -1, kind: input, shape index: {}]
  %s1 = sld [smem:[%s0]]
  %s2 = scalar_lea.smem %s0, 1
  %s3 = sld [smem:[%s2]]
  %s4 = scalar_lea.smem %s0, 2
  %s5 = sld [smem:[%s4]]
  %s6 = scalar_lea.smem %s0, 3
  %s7 = sld [smem:[%s6]]
  %s8 = scalar_lea.smem %s0, 4
  %s9 = sld [smem:[%s8]]
  %s10 = scalar_lea.smem %s0, 5
  %s11 = sld [smem:[%s10]]
  %s12 = scalar_lea.smem %s0, 6
  %s13 = sld [smem:[%s12]]
  %s14 = scalar_lea.smem %s0, 7
  %s15 = sld [smem:[%s14]]
  %s16 = scalar_lea.smem %s0, 8
  %s17 = sld [smem:[%s16]]
  %s18 = scalar_lea.smem %s0, 9
  %s19 = sld [smem:[%s18]]
  %s20 = scalar_lea.smem %s0, 10
  %s21 = sld [smem:[%s20]]
  %s22 = scalar_lea.smem %s0, 11
  %s23 = sld [smem:[%s22]]
  %s24 = scalar_lea.smem %s0, 12
  %s25 = sld [smem:[%s24]]
  %s26 = scalar_lea.smem %s0, 13
  %s27 = sld [smem:[%s26]]
  %s28 = scalar_lea.smem %s0, 14
  %s29 = sld [smem:[%s28]]
  %s30 = scalar_lea.smem %s0, 15
  %s31 = sld [smem:[%s30]]
  %s32 = scalar_lea.smem %s0, 16
  %s33 = sld [smem:[%s32]]
  %s34 = scalar_lea.smem %s0, 17
  %s35 = sld [smem:[%s34]]
  %s36 = scalar_lea.smem %s0, 18
  %s37 = sld [smem:[%s36]]
  %s38 = scalar_lea.smem %s0, 19
  %s39 = sld [smem:[%s38]]
  %s40 = scalar_lea.smem %s0, 20
  %s41 = sld [smem:[%s40]]
  %s42 = scalar_lea.smem %s0, 21
  %s43 = sld [smem:[%s42]]
  %s44 = scalar_lea.smem %s0, 22
  %s45 = sld [smem:[%s44]]
  %s46 = scalar_lea.smem %s0, 23
  %s47 = sld [smem:[%s46]]
  %s48 = scalar_lea.smem %s0, 24
  %s49 = sld [smem:[%s48]]
  %s50 = scalar_lea.smem %s0, 25
  %s51 = sld [smem:[%s50]]
  %s52 = scalar_lea.smem %s0, 26
  %s53 = sld [smem:[%s52]]
  %s54 = scalar_lea.smem %s0, 27
  %s55 = sld [smem:[%s54]]
  %s56 = scalar_lea.smem %s0, 28
  %s57 = sld [smem:[%s56]]
  %s58 = scalar_lea.smem %s0, 29
  %s59 = sld [smem:[%s58]]
  %s60 = sld [smem:[#allocation0]]
  $region178: #{tpu_custom_call.1} parent=0
    _
  %s62 = ssub.s32 1, %s60
  %s63 = scalar_select 0, %s62, %s60
  $region1: #{tpu_custom_call.1} parent=0
    #allocation2 [shape = 'u8[8192]{0}', space=vmem, size = 0x2000, scoped, tag = 'input window, operand 0, single buffered']
    #allocation3 [shape = 's32[1]{0}', space=sflag, size = 0x4, scoped, tag = 'scoped memory for tpu_custom_call.1']
    #allocation4 [shape = 's32[1]{0}', space=sflag, size = 0x4, scoped, tag = 'scoped memory for tpu_custom_call.1']
    #allocation5 [shape = 'u8[98304]{0}', space=vmem, size = 0x18000, scoped, tag = 'input window, operand 1, single buffered']
    #allocation6 [shape = 's32[1]{0}', space=sflag, size = 0x4, scoped, tag = 'scoped memory for tpu_custom_call.1']
    #allocation7 [shape = 'u8[32768]{0}', space=vmem, size = 0x8000, scoped, tag = 'input window, operand 3, single buffered']
    #allocation8 [shape = 'u8[512]{0}', space=vmem, size = 0x400, scoped, tag = 'input window, operand 4, single buffered']
    #allocation9 [shape = 's32[1]{0}', space=sflag, size = 0x4, scoped, tag = 'scoped memory for tpu_custom_call.1']
    #allocation10 [shape = 'u8[512]{0}', space=vmem, size = 0x400, scoped, tag = 'input window, operand 5, single buffered']
    #allocation11 [shape = 'u8[131072]{0}', space=vmem, size = 0x20000, scoped, tag = 'input window, operand 7, single buffered']
    #allocation12 [shape = 's32[1]{0}', space=sflag, size = 0x4, scoped, tag = 'scoped memory for tpu_custom_call.1']
    #allocation13 [shape = 'u8[131072]{0}', space=vmem, size = 0x20000, scoped, tag = 'input window, operand 9, single buffered']
    #allocation14 [shape = 'u8[98304]{0}', space=vmem, size = 0x18000, scoped, tag = 'input window, operand 13, single buffered']
    #allocation15 [shape = 's32[1]{0}', space=sflag, size = 0x4, scoped, tag = 'scoped memory for tpu_custom_call.1']
    #allocation16 [shape = 'u8[32768]{0}', space=vmem, size = 0x8000, scoped, tag = 'input window, operand 15, single buffered']
    #allocation17 [shape = 'u8[131072]{0}', space=vmem, size = 0x20000, scoped, tag = 'input window, operand 19, single buffered']
    #allocation18 [shape = 's32[1]{0}', space=sflag, size = 0x4, scoped, tag = 'scoped memory for tpu_custom_call.1']
    #allocation19 [shape = 'u8[131072]{0}', space=vmem, size = 0x20000, scoped, tag = 'input window, operand 21, single buffered']
    #allocation20 [shape = 'u8[131072]{0}', space=vmem, size = 0x20000, scoped, tag = 'input window, operand 25, single buffered']
    #allocation21 [shape = 's32[1]{0}', space=sflag, size = 0x4, scoped, tag = 'scoped memory for tpu_custom_call.1']
    #allocation22 [shape = 'u8[131072]{0}', space=vmem, size = 0x20000, scoped, tag = 'input window, operand 27, single buffered']
    #allocation23 [shape = 'u8[4096]{0}', space=vmem, size = 0x1000, scoped, tag = 'output window, operand 0, single buffered']
    %64 = vsyncpa [#allocation3], 0
    %65 = vsyncpa [#allocation6], 0
    %66 = vsyncpa [#allocation9], 0
    %67 = vsyncpa [#allocation12], 0
    %68 = vsyncpa [#allocation15], 0
    %69 = vsyncpa [#allocation18], 0
    %70 = vsyncpa [#allocation21], 0
    %71 = vsyncpa [#allocation4], 0
    // Predicated region
    $region2: #{tpu_custom_call.1} parent=1 // pred_check
      _
    $region3: #{tpu_custom_call.1} parent=1 // pred_check_branch
      %73 = sbr.rel (0) target = $region5
    $region4: #{tpu_custom_call.1} parent=1 // pred_region
      %s75 = ssub.s32 256, 256
      %76 = vsyncadd [#allocation3], %s75
      %s77 = sshll.u32 [#allocation2], 4
      %s78 = int_to_ptr.vmem [resolvable:$true] %s77
      %83 = dma.hbm_to_vmem [thread:$0]  %s1, 256, %s78, [#allocation3], 128, 128, 8
    $region5: #{tpu_custom_call.1} parent=1 // pred_fallthru
      _
    // Predicated region
    $region6: #{tpu_custom_call.1} parent=1 // pred_check
      _
    $region7: #{tpu_custom_call.1} parent=1 // pred_check_branch
      %85 = sbr.rel (0) target = $region9
    $region8: #{tpu_custom_call.1} parent=1 // pred_region
      %s87 = ssub.s32 3072, 3072
      %88 = vsyncadd [#allocation6], %s87
      %s89 = sshll.u32 [#allocation5], 4
      %s90 = int_to_ptr.vmem [resolvable:$true] %s89
      %95 = dma.hbm_to_vmem [thread:$0]  %s3, 3072, %s90, [#allocation6], 192, 192, 12
    $region9: #{tpu_custom_call.1} parent=1 // pred_fallthru
      _
    // Predicated region
    $region10: #{tpu_custom_call.1} parent=1 // pred_check
      _
    $region11: #{tpu_custom_call.1} parent=1 // pred_check_branch
      %97 = sbr.rel (0) target = $region13
    $region12: #{tpu_custom_call.1} parent=1 // pred_region
      _
    $region13: #{tpu_custom_call.1} parent=1 // pred_fallthru
      _
    // Predicated region
    $region14: #{tpu_custom_call.1} parent=1 // pred_check
      _
    $region15: #{tpu_custom_call.1} parent=1 // pred_check_branch
      %99 = sbr.rel (0) target = $region17
    $region16: #{tpu_custom_call.1} parent=1 // pred_region
      %s101 = ssub.s32 1024, 1024
      %102 = vsyncadd [#allocation6], %s101
      %s103 = sshll.u32 [#allocation7], 4
      %s104 = int_to_ptr.vmem [resolvable:$true] %s103
      %109 = dma.hbm_to_vmem [thread:$0]  %s7, 1024, %s104, [#allocation6], 64, 64, 4
    $region17: #{tpu_custom_call.1} parent=1 // pred_fallthru
      _
    // Predicated region
    $region18: #{tpu_custom_call.1} parent=1 // pred_check
      _
    $region19: #{tpu_custom_call.1} parent=1 // pred_check_branch
      %111 = sbr.rel (0) target = $region21
    $region20: #{tpu_custom_call.1} parent=1 // pred_region
      %s113 = ssub.s32 16, 16
      %114 = vsyncadd [#allocation9], %s113
      %s116 = sshll.u32 [#allocation8], 4
      %s117 = int_to_ptr.vmem [resolvable:$true] %s116
      %119 = dma.hbm_to_vmem [thread:$0]  %s9, 16, %s117, [#allocation9]
    $region21: #{tpu_custom_call.1} parent=1 // pred_fallthru
      _
    // Predicated region
    $region22: #{tpu_custom_call.1} parent=1 // pred_check
      _
    $region23: #{tpu_custom_call.1} parent=1 // pred_check_branch
      %121 = sbr.rel (0) target = $region25
    $region24: #{tpu_custom_call.1} parent=1 // pred_region
      %s123 = ssub.s32 16, 16
      %124 = vsyncadd [#allocation9], %s123
      %s126 = sshll.u32 [#allocation10], 4
      %s127 = int_to_ptr.vmem [resolvable:$true] %s126
      %129 = dma.hbm_to_vmem [thread:$0]  %s11, 16, %s127, [#allocation9]
    $region25: #{tpu_custom_call.1} parent=1 // pred_fallthru
      _
    // Predicated region
    $region26: #{tpu_custom_call.1} parent=1 // pred_check
      _
    $region27: #{tpu_custom_call.1} parent=1 // pred_check_branch
      %131 = sbr.rel (0) target = $region29
    $region28: #{tpu_custom_call.1} parent=1 // pred_region
      _
    $region29: #{tpu_custom_call.1} parent=1 // pred_fallthru
      _
    // Predicated region
    $region30: #{tpu_custom_call.1} parent=1 // pred_check
      _
    $region31: #{tpu_custom_call.1} parent=1 // pred_check_branch
      %133 = sbr.rel (0) target = $region33
    $region32: #{tpu_custom_call.1} parent=1 // pred_region
      %s135 = ssub.s32 4096, 4096
      %136 = vsyncadd [#allocation12], %s135
      %s137 = sshll.u32 [#allocation11], 4
      %s138 = int_to_ptr.vmem [resolvable:$true] %s137
      %143 = dma.hbm_to_vmem [thread:$0]  %s15, 4096, %s138, [#allocation12], 256, 256, 16
    $region33: #{tpu_custom_call.1} parent=1 // pred_fallthru
      _
    // Predicated region
    $region34: #{tpu_custom_call.1} parent=1 // pred_check
      _
    $region35: #{tpu_custom_call.1} parent=1 // pred_check_branch
      %145 = sbr.rel (0) target = $region37
    $region36: #{tpu_custom_call.1} parent=1 // pred_region
      _
    $region37: #{tpu_custom_call.1} parent=1 // pred_fallthru
      _
    // Predicated region
    $region38: #{tpu_custom_call.1} parent=1 // pred_check
      _
    $region39: #{tpu_custom_call.1} parent=1 // pred_check_branch
      %147 = sbr.rel (0) target = $region41
    $region40: #{tpu_custom_call.1} parent=1 // pred_region
      %s149 = ssub.s32 4096, 4096
      %150 = vsyncadd [#allocation12], %s149
      %s151 = sshll.u32 [#allocation13], 4
      %s152 = int_to_ptr.vmem [resolvable:$true] %s151
      %157 = dma.hbm_to_vmem [thread:$0]  %s19, 4096, %s152, [#allocation12], 64, 64, 4
    $region41: #{tpu_custom_call.1} parent=1 // pred_fallthru
      _
    // Predicated region
    $region42: #{tpu_custom_call.1} parent=1 // pred_check
      _
    $region43: #{tpu_custom_call.1} parent=1 // pred_check_branch
      %159 = sbr.rel (0) target = $region45
    $region44: #{tpu_custom_call.1} parent=1 // pred_region
      _
    $region45: #{tpu_custom_call.1} parent=1 // pred_fallthru
      _
    // Predicated region
    $region46: #{tpu_custom_call.1} parent=1 // pred_check
      _
    $region47: #{tpu_custom_call.1} parent=1 // pred_check_branch
      %161 = sbr.rel (0) target = $region49
    $region48: #{tpu_custom_call.1} parent=1 // pred_region
      _
    $region49: #{tpu_custom_call.1} parent=1 // pred_fallthru
      _
    // Predicated region
    $region50: #{tpu_custom_call.1} parent=1 // pred_check
      _
    $region51: #{tpu_custom_call.1} parent=1 // pred_check_branch
      %163 = sbr.rel (0) target = $region53
    $region52: #{tpu_custom_call.1} parent=1 // pred_region
      _
    $region53: #{tpu_custom_call.1} parent=1 // pred_fallthru
      _
    // Predicated region
    $region54: #{tpu_custom_call.1} parent=1 // pred_check
      _
    $region55: #{tpu_custom_call.1} parent=1 // pred_check_branch
      %165 = sbr.rel (0) target = $region57
    $region56: #{tpu_custom_call.1} parent=1 // pred_region
      %s167 = ssub.s32 3072, 3072
      %168 = vsyncadd [#allocation15], %s167
      %s169 = sshll.u32 [#allocation14], 4
      %s170 = int_to_ptr.vmem [resolvable:$true] %s169
      %175 = dma.hbm_to_vmem [thread:$0]  %s27, 3072, %s170, [#allocation15], 192, 192, 12
    $region57: #{tpu_custom_call.1} parent=1 // pred_fallthru
      _
    // Predicated region
    $region58: #{tpu_custom_call.1} parent=1 // pred_check
      _
    $region59: #{tpu_custom_call.1} parent=1 // pred_check_branch
      %177 = sbr.rel (0) target = $region61
    $region60: #{tpu_custom_call.1} parent=1 // pred_region
      _
    $region61: #{tpu_custom_call.1} parent=1 // pred_fallthru
      _
    // Predicated region
    $region62: #{tpu_custom_call.1} parent=1 // pred_check
      _
    $region63: #{tpu_custom_call.1} parent=1 // pred_check_branch
      %179 = sbr.rel (0) target = $region65
    $region64: #{tpu_custom_call.1} parent=1 // pred_region
      %s181 = ssub.s32 1024, 1024
      %182 = vsyncadd [#allocation15], %s181
      %s183 = sshll.u32 [#allocation16], 4
      %s184 = int_to_ptr.vmem [resolvable:$true] %s183
      %189 = dma.hbm_to_vmem [thread:$0]  %s31, 1024, %s184, [#allocation15], 64, 64, 4
    $region65: #{tpu_custom_call.1} parent=1 // pred_fallthru
      _
    // Predicated region
    $region66: #{tpu_custom_call.1} parent=1 // pred_check
      _
    $region67: #{tpu_custom_call.1} parent=1 // pred_check_branch
      %191 = sbr.rel (0) target = $region69
    $region68: #{tpu_custom_call.1} parent=1 // pred_region
      _
    $region69: #{tpu_custom_call.1} parent=1 // pred_fallthru
      _
    // Predicated region
    $region70: #{tpu_custom_call.1} parent=1 // pred_check
      _
    $region71: #{tpu_custom_call.1} parent=1 // pred_check_branch
      %193 = sbr.rel (0) target = $region73
    $region72: #{tpu_custom_call.1} parent=1 // pred_region
      _
    $region73: #{tpu_custom_call.1} parent=1 // pred_fallthru
      _
    // Predicated region
    $region74: #{tpu_custom_call.1} parent=1 // pred_check
      _
    $region75: #{tpu_custom_call.1} parent=1 // pred_check_branch
      %195 = sbr.rel (0) target = $region77
    $region76: #{tpu_custom_call.1} parent=1 // pred_region
      _
    $region77: #{tpu_custom_call.1} parent=1 // pred_fallthru
      _
    // Predicated region
    $region78: #{tpu_custom_call.1} parent=1 // pred_check
      _
    $region79: #{tpu_custom_call.1} parent=1 // pred_check_branch
      %197 = sbr.rel (0) target = $region81
    $region80: #{tpu_custom_call.1} parent=1 // pred_region
      %s199 = ssub.s32 4096, 4096
      %200 = vsyncadd [#allocation18], %s199
      %s201 = sshll.u32 [#allocation17], 4
      %s202 = int_to_ptr.vmem [resolvable:$true] %s201
      %207 = dma.hbm_to_vmem [thread:$0]  %s39, 4096, %s202, [#allocation18], 256, 256, 16
    $region81: #{tpu_custom_call.1} parent=1 // pred_fallthru
      _
    // Predicated region
    $region82: #{tpu_custom_call.1} parent=1 // pred_check
      _
    $region83: #{tpu_custom_call.1} parent=1 // pred_check_branch
      %209 = sbr.rel (0) target = $region85
    $region84: #{tpu_custom_call.1} parent=1 // pred_region
      _
    $region85: #{tpu_custom_call.1} parent=1 // pred_fallthru
      _
    // Predicated region
    $region86: #{tpu_custom_call.1} parent=1 // pred_check
      _
    $region87: #{tpu_custom_call.1} parent=1 // pred_check_branch
      %211 = sbr.rel (0) target = $region89
    $region88: #{tpu_custom_call.1} parent=1 // pred_region
      %s213 = ssub.s32 4096, 4096
      %214 = vsyncadd [#allocation18], %s213
      %s215 = sshll.u32 [#allocation19], 4
      %s216 = int_to_ptr.vmem [resolvable:$true] %s215
      %221 = dma.hbm_to_vmem [thread:$0]  %s43, 4096, %s216, [#allocation18], 64, 64, 4
    $region89: #{tpu_custom_call.1} parent=1 // pred_fallthru
      _
    // Predicated region
    $region90: #{tpu_custom_call.1} parent=1 // pred_check
      _
    $region91: #{tpu_custom_call.1} parent=1 // pred_check_branch
      %223 = sbr.rel (0) target = $region93
    $region92: #{tpu_custom_call.1} parent=1 // pred_region
      _
    $region93: #{tpu_custom_call.1} parent=1 // pred_fallthru
      _
    // Predicated region
    $region94: #{tpu_custom_call.1} parent=1 // pred_check
      _
    $region95: #{tpu_custom_call.1} parent=1 // pred_check_branch
      %225 = sbr.rel (0) target = $region97
    $region96: #{tpu_custom_call.1} parent=1 // pred_region
      _
    $region97: #{tpu_custom_call.1} parent=1 // pred_fallthru
      _
    // Predicated region
    $region98: #{tpu_custom_call.1} parent=1 // pred_check
      _
    $region99: #{tpu_custom_call.1} parent=1 // pred_check_branch
      %227 = sbr.rel (0) target = $region101
    $region100: #{tpu_custom_call.1} parent=1 // pred_region
      _
    $region101: #{tpu_custom_call.1} parent=1 // pred_fallthru
      _
    // Predicated region
    $region102: #{tpu_custom_call.1} parent=1 // pred_check
      _
    $region103: #{tpu_custom_call.1} parent=1 // pred_check_branch
      %229 = sbr.rel (0) target = $region105
    $region104: #{tpu_custom_call.1} parent=1 // pred_region
      %s231 = ssub.s32 4096, 4096
      %232 = vsyncadd [#allocation21], %s231
      %s233 = sshll.u32 [#allocation20], 4
      %s234 = int_to_ptr.vmem [resolvable:$true] %s233
      %239 = dma.hbm_to_vmem [thread:$0]  %s51, 4096, %s234, [#allocation21], 256, 256, 16
    $region105: #{tpu_custom_call.1} parent=1 // pred_fallthru
      _
    // Predicated region
    $region106: #{tpu_custom_call.1} parent=1 // pred_check
      _
    $region107: #{tpu_custom_call.1} parent=1 // pred_check_branch
      %241 = sbr.rel (0) target = $region109
    $region108: #{tpu_custom_call.1} parent=1 // pred_region
      _
    $region109: #{tpu_custom_call.1} parent=1 // pred_fallthru
      _
    // Predicated region
    $region110: #{tpu_custom_call.1} parent=1 // pred_check
      _
    $region111: #{tpu_custom_call.1} parent=1 // pred_check_branch
      %243 = sbr.rel (0) target = $region113
    $region112: #{tpu_custom_call.1} parent=1 // pred_region
      %s245 = ssub.s32 4096, 4096
      %246 = vsyncadd [#allocation21], %s245
      %s247 = sshll.u32 [#allocation22], 4
      %s248 = int_to_ptr.vmem [resolvable:$true] %s247
      %253 = dma.hbm_to_vmem [thread:$0]  %s55, 4096, %s248, [#allocation21], 64, 64, 4
    $region113: #{tpu_custom_call.1} parent=1 // pred_fallthru
      _
    // Predicated region
    $region114: #{tpu_custom_call.1} parent=1 // pred_check
      _
    $region115: #{tpu_custom_call.1} parent=1 // pred_check_branch
      %255 = sbr.rel (0) target = $region117
    $region116: #{tpu_custom_call.1} parent=1 // pred_region
      _
    $region117: #{tpu_custom_call.1} parent=1 // pred_fallthru
      _
    // Predicated region
    $region118: #{tpu_custom_call.1} parent=1 // pred_check
      _
    $region119: #{tpu_custom_call.1} parent=1 // pred_check_branch
      %257 = sbr.rel (0) target = $region121
    $region120: #{tpu_custom_call.1} parent=1 // pred_region
      %258 = dma.done [#allocation3], 256
    $region121: #{tpu_custom_call.1} parent=1 // pred_fallthru
      _
    // Predicated region
    $region122: #{tpu_custom_call.1} parent=1 // pred_check
      _
    $region123: #{tpu_custom_call.1} parent=1 // pred_check_branch
      %260 = sbr.rel (0) target = $region125
    $region124: #{tpu_custom_call.1} parent=1 // pred_region
      %261 = dma.done [#allocation6], 3072
    $region125: #{tpu_custom_call.1} parent=1 // pred_fallthru
      _
    // Predicated region
    $region126: #{tpu_custom_call.1} parent=1 // pred_check
      _
    $region127: #{tpu_custom_call.1} parent=1 // pred_check_branch
      %263 = sbr.rel (0) target = $region129
    $region128: #{tpu_custom_call.1} parent=1 // pred_region
      %264 = dma.done [#allocation6], 1024
    $region129: #{tpu_custom_call.1} parent=1 // pred_fallthru
      _
    // Predicated region
    $region130: #{tpu_custom_call.1} parent=1 // pred_check
      _
    $region131: #{tpu_custom_call.1} parent=1 // pred_check_branch
      %266 = sbr.rel (0) target = $region133
    $region132: #{tpu_custom_call.1} parent=1 // pred_region
      %267 = dma.done [#allocation9], 16
    $region133: #{tpu_custom_call.1} parent=1 // pred_fallthru
      _
    // Predicated region
    $region134: #{tpu_custom_call.1} parent=1 // pred_check
      _
    $region135: #{tpu_custom_call.1} parent=1 // pred_check_branch
      %269 = sbr.rel (0) target = $region137
    $region136: #{tpu_custom_call.1} parent=1 // pred_region
      %270 = dma.done [#allocation9], 16
    $region137: #{tpu_custom_call.1} parent=1 // pred_fallthru
      _
    // Predicated region
    $region138: #{tpu_custom_call.1} parent=1 // pred_check
      _
    $region139: #{tpu_custom_call.1} parent=1 // pred_check_branch
      %272 = sbr.rel (0) target = $region141
    $region140: #{tpu_custom_call.1} parent=1 // pred_region
      %273 = dma.done [#allocation12], 4096
    $region141: #{tpu_custom_call.1} parent=1 // pred_fallthru
      _
    // Predicated region
    $region142: #{tpu_custom_call.1} parent=1 // pred_check
      _
    $region143: #{tpu_custom_call.1} parent=1 // pred_check_branch
      %275 = sbr.rel (0) target = $region145
    $region144: #{tpu_custom_call.1} parent=1 // pred_region
      %276 = dma.done [#allocation12], 4096
    $region145: #{tpu_custom_call.1} parent=1 // pred_fallthru
      _
    // Predicated region
    $region146: #{tpu_custom_call.1} parent=1 // pred_check
      _
    $region147: #{tpu_custom_call.1} parent=1 // pred_check_branch
      %278 = sbr.rel (0) target = $region149
    $region148: #{tpu_custom_call.1} parent=1 // pred_region
      %279 = dma.done [#allocation15], 3072
    $region149: #{tpu_custom_call.1} parent=1 // pred_fallthru
      _
    // Predicated region
    $region150: #{tpu_custom_call.1} parent=1 // pred_check
      _
    $region151: #{tpu_custom_call.1} parent=1 // pred_check_branch
      %281 = sbr.rel (0) target = $region153
    $region152: #{tpu_custom_call.1} parent=1 // pred_region
      %282 = dma.done [#allocation15], 1024
    $region153: #{tpu_custom_call.1} parent=1 // pred_fallthru
      _
    // Predicated region
    $region154: #{tpu_custom_call.1} parent=1 // pred_check
      _
    $region155: #{tpu_custom_call.1} parent=1 // pred_check_branch
      %284 = sbr.rel (0) target = $region157
    $region156: #{tpu_custom_call.1} parent=1 // pred_region
      %285 = dma.done [#allocation18], 4096
    $region157: #{tpu_custom_call.1} parent=1 // pred_fallthru
      _
    // Predicated region
    $region158: #{tpu_custom_call.1} parent=1 // pred_check
      _
    $region159: #{tpu_custom_call.1} parent=1 // pred_check_branch
      %287 = sbr.rel (0) target = $region161
    $region160: #{tpu_custom_call.1} parent=1 // pred_region
      %288 = dma.done [#allocation18], 4096
    $region161: #{tpu_custom_call.1} parent=1 // pred_fallthru
      _
    // Predicated region
    $region162: #{tpu_custom_call.1} parent=1 // pred_check
      _
    $region163: #{tpu_custom_call.1} parent=1 // pred_check_branch
      %290 = sbr.rel (0) target = $region165
    $region164: #{tpu_custom_call.1} parent=1 // pred_region
      %291 = dma.done [#allocation21], 4096
    $region165: #{tpu_custom_call.1} parent=1 // pred_fallthru
      _
    // Predicated region
    $region166: #{tpu_custom_call.1} parent=1 // pred_check
      _
    $region167: #{tpu_custom_call.1} parent=1 // pred_check_branch
      %293 = sbr.rel (0) target = $region169
    $region168: #{tpu_custom_call.1} parent=1 // pred_region
      %294 = dma.done [#allocation21], 4096
    $region169: #{tpu_custom_call.1} parent=1 // pred_fallthru
      _
    %v296 = vld [vmem:[#allocation2] sm:$0xff]
    %v297 = vld [vmem:[#allocation2 + $0x8] sm:$0xff]
    %v298 = vpack.c.bf16 %v297, %v296
    %v299 = vld [vmem:[#allocation5] sm:$0xff]
    %v300 = vld [vmem:[#allocation5 + $0x8] sm:$0xf]
    %v301 = vld [vmem:[#allocation5 + $0xc] sm:$0xff]
    %v302 = vld [vmem:[#allocation5 + $0x14] sm:$0xf]
    %v303 = vld [vmem:[#allocation5 + $0x18] sm:$0xff]
    %v304 = vld [vmem:[#allocation5 + $0x20] sm:$0xf]
    %v305 = vld [vmem:[#allocation5 + $0x24] sm:$0xff]
    %v306 = vld [vmem:[#allocation5 + $0x2c] sm:$0xf]
    %v307 = vld [vmem:[#allocation5 + $0x30] sm:$0xff]
    %v308 = vld [vmem:[#allocation5 + $0x38] sm:$0xf]
    %v309 = vld [vmem:[#allocation5 + $0x3c] sm:$0xff]
    %v310 = vld [vmem:[#allocation5 + $0x44] sm:$0xf]
    %v311 = vld [vmem:[#allocation5 + $0x48] sm:$0xff]
    %v312 = vld [vmem:[#allocation5 + $0x50] sm:$0xf]
    %v313 = vld [vmem:[#allocation5 + $0x54] sm:$0xff]
    %v314 = vld [vmem:[#allocation5 + $0x5c] sm:$0xf]
    %v315 = vld [vmem:[#allocation5 + $0x60] sm:$0xff]
    %v316 = vld [vmem:[#allocation5 + $0x68] sm:$0xf]
    %v317 = vld [vmem:[#allocation5 + $0x6c] sm:$0xff]
    %v318 = vld [vmem:[#allocation5 + $0x74] sm:$0xf]
    %v319 = vld [vmem:[#allocation5 + $0x78] sm:$0xff]
    %v320 = vld [vmem:[#allocation5 + $0x80] sm:$0xf]
    %v321 = vld [vmem:[#allocation5 + $0x84] sm:$0xff]
    %v322 = vld [vmem:[#allocation5 + $0x8c] sm:$0xf]
    %v323 = vld [vmem:[#allocation5 + $0x90] sm:$0xff]
    %v324 = vld [vmem:[#allocation5 + $0x98] sm:$0xf]
    %v325 = vld [vmem:[#allocation5 + $0x9c] sm:$0xff]
    %v326 = vld [vmem:[#allocation5 + $0xa4] sm:$0xf]
    %v327 = vld [vmem:[#allocation5 + $0xa8] sm:$0xff]
    %v328 = vld [vmem:[#allocation5 + $0xb0] sm:$0xf]
    %v329 = vld [vmem:[#allocation5 + $0xb4] sm:$0xff]
    %v330 = vld [vmem:[#allocation5 + $0xbc] sm:$0xf]
    %v331 = vld [vmem:[%s5] sm:$0x7]
    %v333 = vlaneseq
    %v334 = vshrl.u32 %v333, 7
    %v335 = vsub.s32 0, %v334
    %v336 = vrot.slane %v331, %v335
    %v337 = vlaneseq
    %v338 = vshrl.u32 %v337, 7
    %v339 = vsub.s32 1, %v338
    %v340 = vrot.slane %v331, %v339
    %v341 = vlaneseq
    %v342 = vshrl.u32 %v341, 7
    %v343 = vsub.s32 2, %v342
    %v344 = vrot.slane %v331, %v343
    %v380 = vunpack.c.l.b16 %v299
    %v381 = vunpack.c.h.b16 %v299
    %v382 = vunpack.c.l.b16 %v300
    %v383 = vunpack.c.l.b16 %v301
    %v384 = vunpack.c.h.b16 %v301
    %v385 = vunpack.c.l.b16 %v302
    %v386 = vunpack.c.l.b16 %v303
    %v387 = vunpack.c.h.b16 %v303
    %v388 = vunpack.c.l.b16 %v304
    %v389 = vunpack.c.l.b16 %v305
    %v390 = vunpack.c.h.b16 %v305
    %v391 = vunpack.c.l.b16 %v306
    %v392 = vunpack.c.l.b16 %v307
    %v393 = vunpack.c.h.b16 %v307
    %v394 = vunpack.c.l.b16 %v308
    %v395 = vunpack.c.l.b16 %v309
    %v396 = vunpack.c.h.b16 %v309
    %v397 = vunpack.c.l.b16 %v310
    %v398 = vunpack.c.l.b16 %v311
    %v399 = vunpack.c.h.b16 %v311
    %v400 = vunpack.c.l.b16 %v312
    %v401 = vunpack.c.l.b16 %v313
    %v402 = vunpack.c.h.b16 %v313
    %v403 = vunpack.c.l.b16 %v314
    %v404 = vunpack.c.l.b16 %v315
    %v405 = vunpack.c.h.b16 %v315
    %v406 = vunpack.c.l.b16 %v316
    %v407 = vunpack.c.l.b16 %v317
    %v408 = vunpack.c.h.b16 %v317
    %v409 = vunpack.c.l.b16 %v318
    %v410 = vunpack.c.l.b16 %v319
    %v411 = vunpack.c.h.b16 %v319
    %v412 = vunpack.c.l.b16 %v320
    %v413 = vunpack.c.l.b16 %v321
    %v414 = vunpack.c.h.b16 %v321
    %v415 = vunpack.c.l.b16 %v322
    %v416 = vunpack.c.l.b16 %v323
    %v417 = vunpack.c.h.b16 %v323
    %v418 = vunpack.c.l.b16 %v324
    %v419 = vunpack.c.l.b16 %v325
    %v420 = vunpack.c.h.b16 %v325
    %v421 = vunpack.c.l.b16 %v326
    %v422 = vunpack.c.l.b16 %v327
    %v423 = vunpack.c.h.b16 %v327
    %v424 = vunpack.c.l.b16 %v328
    %v425 = vunpack.c.l.b16 %v329
    %v426 = vunpack.c.h.b16 %v329
    %v427 = vunpack.c.l.b16 %v330
    %v428 = vpack.c.b16 %v383, %v380
    %v429 = vpack.c.b16 %v384, %v381
    %v430 = vpack.c.b16 %v385, %v382
    %v431 = vpack.c.b16 %v389, %v386
    %v432 = vpack.c.b16 %v390, %v387
    %v433 = vpack.c.b16 %v391, %v388
    %v434 = vpack.c.b16 %v395, %v392
    %v435 = vpack.c.b16 %v396, %v393
    %v436 = vpack.c.b16 %v397, %v394
    %v437 = vpack.c.b16 %v401, %v398
    %v438 = vpack.c.b16 %v402, %v399
    %v439 = vpack.c.b16 %v403, %v400
    %v440 = vpack.c.b16 %v407, %v404
    %v441 = vpack.c.b16 %v408, %v405
    %v442 = vpack.c.b16 %v409, %v406
    %v443 = vpack.c.b16 %v413, %v410
    %v444 = vpack.c.b16 %v414, %v411
    %v445 = vpack.c.b16 %v415, %v412
    %v446 = vpack.c.b16 %v419, %v416
    %v447 = vpack.c.b16 %v420, %v417
    %v448 = vpack.c.b16 %v421, %v418
    %v449 = vpack.c.b16 %v425, %v422
    %v450 = vpack.c.b16 %v426, %v423
    %v451 = vpack.c.b16 %v427, %v424
    %476 = vmatprep.subr.bf16.mxu0 %v429
    %477 = vmatpush1.bf16.msra.mxu0 %v428
    %478 = vmatprep.subr.bf16.mxu0 %v432
    %479 = vmatpush1.bf16.msra.mxu0 %v431
    %480 = vmatprep.subr.bf16.mxu0 %v435
    %481 = vmatpush1.bf16.msra.mxu0 %v434
    %482 = vmatprep.subr.bf16.mxu0 %v438
    %483 = vmatpush1.bf16.msra.mxu0 %v437
    %484 = vmatprep.subr.bf16.mxu0 %v441
    %485 = vmatpush1.bf16.msra.mxu0 %v440
    %486 = vmatprep.subr.bf16.mxu0 %v444
    %487 = vmatpush1.bf16.msra.mxu0 %v443
    %488 = vmatprep.subr.bf16.mxu0 %v447
    %489 = vmatpush1.bf16.msra.mxu0 %v446
    %490 = vmatprep.subr.bf16.mxu0 %v450
    %491 = vmatpush1.bf16.msra.mxu0 %v449
    %492 = vmatprep.subr.bf16.mxu0 0
    %493 = vmatpush1.bf16.msra.mxu0 0
    %494 = vmatprep.subr.bf16.mxu0 0
    %495 = vmatpush1.bf16.msra.mxu0 0
    %496 = vmatprep.subr.bf16.mxu0 0
    %497 = vmatpush1.bf16.msra.mxu0 0
    %498 = vmatprep.subr.bf16.mxu0 0
    %499 = vmatpush1.bf16.msra.mxu0 0
    %500 = vmatprep.subr.bf16.mxu0 0
    %501 = vmatpush1.bf16.msra.mxu0 0
    %502 = vmatprep.subr.bf16.mxu0 0
    %503 = vmatpush1.bf16.msra.mxu0 0
    %504 = vmatprep.subr.bf16.mxu0 0
    %505 = vmatpush1.bf16.msra.mxu0 0
    %506 = vmatprep.subr.bf16.mxu0 0
    %507 = vmatpush1.bf16.msra.mxu0 0
    %508 = vmatprep.mubr.bf16.mxu0 0
    %509 = vmatmul.mubr.bf16.gmra.mrb[0].mxu0 %v298
    %v510 = vpop.f32.mrb[0].mxu0
    %v511 = vadd.f32 %v336, %v510
    %v512 = vpop.f32.mrb[0].mxu0
    %v513 = vadd.f32 %v340, %v512
    %v514 = vpop.f32.mrb[0].mxu0
    %v515 = vadd.f32 %v336, %v514
    %v516 = vpop.f32.mrb[0].mxu0
    %v517 = vadd.f32 %v340, %v516
    %518 = vdwg.mxu0
    %519 = vmatprep.subr.bf16.mxu0 0
    %520 = vmatpush1.bf16.msra.mxu0 %v430
    %521 = vmatprep.subr.bf16.mxu0 0
    %522 = vmatpush1.bf16.msra.mxu0 %v433
    %523 = vmatprep.subr.bf16.mxu0 0
    %524 = vmatpush1.bf16.msra.mxu0 %v436
    %525 = vmatprep.subr.bf16.mxu0 0
    %526 = vmatpush1.bf16.msra.mxu0 %v439
    %527 = vmatprep.subr.bf16.mxu0 0
    %528 = vmatpush1.bf16.msra.mxu0 %v442
    %529 = vmatprep.subr.bf16.mxu0 0
    %530 = vmatpush1.bf16.msra.mxu0 %v445
    %531 = vmatprep.subr.bf16.mxu0 0
    %532 = vmatpush1.bf16.msra.mxu0 %v448
    %533 = vmatprep.subr.bf16.mxu0 0
    %534 = vmatpush1.bf16.msra.mxu0 %v451
    %535 = vmatprep.subr.bf16.mxu0 0
    %536 = vmatpush1.bf16.msra.mxu0 0
    %537 = vmatprep.subr.bf16.mxu0 0
    %538 = vmatpush1.bf16.msra.mxu0 0
    %539 = vmatprep.subr.bf16.mxu0 0
    %540 = vmatpush1.bf16.msra.mxu0 0
    %541 = vmatprep.subr.bf16.mxu0 0
    %542 = vmatpush1.bf16.msra.mxu0 0
    %543 = vmatprep.subr.bf16.mxu0 0
    %544 = vmatpush1.bf16.msra.mxu0 0
    %545 = vmatprep.subr.bf16.mxu0 0
    %546 = vmatpush1.bf16.msra.mxu0 0
    %547 = vmatprep.subr.bf16.mxu0 0
    %548 = vmatpush1.bf16.msra.mxu0 0
    %549 = vmatprep.subr.bf16.mxu0 0
    %550 = vmatpush1.bf16.msra.mxu0 0
    %551 = vmatprep.mubr.bf16.mxu0 0
    %552 = vmatmul.mubr.bf16.gmra.mrb[0].mxu0 %v298
    %v553 = vpop.f32.mrb[0].mxu0
    %v554 = vadd.f32 %v344, %v553
    %v555 = vpop.f32.mrb[0].mxu0
    %v556 = vpop.f32.mrb[0].mxu0
    %v557 = vadd.f32 %v344, %v556
    %v558 = vpop.f32.mrb[0].mxu0
    %559 = vdwg.mxu0
    %v560 = vpack.c.bf16 %v515, %v511
    %v561 = vpack.c.bf16 %v517, %v513
    %v562 = vpack.c.bf16 %v557, %v554
    %v563 = vld [vmem:[#allocation7] sm:$0xf]
    %v564 = vld [vmem:[#allocation7 + $0x4] sm:$0xf]
    %v565 = vld [vmem:[#allocation7 + $0x8] sm:$0xf]
    %v566 = vld [vmem:[#allocation7 + $0xc] sm:$0xf]
    %v567 = vld [vmem:[#allocation7 + $0x10] sm:$0xf]
    %v568 = vld [vmem:[#allocation7 + $0x14] sm:$0xf]
    %v569 = vld [vmem:[#allocation7 + $0x18] sm:$0xf]
    %v570 = vld [vmem:[#allocation7 + $0x1c] sm:$0xf]
    %v571 = vld [vmem:[#allocation7 + $0x20] sm:$0xf]
    %v572 = vld [vmem:[#allocation7 + $0x24] sm:$0xf]
    %v573 = vld [vmem:[#allocation7 + $0x28] sm:$0xf]
    %v574 = vld [vmem:[#allocation7 + $0x2c] sm:$0xf]
    %v575 = vld [vmem:[#allocation7 + $0x30] sm:$0xf]
    %v576 = vld [vmem:[#allocation7 + $0x34] sm:$0xf]
    %v577 = vld [vmem:[#allocation7 + $0x38] sm:$0xf]
    %v578 = vld [vmem:[#allocation7 + $0x3c] sm:$0xf]
    %vm579 = vcmask 261120
    %v581 = vsel %vm579, %v560, 0
    %v584 = vsel %vm579, %v561, 0
    %586 = vmatprep.subr.bf16.mxu0 0
    %587 = vmatpush1.bf16.xpose.msra.mxu0 %v584
    %588 = vmatprep.subr.bf16.mxu0 0
    %589 = vmatpush1.bf16.xpose.msra.mxu0 0
    %590 = vmatprep.subr.bf16.mxu0 0
    %591 = vmatpush1.bf16.xpose.msra.mxu0 0
    %592 = vmatprep.subr.bf16.mxu0 0
    %593 = vmatpush1.bf16.xpose.msra.mxu0 0
    %594 = vmatprep.subr.bf16.mxu0 0
    %595 = vmatpush1.bf16.xpose.msra.mxu0 0
    %596 = vmatprep.subr.bf16.mxu0 0
    %597 = vmatpush1.bf16.xpose.msra.mxu0 0
    %598 = vmatprep.subr.bf16.mxu0 0
    %599 = vmatpush1.bf16.xpose.msra.mxu0 0
    %600 = vmatprep.subr.bf16.mxu0 0
    %601 = vmatpush1.bf16.xpose.msra.mxu0 0
    %602 = vmatprep.subr.bf16.mxu0 0
    %603 = vmatpush1.bf16.xpose.msra.mxu0 0
    %604 = vmatprep.subr.bf16.mxu0 0
    %605 = vmatpush1.bf16.xpose.msra.mxu0 0
    %606 = vmatprep.subr.bf16.mxu0 0
    %607 = vmatpush1.bf16.xpose.msra.mxu0 0
    %608 = vmatprep.subr.bf16.mxu0 0
    %609 = vmatpush1.bf16.xpose.msra.mxu0 0
    %610 = vmatprep.subr.bf16.mxu0 0
    %611 = vmatpush1.bf16.xpose.msra.mxu0 0
    %612 = vmatprep.subr.bf16.mxu0 0
    %613 = vmatpush1.bf16.xpose.msra.mxu0 0
    %614 = vmatprep.subr.bf16.mxu0 0
    %615 = vmatpush1.bf16.xpose.msra.mxu0 0
    %616 = vmatprep.subr.bf16.mxu0 0
    %617 = vmatpush1.bf16.xpose.msra.mxu0 0
    %618 = vmatprep.mubr.bf16.mxu0 0
    %619 = vmatmul.mubr.bf16.gmra.mrb[0].mxu0 %v581
    %v620 = vpop.f32.mrb[0].mxu0
    %v621 = vadd.f32 0.0, %v620
    %v622 = vpop.f32.mrb[0].mxu0
    %v623 = vpop.f32.mrb[0].mxu0
    %v624 = vpop.f32.mrb[0].mxu0
    %625 = vdwg.mxu0
    %vm626 = vcmask 64512
    %v627 = vsel %vm626, %v621, -inf
    %628 = vmax.xlane.f32.xlu0 %v627
    %v629 = vpop.xlane.xlu0 %628
    %v630 = vsub.f32 %v621, %v629
    %v631 = vmul.f32 %v630, 1.442695
    %v632 = vpow.pop %v631
    %v633 = vsel %vm626, %v632, 0.0
    %634 = vadd.xlane.f32.xlu0 %v633
    %v635 = vpop.xlane.xlu0 %634
    %v636 = vrcp.pop %v635
    %v637 = vmul.f32 %v632, %v636
    %v638 = vpack.c.bf16 %v637, %v637
    %v640 = vsel %vm626, %v638, 0
    %vm642 = vcmask 1043456
    %v644 = vsel %vm642, %v562, 0
    %646 = vmatprep.subr.bf16.mxu0 0
    %647 = vmatpush1.bf16.msra.mxu0 %v644
    %648 = vmatprep.subr.bf16.mxu0 0
    %649 = vmatpush1.bf16.msra.mxu0 0
    %650 = vmatprep.subr.bf16.mxu0 0
    %651 = vmatpush1.bf16.msra.mxu0 0
    %652 = vmatprep.subr.bf16.mxu0 0
    %653 = vmatpush1.bf16.msra.mxu0 0
    %654 = vmatprep.subr.bf16.mxu0 0
    %655 = vmatpush1.bf16.msra.mxu0 0
    %656 = vmatprep.subr.bf16.mxu0 0
    %657 = vmatpush1.bf16.msra.mxu0 0
    %658 = vmatprep.subr.bf16.mxu0 0
    %659 = vmatpush1.bf16.msra.mxu0 0
    %660 = vmatprep.subr.bf16.mxu0 0
    %661 = vmatpush1.bf16.msra.mxu0 0
    %662 = vmatprep.subr.bf16.mxu0 0
    %663 = vmatpush1.bf16.msra.mxu0 0
    %664 = vmatprep.subr.bf16.mxu0 0
    %665 = vmatpush1.bf16.msra.mxu0 0
    %666 = vmatprep.subr.bf16.mxu0 0
    %667 = vmatpush1.bf16.msra.mxu0 0
    %668 = vmatprep.subr.bf16.mxu0 0
    %669 = vmatpush1.bf16.msra.mxu0 0
    %670 = vmatprep.subr.bf16.mxu0 0
    %671 = vmatpush1.bf16.msra.mxu0 0
    %672 = vmatprep.subr.bf16.mxu0 0
    %673 = vmatpush1.bf16.msra.mxu0 0
    %674 = vmatprep.subr.bf16.mxu0 0
    %675 = vmatpush1.bf16.msra.mxu0 0
    %676 = vmatprep.subr.bf16.mxu0 0
    %677 = vmatpush1.bf16.msra.mxu0 0
    %678 = vmatprep.mubr.bf16.mxu0 0
    %679 = vmatmul.mubr.bf16.gmra.mrb[0].mxu0 %v640
    %v680 = vpop.f32.mrb[0].mxu0
    %v681 = vadd.f32 0.0, %v680
    %v682 = vpop.f32.mrb[0].mxu0
    %v683 = vpop.f32.mrb[0].mxu0
    %v684 = vpop.f32.mrb[0].mxu0
    %685 = vdwg.mxu0
    %v686 = vpack.c.bf16 %v681, %v681
    %688 = vrot.lane.b32.xlu0 %v560, 96
    %v689 = vpop.permute.xlu0 %688
    %691 = vrot.lane.b32.xlu0 %v561, 96
    %v692 = vpop.permute.xlu0 %691
    %v694 = vsel %vm579, %v689, 0
    %v697 = vsel %vm579, %v692, 0
    %699 = vmatprep.subr.bf16.mxu0 0
    %700 = vmatpush1.bf16.xpose.msra.mxu0 %v697
    %701 = vmatprep.subr.bf16.mxu0 0
    %702 = vmatpush1.bf16.xpose.msra.mxu0 0
    %703 = vmatprep.subr.bf16.mxu0 0
    %704 = vmatpush1.bf16.xpose.msra.mxu0 0
    %705 = vmatprep.subr.bf16.mxu0 0
    %706 = vmatpush1.bf16.xpose.msra.mxu0 0
    %707 = vmatprep.subr.bf16.mxu0 0
    %708 = vmatpush1.bf16.xpose.msra.mxu0 0
    %709 = vmatprep.subr.bf16.mxu0 0
    %710 = vmatpush1.bf16.xpose.msra.mxu0 0
    %711 = vmatprep.subr.bf16.mxu0 0
    %712 = vmatpush1.bf16.xpose.msra.mxu0 0
    %713 = vmatprep.subr.bf16.mxu0 0
    %714 = vmatpush1.bf16.xpose.msra.mxu0 0
    %715 = vmatprep.subr.bf16.mxu0 0
    %716 = vmatpush1.bf16.xpose.msra.mxu0 0
    %717 = vmatprep.subr.bf16.mxu0 0
    %718 = vmatpush1.bf16.xpose.msra.mxu0 0
    %719 = vmatprep.subr.bf16.mxu0 0
    %720 = vmatpush1.bf16.xpose.msra.mxu0 0
    %721 = vmatprep.subr.bf16.mxu0 0
    %722 = vmatpush1.bf16.xpose.msra.mxu0 0
    %723 = vmatprep.subr.bf16.mxu0 0
    %724 = vmatpush1.bf16.xpose.msra.mxu0 0
    %725 = vmatprep.subr.bf16.mxu0 0
    %726 = vmatpush1.bf16.xpose.msra.mxu0 0
    %727 = vmatprep.subr.bf16.mxu0 0
    %728 = vmatpush1.bf16.xpose.msra.mxu0 0
    %729 = vmatprep.subr.bf16.mxu0 0
    %730 = vmatpush1.bf16.xpose.msra.mxu0 0
    %731 = vmatprep.mubr.bf16.mxu0 0
    %732 = vmatmul.mubr.bf16.gmra.mrb[0].mxu0 %v694
    %v733 = vpop.f32.mrb[0].mxu0
    %v734 = vadd.f32 0.0, %v733
    %v735 = vpop.f32.mrb[0].mxu0
    %v736 = vpop.f32.mrb[0].mxu0
    %v737 = vpop.f32.mrb[0].mxu0
    %738 = vdwg.mxu0
    %v739 = vsel %vm626, %v734, -inf
    %740 = vmax.xlane.f32.xlu0 %v739
    %v741 = vpop.xlane.xlu0 %740
    %v742 = vsub.f32 %v734, %v741
    %v743 = vmul.f32 %v742, 1.442695
    %v744 = vpow.pop %v743
    %v745 = vsel %vm626, %v744, 0.0
    %746 = vadd.xlane.f32.xlu0 %v745
    %v747 = vpop.xlane.xlu0 %746
    %v748 = vrcp.pop %v747
    %v749 = vmul.f32 %v744, %v748
    %v750 = vpack.c.bf16 %v749, %v749
    %752 = vrot.lane.b32.xlu0 %v562, 96
    %v753 = vpop.permute.xlu0 %752
    %v755 = vsel %vm626, %v750, 0
    %v758 = vsel %vm642, %v753, 0
    %760 = vmatprep.subr.bf16.mxu0 0
    %761 = vmatpush1.bf16.msra.mxu0 %v758
    %762 = vmatprep.subr.bf16.mxu0 0
    %763 = vmatpush1.bf16.msra.mxu0 0
    %764 = vmatprep.subr.bf16.mxu0 0
    %765 = vmatpush1.bf16.msra.mxu0 0
    %766 = vmatprep.subr.bf16.mxu0 0
    %767 = vmatpush1.bf16.msra.mxu0 0
    %768 = vmatprep.subr.bf16.mxu0 0
    %769 = vmatpush1.bf16.msra.mxu0 0
    %770 = vmatprep.subr.bf16.mxu0 0
    %771 = vmatpush1.bf16.msra.mxu0 0
    %772 = vmatprep.subr.bf16.mxu0 0
    %773 = vmatpush1.bf16.msra.mxu0 0
    %774 = vmatprep.subr.bf16.mxu0 0
    %775 = vmatpush1.bf16.msra.mxu0 0
    %776 = vmatprep.subr.bf16.mxu0 0
    %777 = vmatpush1.bf16.msra.mxu0 0
    %778 = vmatprep.subr.bf16.mxu0 0
    %779 = vmatpush1.bf16.msra.mxu0 0
    %780 = vmatprep.subr.bf16.mxu0 0
    %781 = vmatpush1.bf16.msra.mxu0 0
    %782 = vmatprep.subr.bf16.mxu0 0
    %783 = vmatpush1.bf16.msra.mxu0 0
    %784 = vmatprep.subr.bf16.mxu0 0
    %785 = vmatpush1.bf16.msra.mxu0 0
    %786 = vmatprep.subr.bf16.mxu0 0
    %787 = vmatpush1.bf16.msra.mxu0 0
    %788 = vmatprep.subr.bf16.mxu0 0
    %789 = vmatpush1.bf16.msra.mxu0 0
    %790 = vmatprep.subr.bf16.mxu0 0
    %791 = vmatpush1.bf16.msra.mxu0 0
    %792 = vmatprep.mubr.bf16.mxu0 0
    %793 = vmatmul.mubr.bf16.gmra.mrb[0].mxu0 %v755
    %v794 = vpop.f32.mrb[0].mxu0
    %v795 = vadd.f32 0.0, %v794
    %v796 = vpop.f32.mrb[0].mxu0
    %v797 = vpop.f32.mrb[0].mxu0
    %v798 = vpop.f32.mrb[0].mxu0
    %799 = vdwg.mxu0
    %v800 = vpack.c.bf16 %v795, %v795
    %v805 = vunpack.c.l.b16 %v567
    %v806 = vunpack.c.l.b16 %v568
    %v807 = vunpack.c.l.b16 %v569
    %v808 = vunpack.c.l.b16 %v570
    %v809 = vpack.c.b16 %v806, %v805
    %v810 = vpack.c.b16 %v808, %v807
    %v814 = vsel %vm579, %v800, 0
    %816 = vmatprep.subr.bf16.mxu0 0
    %817 = vmatpush1.bf16.msra.mxu0 %v809
    %818 = vmatprep.subr.bf16.mxu0 0
    %819 = vmatpush1.bf16.msra.mxu0 %v810
    %820 = vmatprep.subr.bf16.mxu0 0
    %821 = vmatpush1.bf16.msra.mxu0 0
    %822 = vmatprep.subr.bf16.mxu0 0
    %823 = vmatpush1.bf16.msra.mxu0 0
    %824 = vmatprep.subr.bf16.mxu0 0
    %825 = vmatpush1.bf16.msra.mxu0 0
    %826 = vmatprep.subr.bf16.mxu0 0
    %827 = vmatpush1.bf16.msra.mxu0 0
    %828 = vmatprep.subr.bf16.mxu0 0
    %829 = vmatpush1.bf16.msra.mxu0 0
    %830 = vmatprep.subr.bf16.mxu0 0
    %831 = vmatpush1.bf16.msra.mxu0 0
    %832 = vmatprep.subr.bf16.mxu0 0
    %833 = vmatpush1.bf16.msra.mxu0 0
    %834 = vmatprep.subr.bf16.mxu0 0
    %835 = vmatpush1.bf16.msra.mxu0 0
    %836 = vmatprep.subr.bf16.mxu0 0
    %837 = vmatpush1.bf16.msra.mxu0 0
    %838 = vmatprep.subr.bf16.mxu0 0
    %839 = vmatpush1.bf16.msra.mxu0 0
    %840 = vmatprep.subr.bf16.mxu0 0
    %841 = vmatpush1.bf16.msra.mxu0 0
    %842 = vmatprep.subr.bf16.mxu0 0
    %843 = vmatpush1.bf16.msra.mxu0 0
    %844 = vmatprep.subr.bf16.mxu0 0
    %845 = vmatpush1.bf16.msra.mxu0 0
    %846 = vmatprep.subr.bf16.mxu0 0
    %847 = vmatpush1.bf16.msra.mxu0 0
    %848 = vmatprep.mubr.bf16.mxu0 0
    %849 = vmatmul.mubr.bf16.gmra.mrb[0].mxu0 %v814
    %v850 = vpop.f32.mrb[0].mxu0
    %v851 = vadd.f32 0.0, %v850
    %v852 = vpop.f32.mrb[0].mxu0
    %v853 = vpop.f32.mrb[0].mxu0
    %v854 = vpop.f32.mrb[0].mxu0
    %855 = vdwg.mxu0
    %v860 = vunpack.c.l.b16 %v563
    %v861 = vunpack.c.l.b16 %v564
    %v862 = vunpack.c.l.b16 %v565
    %v863 = vunpack.c.l.b16 %v566
    %v864 = vpack.c.b16 %v861, %v860
    %v865 = vpack.c.b16 %v863, %v862
    %v869 = vsel %vm579, %v686, 0
    %871 = vmatprep.subr.bf16.mxu0 0
    %872 = vmatpush1.bf16.msra.mxu0 %v864
    %873 = vmatprep.subr.bf16.mxu0 0
    %874 = vmatpush1.bf16.msra.mxu0 %v865
    %875 = vmatprep.subr.bf16.mxu0 0
    %876 = vmatpush1.bf16.msra.mxu0 0
    %877 = vmatprep.subr.bf16.mxu0 0
    %878 = vmatpush1.bf16.msra.mxu0 0
    %879 = vmatprep.subr.bf16.mxu0 0
    %880 = vmatpush1.bf16.msra.mxu0 0
    %881 = vmatprep.subr.bf16.mxu0 0
    %882 = vmatpush1.bf16.msra.mxu0 0
    %883 = vmatprep.subr.bf16.mxu0 0
    %884 = vmatpush1.bf16.msra.mxu0 0
    %885 = vmatprep.subr.bf16.mxu0 0
    %886 = vmatpush1.bf16.msra.mxu0 0
    %887 = vmatprep.subr.bf16.mxu0 0
    %888 = vmatpush1.bf16.msra.mxu0 0
    %889 = vmatprep.subr.bf16.mxu0 0
    %890 = vmatpush1.bf16.msra.mxu0 0
    %891 = vmatprep.subr.bf16.mxu0 0
    %892 = vmatpush1.bf16.msra.mxu0 0
    %893 = vmatprep.subr.bf16.mxu0 0
    %894 = vmatpush1.bf16.msra.mxu0 0
    %895 = vmatprep.subr.bf16.mxu0 0
    %896 = vmatpush1.bf16.msra.mxu0 0
    %897 = vmatprep.subr.bf16.mxu0 0
    %898 = vmatpush1.bf16.msra.mxu0 0
    %899 = vmatprep.subr.bf16.mxu0 0
    %900 = vmatpush1.bf16.msra.mxu0 0
    %901 = vmatprep.subr.bf16.mxu0 0
    %902 = vmatpush1.bf16.msra.mxu0 0
    %903 = vmatprep.mubr.bf16.mxu0 0
    %904 = vmatmul.mubr.bf16.gmra.mrb[0].mxu0 %v869
    %v905 = vpop.f32.mrb[0].mxu0
    %v906 = vadd.f32 %v851, %v905
    %v907 = vpop.f32.mrb[0].mxu0
    %v908 = vpop.f32.mrb[0].mxu0
    %v909 = vpop.f32.mrb[0].mxu0
    %910 = vdwg.mxu0
    %911 = vrot.lane.b32.xlu0 %v560, 64
    %v912 = vpop.permute.xlu0 %911
    %913 = vrot.lane.b32.xlu0 %v561, 64
    %v914 = vpop.permute.xlu0 %913
    %v916 = vsel %vm579, %v912, 0
    %v919 = vsel %vm579, %v914, 0
    %921 = vmatprep.subr.bf16.mxu0 0
    %922 = vmatpush1.bf16.xpose.msra.mxu0 %v919
    %923 = vmatprep.subr.bf16.mxu0 0
    %924 = vmatpush1.bf16.xpose.msra.mxu0 0
    %925 = vmatprep.subr.bf16.mxu0 0
    %926 = vmatpush1.bf16.xpose.msra.mxu0 0
    %927 = vmatprep.subr.bf16.mxu0 0
    %928 = vmatpush1.bf16.xpose.msra.mxu0 0
    %929 = vmatprep.subr.bf16.mxu0 0
    %930 = vmatpush1.bf16.xpose.msra.mxu0 0
    %931 = vmatprep.subr.bf16.mxu0 0
    %932 = vmatpush1.bf16.xpose.msra.mxu0 0
    %933 = vmatprep.subr.bf16.mxu0 0
    %934 = vmatpush1.bf16.xpose.msra.mxu0 0
    %935 = vmatprep.subr.bf16.mxu0 0
    %936 = vmatpush1.bf16.xpose.msra.mxu0 0
    %937 = vmatprep.subr.bf16.mxu0 0
    %938 = vmatpush1.bf16.xpose.msra.mxu0 0
    %939 = vmatprep.subr.bf16.mxu0 0
    %940 = vmatpush1.bf16.xpose.msra.mxu0 0
    %941 = vmatprep.subr.bf16.mxu0 0
    %942 = vmatpush1.bf16.xpose.msra.mxu0 0
    %943 = vmatprep.subr.bf16.mxu0 0
    %944 = vmatpush1.bf16.xpose.msra.mxu0 0
    %945 = vmatprep.subr.bf16.mxu0 0
    %946 = vmatpush1.bf16.xpose.msra.mxu0 0
    %947 = vmatprep.subr.bf16.mxu0 0
    %948 = vmatpush1.bf16.xpose.msra.mxu0 0
    %949 = vmatprep.subr.bf16.mxu0 0
    %950 = vmatpush1.bf16.xpose.msra.mxu0 0
    %951 = vmatprep.subr.bf16.mxu0 0
    %952 = vmatpush1.bf16.xpose.msra.mxu0 0
    %953 = vmatprep.mubr.bf16.mxu0 0
    %954 = vmatmul.mubr.bf16.gmra.mrb[0].mxu0 %v916
    %v955 = vpop.f32.mrb[0].mxu0
    %v956 = vadd.f32 0.0, %v955
    %v957 = vpop.f32.mrb[0].mxu0
    %v958 = vpop.f32.mrb[0].mxu0
    %v959 = vpop.f32.mrb[0].mxu0
    %960 = vdwg.mxu0
    %v961 = vsel %vm626, %v956, -inf
    %962 = vmax.xlane.f32.xlu0 %v961
    %v963 = vpop.xlane.xlu0 %962
    %v964 = vsub.f32 %v956, %v963
    %v965 = vmul.f32 %v964, 1.442695
    %v966 = vpow.pop %v965
    %v967 = vsel %vm626, %v966, 0.0
    %968 = vadd.xlane.f32.xlu0 %v967
    %v969 = vpop.xlane.xlu0 %968
    %v970 = vrcp.pop %v969
    %v971 = vmul.f32 %v966, %v970
    %v972 = vpack.c.bf16 %v971, %v971
    %973 = vrot.lane.b32.xlu0 %v562, 64
    %v974 = vpop.permute.xlu0 %973
    %v976 = vsel %vm626, %v972, 0
    %v979 = vsel %vm642, %v974, 0
    %981 = vmatprep.subr.bf16.mxu0 0
    %982 = vmatpush1.bf16.msra.mxu0 %v979
    %983 = vmatprep.subr.bf16.mxu0 0
    %984 = vmatpush1.bf16.msra.mxu0 0
    %985 = vmatprep.subr.bf16.mxu0 0
    %986 = vmatpush1.bf16.msra.mxu0 0
    %987 = vmatprep.subr.bf16.mxu0 0
    %988 = vmatpush1.bf16.msra.mxu0 0
    %989 = vmatprep.subr.bf16.mxu0 0
    %990 = vmatpush1.bf16.msra.mxu0 0
    %991 = vmatprep.subr.bf16.mxu0 0
    %992 = vmatpush1.bf16.msra.mxu0 0
    %993 = vmatprep.subr.bf16.mxu0 0
    %994 = vmatpush1.bf16.msra.mxu0 0
    %995 = vmatprep.subr.bf16.mxu0 0
    %996 = vmatpush1.bf16.msra.mxu0 0
    %997 = vmatprep.subr.bf16.mxu0 0
    %998 = vmatpush1.bf16.msra.mxu0 0
    %999 = vmatprep.subr.bf16.mxu0 0
    %1000 = vmatpush1.bf16.msra.mxu0 0
    %1001 = vmatprep.subr.bf16.mxu0 0
    %1002 = vmatpush1.bf16.msra.mxu0 0
    %1003 = vmatprep.subr.bf16.mxu0 0
    %1004 = vmatpush1.bf16.msra.mxu0 0
    %1005 = vmatprep.subr.bf16.mxu0 0
    %1006 = vmatpush1.bf16.msra.mxu0 0
    %1007 = vmatprep.subr.bf16.mxu0 0
    %1008 = vmatpush1.bf16.msra.mxu0 0
    %1009 = vmatprep.subr.bf16.mxu0 0
    %1010 = vmatpush1.bf16.msra.mxu0 0
    %1011 = vmatprep.subr.bf16.mxu0 0
    %1012 = vmatpush1.bf16.msra.mxu0 0
    %1013 = vmatprep.mubr.bf16.mxu0 0
    %1014 = vmatmul.mubr.bf16.gmra.mrb[0].mxu0 %v976
    %v1015 = vpop.f32.mrb[0].mxu0
    %v1016 = vadd.f32 0.0, %v1015
    %v1017 = vpop.f32.mrb[0].mxu0
    %v1018 = vpop.f32.mrb[0].mxu0
    %v1019 = vpop.f32.mrb[0].mxu0
    %1020 = vdwg.mxu0
    %v1021 = vpack.c.bf16 %v1016, %v1016
    %v1026 = vunpack.c.l.b16 %v571
    %v1027 = vunpack.c.l.b16 %v572
    %v1028 = vunpack.c.l.b16 %v573
    %v1029 = vunpack.c.l.b16 %v574
    %v1030 = vpack.c.b16 %v1027, %v1026
    %v1031 = vpack.c.b16 %v1029, %v1028
    %v1035 = vsel %vm579, %v1021, 0
    %1037 = vmatprep.subr.bf16.mxu0 0
    %1038 = vmatpush1.bf16.msra.mxu0 %v1030
    %1039 = vmatprep.subr.bf16.mxu0 0
    %1040 = vmatpush1.bf16.msra.mxu0 %v1031
    %1041 = vmatprep.subr.bf16.mxu0 0
    %1042 = vmatpush1.bf16.msra.mxu0 0
    %1043 = vmatprep.subr.bf16.mxu0 0
    %1044 = vmatpush1.bf16.msra.mxu0 0
    %1045 = vmatprep.subr.bf16.mxu0 0
    %1046 = vmatpush1.bf16.msra.mxu0 0
    %1047 = vmatprep.subr.bf16.mxu0 0
    %1048 = vmatpush1.bf16.msra.mxu0 0
    %1049 = vmatprep.subr.bf16.mxu0 0
    %1050 = vmatpush1.bf16.msra.mxu0 0
    %1051 = vmatprep.subr.bf16.mxu0 0
    %1052 = vmatpush1.bf16.msra.mxu0 0
    %1053 = vmatprep.subr.bf16.mxu0 0
    %1054 = vmatpush1.bf16.msra.mxu0 0
    %1055 = vmatprep.subr.bf16.mxu0 0
    %1056 = vmatpush1.bf16.msra.mxu0 0
    %1057 = vmatprep.subr.bf16.mxu0 0
    %1058 = vmatpush1.bf16.msra.mxu0 0
    %1059 = vmatprep.subr.bf16.mxu0 0
    %1060 = vmatpush1.bf16.msra.mxu0 0
    %1061 = vmatprep.subr.bf16.mxu0 0
    %1062 = vmatpush1.bf16.msra.mxu0 0
    %1063 = vmatprep.subr.bf16.mxu0 0
    %1064 = vmatpush1.bf16.msra.mxu0 0
    %1065 = vmatprep.subr.bf16.mxu0 0
    %1066 = vmatpush1.bf16.msra.mxu0 0
    %1067 = vmatprep.subr.bf16.mxu0 0
    %1068 = vmatpush1.bf16.msra.mxu0 0
    %1069 = vmatprep.mubr.bf16.mxu0 0
    %1070 = vmatmul.mubr.bf16.gmra.mrb[0].mxu0 %v1035
    %v1071 = vpop.f32.mrb[0].mxu0
    %v1072 = vadd.f32 0.0, %v1071
    %v1073 = vpop.f32.mrb[0].mxu0
    %v1074 = vpop.f32.mrb[0].mxu0
    %v1075 = vpop.f32.mrb[0].mxu0
    %1076 = vdwg.mxu0
    %v1077 = vadd.f32 %v906, %v1072
    %1078 = vrot.lane.b32.xlu0 %v560, 32
    %v1079 = vpop.permute.xlu0 %1078
    %1080 = vrot.lane.b32.xlu0 %v561, 32
    %v1081 = vpop.permute.xlu0 %1080
    %v1083 = vsel %vm579, %v1079, 0
    %v1086 = vsel %vm579, %v1081, 0
    %1088 = vmatprep.subr.bf16.mxu0 0
    %1089 = vmatpush1.bf16.xpose.msra.mxu0 %v1086
    %1090 = vmatprep.subr.bf16.mxu0 0
    %1091 = vmatpush1.bf16.xpose.msra.mxu0 0
    %1092 = vmatprep.subr.bf16.mxu0 0
    %1093 = vmatpush1.bf16.xpose.msra.mxu0 0
    %1094 = vmatprep.subr.bf16.mxu0 0
    %1095 = vmatpush1.bf16.xpose.msra.mxu0 0
    %1096 = vmatprep.subr.bf16.mxu0 0
    %1097 = vmatpush1.bf16.xpose.msra.mxu0 0
    %1098 = vmatprep.subr.bf16.mxu0 0
    %1099 = vmatpush1.bf16.xpose.msra.mxu0 0
    %1100 = vmatprep.subr.bf16.mxu0 0
    %1101 = vmatpush1.bf16.xpose.msra.mxu0 0
    %1102 = vmatprep.subr.bf16.mxu0 0
    %1103 = vmatpush1.bf16.xpose.msra.mxu0 0
    %1104 = vmatprep.subr.bf16.mxu0 0
    %1105 = vmatpush1.bf16.xpose.msra.mxu0 0
    %1106 = vmatprep.subr.bf16.mxu0 0
    %1107 = vmatpush1.bf16.xpose.msra.mxu0 0
    %1108 = vmatprep.subr.bf16.mxu0 0
    %1109 = vmatpush1.bf16.xpose.msra.mxu0 0
    %1110 = vmatprep.subr.bf16.mxu0 0
    %1111 = vmatpush1.bf16.xpose.msra.mxu0 0
    %1112 = vmatprep.subr.bf16.mxu0 0
    %1113 = vmatpush1.bf16.xpose.msra.mxu0 0
    %1114 = vmatprep.subr.bf16.mxu0 0
    %1115 = vmatpush1.bf16.xpose.msra.mxu0 0
    %1116 = vmatprep.subr.bf16.mxu0 0
    %1117 = vmatpush1.bf16.xpose.msra.mxu0 0
    %1118 = vmatprep.subr.bf16.mxu0 0
    %1119 = vmatpush1.bf16.xpose.msra.mxu0 0
    %1120 = vmatprep.mubr.bf16.mxu0 0
    %1121 = vmatmul.mubr.bf16.gmra.mrb[0].mxu0 %v1083
    %v1122 = vpop.f32.mrb[0].mxu0
    %v1123 = vadd.f32 0.0, %v1122
    %v1124 = vpop.f32.mrb[0].mxu0
    %v1125 = vpop.f32.mrb[0].mxu0
    %v1126 = vpop.f32.mrb[0].mxu0
    %1127 = vdwg.mxu0
    %v1128 = vsel %vm626, %v1123, -inf
    %1129 = vmax.xlane.f32.xlu0 %v1128
    %v1130 = vpop.xlane.xlu0 %1129
    %v1131 = vsub.f32 %v1123, %v1130
    %v1132 = vmul.f32 %v1131, 1.442695
    %v1133 = vpow.pop %v1132
    %v1134 = vsel %vm626, %v1133, 0.0
    %1135 = vadd.xlane.f32.xlu0 %v1134
    %v1136 = vpop.xlane.xlu0 %1135
    %v1137 = vrcp.pop %v1136
    %v1138 = vmul.f32 %v1133, %v1137
    %v1139 = vpack.c.bf16 %v1138, %v1138
    %1140 = vrot.lane.b32.xlu0 %v562, 32
    %v1141 = vpop.permute.xlu0 %1140
    %v1143 = vsel %vm626, %v1139, 0
    %v1146 = vsel %vm642, %v1141, 0
    %1148 = vmatprep.subr.bf16.mxu0 0
    %1149 = vmatpush1.bf16.msra.mxu0 %v1146
    %1150 = vmatprep.subr.bf16.mxu0 0
    %1151 = vmatpush1.bf16.msra.mxu0 0
    %1152 = vmatprep.subr.bf16.mxu0 0
    %1153 = vmatpush1.bf16.msra.mxu0 0
    %1154 = vmatprep.subr.bf16.mxu0 0
    %1155 = vmatpush1.bf16.msra.mxu0 0
    %1156 = vmatprep.subr.bf16.mxu0 0
    %1157 = vmatpush1.bf16.msra.mxu0 0
    %1158 = vmatprep.subr.bf16.mxu0 0
    %1159 = vmatpush1.bf16.msra.mxu0 0
    %1160 = vmatprep.subr.bf16.mxu0 0
    %1161 = vmatpush1.bf16.msra.mxu0 0
    %1162 = vmatprep.subr.bf16.mxu0 0
    %1163 = vmatpush1.bf16.msra.mxu0 0
    %1164 = vmatprep.subr.bf16.mxu0 0
    %1165 = vmatpush1.bf16.msra.mxu0 0
    %1166 = vmatprep.subr.bf16.mxu0 0
    %1167 = vmatpush1.bf16.msra.mxu0 0
    %1168 = vmatprep.subr.bf16.mxu0 0
    %1169 = vmatpush1.bf16.msra.mxu0 0
    %1170 = vmatprep.subr.bf16.mxu0 0
    %1171 = vmatpush1.bf16.msra.mxu0 0
    %1172 = vmatprep.subr.bf16.mxu0 0
    %1173 = vmatpush1.bf16.msra.mxu0 0
    %1174 = vmatprep.subr.bf16.mxu0 0
    %1175 = vmatpush1.bf16.msra.mxu0 0
    %1176 = vmatprep.subr.bf16.mxu0 0
    %1177 = vmatpush1.bf16.msra.mxu0 0
    %1178 = vmatprep.subr.bf16.mxu0 0
    %1179 = vmatpush1.bf16.msra.mxu0 0
    %1180 = vmatprep.mubr.bf16.mxu0 0
    %1181 = vmatmul.mubr.bf16.gmra.mrb[0].mxu0 %v1143
    %v1182 = vpop.f32.mrb[0].mxu0
    %v1183 = vadd.f32 0.0, %v1182
    %v1184 = vpop.f32.mrb[0].mxu0
    %v1185 = vpop.f32.mrb[0].mxu0
    %v1186 = vpop.f32.mrb[0].mxu0
    %1187 = vdwg.mxu0
    %v1188 = vpack.c.bf16 %v1183, %v1183
    %v1193 = vunpack.c.l.b16 %v575
    %v1194 = vunpack.c.l.b16 %v576
    %v1195 = vunpack.c.l.b16 %v577
    %v1196 = vunpack.c.l.b16 %v578
    %v1197 = vpack.c.b16 %v1194, %v1193
    %v1198 = vpack.c.b16 %v1196, %v1195
    %v1202 = vsel %vm579, %v1188, 0
    %1204 = vmatprep.subr.bf16.mxu0 0
    %1205 = vmatpush1.bf16.msra.mxu0 %v1197
    %1206 = vmatprep.subr.bf16.mxu0 0
    %1207 = vmatpush1.bf16.msra.mxu0 %v1198
    %1208 = vmatprep.subr.bf16.mxu0 0
    %1209 = vmatpush1.bf16.msra.mxu0 0
    %1210 = vmatprep.subr.bf16.mxu0 0
    %1211 = vmatpush1.bf16.msra.mxu0 0
    %1212 = vmatprep.subr.bf16.mxu0 0
    %1213 = vmatpush1.bf16.msra.mxu0 0
    %1214 = vmatprep.subr.bf16.mxu0 0
    %1215 = vmatpush1.bf16.msra.mxu0 0
    %1216 = vmatprep.subr.bf16.mxu0 0
    %1217 = vmatpush1.bf16.msra.mxu0 0
    %1218 = vmatprep.subr.bf16.mxu0 0
    %1219 = vmatpush1.bf16.msra.mxu0 0
    %1220 = vmatprep.subr.bf16.mxu0 0
    %1221 = vmatpush1.bf16.msra.mxu0 0
    %1222 = vmatprep.subr.bf16.mxu0 0
    %1223 = vmatpush1.bf16.msra.mxu0 0
    %1224 = vmatprep.subr.bf16.mxu0 0
    %1225 = vmatpush1.bf16.msra.mxu0 0
    %1226 = vmatprep.subr.bf16.mxu0 0
    %1227 = vmatpush1.bf16.msra.mxu0 0
    %1228 = vmatprep.subr.bf16.mxu0 0
    %1229 = vmatpush1.bf16.msra.mxu0 0
    %1230 = vmatprep.subr.bf16.mxu0 0
    %1231 = vmatpush1.bf16.msra.mxu0 0
    %1232 = vmatprep.subr.bf16.mxu0 0
    %1233 = vmatpush1.bf16.msra.mxu0 0
    %1234 = vmatprep.subr.bf16.mxu0 0
    %1235 = vmatpush1.bf16.msra.mxu0 0
    %1236 = vmatprep.mubr.bf16.mxu0 0
    %1237 = vmatmul.mubr.bf16.gmra.mrb[0].mxu0 %v1202
    %v1238 = vpop.f32.mrb[0].mxu0
    %v1239 = vadd.f32 0.0, %v1238
    %v1240 = vpop.f32.mrb[0].mxu0
    %v1241 = vpop.f32.mrb[0].mxu0
    %v1242 = vpop.f32.mrb[0].mxu0
    %1243 = vdwg.mxu0
    %v1244 = vadd.f32 %v1077, %v1239
    %v1245 = vrot.slane %v560, 4
    %v1246 = vrot.slane %v561, 4
    %v1248 = vsel %vm579, %v1245, 0
    %v1251 = vsel %vm579, %v1246, 0
    %1253 = vmatprep.subr.bf16.mxu0 0
    %1254 = vmatpush1.bf16.xpose.msra.mxu0 %v1251
    %1255 = vmatprep.subr.bf16.mxu0 0
    %1256 = vmatpush1.bf16.xpose.msra.mxu0 0
    %1257 = vmatprep.subr.bf16.mxu0 0
    %1258 = vmatpush1.bf16.xpose.msra.mxu0 0
    %1259 = vmatprep.subr.bf16.mxu0 0
    %1260 = vmatpush1.bf16.xpose.msra.mxu0 0
    %1261 = vmatprep.subr.bf16.mxu0 0
    %1262 = vmatpush1.bf16.xpose.msra.mxu0 0
    %1263 = vmatprep.subr.bf16.mxu0 0
    %1264 = vmatpush1.bf16.xpose.msra.mxu0 0
    %1265 = vmatprep.subr.bf16.mxu0 0
    %1266 = vmatpush1.bf16.xpose.msra.mxu0 0
    %1267 = vmatprep.subr.bf16.mxu0 0
    %1268 = vmatpush1.bf16.xpose.msra.mxu0 0
    %1269 = vmatprep.subr.bf16.mxu0 0
    %1270 = vmatpush1.bf16.xpose.msra.mxu0 0
    %1271 = vmatprep.subr.bf16.mxu0 0
    %1272 = vmatpush1.bf16.xpose.msra.mxu0 0
    %1273 = vmatprep.subr.bf16.mxu0 0
    %1274 = vmatpush1.bf16.xpose.msra.mxu0 0
    %1275 = vmatprep.subr.bf16.mxu0 0
    %1276 = vmatpush1.bf16.xpose.msra.mxu0 0
    %1277 = vmatprep.subr.bf16.mxu0 0
    %1278 = vmatpush1.bf16.xpose.msra.mxu0 0
    %1279 = vmatprep.subr.bf16.mxu0 0
    %1280 = vmatpush1.bf16.xpose.msra.mxu0 0
    %1281 = vmatprep.subr.bf16.mxu0 0
    %1282 = vmatpush1.bf16.xpose.msra.mxu0 0
    %1283 = vmatprep.subr.bf16.mxu0 0
    %1284 = vmatpush1.bf16.xpose.msra.mxu0 0
    %1285 = vmatprep.mubr.bf16.mxu0 0
    %1286 = vmatmul.mubr.bf16.gmra.mrb[0].mxu0 %v1248
    %v1287 = vpop.f32.mrb[0].mxu0
    %v1288 = vadd.f32 0.0, %v1287
    %v1289 = vpop.f32.mrb[0].mxu0
    %v1290 = vpop.f32.mrb[0].mxu0
    %v1291 = vpop.f32.mrb[0].mxu0
    %1292 = vdwg.mxu0
    %v1293 = vsel %vm626, %v1288, -inf
    %1294 = vmax.xlane.f32.xlu0 %v1293
    %v1295 = vpop.xlane.xlu0 %1294
    %v1296 = vsub.f32 %v1288, %v1295
    %v1297 = vmul.f32 %v1296, 1.442695
    %v1298 = vpow.pop %v1297
    %v1299 = vsel %vm626, %v1298, 0.0
    %1300 = vadd.xlane.f32.xlu0 %v1299
    %v1301 = vpop.xlane.xlu0 %1300
    %v1302 = vrcp.pop %v1301
    %v1303 = vmul.f32 %v1298, %v1302
    %v1304 = vpack.c.bf16 %v1303, %v1303
    %v1305 = vrot.slane %v562, 4
    %v1307 = vsel %vm626, %v1304, 0
    %v1310 = vsel %vm642, %v1305, 0
    %1312 = vmatprep.subr.bf16.mxu0 0
    %1313 = vmatpush1.bf16.msra.mxu0 %v1310
    %1314 = vmatprep.subr.bf16.mxu0 0
    %1315 = vmatpush1.bf16.msra.mxu0 0
    %1316 = vmatprep.subr.bf16.mxu0 0
    %1317 = vmatpush1.bf16.msra.mxu0 0
    %1318 = vmatprep.subr.bf16.mxu0 0
    %1319 = vmatpush1.bf16.msra.mxu0 0
    %1320 = vmatprep.subr.bf16.mxu0 0
    %1321 = vmatpush1.bf16.msra.mxu0 0
    %1322 = vmatprep.subr.bf16.mxu0 0
    %1323 = vmatpush1.bf16.msra.mxu0 0
    %1324 = vmatprep.subr.bf16.mxu0 0
    %1325 = vmatpush1.bf16.msra.mxu0 0
    %1326 = vmatprep.subr.bf16.mxu0 0
    %1327 = vmatpush1.bf16.msra.mxu0 0
    %1328 = vmatprep.subr.bf16.mxu0 0
    %1329 = vmatpush1.bf16.msra.mxu0 0
    %1330 = vmatprep.subr.bf16.mxu0 0
    %1331 = vmatpush1.bf16.msra.mxu0 0
    %1332 = vmatprep.subr.bf16.mxu0 0
    %1333 = vmatpush1.bf16.msra.mxu0 0
    %1334 = vmatprep.subr.bf16.mxu0 0
    %1335 = vmatpush1.bf16.msra.mxu0 0
    %1336 = vmatprep.subr.bf16.mxu0 0
    %1337 = vmatpush1.bf16.msra.mxu0 0
    %1338 = vmatprep.subr.bf16.mxu0 0
    %1339 = vmatpush1.bf16.msra.mxu0 0
    %1340 = vmatprep.subr.bf16.mxu0 0
    %1341 = vmatpush1.bf16.msra.mxu0 0
    %1342 = vmatprep.subr.bf16.mxu0 0
    %1343 = vmatpush1.bf16.msra.mxu0 0
    %1344 = vmatprep.mubr.bf16.mxu0 0
    %1345 = vmatmul.mubr.bf16.gmra.mrb[0].mxu0 %v1307
    %v1346 = vpop.f32.mrb[0].mxu0
    %v1347 = vadd.f32 0.0, %v1346
    %v1348 = vpop.f32.mrb[0].mxu0
    %v1349 = vpop.f32.mrb[0].mxu0
    %v1350 = vpop.f32.mrb[0].mxu0
    %1351 = vdwg.mxu0
    %v1352 = vpack.c.bf16 %v1347, %v1347
    %1353 = vrot.lane.b32.xlu0 %v1245, 96
    %v1354 = vpop.permute.xlu0 %1353
    %1355 = vrot.lane.b32.xlu0 %v1246, 96
    %v1356 = vpop.permute.xlu0 %1355
    %v1358 = vsel %vm579, %v1354, 0
    %v1361 = vsel %vm579, %v1356, 0
    %1363 = vmatprep.subr.bf16.mxu0 0
    %1364 = vmatpush1.bf16.xpose.msra.mxu0 %v1361
    %1365 = vmatprep.subr.bf16.mxu0 0
    %1366 = vmatpush1.bf16.xpose.msra.mxu0 0
    %1367 = vmatprep.subr.bf16.mxu0 0
    %1368 = vmatpush1.bf16.xpose.msra.mxu0 0
    %1369 = vmatprep.subr.bf16.mxu0 0
    %1370 = vmatpush1.bf16.xpose.msra.mxu0 0
    %1371 = vmatprep.subr.bf16.mxu0 0
    %1372 = vmatpush1.bf16.xpose.msra.mxu0 0
    %1373 = vmatprep.subr.bf16.mxu0 0
    %1374 = vmatpush1.bf16.xpose.msra.mxu0 0
    %1375 = vmatprep.subr.bf16.mxu0 0
    %1376 = vmatpush1.bf16.xpose.msra.mxu0 0
    %1377 = vmatprep.subr.bf16.mxu0 0
    %1378 = vmatpush1.bf16.xpose.msra.mxu0 0
    %1379 = vmatprep.subr.bf16.mxu0 0
    %1380 = vmatpush1.bf16.xpose.msra.mxu0 0
    %1381 = vmatprep.subr.bf16.mxu0 0
    %1382 = vmatpush1.bf16.xpose.msra.mxu0 0
    %1383 = vmatprep.subr.bf16.mxu0 0
    %1384 = vmatpush1.bf16.xpose.msra.mxu0 0
    %1385 = vmatprep.subr.bf16.mxu0 0
    %1386 = vmatpush1.bf16.xpose.msra.mxu0 0
    %1387 = vmatprep.subr.bf16.mxu0 0
    %1388 = vmatpush1.bf16.xpose.msra.mxu0 0
    %1389 = vmatprep.subr.bf16.mxu0 0
    %1390 = vmatpush1.bf16.xpose.msra.mxu0 0
    %1391 = vmatprep.subr.bf16.mxu0 0
    %1392 = vmatpush1.bf16.xpose.msra.mxu0 0
    %1393 = vmatprep.subr.bf16.mxu0 0
    %1394 = vmatpush1.bf16.xpose.msra.mxu0 0
    %1395 = vmatprep.mubr.bf16.mxu0 0
    %1396 = vmatmul.mubr.bf16.gmra.mrb[0].mxu0 %v1358
    %v1397 = vpop.f32.mrb[0].mxu0
    %v1398 = vadd.f32 0.0, %v1397
    %v1399 = vpop.f32.mrb[0].mxu0
    %v1400 = vpop.f32.mrb[0].mxu0
    %v1401 = vpop.f32.mrb[0].mxu0
    %1402 = vdwg.mxu0
    %v1403 = vsel %vm626, %v1398, -inf
    %1404 = vmax.xlane.f32.xlu0 %v1403
    %v1405 = vpop.xlane.xlu0 %1404
    %v1406 = vsub.f32 %v1398, %v1405
    %v1407 = vmul.f32 %v1406, 1.442695
    %v1408 = vpow.pop %v1407
    %v1409 = vsel %vm626, %v1408, 0.0
    %1410 = vadd.xlane.f32.xlu0 %v1409
    %v1411 = vpop.xlane.xlu0 %1410
    %v1412 = vrcp.pop %v1411
    %v1413 = vmul.f32 %v1408, %v1412
    %v1414 = vpack.c.bf16 %v1413, %v1413
    %1415 = vrot.lane.b32.xlu0 %v1305, 96
    %v1416 = vpop.permute.xlu0 %1415
    %v1418 = vsel %vm626, %v1414, 0
    %v1421 = vsel %vm642, %v1416, 0
    %1423 = vmatprep.subr.bf16.mxu0 0
    %1424 = vmatpush1.bf16.msra.mxu0 %v1421
    %1425 = vmatprep.subr.bf16.mxu0 0
    %1426 = vmatpush1.bf16.msra.mxu0 0
    %1427 = vmatprep.subr.bf16.mxu0 0
    %1428 = vmatpush1.bf16.msra.mxu0 0
    %1429 = vmatprep.subr.bf16.mxu0 0
    %1430 = vmatpush1.bf16.msra.mxu0 0
    %1431 = vmatprep.subr.bf16.mxu0 0
    %1432 = vmatpush1.bf16.msra.mxu0 0
    %1433 = vmatprep.subr.bf16.mxu0 0
    %1434 = vmatpush1.bf16.msra.mxu0 0
    %1435 = vmatprep.subr.bf16.mxu0 0
    %1436 = vmatpush1.bf16.msra.mxu0 0
    %1437 = vmatprep.subr.bf16.mxu0 0
    %1438 = vmatpush1.bf16.msra.mxu0 0
    %1439 = vmatprep.subr.bf16.mxu0 0
    %1440 = vmatpush1.bf16.msra.mxu0 0
    %1441 = vmatprep.subr.bf16.mxu0 0
    %1442 = vmatpush1.bf16.msra.mxu0 0
    %1443 = vmatprep.subr.bf16.mxu0 0
    %1444 = vmatpush1.bf16.msra.mxu0 0
    %1445 = vmatprep.subr.bf16.mxu0 0
    %1446 = vmatpush1.bf16.msra.mxu0 0
    %1447 = vmatprep.subr.bf16.mxu0 0
    %1448 = vmatpush1.bf16.msra.mxu0 0
    %1449 = vmatprep.subr.bf16.mxu0 0
    %1450 = vmatpush1.bf16.msra.mxu0 0
    %1451 = vmatprep.subr.bf16.mxu0 0
    %1452 = vmatpush1.bf16.msra.mxu0 0
    %1453 = vmatprep.subr.bf16.mxu0 0
    %1454 = vmatpush1.bf16.msra.mxu0 0
    %1455 = vmatprep.mubr.bf16.mxu0 0
    %1456 = vmatmul.mubr.bf16.gmra.mrb[0].mxu0 %v1418
    %v1457 = vpop.f32.mrb[0].mxu0
    %v1458 = vadd.f32 0.0, %v1457
    %v1459 = vpop.f32.mrb[0].mxu0
    %v1460 = vpop.f32.mrb[0].mxu0
    %v1461 = vpop.f32.mrb[0].mxu0
    %1462 = vdwg.mxu0
    %v1463 = vpack.c.bf16 %v1458, %v1458
    %v1465 = vsel %vm579, %v1463, 0
    %1467 = vmatprep.subr.bf16.mxu0 0
    %1468 = vmatpush1.bf16.msra.mxu0 %v809
    %1469 = vmatprep.subr.bf16.mxu0 0
    %1470 = vmatpush1.bf16.msra.mxu0 %v810
    %1471 = vmatprep.subr.bf16.mxu0 0
    %1472 = vmatpush1.bf16.msra.mxu0 0
    %1473 = vmatprep.subr.bf16.mxu0 0
    %1474 = vmatpush1.bf16.msra.mxu0 0
    %1475 = vmatprep.subr.bf16.mxu0 0
    %1476 = vmatpush1.bf16.msra.mxu0 0
    %1477 = vmatprep.subr.bf16.mxu0 0
    %1478 = vmatpush1.bf16.msra.mxu0 0
    %1479 = vmatprep.subr.bf16.mxu0 0
    %1480 = vmatpush1.bf16.msra.mxu0 0
    %1481 = vmatprep.subr.bf16.mxu0 0
    %1482 = vmatpush1.bf16.msra.mxu0 0
    %1483 = vmatprep.subr.bf16.mxu0 0
    %1484 = vmatpush1.bf16.msra.mxu0 0
    %1485 = vmatprep.subr.bf16.mxu0 0
    %1486 = vmatpush1.bf16.msra.mxu0 0
    %1487 = vmatprep.subr.bf16.mxu0 0
    %1488 = vmatpush1.bf16.msra.mxu0 0
    %1489 = vmatprep.subr.bf16.mxu0 0
    %1490 = vmatpush1.bf16.msra.mxu0 0
    %1491 = vmatprep.subr.bf16.mxu0 0
    %1492 = vmatpush1.bf16.msra.mxu0 0
    %1493 = vmatprep.subr.bf16.mxu0 0
    %1494 = vmatpush1.bf16.msra.mxu0 0
    %1495 = vmatprep.subr.bf16.mxu0 0
    %1496 = vmatpush1.bf16.msra.mxu0 0
    %1497 = vmatprep.subr.bf16.mxu0 0
    %1498 = vmatpush1.bf16.msra.mxu0 0
    %1499 = vmatprep.mubr.bf16.mxu0 0
    %1500 = vmatmul.mubr.bf16.gmra.mrb[0].mxu0 %v1465
    %v1501 = vpop.f32.mrb[0].mxu0
    %v1502 = vadd.f32 0.0, %v1501
    %v1503 = vpop.f32.mrb[0].mxu0
    %v1504 = vpop.f32.mrb[0].mxu0
    %v1505 = vpop.f32.mrb[0].mxu0
    %1506 = vdwg.mxu0
    %v1508 = vsel %vm579, %v1352, 0
    %1510 = vmatprep.subr.bf16.mxu0 0
    %1511 = vmatpush1.bf16.msra.mxu0 %v864
    %1512 = vmatprep.subr.bf16.mxu0 0
    %1513 = vmatpush1.bf16.msra.mxu0 %v865
    %1514 = vmatprep.subr.bf16.mxu0 0
    %1515 = vmatpush1.bf16.msra.mxu0 0
    %1516 = vmatprep.subr.bf16.mxu0 0
    %1517 = vmatpush1.bf16.msra.mxu0 0
    %1518 = vmatprep.subr.bf16.mxu0 0
    %1519 = vmatpush1.bf16.msra.mxu0 0
    %1520 = vmatprep.subr.bf16.mxu0 0
    %1521 = vmatpush1.bf16.msra.mxu0 0
    %1522 = vmatprep.subr.bf16.mxu0 0
    %1523 = vmatpush1.bf16.msra.mxu0 0
    %1524 = vmatprep.subr.bf16.mxu0 0
    %1525 = vmatpush1.bf16.msra.mxu0 0
    %1526 = vmatprep.subr.bf16.mxu0 0
    %1527 = vmatpush1.bf16.msra.mxu0 0
    %1528 = vmatprep.subr.bf16.mxu0 0
    %1529 = vmatpush1.bf16.msra.mxu0 0
    %1530 = vmatprep.subr.bf16.mxu0 0
    %1531 = vmatpush1.bf16.msra.mxu0 0
    %1532 = vmatprep.subr.bf16.mxu0 0
    %1533 = vmatpush1.bf16.msra.mxu0 0
    %1534 = vmatprep.subr.bf16.mxu0 0
    %1535 = vmatpush1.bf16.msra.mxu0 0
    %1536 = vmatprep.subr.bf16.mxu0 0
    %1537 = vmatpush1.bf16.msra.mxu0 0
    %1538 = vmatprep.subr.bf16.mxu0 0
    %1539 = vmatpush1.bf16.msra.mxu0 0
    %1540 = vmatprep.subr.bf16.mxu0 0
    %1541 = vmatpush1.bf16.msra.mxu0 0
    %1542 = vmatprep.mubr.bf16.mxu0 0
    %1543 = vmatmul.mubr.bf16.gmra.mrb[0].mxu0 %v1508
    %v1544 = vpop.f32.mrb[0].mxu0
    %v1545 = vadd.f32 %v1502, %v1544
    %v1546 = vpop.f32.mrb[0].mxu0
    %v1547 = vpop.f32.mrb[0].mxu0
    %v1548 = vpop.f32.mrb[0].mxu0
    %1549 = vdwg.mxu0
    %1550 = vrot.lane.b32.xlu0 %v1245, 64
    %v1551 = vpop.permute.xlu0 %1550
    %1552 = vrot.lane.b32.xlu0 %v1246, 64
    %v1553 = vpop.permute.xlu0 %1552
    %v1555 = vsel %vm579, %v1551, 0
    %v1558 = vsel %vm579, %v1553, 0
    %1560 = vmatprep.subr.bf16.mxu0 0
    %1561 = vmatpush1.bf16.xpose.msra.mxu0 %v1558
    %1562 = vmatprep.subr.bf16.mxu0 0
    %1563 = vmatpush1.bf16.xpose.msra.mxu0 0
    %1564 = vmatprep.subr.bf16.mxu0 0
    %1565 = vmatpush1.bf16.xpose.msra.mxu0 0
    %1566 = vmatprep.subr.bf16.mxu0 0
    %1567 = vmatpush1.bf16.xpose.msra.mxu0 0
    %1568 = vmatprep.subr.bf16.mxu0 0
    %1569 = vmatpush1.bf16.xpose.msra.mxu0 0
    %1570 = vmatprep.subr.bf16.mxu0 0
    %1571 = vmatpush1.bf16.xpose.msra.mxu0 0
    %1572 = vmatprep.subr.bf16.mxu0 0
    %1573 = vmatpush1.bf16.xpose.msra.mxu0 0
    %1574 = vmatprep.subr.bf16.mxu0 0
    %1575 = vmatpush1.bf16.xpose.msra.mxu0 0
    %1576 = vmatprep.subr.bf16.mxu0 0
    %1577 = vmatpush1.bf16.xpose.msra.mxu0 0
    %1578 = vmatprep.subr.bf16.mxu0 0
    %1579 = vmatpush1.bf16.xpose.msra.mxu0 0
    %1580 = vmatprep.subr.bf16.mxu0 0
    %1581 = vmatpush1.bf16.xpose.msra.mxu0 0
    %1582 = vmatprep.subr.bf16.mxu0 0
    %1583 = vmatpush1.bf16.xpose.msra.mxu0 0
    %1584 = vmatprep.subr.bf16.mxu0 0
    %1585 = vmatpush1.bf16.xpose.msra.mxu0 0
    %1586 = vmatprep.subr.bf16.mxu0 0
    %1587 = vmatpush1.bf16.xpose.msra.mxu0 0
    %1588 = vmatprep.subr.bf16.mxu0 0
    %1589 = vmatpush1.bf16.xpose.msra.mxu0 0
    %1590 = vmatprep.subr.bf16.mxu0 0
    %1591 = vmatpush1.bf16.xpose.msra.mxu0 0
    %1592 = vmatprep.mubr.bf16.mxu0 0
    %1593 = vmatmul.mubr.bf16.gmra.mrb[0].mxu0 %v1555
    %v1594 = vpop.f32.mrb[0].mxu0
    %v1595 = vadd.f32 0.0, %v1594
    %v1596 = vpop.f32.mrb[0].mxu0
    %v1597 = vpop.f32.mrb[0].mxu0
    %v1598 = vpop.f32.mrb[0].mxu0
    %1599 = vdwg.mxu0
    %v1600 = vsel %vm626, %v1595, -inf
    %1601 = vmax.xlane.f32.xlu0 %v1600
    %v1602 = vpop.xlane.xlu0 %1601
    %v1603 = vsub.f32 %v1595, %v1602
    %v1604 = vmul.f32 %v1603, 1.442695
    %v1605 = vpow.pop %v1604
    %v1606 = vsel %vm626, %v1605, 0.0
    %1607 = vadd.xlane.f32.xlu0 %v1606
    %v1608 = vpop.xlane.xlu0 %1607
    %v1609 = vrcp.pop %v1608
    %v1610 = vmul.f32 %v1605, %v1609
    %v1611 = vpack.c.bf16 %v1610, %v1610
    %1612 = vrot.lane.b32.xlu0 %v1305, 64
    %v1613 = vpop.permute.xlu0 %1612
    %v1615 = vsel %vm626, %v1611, 0
    %v1618 = vsel %vm642, %v1613, 0
    %1620 = vmatprep.subr.bf16.mxu0 0
    %1621 = vmatpush1.bf16.msra.mxu0 %v1618
    %1622 = vmatprep.subr.bf16.mxu0 0
    %1623 = vmatpush1.bf16.msra.mxu0 0
    %1624 = vmatprep.subr.bf16.mxu0 0
    %1625 = vmatpush1.bf16.msra.mxu0 0
    %1626 = vmatprep.subr.bf16.mxu0 0
    %1627 = vmatpush1.bf16.msra.mxu0 0
    %1628 = vmatprep.subr.bf16.mxu0 0
    %1629 = vmatpush1.bf16.msra.mxu0 0
    %1630 = vmatprep.subr.bf16.mxu0 0
    %1631 = vmatpush1.bf16.msra.mxu0 0
    %1632 = vmatprep.subr.bf16.mxu0 0
    %1633 = vmatpush1.bf16.msra.mxu0 0
    %1634 = vmatprep.subr.bf16.mxu0 0
    %1635 = vmatpush1.bf16.msra.mxu0 0
    %1636 = vmatprep.subr.bf16.mxu0 0
    %1637 = vmatpush1.bf16.msra.mxu0 0
    %1638 = vmatprep.subr.bf16.mxu0 0
    %1639 = vmatpush1.bf16.msra.mxu0 0
    %1640 = vmatprep.subr.bf16.mxu0 0
    %1641 = vmatpush1.bf16.msra.mxu0 0
    %1642 = vmatprep.subr.bf16.mxu0 0
    %1643 = vmatpush1.bf16.msra.mxu0 0
    %1644 = vmatprep.subr.bf16.mxu0 0
    %1645 = vmatpush1.bf16.msra.mxu0 0
    %1646 = vmatprep.subr.bf16.mxu0 0
    %1647 = vmatpush1.bf16.msra.mxu0 0
    %1648 = vmatprep.subr.bf16.mxu0 0
    %1649 = vmatpush1.bf16.msra.mxu0 0
    %1650 = vmatprep.subr.bf16.mxu0 0
    %1651 = vmatpush1.bf16.msra.mxu0 0
    %1652 = vmatprep.mubr.bf16.mxu0 0
    %1653 = vmatmul.mubr.bf16.gmra.mrb[0].mxu0 %v1615
    %v1654 = vpop.f32.mrb[0].mxu0
    %v1655 = vadd.f32 0.0, %v1654
    %v1656 = vpop.f32.mrb[0].mxu0
    %v1657 = vpop.f32.mrb[0].mxu0
    %v1658 = vpop.f32.mrb[0].mxu0
    %1659 = vdwg.mxu0
    %v1660 = vpack.c.bf16 %v1655, %v1655
    %v1662 = vsel %vm579, %v1660, 0
    %1664 = vmatprep.subr.bf16.mxu0 0
    %1665 = vmatpush1.bf16.msra.mxu0 %v1030
    %1666 = vmatprep.subr.bf16.mxu0 0
    %1667 = vmatpush1.bf16.msra.mxu0 %v1031
    %1668 = vmatprep.subr.bf16.mxu0 0
    %1669 = vmatpush1.bf16.msra.mxu0 0
    %1670 = vmatprep.subr.bf16.mxu0 0
    %1671 = vmatpush1.bf16.msra.mxu0 0
    %1672 = vmatprep.subr.bf16.mxu0 0
    %1673 = vmatpush1.bf16.msra.mxu0 0
    %1674 = vmatprep.subr.bf16.mxu0 0
    %1675 = vmatpush1.bf16.msra.mxu0 0
    %1676 = vmatprep.subr.bf16.mxu0 0
    %1677 = vmatpush1.bf16.msra.mxu0 0
    %1678 = vmatprep.subr.bf16.mxu0 0
    %1679 = vmatpush1.bf16.msra.mxu0 0
    %1680 = vmatprep.subr.bf16.mxu0 0
    %1681 = vmatpush1.bf16.msra.mxu0 0
    %1682 = vmatprep.subr.bf16.mxu0 0
    %1683 = vmatpush1.bf16.msra.mxu0 0
    %1684 = vmatprep.subr.bf16.mxu0 0
    %1685 = vmatpush1.bf16.msra.mxu0 0
    %1686 = vmatprep.subr.bf16.mxu0 0
    %1687 = vmatpush1.bf16.msra.mxu0 0
    %1688 = vmatprep.subr.bf16.mxu0 0
    %1689 = vmatpush1.bf16.msra.mxu0 0
    %1690 = vmatprep.subr.bf16.mxu0 0
    %1691 = vmatpush1.bf16.msra.mxu0 0
    %1692 = vmatprep.subr.bf16.mxu0 0
    %1693 = vmatpush1.bf16.msra.mxu0 0
    %1694 = vmatprep.subr.bf16.mxu0 0
    %1695 = vmatpush1.bf16.msra.mxu0 0
    %1696 = vmatprep.mubr.bf16.mxu0 0
    %1697 = vmatmul.mubr.bf16.gmra.mrb[0].mxu0 %v1662
    %v1698 = vpop.f32.mrb[0].mxu0
    %v1699 = vadd.f32 0.0, %v1698
    %v1700 = vpop.f32.mrb[0].mxu0
    %v1701 = vpop.f32.mrb[0].mxu0
    %v1702 = vpop.f32.mrb[0].mxu0
    %1703 = vdwg.mxu0
    %v1704 = vadd.f32 %v1545, %v1699
    %1705 = vrot.lane.b32.xlu0 %v1245, 32
    %v1706 = vpop.permute.xlu0 %1705
    %1707 = vrot.lane.b32.xlu0 %v1246, 32
    %v1708 = vpop.permute.xlu0 %1707
    %v1710 = vsel %vm579, %v1706, 0
    %v1713 = vsel %vm579, %v1708, 0
    %1715 = vmatprep.subr.bf16.mxu0 0
    %1716 = vmatpush1.bf16.xpose.msra.mxu0 %v1713
    %1717 = vmatprep.subr.bf16.mxu0 0
    %1718 = vmatpush1.bf16.xpose.msra.mxu0 0
    %1719 = vmatprep.subr.bf16.mxu0 0
    %1720 = vmatpush1.bf16.xpose.msra.mxu0 0
    %1721 = vmatprep.subr.bf16.mxu0 0
    %1722 = vmatpush1.bf16.xpose.msra.mxu0 0
    %1723 = vmatprep.subr.bf16.mxu0 0
    %1724 = vmatpush1.bf16.xpose.msra.mxu0 0
    %1725 = vmatprep.subr.bf16.mxu0 0
    %1726 = vmatpush1.bf16.xpose.msra.mxu0 0
    %1727 = vmatprep.subr.bf16.mxu0 0
    %1728 = vmatpush1.bf16.xpose.msra.mxu0 0
    %1729 = vmatprep.subr.bf16.mxu0 0
    %1730 = vmatpush1.bf16.xpose.msra.mxu0 0
    %1731 = vmatprep.subr.bf16.mxu0 0
    %1732 = vmatpush1.bf16.xpose.msra.mxu0 0
    %1733 = vmatprep.subr.bf16.mxu0 0
    %1734 = vmatpush1.bf16.xpose.msra.mxu0 0
    %1735 = vmatprep.subr.bf16.mxu0 0
    %1736 = vmatpush1.bf16.xpose.msra.mxu0 0
    %1737 = vmatprep.subr.bf16.mxu0 0
    %1738 = vmatpush1.bf16.xpose.msra.mxu0 0
    %1739 = vmatprep.subr.bf16.mxu0 0
    %1740 = vmatpush1.bf16.xpose.msra.mxu0 0
    %1741 = vmatprep.subr.bf16.mxu0 0
    %1742 = vmatpush1.bf16.xpose.msra.mxu0 0
    %1743 = vmatprep.subr.bf16.mxu0 0
    %1744 = vmatpush1.bf16.xpose.msra.mxu0 0
    %1745 = vmatprep.subr.bf16.mxu0 0
    %1746 = vmatpush1.bf16.xpose.msra.mxu0 0
    %1747 = vmatprep.mubr.bf16.mxu0 0
    %1748 = vmatmul.mubr.bf16.gmra.mrb[0].mxu0 %v1710
    %v1749 = vpop.f32.mrb[0].mxu0
    %v1750 = vadd.f32 0.0, %v1749
    %v1751 = vpop.f32.mrb[0].mxu0
    %v1752 = vpop.f32.mrb[0].mxu0
    %v1753 = vpop.f32.mrb[0].mxu0
    %1754 = vdwg.mxu0
    %v1755 = vsel %vm626, %v1750, -inf
    %1756 = vmax.xlane.f32.xlu0 %v1755
    %v1757 = vpop.xlane.xlu0 %1756
    %v1758 = vsub.f32 %v1750, %v1757
    %v1759 = vmul.f32 %v1758, 1.442695
    %v1760 = vpow.pop %v1759
    %v1761 = vsel %vm626, %v1760, 0.0
    %1762 = vadd.xlane.f32.xlu0 %v1761
    %v1763 = vpop.xlane.xlu0 %1762
    %v1764 = vrcp.pop %v1763
    %v1765 = vmul.f32 %v1760, %v1764
    %v1766 = vpack.c.bf16 %v1765, %v1765
    %1767 = vrot.lane.b32.xlu0 %v1305, 32
    %v1768 = vpop.permute.xlu0 %1767
    %v1770 = vsel %vm626, %v1766, 0
    %v1773 = vsel %vm642, %v1768, 0
    %1775 = vmatprep.subr.bf16.mxu0 0
    %1776 = vmatpush1.bf16.msra.mxu0 %v1773
    %1777 = vmatprep.subr.bf16.mxu0 0
    %1778 = vmatpush1.bf16.msra.mxu0 0
    %1779 = vmatprep.subr.bf16.mxu0 0
    %1780 = vmatpush1.bf16.msra.mxu0 0
    %1781 = vmatprep.subr.bf16.mxu0 0
    %1782 = vmatpush1.bf16.msra.mxu0 0
    %1783 = vmatprep.subr.bf16.mxu0 0
    %1784 = vmatpush1.bf16.msra.mxu0 0
    %1785 = vmatprep.subr.bf16.mxu0 0
    %1786 = vmatpush1.bf16.msra.mxu0 0
    %1787 = vmatprep.subr.bf16.mxu0 0
    %1788 = vmatpush1.bf16.msra.mxu0 0
    %1789 = vmatprep.subr.bf16.mxu0 0
    %1790 = vmatpush1.bf16.msra.mxu0 0
    %1791 = vmatprep.subr.bf16.mxu0 0
    %1792 = vmatpush1.bf16.msra.mxu0 0
    %1793 = vmatprep.subr.bf16.mxu0 0
    %1794 = vmatpush1.bf16.msra.mxu0 0
    %1795 = vmatprep.subr.bf16.mxu0 0
    %1796 = vmatpush1.bf16.msra.mxu0 0
    %1797 = vmatprep.subr.bf16.mxu0 0
    %1798 = vmatpush1.bf16.msra.mxu0 0
    %1799 = vmatprep.subr.bf16.mxu0 0
    %1800 = vmatpush1.bf16.msra.mxu0 0
    %1801 = vmatprep.subr.bf16.mxu0 0
    %1802 = vmatpush1.bf16.msra.mxu0 0
    %1803 = vmatprep.subr.bf16.mxu0 0
    %1804 = vmatpush1.bf16.msra.mxu0 0
    %1805 = vmatprep.subr.bf16.mxu0 0
    %1806 = vmatpush1.bf16.msra.mxu0 0
    %1807 = vmatprep.mubr.bf16.mxu0 0
    %1808 = vmatmul.mubr.bf16.gmra.mrb[0].mxu0 %v1770
    %v1809 = vpop.f32.mrb[0].mxu0
    %v1810 = vadd.f32 0.0, %v1809
    %v1811 = vpop.f32.mrb[0].mxu0
    %v1812 = vpop.f32.mrb[0].mxu0
    %v1813 = vpop.f32.mrb[0].mxu0
    %1814 = vdwg.mxu0
    %v1815 = vpack.c.bf16 %v1810, %v1810
    %v1817 = vsel %vm579, %v1815, 0
    %1819 = vmatprep.subr.bf16.mxu0 0
    %1820 = vmatpush1.bf16.msra.mxu0 %v1197
    %1821 = vmatprep.subr.bf16.mxu0 0
    %1822 = vmatpush1.bf16.msra.mxu0 %v1198
    %1823 = vmatprep.subr.bf16.mxu0 0
    %1824 = vmatpush1.bf16.msra.mxu0 0
    %1825 = vmatprep.subr.bf16.mxu0 0
    %1826 = vmatpush1.bf16.msra.mxu0 0
    %1827 = vmatprep.subr.bf16.mxu0 0
    %1828 = vmatpush1.bf16.msra.mxu0 0
    %1829 = vmatprep.subr.bf16.mxu0 0
    %1830 = vmatpush1.bf16.msra.mxu0 0
    %1831 = vmatprep.subr.bf16.mxu0 0
    %1832 = vmatpush1.bf16.msra.mxu0 0
    %1833 = vmatprep.subr.bf16.mxu0 0
    %1834 = vmatpush1.bf16.msra.mxu0 0
    %1835 = vmatprep.subr.bf16.mxu0 0
    %1836 = vmatpush1.bf16.msra.mxu0 0
    %1837 = vmatprep.subr.bf16.mxu0 0
    %1838 = vmatpush1.bf16.msra.mxu0 0
    %1839 = vmatprep.subr.bf16.mxu0 0
    %1840 = vmatpush1.bf16.msra.mxu0 0
    %1841 = vmatprep.subr.bf16.mxu0 0
    %1842 = vmatpush1.bf16.msra.mxu0 0
    %1843 = vmatprep.subr.bf16.mxu0 0
    %1844 = vmatpush1.bf16.msra.mxu0 0
    %1845 = vmatprep.subr.bf16.mxu0 0
    %1846 = vmatpush1.bf16.msra.mxu0 0
    %1847 = vmatprep.subr.bf16.mxu0 0
    %1848 = vmatpush1.bf16.msra.mxu0 0
    %1849 = vmatprep.subr.bf16.mxu0 0
    %1850 = vmatpush1.bf16.msra.mxu0 0
    %1851 = vmatprep.mubr.bf16.mxu0 0
    %1852 = vmatmul.mubr.bf16.gmra.mrb[0].mxu0 %v1817
    %v1853 = vpop.f32.mrb[0].mxu0
    %v1854 = vadd.f32 0.0, %v1853
    %v1855 = vpop.f32.mrb[0].mxu0
    %v1856 = vpop.f32.mrb[0].mxu0
    %v1857 = vpop.f32.mrb[0].mxu0
    %1858 = vdwg.mxu0
    %v1859 = vadd.f32 %v1704, %v1854
    %v1860 = vld [vmem:[#allocation8] sm:$0x1]
    %v1862 = vlaneseq
    %v1863 = vshrl.u32 %v1862, 7
    %v1864 = vsub.s32 0, %v1863
    %v1865 = vrot.slane %v1860, %v1864
    %v1867 = vadd.f32 %v1244, %v1865
    %v1868 = vadd.f32 %v1859, %v1865
    %v1869 = vadd.f32 %v296, %v1867
    %v1870 = vadd.f32 %v297, %v1868
    %v1871 = vld [vmem:[#allocation10] sm:$0x1]
    %v1872 = vld [vmem:[%s13] sm:$0x1]
    %1873 = vadd.xlane.f32.xlu0 %v1869
    %v1874 = vpop.xlane.xlu0 %1873
    %1875 = vadd.xlane.f32.xlu0 %v1870
    %v1876 = vpop.xlane.xlu0 %1875
    %v1877 = vrcp.pop 128.0
    %v1878 = vmul.f32 %v1874, %v1877
    %v1879 = vmul.f32 %v1876, %v1877
    %v1880 = vsub.f32 %v1869, %v1878
    %v1881 = vsub.f32 %v1870, %v1879
    %v1882 = vmul.f32 %v1880, %v1880
    %v1883 = vmul.f32 %v1881, %v1881
    %1884 = vadd.xlane.f32.xlu0 %v1882
    %v1885 = vpop.xlane.xlu0 %1884
    %1886 = vadd.xlane.f32.xlu0 %v1883
    %v1887 = vpop.xlane.xlu0 %1886
    %v1888 = vmul.f32 %v1885, %v1877
    %v1889 = vmul.f32 %v1887, %v1877
    %v1890 = vadd.f32 %v1888, 1e-05
    %v1891 = vadd.f32 %v1889, 1e-05
    %v1892 = vrsqrt.pop %v1890
    %v1893 = vrsqrt.pop %v1891
    %v1894 = vmul.f32 %v1880, %v1892
    %v1895 = vmul.f32 %v1881, %v1893
    %v1897 = vlaneseq
    %v1898 = vshrl.u32 %v1897, 7
    %v1899 = vsub.s32 0, %v1898
    %v1900 = vrot.slane %v1871, %v1899
    %v1902 = vmul.f32 %v1894, %v1900
    %v1903 = vmul.f32 %v1895, %v1900
    %v1905 = vlaneseq
    %v1906 = vshrl.u32 %v1905, 7
    %v1907 = vsub.s32 0, %v1906
    %v1908 = vrot.slane %v1872, %v1907
    %v1910 = vadd.f32 %v1902, %v1908
    %v1911 = vadd.f32 %v1903, %v1908
    %v1912 = vpack.c.bf16 %v1911, %v1910
    %v1913 = vld [vmem:[#allocation11] sm:$0xff]
    %v1914 = vld [vmem:[#allocation11 + $0x8] sm:$0xff]
    %v1915 = vld [vmem:[#allocation11 + $0x10] sm:$0xff]
    %v1916 = vld [vmem:[#allocation11 + $0x18] sm:$0xff]
    %v1917 = vld [vmem:[#allocation11 + $0x20] sm:$0xff]
    %v1918 = vld [vmem:[#allocation11 + $0x28] sm:$0xff]
    %v1919 = vld [vmem:[#allocation11 + $0x30] sm:$0xff]
    %v1920 = vld [vmem:[#allocation11 + $0x38] sm:$0xff]
    %v1921 = vld [vmem:[#allocation11 + $0x40] sm:$0xff]
    %v1922 = vld [vmem:[#allocation11 + $0x48] sm:$0xff]
    %v1923 = vld [vmem:[#allocation11 + $0x50] sm:$0xff]
    %v1924 = vld [vmem:[#allocation11 + $0x58] sm:$0xff]
    %v1925 = vld [vmem:[#allocation11 + $0x60] sm:$0xff]
    %v1926 = vld [vmem:[#allocation11 + $0x68] sm:$0xff]
    %v1927 = vld [vmem:[#allocation11 + $0x70] sm:$0xff]
    %v1928 = vld [vmem:[#allocation11 + $0x78] sm:$0xff]
    %v1929 = vld [vmem:[#allocation11 + $0x80] sm:$0xff]
    %v1930 = vld [vmem:[#allocation11 + $0x88] sm:$0xff]
    %v1931 = vld [vmem:[#allocation11 + $0x90] sm:$0xff]
    %v1932 = vld [vmem:[#allocation11 + $0x98] sm:$0xff]
    %v1933 = vld [vmem:[#allocation11 + $0xa0] sm:$0xff]
    %v1934 = vld [vmem:[#allocation11 + $0xa8] sm:$0xff]
    %v1935 = vld [vmem:[#allocation11 + $0xb0] sm:$0xff]
    %v1936 = vld [vmem:[#allocation11 + $0xb8] sm:$0xff]
    %v1937 = vld [vmem:[#allocation11 + $0xc0] sm:$0xff]
    %v1938 = vld [vmem:[#allocation11 + $0xc8] sm:$0xff]
    %v1939 = vld [vmem:[#allocation11 + $0xd0] sm:$0xff]
    %v1940 = vld [vmem:[#allocation11 + $0xd8] sm:$0xff]
    %v1941 = vld [vmem:[#allocation11 + $0xe0] sm:$0xff]
    %v1942 = vld [vmem:[#allocation11 + $0xe8] sm:$0xff]
    %v1943 = vld [vmem:[#allocation11 + $0xf0] sm:$0xff]
    %v1944 = vld [vmem:[#allocation11 + $0xf8] sm:$0xff]
    %v1945 = vld [vmem:[%s17] sm:$0xf]
    %v1947 = vlaneseq
    %v1948 = vshrl.u32 %v1947, 7
    %v1949 = vsub.s32 0, %v1948
    %v1950 = vrot.slane %v1945, %v1949
    %v1951 = vlaneseq
    %v1952 = vshrl.u32 %v1951, 7
    %v1953 = vsub.s32 1, %v1952
    %v1954 = vrot.slane %v1945, %v1953
    %v1955 = vlaneseq
    %v1956 = vshrl.u32 %v1955, 7
    %v1957 = vsub.s32 2, %v1956
    %v1958 = vrot.slane %v1945, %v1957
    %v1959 = vlaneseq
    %v1960 = vshrl.u32 %v1959, 7
    %v1961 = vsub.s32 3, %v1960
    %v1962 = vrot.slane %v1945, %v1961
    %v1999 = vunpack.c.l.b16 %v1913
    %v2000 = vunpack.c.h.b16 %v1913
    %v2001 = vunpack.c.l.b16 %v1914
    %v2002 = vunpack.c.h.b16 %v1914
    %v2003 = vunpack.c.l.b16 %v1915
    %v2004 = vunpack.c.h.b16 %v1915
    %v2005 = vunpack.c.l.b16 %v1916
    %v2006 = vunpack.c.h.b16 %v1916
    %v2007 = vunpack.c.l.b16 %v1917
    %v2008 = vunpack.c.h.b16 %v1917
    %v2009 = vunpack.c.l.b16 %v1918
    %v2010 = vunpack.c.h.b16 %v1918
    %v2011 = vunpack.c.l.b16 %v1919
    %v2012 = vunpack.c.h.b16 %v1919
    %v2013 = vunpack.c.l.b16 %v1920
    %v2014 = vunpack.c.h.b16 %v1920
    %v2015 = vunpack.c.l.b16 %v1921
    %v2016 = vunpack.c.h.b16 %v1921
    %v2017 = vunpack.c.l.b16 %v1922
    %v2018 = vunpack.c.h.b16 %v1922
    %v2019 = vunpack.c.l.b16 %v1923
    %v2020 = vunpack.c.h.b16 %v1923
    %v2021 = vunpack.c.l.b16 %v1924
    %v2022 = vunpack.c.h.b16 %v1924
    %v2023 = vunpack.c.l.b16 %v1925
    %v2024 = vunpack.c.h.b16 %v1925
    %v2025 = vunpack.c.l.b16 %v1926
    %v2026 = vunpack.c.h.b16 %v1926
    %v2027 = vunpack.c.l.b16 %v1927
    %v2028 = vunpack.c.h.b16 %v1927
    %v2029 = vunpack.c.l.b16 %v1928
    %v2030 = vunpack.c.h.b16 %v1928
    %v2031 = vunpack.c.l.b16 %v1929
    %v2032 = vunpack.c.h.b16 %v1929
    %v2033 = vunpack.c.l.b16 %v1930
    %v2034 = vunpack.c.h.b16 %v1930
    %v2035 = vunpack.c.l.b16 %v1931
    %v2036 = vunpack.c.h.b16 %v1931
    %v2037 = vunpack.c.l.b16 %v1932
    %v2038 = vunpack.c.h.b16 %v1932
    %v2039 = vunpack.c.l.b16 %v1933
    %v2040 = vunpack.c.h.b16 %v1933
    %v2041 = vunpack.c.l.b16 %v1934
    %v2042 = vunpack.c.h.b16 %v1934
    %v2043 = vunpack.c.l.b16 %v1935
    %v2044 = vunpack.c.h.b16 %v1935
    %v2045 = vunpack.c.l.b16 %v1936
    %v2046 = vunpack.c.h.b16 %v1936
    %v2047 = vunpack.c.l.b16 %v1937
    %v2048 = vunpack.c.h.b16 %v1937
    %v2049 = vunpack.c.l.b16 %v1938
    %v2050 = vunpack.c.h.b16 %v1938
    %v2051 = vunpack.c.l.b16 %v1939
    %v2052 = vunpack.c.h.b16 %v1939
    %v2053 = vunpack.c.l.b16 %v1940
    %v2054 = vunpack.c.h.b16 %v1940
    %v2055 = vunpack.c.l.b16 %v1941
    %v2056 = vunpack.c.h.b16 %v1941
    %v2057 = vunpack.c.l.b16 %v1942
    %v2058 = vunpack.c.h.b16 %v1942
    %v2059 = vunpack.c.l.b16 %v1943
    %v2060 = vunpack.c.h.b16 %v1943
    %v2061 = vunpack.c.l.b16 %v1944
    %v2062 = vunpack.c.h.b16 %v1944
    %v2063 = vpack.c.b16 %v2003, %v1999
    %v2064 = vpack.c.b16 %v2004, %v2000
    %v2065 = vpack.c.b16 %v2005, %v2001
    %v2066 = vpack.c.b16 %v2006, %v2002
    %v2067 = vpack.c.b16 %v2011, %v2007
    %v2068 = vpack.c.b16 %v2012, %v2008
    %v2069 = vpack.c.b16 %v2013, %v2009
    %v2070 = vpack.c.b16 %v2014, %v2010
    %v2071 = vpack.c.b16 %v2019, %v2015
    %v2072 = vpack.c.b16 %v2020, %v2016
    %v2073 = vpack.c.b16 %v2021, %v2017
    %v2074 = vpack.c.b16 %v2022, %v2018
    %v2075 = vpack.c.b16 %v2027, %v2023
    %v2076 = vpack.c.b16 %v2028, %v2024
    %v2077 = vpack.c.b16 %v2029, %v2025
    %v2078 = vpack.c.b16 %v2030, %v2026
    %v2079 = vpack.c.b16 %v2035, %v2031
    %v2080 = vpack.c.b16 %v2036, %v2032
    %v2081 = vpack.c.b16 %v2037, %v2033
    %v2082 = vpack.c.b16 %v2038, %v2034
    %v2083 = vpack.c.b16 %v2043, %v2039
    %v2084 = vpack.c.b16 %v2044, %v2040
    %v2085 = vpack.c.b16 %v2045, %v2041
    %v2086 = vpack.c.b16 %v2046, %v2042
    %v2087 = vpack.c.b16 %v2051, %v2047
    %v2088 = vpack.c.b16 %v2052, %v2048
    %v2089 = vpack.c.b16 %v2053, %v2049
    %v2090 = vpack.c.b16 %v2054, %v2050
    %v2091 = vpack.c.b16 %v2059, %v2055
    %v2092 = vpack.c.b16 %v2060, %v2056
    %v2093 = vpack.c.b16 %v2061, %v2057
    %v2094 = vpack.c.b16 %v2062, %v2058
    %2127 = vmatprep.subr.bf16.mxu0 %v2064
    %2128 = vmatpush1.bf16.msra.mxu0 %v2063
    %2129 = vmatprep.subr.bf16.mxu0 %v2068
    %2130 = vmatpush1.bf16.msra.mxu0 %v2067
    %2131 = vmatprep.subr.bf16.mxu0 %v2072
    %2132 = vmatpush1.bf16.msra.mxu0 %v2071
    %2133 = vmatprep.subr.bf16.mxu0 %v2076
    %2134 = vmatpush1.bf16.msra.mxu0 %v2075
    %2135 = vmatprep.subr.bf16.mxu0 %v2080
    %2136 = vmatpush1.bf16.msra.mxu0 %v2079
    %2137 = vmatprep.subr.bf16.mxu0 %v2084
    %2138 = vmatpush1.bf16.msra.mxu0 %v2083
    %2139 = vmatprep.subr.bf16.mxu0 %v2088
    %2140 = vmatpush1.bf16.msra.mxu0 %v2087
    %2141 = vmatprep.subr.bf16.mxu0 %v2092
    %2142 = vmatpush1.bf16.msra.mxu0 %v2091
    %2143 = vmatprep.subr.bf16.mxu0 0
    %2144 = vmatpush1.bf16.msra.mxu0 0
    %2145 = vmatprep.subr.bf16.mxu0 0
    %2146 = vmatpush1.bf16.msra.mxu0 0
    %2147 = vmatprep.subr.bf16.mxu0 0
    %2148 = vmatpush1.bf16.msra.mxu0 0
    %2149 = vmatprep.subr.bf16.mxu0 0
    %2150 = vmatpush1.bf16.msra.mxu0 0
    %2151 = vmatprep.subr.bf16.mxu0 0
    %2152 = vmatpush1.bf16.msra.mxu0 0
    %2153 = vmatprep.subr.bf16.mxu0 0
    %2154 = vmatpush1.bf16.msra.mxu0 0
    %2155 = vmatprep.subr.bf16.mxu0 0
    %2156 = vmatpush1.bf16.msra.mxu0 0
    %2157 = vmatprep.subr.bf16.mxu0 0
    %2158 = vmatpush1.bf16.msra.mxu0 0
    %2159 = vmatprep.mubr.bf16.mxu0 0
    %2160 = vmatmul.mubr.bf16.gmra.mrb[0].mxu0 %v1912
    %v2161 = vpop.f32.mrb[0].mxu0
    %v2162 = vadd.f32 %v1950, %v2161
    %v2163 = vpop.f32.mrb[0].mxu0
    %v2164 = vadd.f32 %v1954, %v2163
    %v2165 = vpop.f32.mrb[0].mxu0
    %v2166 = vadd.f32 %v1950, %v2165
    %v2167 = vpop.f32.mrb[0].mxu0
    %v2168 = vadd.f32 %v1954, %v2167
    %2169 = vdwg.mxu0
    %2170 = vmatprep.subr.bf16.mxu0 %v2066
    %2171 = vmatpush1.bf16.msra.mxu0 %v2065
    %2172 = vmatprep.subr.bf16.mxu0 %v2070
    %2173 = vmatpush1.bf16.msra.mxu0 %v2069
    %2174 = vmatprep.subr.bf16.mxu0 %v2074
    %2175 = vmatpush1.bf16.msra.mxu0 %v2073
    %2176 = vmatprep.subr.bf16.mxu0 %v2078
    %2177 = vmatpush1.bf16.msra.mxu0 %v2077
    %2178 = vmatprep.subr.bf16.mxu0 %v2082
    %2179 = vmatpush1.bf16.msra.mxu0 %v2081
    %2180 = vmatprep.subr.bf16.mxu0 %v2086
    %2181 = vmatpush1.bf16.msra.mxu0 %v2085
    %2182 = vmatprep.subr.bf16.mxu0 %v2090
    %2183 = vmatpush1.bf16.msra.mxu0 %v2089
    %2184 = vmatprep.subr.bf16.mxu0 %v2094
    %2185 = vmatpush1.bf16.msra.mxu0 %v2093
    %2186 = vmatprep.subr.bf16.mxu0 0
    %2187 = vmatpush1.bf16.msra.mxu0 0
    %2188 = vmatprep.subr.bf16.mxu0 0
    %2189 = vmatpush1.bf16.msra.mxu0 0
    %2190 = vmatprep.subr.bf16.mxu0 0
    %2191 = vmatpush1.bf16.msra.mxu0 0
    %2192 = vmatprep.subr.bf16.mxu0 0
    %2193 = vmatpush1.bf16.msra.mxu0 0
    %2194 = vmatprep.subr.bf16.mxu0 0
    %2195 = vmatpush1.bf16.msra.mxu0 0
    %2196 = vmatprep.subr.bf16.mxu0 0
    %2197 = vmatpush1.bf16.msra.mxu0 0
    %2198 = vmatprep.subr.bf16.mxu0 0
    %2199 = vmatpush1.bf16.msra.mxu0 0
    %2200 = vmatprep.subr.bf16.mxu0 0
    %2201 = vmatpush1.bf16.msra.mxu0 0
    %2202 = vmatprep.mubr.bf16.mxu0 0
    %2203 = vmatmul.mubr.bf16.gmra.mrb[0].mxu0 %v1912
    %v2204 = vpop.f32.mrb[0].mxu0
    %v2205 = vadd.f32 %v1958, %v2204
    %v2206 = vpop.f32.mrb[0].mxu0
    %v2207 = vadd.f32 %v1962, %v2206
    %v2208 = vpop.f32.mrb[0].mxu0
    %v2209 = vadd.f32 %v1958, %v2208
    %v2210 = vpop.f32.mrb[0].mxu0
    %v2211 = vadd.f32 %v1962, %v2210
    %2212 = vdwg.mxu0
    %v2213 = vmax.f32 %v2162, 0.0
    %v2214 = vmax.f32 %v2164, 0.0
    %v2215 = vmax.f32 %v2205, 0.0
    %v2216 = vmax.f32 %v2207, 0.0
    %v2217 = vmax.f32 %v2166, 0.0
    %v2218 = vmax.f32 %v2168, 0.0
    %v2219 = vmax.f32 %v2209, 0.0
    %v2220 = vmax.f32 %v2211, 0.0
    %v2221 = vpack.c.bf16 %v2217, %v2213
    %v2222 = vpack.c.bf16 %v2218, %v2214
    %v2223 = vpack.c.bf16 %v2219, %v2215
    %v2224 = vpack.c.bf16 %v2220, %v2216
    %v2225 = vld [vmem:[#allocation13] sm:$0xf]
    %v2226 = vld [vmem:[#allocation13 + $0x4] sm:$0xf]
    %v2227 = vld [vmem:[#allocation13 + $0x8] sm:$0xf]
    %v2228 = vld [vmem:[#allocation13 + $0xc] sm:$0xf]
    %v2229 = vld [vmem:[#allocation13 + $0x10] sm:$0xf]
    %v2230 = vld [vmem:[#allocation13 + $0x14] sm:$0xf]
    %v2231 = vld [vmem:[#allocation13 + $0x18] sm:$0xf]
    %v2232 = vld [vmem:[#allocation13 + $0x1c] sm:$0xf]
    %v2233 = vld [vmem:[#allocation13 + $0x20] sm:$0xf]
    %v2234 = vld [vmem:[#allocation13 + $0x24] sm:$0xf]
    %v2235 = vld [vmem:[#allocation13 + $0x28] sm:$0xf]
    %v2236 = vld [vmem:[#allocation13 + $0x2c] sm:$0xf]
    %v2237 = vld [vmem:[#allocation13 + $0x30] sm:$0xf]
    %v2238 = vld [vmem:[#allocation13 + $0x34] sm:$0xf]
    %v2239 = vld [vmem:[#allocation13 + $0x38] sm:$0xf]
    %v2240 = vld [vmem:[#allocation13 + $0x3c] sm:$0xf]
    %v2241 = vld [vmem:[#allocation13 + $0x40] sm:$0xf]
    %v2242 = vld [vmem:[#allocation13 + $0x44] sm:$0xf]
    %v2243 = vld [vmem:[#allocation13 + $0x48] sm:$0xf]
    %v2244 = vld [vmem:[#allocation13 + $0x4c] sm:$0xf]
    %v2245 = vld [vmem:[#allocation13 + $0x50] sm:$0xf]
    %v2246 = vld [vmem:[#allocation13 + $0x54] sm:$0xf]
    %v2247 = vld [vmem:[#allocation13 + $0x58] sm:$0xf]
    %v2248 = vld [vmem:[#allocation13 + $0x5c] sm:$0xf]
    %v2249 = vld [vmem:[#allocation13 + $0x60] sm:$0xf]
    %v2250 = vld [vmem:[#allocation13 + $0x64] sm:$0xf]
    %v2251 = vld [vmem:[#allocation13 + $0x68] sm:$0xf]
    %v2252 = vld [vmem:[#allocation13 + $0x6c] sm:$0xf]
    %v2253 = vld [vmem:[#allocation13 + $0x70] sm:$0xf]
    %v2254 = vld [vmem:[#allocation13 + $0x74] sm:$0xf]
    %v2255 = vld [vmem:[#allocation13 + $0x78] sm:$0xf]
    %v2256 = vld [vmem:[#allocation13 + $0x7c] sm:$0xf]
    %v2257 = vld [vmem:[#allocation13 + $0x80] sm:$0xf]
    %v2258 = vld [vmem:[#allocation13 + $0x84] sm:$0xf]
    %v2259 = vld [vmem:[#allocation13 + $0x88] sm:$0xf]
    %v2260 = vld [vmem:[#allocation13 + $0x8c] sm:$0xf]
    %v2261 = vld [vmem:[#allocation13 + $0x90] sm:$0xf]
    %v2262 = vld [vmem:[#allocation13 + $0x94] sm:$0xf]
    %v2263 = vld [vmem:[#allocation13 + $0x98] sm:$0xf]
    %v2264 = vld [vmem:[#allocation13 + $0x9c] sm:$0xf]
    %v2265 = vld [vmem:[#allocation13 + $0xa0] sm:$0xf]
    %v2266 = vld [vmem:[#allocation13 + $0xa4] sm:$0xf]
    %v2267 = vld [vmem:[#allocation13 + $0xa8] sm:$0xf]
    %v2268 = vld [vmem:[#allocation13 + $0xac] sm:$0xf]
    %v2269 = vld [vmem:[#allocation13 + $0xb0] sm:$0xf]
    %v2270 = vld [vmem:[#allocation13 + $0xb4] sm:$0xf]
    %v2271 = vld [vmem:[#allocation13 + $0xb8] sm:$0xf]
    %v2272 = vld [vmem:[#allocation13 + $0xbc] sm:$0xf]
    %v2273 = vld [vmem:[#allocation13 + $0xc0] sm:$0xf]
    %v2274 = vld [vmem:[#allocation13 + $0xc4] sm:$0xf]
    %v2275 = vld [vmem:[#allocation13 + $0xc8] sm:$0xf]
    %v2276 = vld [vmem:[#allocation13 + $0xcc] sm:$0xf]
    %v2277 = vld [vmem:[#allocation13 + $0xd0] sm:$0xf]
    %v2278 = vld [vmem:[#allocation13 + $0xd4] sm:$0xf]
    %v2279 = vld [vmem:[#allocation13 + $0xd8] sm:$0xf]
    %v2280 = vld [vmem:[#allocation13 + $0xdc] sm:$0xf]
    %v2281 = vld [vmem:[#allocation13 + $0xe0] sm:$0xf]
    %v2282 = vld [vmem:[#allocation13 + $0xe4] sm:$0xf]
    %v2283 = vld [vmem:[#allocation13 + $0xe8] sm:$0xf]
    %v2284 = vld [vmem:[#allocation13 + $0xec] sm:$0xf]
    %v2285 = vld [vmem:[#allocation13 + $0xf0] sm:$0xf]
    %v2286 = vld [vmem:[#allocation13 + $0xf4] sm:$0xf]
    %v2287 = vld [vmem:[#allocation13 + $0xf8] sm:$0xf]
    %v2288 = vld [vmem:[#allocation13 + $0xfc] sm:$0xf]
    %v2289 = vld [vmem:[%s21] sm:$0x1]
    %v2291 = vlaneseq
    %v2292 = vshrl.u32 %v2291, 7
    %v2293 = vsub.s32 0, %v2292
    %v2294 = vrot.slane %v2289, %v2293
    %v2360 = vunpack.c.l.b16 %v2225
    %v2361 = vunpack.c.l.b16 %v2226
    %v2362 = vunpack.c.l.b16 %v2227
    %v2363 = vunpack.c.l.b16 %v2228
    %v2364 = vunpack.c.l.b16 %v2229
    %v2365 = vunpack.c.l.b16 %v2230
    %v2366 = vunpack.c.l.b16 %v2231
    %v2367 = vunpack.c.l.b16 %v2232
    %v2368 = vunpack.c.l.b16 %v2233
    %v2369 = vunpack.c.l.b16 %v2234
    %v2370 = vunpack.c.l.b16 %v2235
    %v2371 = vunpack.c.l.b16 %v2236
    %v2372 = vunpack.c.l.b16 %v2237
    %v2373 = vunpack.c.l.b16 %v2238
    %v2374 = vunpack.c.l.b16 %v2239
    %v2375 = vunpack.c.l.b16 %v2240
    %v2376 = vunpack.c.l.b16 %v2241
    %v2377 = vunpack.c.l.b16 %v2242
    %v2378 = vunpack.c.l.b16 %v2243
    %v2379 = vunpack.c.l.b16 %v2244
    %v2380 = vunpack.c.l.b16 %v2245
    %v2381 = vunpack.c.l.b16 %v2246
    %v2382 = vunpack.c.l.b16 %v2247
    %v2383 = vunpack.c.l.b16 %v2248
    %v2384 = vunpack.c.l.b16 %v2249
    %v2385 = vunpack.c.l.b16 %v2250
    %v2386 = vunpack.c.l.b16 %v2251
    %v2387 = vunpack.c.l.b16 %v2252
    %v2388 = vunpack.c.l.b16 %v2253
    %v2389 = vunpack.c.l.b16 %v2254
    %v2390 = vunpack.c.l.b16 %v2255
    %v2391 = vunpack.c.l.b16 %v2256
    %v2392 = vunpack.c.l.b16 %v2257
    %v2393 = vunpack.c.l.b16 %v2258
    %v2394 = vunpack.c.l.b16 %v2259
    %v2395 = vunpack.c.l.b16 %v2260
    %v2396 = vunpack.c.l.b16 %v2261
    %v2397 = vunpack.c.l.b16 %v2262
    %v2398 = vunpack.c.l.b16 %v2263
    %v2399 = vunpack.c.l.b16 %v2264
    %v2400 = vunpack.c.l.b16 %v2265
    %v2401 = vunpack.c.l.b16 %v2266
    %v2402 = vunpack.c.l.b16 %v2267
    %v2403 = vunpack.c.l.b16 %v2268
    %v2404 = vunpack.c.l.b16 %v2269
    %v2405 = vunpack.c.l.b16 %v2270
    %v2406 = vunpack.c.l.b16 %v2271
    %v2407 = vunpack.c.l.b16 %v2272
    %v2408 = vunpack.c.l.b16 %v2273
    %v2409 = vunpack.c.l.b16 %v2274
    %v2410 = vunpack.c.l.b16 %v2275
    %v2411 = vunpack.c.l.b16 %v2276
    %v2412 = vunpack.c.l.b16 %v2277
    %v2413 = vunpack.c.l.b16 %v2278
    %v2414 = vunpack.c.l.b16 %v2279
    %v2415 = vunpack.c.l.b16 %v2280
    %v2416 = vunpack.c.l.b16 %v2281
    %v2417 = vunpack.c.l.b16 %v2282
    %v2418 = vunpack.c.l.b16 %v2283
    %v2419 = vunpack.c.l.b16 %v2284
    %v2420 = vunpack.c.l.b16 %v2285
    %v2421 = vunpack.c.l.b16 %v2286
    %v2422 = vunpack.c.l.b16 %v2287
    %v2423 = vunpack.c.l.b16 %v2288
    %v2424 = vpack.c.b16 %v2361, %v2360
    %v2425 = vpack.c.b16 %v2363, %v2362
    %v2426 = vpack.c.b16 %v2365, %v2364
    %v2427 = vpack.c.b16 %v2367, %v2366
    %v2428 = vpack.c.b16 %v2369, %v2368
    %v2429 = vpack.c.b16 %v2371, %v2370
    %v2430 = vpack.c.b16 %v2373, %v2372
    %v2431 = vpack.c.b16 %v2375, %v2374
    %v2432 = vpack.c.b16 %v2377, %v2376
    %v2433 = vpack.c.b16 %v2379, %v2378
    %v2434 = vpack.c.b16 %v2381, %v2380
    %v2435 = vpack.c.b16 %v2383, %v2382
    %v2436 = vpack.c.b16 %v2385, %v2384
    %v2437 = vpack.c.b16 %v2387, %v2386
    %v2438 = vpack.c.b16 %v2389, %v2388
    %v2439 = vpack.c.b16 %v2391, %v2390
    %v2440 = vpack.c.b16 %v2393, %v2392
    %v2441 = vpack.c.b16 %v2395, %v2394
    %v2442 = vpack.c.b16 %v2397, %v2396
    %v2443 = vpack.c.b16 %v2399, %v2398
    %v2444 = vpack.c.b16 %v2401, %v2400
    %v2445 = vpack.c.b16 %v2403, %v2402
    %v2446 = vpack.c.b16 %v2405, %v2404
    %v2447 = vpack.c.b16 %v2407, %v2406
    %v2448 = vpack.c.b16 %v2409, %v2408
    %v2449 = vpack.c.b16 %v2411, %v2410
    %v2450 = vpack.c.b16 %v2413, %v2412
    %v2451 = vpack.c.b16 %v2415, %v2414
    %v2452 = vpack.c.b16 %v2417, %v2416
    %v2453 = vpack.c.b16 %v2419, %v2418
    %v2454 = vpack.c.b16 %v2421, %v2420
    %v2455 = vpack.c.b16 %v2423, %v2422
    %2488 = vmatprep.subr.bf16.mxu0 0
    %2489 = vmatpush1.bf16.msra.mxu0 %v2424
    %2490 = vmatprep.subr.bf16.mxu0 0
    %2491 = vmatpush1.bf16.msra.mxu0 %v2425
    %2492 = vmatprep.subr.bf16.mxu0 0
    %2493 = vmatpush1.bf16.msra.mxu0 %v2426
    %2494 = vmatprep.subr.bf16.mxu0 0
    %2495 = vmatpush1.bf16.msra.mxu0 %v2427
    %2496 = vmatprep.subr.bf16.mxu0 0
    %2497 = vmatpush1.bf16.msra.mxu0 %v2428
    %2498 = vmatprep.subr.bf16.mxu0 0
    %2499 = vmatpush1.bf16.msra.mxu0 %v2429
    %2500 = vmatprep.subr.bf16.mxu0 0
    %2501 = vmatpush1.bf16.msra.mxu0 %v2430
    %2502 = vmatprep.subr.bf16.mxu0 0
    %2503 = vmatpush1.bf16.msra.mxu0 %v2431
    %2504 = vmatprep.subr.bf16.mxu0 0
    %2505 = vmatpush1.bf16.msra.mxu0 %v2432
    %2506 = vmatprep.subr.bf16.mxu0 0
    %2507 = vmatpush1.bf16.msra.mxu0 %v2433
    %2508 = vmatprep.subr.bf16.mxu0 0
    %2509 = vmatpush1.bf16.msra.mxu0 %v2434
    %2510 = vmatprep.subr.bf16.mxu0 0
    %2511 = vmatpush1.bf16.msra.mxu0 %v2435
    %2512 = vmatprep.subr.bf16.mxu0 0
    %2513 = vmatpush1.bf16.msra.mxu0 %v2436
    %2514 = vmatprep.subr.bf16.mxu0 0
    %2515 = vmatpush1.bf16.msra.mxu0 %v2437
    %2516 = vmatprep.subr.bf16.mxu0 0
    %2517 = vmatpush1.bf16.msra.mxu0 %v2438
    %2518 = vmatprep.subr.bf16.mxu0 0
    %2519 = vmatpush1.bf16.msra.mxu0 %v2439
    %2520 = vmatprep.mubr.bf16.mxu0 %v2222
    %2521 = vmatmul.mubr.bf16.gmra.mrb[0].mxu0 %v2221
    %v2522 = vpop.f32.mrb[0].mxu0
    %v2523 = vadd.f32 %v2294, %v2522
    %v2524 = vpop.f32.mrb[0].mxu0
    %v2525 = vpop.f32.mrb[0].mxu0
    %v2526 = vadd.f32 %v2294, %v2525
    %v2527 = vpop.f32.mrb[0].mxu0
    %2528 = vdwg.mxu0
    %2529 = vmatprep.subr.bf16.mxu0 0
    %2530 = vmatpush1.bf16.msra.mxu0 %v2440
    %2531 = vmatprep.subr.bf16.mxu0 0
    %2532 = vmatpush1.bf16.msra.mxu0 %v2441
    %2533 = vmatprep.subr.bf16.mxu0 0
    %2534 = vmatpush1.bf16.msra.mxu0 %v2442
    %2535 = vmatprep.subr.bf16.mxu0 0
    %2536 = vmatpush1.bf16.msra.mxu0 %v2443
    %2537 = vmatprep.subr.bf16.mxu0 0
    %2538 = vmatpush1.bf16.msra.mxu0 %v2444
    %2539 = vmatprep.subr.bf16.mxu0 0
    %2540 = vmatpush1.bf16.msra.mxu0 %v2445
    %2541 = vmatprep.subr.bf16.mxu0 0
    %2542 = vmatpush1.bf16.msra.mxu0 %v2446
    %2543 = vmatprep.subr.bf16.mxu0 0
    %2544 = vmatpush1.bf16.msra.mxu0 %v2447
    %2545 = vmatprep.subr.bf16.mxu0 0
    %2546 = vmatpush1.bf16.msra.mxu0 %v2448
    %2547 = vmatprep.subr.bf16.mxu0 0
    %2548 = vmatpush1.bf16.msra.mxu0 %v2449
    %2549 = vmatprep.subr.bf16.mxu0 0
    %2550 = vmatpush1.bf16.msra.mxu0 %v2450
    %2551 = vmatprep.subr.bf16.mxu0 0
    %2552 = vmatpush1.bf16.msra.mxu0 %v2451
    %2553 = vmatprep.subr.bf16.mxu0 0
    %2554 = vmatpush1.bf16.msra.mxu0 %v2452
    %2555 = vmatprep.subr.bf16.mxu0 0
    %2556 = vmatpush1.bf16.msra.mxu0 %v2453
    %2557 = vmatprep.subr.bf16.mxu0 0
    %2558 = vmatpush1.bf16.msra.mxu0 %v2454
    %2559 = vmatprep.subr.bf16.mxu0 0
    %2560 = vmatpush1.bf16.msra.mxu0 %v2455
    %2561 = vmatprep.mubr.bf16.mxu0 %v2224
    %2562 = vmatmul.mubr.bf16.gmra.mrb[0].mxu0 %v2223
    %v2563 = vpop.f32.mrb[0].mxu0
    %v2564 = vadd.f32 %v2523, %v2563
    %v2565 = vpop.f32.mrb[0].mxu0
    %v2566 = vpop.f32.mrb[0].mxu0
    %v2567 = vadd.f32 %v2526, %v2566
    %v2568 = vpop.f32.mrb[0].mxu0
    %2569 = vdwg.mxu0
    %v2570 = vadd.f32 %v1910, %v2564
    %v2571 = vadd.f32 %v1911, %v2567
    %v2572 = vld [vmem:[%s23] sm:$0x1]
    %v2573 = vld [vmem:[%s25] sm:$0x1]
    %2574 = vadd.xlane.f32.xlu0 %v2570
    %v2575 = vpop.xlane.xlu0 %2574
    %2576 = vadd.xlane.f32.xlu0 %v2571
    %v2577 = vpop.xlane.xlu0 %2576
    %v2578 = vmul.f32 %v2575, %v1877
    %v2579 = vmul.f32 %v2577, %v1877
    %v2580 = vsub.f32 %v2570, %v2578
    %v2581 = vsub.f32 %v2571, %v2579
    %v2582 = vmul.f32 %v2580, %v2580
    %v2583 = vmul.f32 %v2581, %v2581
    %2584 = vadd.xlane.f32.xlu0 %v2582
    %v2585 = vpop.xlane.xlu0 %2584
    %2586 = vadd.xlane.f32.xlu0 %v2583
    %v2587 = vpop.xlane.xlu0 %2586
    %v2588 = vmul.f32 %v2585, %v1877
    %v2589 = vmul.f32 %v2587, %v1877
    %v2590 = vadd.f32 %v2588, 1e-05
    %v2591 = vadd.f32 %v2589, 1e-05
    %v2592 = vrsqrt.pop %v2590
    %v2593 = vrsqrt.pop %v2591
    %v2594 = vmul.f32 %v2580, %v2592
    %v2595 = vmul.f32 %v2581, %v2593
    %v2597 = vlaneseq
    %v2598 = vshrl.u32 %v2597, 7
    %v2599 = vsub.s32 0, %v2598
    %v2600 = vrot.slane %v2572, %v2599
    %v2602 = vmul.f32 %v2594, %v2600
    %v2603 = vmul.f32 %v2595, %v2600
    %v2605 = vlaneseq
    %v2606 = vshrl.u32 %v2605, 7
    %v2607 = vsub.s32 0, %v2606
    %v2608 = vrot.slane %v2573, %v2607
    %v2610 = vadd.f32 %v2602, %v2608
    %v2611 = vadd.f32 %v2603, %v2608
    %v2612 = vpack.c.bf16 %v2611, %v2610
    %v2613 = vld [vmem:[#allocation14] sm:$0xff]
    %v2614 = vld [vmem:[#allocation14 + $0x8] sm:$0xf]
    %v2615 = vld [vmem:[#allocation14 + $0xc] sm:$0xff]
    %v2616 = vld [vmem:[#allocation14 + $0x14] sm:$0xf]
    %v2617 = vld [vmem:[#allocation14 + $0x18] sm:$0xff]
    %v2618 = vld [vmem:[#allocation14 + $0x20] sm:$0xf]
    %v2619 = vld [vmem:[#allocation14 + $0x24] sm:$0xff]
    %v2620 = vld [vmem:[#allocation14 + $0x2c] sm:$0xf]
    %v2621 = vld [vmem:[#allocation14 + $0x30] sm:$0xff]
    %v2622 = vld [vmem:[#allocation14 + $0x38] sm:$0xf]
    %v2623 = vld [vmem:[#allocation14 + $0x3c] sm:$0xff]
    %v2624 = vld [vmem:[#allocation14 + $0x44] sm:$0xf]
    %v2625 = vld [vmem:[#allocation14 + $0x48] sm:$0xff]
    %v2626 = vld [vmem:[#allocation14 + $0x50] sm:$0xf]
    %v2627 = vld [vmem:[#allocation14 + $0x54] sm:$0xff]
    %v2628 = vld [vmem:[#allocation14 + $0x5c] sm:$0xf]
    %v2629 = vld [vmem:[#allocation14 + $0x60] sm:$0xff]
    %v2630 = vld [vmem:[#allocation14 + $0x68] sm:$0xf]
    %v2631 = vld [vmem:[#allocation14 + $0x6c] sm:$0xff]
    %v2632 = vld [vmem:[#allocation14 + $0x74] sm:$0xf]
    %v2633 = vld [vmem:[#allocation14 + $0x78] sm:$0xff]
    %v2634 = vld [vmem:[#allocation14 + $0x80] sm:$0xf]
    %v2635 = vld [vmem:[#allocation14 + $0x84] sm:$0xff]
    %v2636 = vld [vmem:[#allocation14 + $0x8c] sm:$0xf]
    %v2637 = vld [vmem:[#allocation14 + $0x90] sm:$0xff]
    %v2638 = vld [vmem:[#allocation14 + $0x98] sm:$0xf]
    %v2639 = vld [vmem:[#allocation14 + $0x9c] sm:$0xff]
    %v2640 = vld [vmem:[#allocation14 + $0xa4] sm:$0xf]
    %v2641 = vld [vmem:[#allocation14 + $0xa8] sm:$0xff]
    %v2642 = vld [vmem:[#allocation14 + $0xb0] sm:$0xf]
    %v2643 = vld [vmem:[#allocation14 + $0xb4] sm:$0xff]
    %v2644 = vld [vmem:[#allocation14 + $0xbc] sm:$0xf]
    %v2645 = vld [vmem:[%s29] sm:$0x7]
    %v2647 = vlaneseq
    %v2648 = vshrl.u32 %v2647, 7
    %v2649 = vsub.s32 0, %v2648
    %v2650 = vrot.slane %v2645, %v2649
    %v2651 = vlaneseq
    %v2652 = vshrl.u32 %v2651, 7
    %v2653 = vsub.s32 1, %v2652
    %v2654 = vrot.slane %v2645, %v2653
    %v2655 = vlaneseq
    %v2656 = vshrl.u32 %v2655, 7
    %v2657 = vsub.s32 2, %v2656
    %v2658 = vrot.slane %v2645, %v2657
    %v2694 = vunpack.c.l.b16 %v2613
    %v2695 = vunpack.c.h.b16 %v2613
    %v2696 = vunpack.c.l.b16 %v2614
    %v2697 = vunpack.c.l.b16 %v2615
    %v2698 = vunpack.c.h.b16 %v2615
    %v2699 = vunpack.c.l.b16 %v2616
    %v2700 = vunpack.c.l.b16 %v2617
    %v2701 = vunpack.c.h.b16 %v2617
    %v2702 = vunpack.c.l.b16 %v2618
    %v2703 = vunpack.c.l.b16 %v2619
    %v2704 = vunpack.c.h.b16 %v2619
    %v2705 = vunpack.c.l.b16 %v2620
    %v2706 = vunpack.c.l.b16 %v2621
    %v2707 = vunpack.c.h.b16 %v2621
    %v2708 = vunpack.c.l.b16 %v2622
    %v2709 = vunpack.c.l.b16 %v2623
    %v2710 = vunpack.c.h.b16 %v2623
    %v2711 = vunpack.c.l.b16 %v2624
    %v2712 = vunpack.c.l.b16 %v2625
    %v2713 = vunpack.c.h.b16 %v2625
    %v2714 = vunpack.c.l.b16 %v2626
    %v2715 = vunpack.c.l.b16 %v2627
    %v2716 = vunpack.c.h.b16 %v2627
    %v2717 = vunpack.c.l.b16 %v2628
    %v2718 = vunpack.c.l.b16 %v2629
    %v2719 = vunpack.c.h.b16 %v2629
    %v2720 = vunpack.c.l.b16 %v2630
    %v2721 = vunpack.c.l.b16 %v2631
    %v2722 = vunpack.c.h.b16 %v2631
    %v2723 = vunpack.c.l.b16 %v2632
    %v2724 = vunpack.c.l.b16 %v2633
    %v2725 = vunpack.c.h.b16 %v2633
    %v2726 = vunpack.c.l.b16 %v2634
    %v2727 = vunpack.c.l.b16 %v2635
    %v2728 = vunpack.c.h.b16 %v2635
    %v2729 = vunpack.c.l.b16 %v2636
    %v2730 = vunpack.c.l.b16 %v2637
    %v2731 = vunpack.c.h.b16 %v2637
    %v2732 = vunpack.c.l.b16 %v2638
    %v2733 = vunpack.c.l.b16 %v2639
    %v2734 = vunpack.c.h.b16 %v2639
    %v2735 = vunpack.c.l.b16 %v2640
    %v2736 = vunpack.c.l.b16 %v2641
    %v2737 = vunpack.c.h.b16 %v2641
    %v2738 = vunpack.c.l.b16 %v2642
    %v2739 = vunpack.c.l.b16 %v2643
    %v2740 = vunpack.c.h.b16 %v2643
    %v2741 = vunpack.c.l.b16 %v2644
    %v2742 = vpack.c.b16 %v2697, %v2694
    %v2743 = vpack.c.b16 %v2698, %v2695
    %v2744 = vpack.c.b16 %v2699, %v2696
    %v2745 = vpack.c.b16 %v2703, %v2700
    %v2746 = vpack.c.b16 %v2704, %v2701
    %v2747 = vpack.c.b16 %v2705, %v2702
    %v2748 = vpack.c.b16 %v2709, %v2706
    %v2749 = vpack.c.b16 %v2710, %v2707
    %v2750 = vpack.c.b16 %v2711, %v2708
    %v2751 = vpack.c.b16 %v2715, %v2712
    %v2752 = vpack.c.b16 %v2716, %v2713
    %v2753 = vpack.c.b16 %v2717, %v2714
    %v2754 = vpack.c.b16 %v2721, %v2718
    %v2755 = vpack.c.b16 %v2722, %v2719
    %v2756 = vpack.c.b16 %v2723, %v2720
    %v2757 = vpack.c.b16 %v2727, %v2724
    %v2758 = vpack.c.b16 %v2728, %v2725
    %v2759 = vpack.c.b16 %v2729, %v2726
    %v2760 = vpack.c.b16 %v2733, %v2730
    %v2761 = vpack.c.b16 %v2734, %v2731
    %v2762 = vpack.c.b16 %v2735, %v2732
    %v2763 = vpack.c.b16 %v2739, %v2736
    %v2764 = vpack.c.b16 %v2740, %v2737
    %v2765 = vpack.c.b16 %v2741, %v2738
    %2790 = vmatprep.subr.bf16.mxu0 %v2743
    %2791 = vmatpush1.bf16.msra.mxu0 %v2742
    %2792 = vmatprep.subr.bf16.mxu0 %v2746
    %2793 = vmatpush1.bf16.msra.mxu0 %v2745
    %2794 = vmatprep.subr.bf16.mxu0 %v2749
    %2795 = vmatpush1.bf16.msra.mxu0 %v2748
    %2796 = vmatprep.subr.bf16.mxu0 %v2752
    %2797 = vmatpush1.bf16.msra.mxu0 %v2751
    %2798 = vmatprep.subr.bf16.mxu0 %v2755
    %2799 = vmatpush1.bf16.msra.mxu0 %v2754
    %2800 = vmatprep.subr.bf16.mxu0 %v2758
    %2801 = vmatpush1.bf16.msra.mxu0 %v2757
    %2802 = vmatprep.subr.bf16.mxu0 %v2761
    %2803 = vmatpush1.bf16.msra.mxu0 %v2760
    %2804 = vmatprep.subr.bf16.mxu0 %v2764
    %2805 = vmatpush1.bf16.msra.mxu0 %v2763
    %2806 = vmatprep.subr.bf16.mxu0 0
    %2807 = vmatpush1.bf16.msra.mxu0 0
    %2808 = vmatprep.subr.bf16.mxu0 0
    %2809 = vmatpush1.bf16.msra.mxu0 0
    %2810 = vmatprep.subr.bf16.mxu0 0
    %2811 = vmatpush1.bf16.msra.mxu0 0
    %2812 = vmatprep.subr.bf16.mxu0 0
    %2813 = vmatpush1.bf16.msra.mxu0 0
    %2814 = vmatprep.subr.bf16.mxu0 0
    %2815 = vmatpush1.bf16.msra.mxu0 0
    %2816 = vmatprep.subr.bf16.mxu0 0
    %2817 = vmatpush1.bf16.msra.mxu0 0
    %2818 = vmatprep.subr.bf16.mxu0 0
    %2819 = vmatpush1.bf16.msra.mxu0 0
    %2820 = vmatprep.subr.bf16.mxu0 0
    %2821 = vmatpush1.bf16.msra.mxu0 0
    %2822 = vmatprep.mubr.bf16.mxu0 0
    %2823 = vmatmul.mubr.bf16.gmra.mrb[0].mxu0 %v2612
    %v2824 = vpop.f32.mrb[0].mxu0
    %v2825 = vadd.f32 %v2650, %v2824
    %v2826 = vpop.f32.mrb[0].mxu0
    %v2827 = vadd.f32 %v2654, %v2826
    %v2828 = vpop.f32.mrb[0].mxu0
    %v2829 = vadd.f32 %v2650, %v2828
    %v2830 = vpop.f32.mrb[0].mxu0
    %v2831 = vadd.f32 %v2654, %v2830
    %2832 = vdwg.mxu0
    %2833 = vmatprep.subr.bf16.mxu0 0
    %2834 = vmatpush1.bf16.msra.mxu0 %v2744
    %2835 = vmatprep.subr.bf16.mxu0 0
    %2836 = vmatpush1.bf16.msra.mxu0 %v2747
    %2837 = vmatprep.subr.bf16.mxu0 0
    %2838 = vmatpush1.bf16.msra.mxu0 %v2750
    %2839 = vmatprep.subr.bf16.mxu0 0
    %2840 = vmatpush1.bf16.msra.mxu0 %v2753
    %2841 = vmatprep.subr.bf16.mxu0 0
    %2842 = vmatpush1.bf16.msra.mxu0 %v2756
    %2843 = vmatprep.subr.bf16.mxu0 0
    %2844 = vmatpush1.bf16.msra.mxu0 %v2759
    %2845 = vmatprep.subr.bf16.mxu0 0
    %2846 = vmatpush1.bf16.msra.mxu0 %v2762
    %2847 = vmatprep.subr.bf16.mxu0 0
    %2848 = vmatpush1.bf16.msra.mxu0 %v2765
    %2849 = vmatprep.subr.bf16.mxu0 0
    %2850 = vmatpush1.bf16.msra.mxu0 0
    %2851 = vmatprep.subr.bf16.mxu0 0
    %2852 = vmatpush1.bf16.msra.mxu0 0
    %2853 = vmatprep.subr.bf16.mxu0 0
    %2854 = vmatpush1.bf16.msra.mxu0 0
    %2855 = vmatprep.subr.bf16.mxu0 0
    %2856 = vmatpush1.bf16.msra.mxu0 0
    %2857 = vmatprep.subr.bf16.mxu0 0
    %2858 = vmatpush1.bf16.msra.mxu0 0
    %2859 = vmatprep.subr.bf16.mxu0 0
    %2860 = vmatpush1.bf16.msra.mxu0 0
    %2861 = vmatprep.subr.bf16.mxu0 0
    %2862 = vmatpush1.bf16.msra.mxu0 0
    %2863 = vmatprep.subr.bf16.mxu0 0
    %2864 = vmatpush1.bf16.msra.mxu0 0
    %2865 = vmatprep.mubr.bf16.mxu0 0
    %2866 = vmatmul.mubr.bf16.gmra.mrb[0].mxu0 %v2612
    %v2867 = vpop.f32.mrb[0].mxu0
    %v2868 = vadd.f32 %v2658, %v2867
    %v2869 = vpop.f32.mrb[0].mxu0
    %v2870 = vpop.f32.mrb[0].mxu0
    %v2871 = vadd.f32 %v2658, %v2870
    %v2872 = vpop.f32.mrb[0].mxu0
    %2873 = vdwg.mxu0
    %v2874 = vpack.c.bf16 %v2829, %v2825
    %v2875 = vpack.c.bf16 %v2831, %v2827
    %v2876 = vpack.c.bf16 %v2871, %v2868
    %v2877 = vld [vmem:[#allocation16] sm:$0xf]
    %v2878 = vld [vmem:[#allocation16 + $0x4] sm:$0xf]
    %v2879 = vld [vmem:[#allocation16 + $0x8] sm:$0xf]
    %v2880 = vld [vmem:[#allocation16 + $0xc] sm:$0xf]
    %v2881 = vld [vmem:[#allocation16 + $0x10] sm:$0xf]
    %v2882 = vld [vmem:[#allocation16 + $0x14] sm:$0xf]
    %v2883 = vld [vmem:[#allocation16 + $0x18] sm:$0xf]
    %v2884 = vld [vmem:[#allocation16 + $0x1c] sm:$0xf]
    %v2885 = vld [vmem:[#allocation16 + $0x20] sm:$0xf]
    %v2886 = vld [vmem:[#allocation16 + $0x24] sm:$0xf]
    %v2887 = vld [vmem:[#allocation16 + $0x28] sm:$0xf]
    %v2888 = vld [vmem:[#allocation16 + $0x2c] sm:$0xf]
    %v2889 = vld [vmem:[#allocation16 + $0x30] sm:$0xf]
    %v2890 = vld [vmem:[#allocation16 + $0x34] sm:$0xf]
    %v2891 = vld [vmem:[#allocation16 + $0x38] sm:$0xf]
    %v2892 = vld [vmem:[#allocation16 + $0x3c] sm:$0xf]
    %v2894 = vsel %vm579, %v2874, 0
    %v2897 = vsel %vm579, %v2875, 0
    %2899 = vmatprep.subr.bf16.mxu0 0
    %2900 = vmatpush1.bf16.xpose.msra.mxu0 %v2897
    %2901 = vmatprep.subr.bf16.mxu0 0
    %2902 = vmatpush1.bf16.xpose.msra.mxu0 0
    %2903 = vmatprep.subr.bf16.mxu0 0
    %2904 = vmatpush1.bf16.xpose.msra.mxu0 0
    %2905 = vmatprep.subr.bf16.mxu0 0
    %2906 = vmatpush1.bf16.xpose.msra.mxu0 0
    %2907 = vmatprep.subr.bf16.mxu0 0
    %2908 = vmatpush1.bf16.xpose.msra.mxu0 0
    %2909 = vmatprep.subr.bf16.mxu0 0
    %2910 = vmatpush1.bf16.xpose.msra.mxu0 0
    %2911 = vmatprep.subr.bf16.mxu0 0
    %2912 = vmatpush1.bf16.xpose.msra.mxu0 0
    %2913 = vmatprep.subr.bf16.mxu0 0
    %2914 = vmatpush1.bf16.xpose.msra.mxu0 0
    %2915 = vmatprep.subr.bf16.mxu0 0
    %2916 = vmatpush1.bf16.xpose.msra.mxu0 0
    %2917 = vmatprep.subr.bf16.mxu0 0
    %2918 = vmatpush1.bf16.xpose.msra.mxu0 0
    %2919 = vmatprep.subr.bf16.mxu0 0
    %2920 = vmatpush1.bf16.xpose.msra.mxu0 0
    %2921 = vmatprep.subr.bf16.mxu0 0
    %2922 = vmatpush1.bf16.xpose.msra.mxu0 0
    %2923 = vmatprep.subr.bf16.mxu0 0
    %2924 = vmatpush1.bf16.xpose.msra.mxu0 0
    %2925 = vmatprep.subr.bf16.mxu0 0
    %2926 = vmatpush1.bf16.xpose.msra.mxu0 0
    %2927 = vmatprep.subr.bf16.mxu0 0
    %2928 = vmatpush1.bf16.xpose.msra.mxu0 0
    %2929 = vmatprep.subr.bf16.mxu0 0
    %2930 = vmatpush1.bf16.xpose.msra.mxu0 0
    %2931 = vmatprep.mubr.bf16.mxu0 0
    %2932 = vmatmul.mubr.bf16.gmra.mrb[0].mxu0 %v2894
    %v2933 = vpop.f32.mrb[0].mxu0
    %v2934 = vadd.f32 0.0, %v2933
    %v2935 = vpop.f32.mrb[0].mxu0
    %v2936 = vpop.f32.mrb[0].mxu0
    %v2937 = vpop.f32.mrb[0].mxu0
    %2938 = vdwg.mxu0
    %v2939 = vsel %vm626, %v2934, -inf
    %2940 = vmax.xlane.f32.xlu0 %v2939
    %v2941 = vpop.xlane.xlu0 %2940
    %v2942 = vsub.f32 %v2934, %v2941
    %v2943 = vmul.f32 %v2942, 1.442695
    %v2944 = vpow.pop %v2943
    %v2945 = vsel %vm626, %v2944, 0.0
    %2946 = vadd.xlane.f32.xlu0 %v2945
    %v2947 = vpop.xlane.xlu0 %2946
    %v2948 = vrcp.pop %v2947
    %v2949 = vmul.f32 %v2944, %v2948
    %v2950 = vpack.c.bf16 %v2949, %v2949
    %v2952 = vsel %vm626, %v2950, 0
    %v2955 = vsel %vm642, %v2876, 0
    %2957 = vmatprep.subr.bf16.mxu0 0
    %2958 = vmatpush1.bf16.msra.mxu0 %v2955
    %2959 = vmatprep.subr.bf16.mxu0 0
    %2960 = vmatpush1.bf16.msra.mxu0 0
    %2961 = vmatprep.subr.bf16.mxu0 0
    %2962 = vmatpush1.bf16.msra.mxu0 0
    %2963 = vmatprep.subr.bf16.mxu0 0
    %2964 = vmatpush1.bf16.msra.mxu0 0
    %2965 = vmatprep.subr.bf16.mxu0 0
    %2966 = vmatpush1.bf16.msra.mxu0 0
    %2967 = vmatprep.subr.bf16.mxu0 0
    %2968 = vmatpush1.bf16.msra.mxu0 0
    %2969 = vmatprep.subr.bf16.mxu0 0
    %2970 = vmatpush1.bf16.msra.mxu0 0
    %2971 = vmatprep.subr.bf16.mxu0 0
    %2972 = vmatpush1.bf16.msra.mxu0 0
    %2973 = vmatprep.subr.bf16.mxu0 0
    %2974 = vmatpush1.bf16.msra.mxu0 0
    %2975 = vmatprep.subr.bf16.mxu0 0
    %2976 = vmatpush1.bf16.msra.mxu0 0
    %2977 = vmatprep.subr.bf16.mxu0 0
    %2978 = vmatpush1.bf16.msra.mxu0 0
    %2979 = vmatprep.subr.bf16.mxu0 0
    %2980 = vmatpush1.bf16.msra.mxu0 0
    %2981 = vmatprep.subr.bf16.mxu0 0
    %2982 = vmatpush1.bf16.msra.mxu0 0
    %2983 = vmatprep.subr.bf16.mxu0 0
    %2984 = vmatpush1.bf16.msra.mxu0 0
    %2985 = vmatprep.subr.bf16.mxu0 0
    %2986 = vmatpush1.bf16.msra.mxu0 0
    %2987 = vmatprep.subr.bf16.mxu0 0
    %2988 = vmatpush1.bf16.msra.mxu0 0
    %2989 = vmatprep.mubr.bf16.mxu0 0
    %2990 = vmatmul.mubr.bf16.gmra.mrb[0].mxu0 %v2952
    %v2991 = vpop.f32.mrb[0].mxu0
    %v2992 = vadd.f32 0.0, %v2991
    %v2993 = vpop.f32.mrb[0].mxu0
    %v2994 = vpop.f32.mrb[0].mxu0
    %v2995 = vpop.f32.mrb[0].mxu0
    %2996 = vdwg.mxu0
    %v2997 = vpack.c.bf16 %v2992, %v2992
    %2999 = vrot.lane.b32.xlu0 %v2874, 96
    %v3000 = vpop.permute.xlu0 %2999
    %3002 = vrot.lane.b32.xlu0 %v2875, 96
    %v3003 = vpop.permute.xlu0 %3002
    %v3005 = vsel %vm579, %v3000, 0
    %v3008 = vsel %vm579, %v3003, 0
    %3010 = vmatprep.subr.bf16.mxu0 0
    %3011 = vmatpush1.bf16.xpose.msra.mxu0 %v3008
    %3012 = vmatprep.subr.bf16.mxu0 0
    %3013 = vmatpush1.bf16.xpose.msra.mxu0 0
    %3014 = vmatprep.subr.bf16.mxu0 0
    %3015 = vmatpush1.bf16.xpose.msra.mxu0 0
    %3016 = vmatprep.subr.bf16.mxu0 0
    %3017 = vmatpush1.bf16.xpose.msra.mxu0 0
    %3018 = vmatprep.subr.bf16.mxu0 0
    %3019 = vmatpush1.bf16.xpose.msra.mxu0 0
    %3020 = vmatprep.subr.bf16.mxu0 0
    %3021 = vmatpush1.bf16.xpose.msra.mxu0 0
    %3022 = vmatprep.subr.bf16.mxu0 0
    %3023 = vmatpush1.bf16.xpose.msra.mxu0 0
    %3024 = vmatprep.subr.bf16.mxu0 0
    %3025 = vmatpush1.bf16.xpose.msra.mxu0 0
    %3026 = vmatprep.subr.bf16.mxu0 0
    %3027 = vmatpush1.bf16.xpose.msra.mxu0 0
    %3028 = vmatprep.subr.bf16.mxu0 0
    %3029 = vmatpush1.bf16.xpose.msra.mxu0 0
    %3030 = vmatprep.subr.bf16.mxu0 0
    %3031 = vmatpush1.bf16.xpose.msra.mxu0 0
    %3032 = vmatprep.subr.bf16.mxu0 0
    %3033 = vmatpush1.bf16.xpose.msra.mxu0 0
    %3034 = vmatprep.subr.bf16.mxu0 0
    %3035 = vmatpush1.bf16.xpose.msra.mxu0 0
    %3036 = vmatprep.subr.bf16.mxu0 0
    %3037 = vmatpush1.bf16.xpose.msra.mxu0 0
    %3038 = vmatprep.subr.bf16.mxu0 0
    %3039 = vmatpush1.bf16.xpose.msra.mxu0 0
    %3040 = vmatprep.subr.bf16.mxu0 0
    %3041 = vmatpush1.bf16.xpose.msra.mxu0 0
    %3042 = vmatprep.mubr.bf16.mxu0 0
    %3043 = vmatmul.mubr.bf16.gmra.mrb[0].mxu0 %v3005
    %v3044 = vpop.f32.mrb[0].mxu0
    %v3045 = vadd.f32 0.0, %v3044
    %v3046 = vpop.f32.mrb[0].mxu0
    %v3047 = vpop.f32.mrb[0].mxu0
    %v3048 = vpop.f32.mrb[0].mxu0
    %3049 = vdwg.mxu0
    %v3050 = vsel %vm626, %v3045, -inf
    %3051 = vmax.xlane.f32.xlu0 %v3050
    %v3052 = vpop.xlane.xlu0 %3051
    %v3053 = vsub.f32 %v3045, %v3052
    %v3054 = vmul.f32 %v3053, 1.442695
    %v3055 = vpow.pop %v3054
    %v3056 = vsel %vm626, %v3055, 0.0
    %3057 = vadd.xlane.f32.xlu0 %v3056
    %v3058 = vpop.xlane.xlu0 %3057
    %v3059 = vrcp.pop %v3058
    %v3060 = vmul.f32 %v3055, %v3059
    %v3061 = vpack.c.bf16 %v3060, %v3060
    %3063 = vrot.lane.b32.xlu0 %v2876, 96
    %v3064 = vpop.permute.xlu0 %3063
    %v3066 = vsel %vm626, %v3061, 0
    %v3069 = vsel %vm642, %v3064, 0
    %3071 = vmatprep.subr.bf16.mxu0 0
    %3072 = vmatpush1.bf16.msra.mxu0 %v3069
    %3073 = vmatprep.subr.bf16.mxu0 0
    %3074 = vmatpush1.bf16.msra.mxu0 0
    %3075 = vmatprep.subr.bf16.mxu0 0
    %3076 = vmatpush1.bf16.msra.mxu0 0
    %3077 = vmatprep.subr.bf16.mxu0 0
    %3078 = vmatpush1.bf16.msra.mxu0 0
    %3079 = vmatprep.subr.bf16.mxu0 0
    %3080 = vmatpush1.bf16.msra.mxu0 0
    %3081 = vmatprep.subr.bf16.mxu0 0
    %3082 = vmatpush1.bf16.msra.mxu0 0
    %3083 = vmatprep.subr.bf16.mxu0 0
    %3084 = vmatpush1.bf16.msra.mxu0 0
    %3085 = vmatprep.subr.bf16.mxu0 0
    %3086 = vmatpush1.bf16.msra.mxu0 0
    %3087 = vmatprep.subr.bf16.mxu0 0
    %3088 = vmatpush1.bf16.msra.mxu0 0
    %3089 = vmatprep.subr.bf16.mxu0 0
    %3090 = vmatpush1.bf16.msra.mxu0 0
    %3091 = vmatprep.subr.bf16.mxu0 0
    %3092 = vmatpush1.bf16.msra.mxu0 0
    %3093 = vmatprep.subr.bf16.mxu0 0
    %3094 = vmatpush1.bf16.msra.mxu0 0
    %3095 = vmatprep.subr.bf16.mxu0 0
    %3096 = vmatpush1.bf16.msra.mxu0 0
    %3097 = vmatprep.subr.bf16.mxu0 0
    %3098 = vmatpush1.bf16.msra.mxu0 0
    %3099 = vmatprep.subr.bf16.mxu0 0
    %3100 = vmatpush1.bf16.msra.mxu0 0
    %3101 = vmatprep.subr.bf16.mxu0 0
    %3102 = vmatpush1.bf16.msra.mxu0 0
    %3103 = vmatprep.mubr.bf16.mxu0 0
    %3104 = vmatmul.mubr.bf16.gmra.mrb[0].mxu0 %v3066
    %v3105 = vpop.f32.mrb[0].mxu0
    %v3106 = vadd.f32 0.0, %v3105
    %v3107 = vpop.f32.mrb[0].mxu0
    %v3108 = vpop.f32.mrb[0].mxu0
    %v3109 = vpop.f32.mrb[0].mxu0
    %3110 = vdwg.mxu0
    %v3111 = vpack.c.bf16 %v3106, %v3106
    %v3116 = vunpack.c.l.b16 %v2881
    %v3117 = vunpack.c.l.b16 %v2882
    %v3118 = vunpack.c.l.b16 %v2883
    %v3119 = vunpack.c.l.b16 %v2884
    %v3120 = vpack.c.b16 %v3117, %v3116
    %v3121 = vpack.c.b16 %v3119, %v3118
    %v3125 = vsel %vm579, %v3111, 0
    %3127 = vmatprep.subr.bf16.mxu0 0
    %3128 = vmatpush1.bf16.msra.mxu0 %v3120
    %3129 = vmatprep.subr.bf16.mxu0 0
    %3130 = vmatpush1.bf16.msra.mxu0 %v3121
    %3131 = vmatprep.subr.bf16.mxu0 0
    %3132 = vmatpush1.bf16.msra.mxu0 0
    %3133 = vmatprep.subr.bf16.mxu0 0
    %3134 = vmatpush1.bf16.msra.mxu0 0
    %3135 = vmatprep.subr.bf16.mxu0 0
    %3136 = vmatpush1.bf16.msra.mxu0 0
    %3137 = vmatprep.subr.bf16.mxu0 0
    %3138 = vmatpush1.bf16.msra.mxu0 0
    %3139 = vmatprep.subr.bf16.mxu0 0
    %3140 = vmatpush1.bf16.msra.mxu0 0
    %3141 = vmatprep.subr.bf16.mxu0 0
    %3142 = vmatpush1.bf16.msra.mxu0 0
    %3143 = vmatprep.subr.bf16.mxu0 0
    %3144 = vmatpush1.bf16.msra.mxu0 0
    %3145 = vmatprep.subr.bf16.mxu0 0
    %3146 = vmatpush1.bf16.msra.mxu0 0
    %3147 = vmatprep.subr.bf16.mxu0 0
    %3148 = vmatpush1.bf16.msra.mxu0 0
    %3149 = vmatprep.subr.bf16.mxu0 0
    %3150 = vmatpush1.bf16.msra.mxu0 0
    %3151 = vmatprep.subr.bf16.mxu0 0
    %3152 = vmatpush1.bf16.msra.mxu0 0
    %3153 = vmatprep.subr.bf16.mxu0 0
    %3154 = vmatpush1.bf16.msra.mxu0 0
    %3155 = vmatprep.subr.bf16.mxu0 0
    %3156 = vmatpush1.bf16.msra.mxu0 0
    %3157 = vmatprep.subr.bf16.mxu0 0
    %3158 = vmatpush1.bf16.msra.mxu0 0
    %3159 = vmatprep.mubr.bf16.mxu0 0
    %3160 = vmatmul.mubr.bf16.gmra.mrb[0].mxu0 %v3125
    %v3161 = vpop.f32.mrb[0].mxu0
    %v3162 = vadd.f32 0.0, %v3161
    %v3163 = vpop.f32.mrb[0].mxu0
    %v3164 = vpop.f32.mrb[0].mxu0
    %v3165 = vpop.f32.mrb[0].mxu0
    %3166 = vdwg.mxu0
    %v3171 = vunpack.c.l.b16 %v2877
    %v3172 = vunpack.c.l.b16 %v2878
    %v3173 = vunpack.c.l.b16 %v2879
    %v3174 = vunpack.c.l.b16 %v2880
    %v3175 = vpack.c.b16 %v3172, %v3171
    %v3176 = vpack.c.b16 %v3174, %v3173
    %v3180 = vsel %vm579, %v2997, 0
    %3182 = vmatprep.subr.bf16.mxu0 0
    %3183 = vmatpush1.bf16.msra.mxu0 %v3175
    %3184 = vmatprep.subr.bf16.mxu0 0
    %3185 = vmatpush1.bf16.msra.mxu0 %v3176
    %3186 = vmatprep.subr.bf16.mxu0 0
    %3187 = vmatpush1.bf16.msra.mxu0 0
    %3188 = vmatprep.subr.bf16.mxu0 0
    %3189 = vmatpush1.bf16.msra.mxu0 0
    %3190 = vmatprep.subr.bf16.mxu0 0
    %3191 = vmatpush1.bf16.msra.mxu0 0
    %3192 = vmatprep.subr.bf16.mxu0 0
    %3193 = vmatpush1.bf16.msra.mxu0 0
    %3194 = vmatprep.subr.bf16.mxu0 0
    %3195 = vmatpush1.bf16.msra.mxu0 0
    %3196 = vmatprep.subr.bf16.mxu0 0
    %3197 = vmatpush1.bf16.msra.mxu0 0
    %3198 = vmatprep.subr.bf16.mxu0 0
    %3199 = vmatpush1.bf16.msra.mxu0 0
    %3200 = vmatprep.subr.bf16.mxu0 0
    %3201 = vmatpush1.bf16.msra.mxu0 0
    %3202 = vmatprep.subr.bf16.mxu0 0
    %3203 = vmatpush1.bf16.msra.mxu0 0
    %3204 = vmatprep.subr.bf16.mxu0 0
    %3205 = vmatpush1.bf16.msra.mxu0 0
    %3206 = vmatprep.subr.bf16.mxu0 0
    %3207 = vmatpush1.bf16.msra.mxu0 0
    %3208 = vmatprep.subr.bf16.mxu0 0
    %3209 = vmatpush1.bf16.msra.mxu0 0
    %3210 = vmatprep.subr.bf16.mxu0 0
    %3211 = vmatpush1.bf16.msra.mxu0 0
    %3212 = vmatprep.subr.bf16.mxu0 0
    %3213 = vmatpush1.bf16.msra.mxu0 0
    %3214 = vmatprep.mubr.bf16.mxu0 0
    %3215 = vmatmul.mubr.bf16.gmra.mrb[0].mxu0 %v3180
    %v3216 = vpop.f32.mrb[0].mxu0
    %v3217 = vadd.f32 %v3162, %v3216
    %v3218 = vpop.f32.mrb[0].mxu0
    %v3219 = vpop.f32.mrb[0].mxu0
    %v3220 = vpop.f32.mrb[0].mxu0
    %3221 = vdwg.mxu0
    %3222 = vrot.lane.b32.xlu0 %v2874, 64
    %v3223 = vpop.permute.xlu0 %3222
    %3224 = vrot.lane.b32.xlu0 %v2875, 64
    %v3225 = vpop.permute.xlu0 %3224
    %v3227 = vsel %vm579, %v3223, 0
    %v3230 = vsel %vm579, %v3225, 0
    %3232 = vmatprep.subr.bf16.mxu0 0
    %3233 = vmatpush1.bf16.xpose.msra.mxu0 %v3230
    %3234 = vmatprep.subr.bf16.mxu0 0
    %3235 = vmatpush1.bf16.xpose.msra.mxu0 0
    %3236 = vmatprep.subr.bf16.mxu0 0
    %3237 = vmatpush1.bf16.xpose.msra.mxu0 0
    %3238 = vmatprep.subr.bf16.mxu0 0
    %3239 = vmatpush1.bf16.xpose.msra.mxu0 0
    %3240 = vmatprep.subr.bf16.mxu0 0
    %3241 = vmatpush1.bf16.xpose.msra.mxu0 0
    %3242 = vmatprep.subr.bf16.mxu0 0
    %3243 = vmatpush1.bf16.xpose.msra.mxu0 0
    %3244 = vmatprep.subr.bf16.mxu0 0
    %3245 = vmatpush1.bf16.xpose.msra.mxu0 0
    %3246 = vmatprep.subr.bf16.mxu0 0
    %3247 = vmatpush1.bf16.xpose.msra.mxu0 0
    %3248 = vmatprep.subr.bf16.mxu0 0
    %3249 = vmatpush1.bf16.xpose.msra.mxu0 0
    %3250 = vmatprep.subr.bf16.mxu0 0
    %3251 = vmatpush1.bf16.xpose.msra.mxu0 0
    %3252 = vmatprep.subr.bf16.mxu0 0
    %3253 = vmatpush1.bf16.xpose.msra.mxu0 0
    %3254 = vmatprep.subr.bf16.mxu0 0
    %3255 = vmatpush1.bf16.xpose.msra.mxu0 0
    %3256 = vmatprep.subr.bf16.mxu0 0
    %3257 = vmatpush1.bf16.xpose.msra.mxu0 0
    %3258 = vmatprep.subr.bf16.mxu0 0
    %3259 = vmatpush1.bf16.xpose.msra.mxu0 0
    %3260 = vmatprep.subr.bf16.mxu0 0
    %3261 = vmatpush1.bf16.xpose.msra.mxu0 0
    %3262 = vmatprep.subr.bf16.mxu0 0
    %3263 = vmatpush1.bf16.xpose.msra.mxu0 0
    %3264 = vmatprep.mubr.bf16.mxu0 0
    %3265 = vmatmul.mubr.bf16.gmra.mrb[0].mxu0 %v3227
    %v3266 = vpop.f32.mrb[0].mxu0
    %v3267 = vadd.f32 0.0, %v3266
    %v3268 = vpop.f32.mrb[0].mxu0
    %v3269 = vpop.f32.mrb[0].mxu0
    %v3270 = vpop.f32.mrb[0].mxu0
    %3271 = vdwg.mxu0
    %v3272 = vsel %vm626, %v3267, -inf
    %3273 = vmax.xlane.f32.xlu0 %v3272
    %v3274 = vpop.xlane.xlu0 %3273
    %v3275 = vsub.f32 %v3267, %v3274
    %v3276 = vmul.f32 %v3275, 1.442695
    %v3277 = vpow.pop %v3276
    %v3278 = vsel %vm626, %v3277, 0.0
    %3279 = vadd.xlane.f32.xlu0 %v3278
    %v3280 = vpop.xlane.xlu0 %3279
    %v3281 = vrcp.pop %v3280
    %v3282 = vmul.f32 %v3277, %v3281
    %v3283 = vpack.c.bf16 %v3282, %v3282
    %3284 = vrot.lane.b32.xlu0 %v2876, 64
    %v3285 = vpop.permute.xlu0 %3284
    %v3287 = vsel %vm626, %v3283, 0
    %v3290 = vsel %vm642, %v3285, 0
    %3292 = vmatprep.subr.bf16.mxu0 0
    %3293 = vmatpush1.bf16.msra.mxu0 %v3290
    %3294 = vmatprep.subr.bf16.mxu0 0
    %3295 = vmatpush1.bf16.msra.mxu0 0
    %3296 = vmatprep.subr.bf16.mxu0 0
    %3297 = vmatpush1.bf16.msra.mxu0 0
    %3298 = vmatprep.subr.bf16.mxu0 0
    %3299 = vmatpush1.bf16.msra.mxu0 0
    %3300 = vmatprep.subr.bf16.mxu0 0
    %3301 = vmatpush1.bf16.msra.mxu0 0
    %3302 = vmatprep.subr.bf16.mxu0 0
    %3303 = vmatpush1.bf16.msra.mxu0 0
    %3304 = vmatprep.subr.bf16.mxu0 0
    %3305 = vmatpush1.bf16.msra.mxu0 0
    %3306 = vmatprep.subr.bf16.mxu0 0
    %3307 = vmatpush1.bf16.msra.mxu0 0
    %3308 = vmatprep.subr.bf16.mxu0 0
    %3309 = vmatpush1.bf16.msra.mxu0 0
    %3310 = vmatprep.subr.bf16.mxu0 0
    %3311 = vmatpush1.bf16.msra.mxu0 0
    %3312 = vmatprep.subr.bf16.mxu0 0
    %3313 = vmatpush1.bf16.msra.mxu0 0
    %3314 = vmatprep.subr.bf16.mxu0 0
    %3315 = vmatpush1.bf16.msra.mxu0 0
    %3316 = vmatprep.subr.bf16.mxu0 0
    %3317 = vmatpush1.bf16.msra.mxu0 0
    %3318 = vmatprep.subr.bf16.mxu0 0
    %3319 = vmatpush1.bf16.msra.mxu0 0
    %3320 = vmatprep.subr.bf16.mxu0 0
    %3321 = vmatpush1.bf16.msra.mxu0 0
    %3322 = vmatprep.subr.bf16.mxu0 0
    %3323 = vmatpush1.bf16.msra.mxu0 0
    %3324 = vmatprep.mubr.bf16.mxu0 0
    %3325 = vmatmul.mubr.bf16.gmra.mrb[0].mxu0 %v3287
    %v3326 = vpop.f32.mrb[0].mxu0
    %v3327 = vadd.f32 0.0, %v3326
    %v3328 = vpop.f32.mrb[0].mxu0
    %v3329 = vpop.f32.mrb[0].mxu0
    %v3330 = vpop.f32.mrb[0].mxu0
    %3331 = vdwg.mxu0
    %v3332 = vpack.c.bf16 %v3327, %v3327
    %v3337 = vunpack.c.l.b16 %v2885
    %v3338 = vunpack.c.l.b16 %v2886
    %v3339 = vunpack.c.l.b16 %v2887
    %v3340 = vunpack.c.l.b16 %v2888
    %v3341 = vpack.c.b16 %v3338, %v3337
    %v3342 = vpack.c.b16 %v3340, %v3339
    %v3346 = vsel %vm579, %v3332, 0
    %3348 = vmatprep.subr.bf16.mxu0 0
    %3349 = vmatpush1.bf16.msra.mxu0 %v3341
    %3350 = vmatprep.subr.bf16.mxu0 0
    %3351 = vmatpush1.bf16.msra.mxu0 %v3342
    %3352 = vmatprep.subr.bf16.mxu0 0
    %3353 = vmatpush1.bf16.msra.mxu0 0
    %3354 = vmatprep.subr.bf16.mxu0 0
    %3355 = vmatpush1.bf16.msra.mxu0 0
    %3356 = vmatprep.subr.bf16.mxu0 0
    %3357 = vmatpush1.bf16.msra.mxu0 0
    %3358 = vmatprep.subr.bf16.mxu0 0
    %3359 = vmatpush1.bf16.msra.mxu0 0
    %3360 = vmatprep.subr.bf16.mxu0 0
    %3361 = vmatpush1.bf16.msra.mxu0 0
    %3362 = vmatprep.subr.bf16.mxu0 0
    %3363 = vmatpush1.bf16.msra.mxu0 0
    %3364 = vmatprep.subr.bf16.mxu0 0
    %3365 = vmatpush1.bf16.msra.mxu0 0
    %3366 = vmatprep.subr.bf16.mxu0 0
    %3367 = vmatpush1.bf16.msra.mxu0 0
    %3368 = vmatprep.subr.bf16.mxu0 0
    %3369 = vmatpush1.bf16.msra.mxu0 0
    %3370 = vmatprep.subr.bf16.mxu0 0
    %3371 = vmatpush1.bf16.msra.mxu0 0
    %3372 = vmatprep.subr.bf16.mxu0 0
    %3373 = vmatpush1.bf16.msra.mxu0 0
    %3374 = vmatprep.subr.bf16.mxu0 0
    %3375 = vmatpush1.bf16.msra.mxu0 0
    %3376 = vmatprep.subr.bf16.mxu0 0
    %3377 = vmatpush1.bf16.msra.mxu0 0
    %3378 = vmatprep.subr.bf16.mxu0 0
    %3379 = vmatpush1.bf16.msra.mxu0 0
    %3380 = vmatprep.mubr.bf16.mxu0 0
    %3381 = vmatmul.mubr.bf16.gmra.mrb[0].mxu0 %v3346
    %v3382 = vpop.f32.mrb[0].mxu0
    %v3383 = vadd.f32 0.0, %v3382
    %v3384 = vpop.f32.mrb[0].mxu0
    %v3385 = vpop.f32.mrb[0].mxu0
    %v3386 = vpop.f32.mrb[0].mxu0
    %3387 = vdwg.mxu0
    %v3388 = vadd.f32 %v3217, %v3383
    %3389 = vrot.lane.b32.xlu0 %v2874, 32
    %v3390 = vpop.permute.xlu0 %3389
    %3391 = vrot.lane.b32.xlu0 %v2875, 32
    %v3392 = vpop.permute.xlu0 %3391
    %v3394 = vsel %vm579, %v3390, 0
    %v3397 = vsel %vm579, %v3392, 0
    %3399 = vmatprep.subr.bf16.mxu0 0
    %3400 = vmatpush1.bf16.xpose.msra.mxu0 %v3397
    %3401 = vmatprep.subr.bf16.mxu0 0
    %3402 = vmatpush1.bf16.xpose.msra.mxu0 0
    %3403 = vmatprep.subr.bf16.mxu0 0
    %3404 = vmatpush1.bf16.xpose.msra.mxu0 0
    %3405 = vmatprep.subr.bf16.mxu0 0
    %3406 = vmatpush1.bf16.xpose.msra.mxu0 0
    %3407 = vmatprep.subr.bf16.mxu0 0
    %3408 = vmatpush1.bf16.xpose.msra.mxu0 0
    %3409 = vmatprep.subr.bf16.mxu0 0
    %3410 = vmatpush1.bf16.xpose.msra.mxu0 0
    %3411 = vmatprep.subr.bf16.mxu0 0
    %3412 = vmatpush1.bf16.xpose.msra.mxu0 0
    %3413 = vmatprep.subr.bf16.mxu0 0
    %3414 = vmatpush1.bf16.xpose.msra.mxu0 0
    %3415 = vmatprep.subr.bf16.mxu0 0
    %3416 = vmatpush1.bf16.xpose.msra.mxu0 0
    %3417 = vmatprep.subr.bf16.mxu0 0
    %3418 = vmatpush1.bf16.xpose.msra.mxu0 0
    %3419 = vmatprep.subr.bf16.mxu0 0
    %3420 = vmatpush1.bf16.xpose.msra.mxu0 0
    %3421 = vmatprep.subr.bf16.mxu0 0
    %3422 = vmatpush1.bf16.xpose.msra.mxu0 0
    %3423 = vmatprep.subr.bf16.mxu0 0
    %3424 = vmatpush1.bf16.xpose.msra.mxu0 0
    %3425 = vmatprep.subr.bf16.mxu0 0
    %3426 = vmatpush1.bf16.xpose.msra.mxu0 0
    %3427 = vmatprep.subr.bf16.mxu0 0
    %3428 = vmatpush1.bf16.xpose.msra.mxu0 0
    %3429 = vmatprep.subr.bf16.mxu0 0
    %3430 = vmatpush1.bf16.xpose.msra.mxu0 0
    %3431 = vmatprep.mubr.bf16.mxu0 0
    %3432 = vmatmul.mubr.bf16.gmra.mrb[0].mxu0 %v3394
    %v3433 = vpop.f32.mrb[0].mxu0
    %v3434 = vadd.f32 0.0, %v3433
    %v3435 = vpop.f32.mrb[0].mxu0
    %v3436 = vpop.f32.mrb[0].mxu0
    %v3437 = vpop.f32.mrb[0].mxu0
    %3438 = vdwg.mxu0
    %v3439 = vsel %vm626, %v3434, -inf
    %3440 = vmax.xlane.f32.xlu0 %v3439
    %v3441 = vpop.xlane.xlu0 %3440
    %v3442 = vsub.f32 %v3434, %v3441
    %v3443 = vmul.f32 %v3442, 1.442695
    %v3444 = vpow.pop %v3443
    %v3445 = vsel %vm626, %v3444, 0.0
    %3446 = vadd.xlane.f32.xlu0 %v3445
    %v3447 = vpop.xlane.xlu0 %3446
    %v3448 = vrcp.pop %v3447
    %v3449 = vmul.f32 %v3444, %v3448
    %v3450 = vpack.c.bf16 %v3449, %v3449
    %3451 = vrot.lane.b32.xlu0 %v2876, 32
    %v3452 = vpop.permute.xlu0 %3451
    %v3454 = vsel %vm626, %v3450, 0
    %v3457 = vsel %vm642, %v3452, 0
    %3459 = vmatprep.subr.bf16.mxu0 0
    %3460 = vmatpush1.bf16.msra.mxu0 %v3457
    %3461 = vmatprep.subr.bf16.mxu0 0
    %3462 = vmatpush1.bf16.msra.mxu0 0
    %3463 = vmatprep.subr.bf16.mxu0 0
    %3464 = vmatpush1.bf16.msra.mxu0 0
    %3465 = vmatprep.subr.bf16.mxu0 0
    %3466 = vmatpush1.bf16.msra.mxu0 0
    %3467 = vmatprep.subr.bf16.mxu0 0
    %3468 = vmatpush1.bf16.msra.mxu0 0
    %3469 = vmatprep.subr.bf16.mxu0 0
    %3470 = vmatpush1.bf16.msra.mxu0 0
    %3471 = vmatprep.subr.bf16.mxu0 0
    %3472 = vmatpush1.bf16.msra.mxu0 0
    %3473 = vmatprep.subr.bf16.mxu0 0
    %3474 = vmatpush1.bf16.msra.mxu0 0
    %3475 = vmatprep.subr.bf16.mxu0 0
    %3476 = vmatpush1.bf16.msra.mxu0 0
    %3477 = vmatprep.subr.bf16.mxu0 0
    %3478 = vmatpush1.bf16.msra.mxu0 0
    %3479 = vmatprep.subr.bf16.mxu0 0
    %3480 = vmatpush1.bf16.msra.mxu0 0
    %3481 = vmatprep.subr.bf16.mxu0 0
    %3482 = vmatpush1.bf16.msra.mxu0 0
    %3483 = vmatprep.subr.bf16.mxu0 0
    %3484 = vmatpush1.bf16.msra.mxu0 0
    %3485 = vmatprep.subr.bf16.mxu0 0
    %3486 = vmatpush1.bf16.msra.mxu0 0
    %3487 = vmatprep.subr.bf16.mxu0 0
    %3488 = vmatpush1.bf16.msra.mxu0 0
    %3489 = vmatprep.subr.bf16.mxu0 0
    %3490 = vmatpush1.bf16.msra.mxu0 0
    %3491 = vmatprep.mubr.bf16.mxu0 0
    %3492 = vmatmul.mubr.bf16.gmra.mrb[0].mxu0 %v3454
    %v3493 = vpop.f32.mrb[0].mxu0
    %v3494 = vadd.f32 0.0, %v3493
    %v3495 = vpop.f32.mrb[0].mxu0
    %v3496 = vpop.f32.mrb[0].mxu0
    %v3497 = vpop.f32.mrb[0].mxu0
    %3498 = vdwg.mxu0
    %v3499 = vpack.c.bf16 %v3494, %v3494
    %v3504 = vunpack.c.l.b16 %v2889
    %v3505 = vunpack.c.l.b16 %v2890
    %v3506 = vunpack.c.l.b16 %v2891
    %v3507 = vunpack.c.l.b16 %v2892
    %v3508 = vpack.c.b16 %v3505, %v3504
    %v3509 = vpack.c.b16 %v3507, %v3506
    %v3513 = vsel %vm579, %v3499, 0
    %3515 = vmatprep.subr.bf16.mxu0 0
    %3516 = vmatpush1.bf16.msra.mxu0 %v3508
    %3517 = vmatprep.subr.bf16.mxu0 0
    %3518 = vmatpush1.bf16.msra.mxu0 %v3509
    %3519 = vmatprep.subr.bf16.mxu0 0
    %3520 = vmatpush1.bf16.msra.mxu0 0
    %3521 = vmatprep.subr.bf16.mxu0 0
    %3522 = vmatpush1.bf16.msra.mxu0 0
    %3523 = vmatprep.subr.bf16.mxu0 0
    %3524 = vmatpush1.bf16.msra.mxu0 0
    %3525 = vmatprep.subr.bf16.mxu0 0
    %3526 = vmatpush1.bf16.msra.mxu0 0
    %3527 = vmatprep.subr.bf16.mxu0 0
    %3528 = vmatpush1.bf16.msra.mxu0 0
    %3529 = vmatprep.subr.bf16.mxu0 0
    %3530 = vmatpush1.bf16.msra.mxu0 0
    %3531 = vmatprep.subr.bf16.mxu0 0
    %3532 = vmatpush1.bf16.msra.mxu0 0
    %3533 = vmatprep.subr.bf16.mxu0 0
    %3534 = vmatpush1.bf16.msra.mxu0 0
    %3535 = vmatprep.subr.bf16.mxu0 0
    %3536 = vmatpush1.bf16.msra.mxu0 0
    %3537 = vmatprep.subr.bf16.mxu0 0
    %3538 = vmatpush1.bf16.msra.mxu0 0
    %3539 = vmatprep.subr.bf16.mxu0 0
    %3540 = vmatpush1.bf16.msra.mxu0 0
    %3541 = vmatprep.subr.bf16.mxu0 0
    %3542 = vmatpush1.bf16.msra.mxu0 0
    %3543 = vmatprep.subr.bf16.mxu0 0
    %3544 = vmatpush1.bf16.msra.mxu0 0
    %3545 = vmatprep.subr.bf16.mxu0 0
    %3546 = vmatpush1.bf16.msra.mxu0 0
    %3547 = vmatprep.mubr.bf16.mxu0 0
    %3548 = vmatmul.mubr.bf16.gmra.mrb[0].mxu0 %v3513
    %v3549 = vpop.f32.mrb[0].mxu0
    %v3550 = vadd.f32 0.0, %v3549
    %v3551 = vpop.f32.mrb[0].mxu0
    %v3552 = vpop.f32.mrb[0].mxu0
    %v3553 = vpop.f32.mrb[0].mxu0
    %3554 = vdwg.mxu0
    %v3555 = vadd.f32 %v3388, %v3550
    %v3556 = vrot.slane %v2874, 4
    %v3557 = vrot.slane %v2875, 4
    %v3559 = vsel %vm579, %v3556, 0
    %v3562 = vsel %vm579, %v3557, 0
    %3564 = vmatprep.subr.bf16.mxu0 0
    %3565 = vmatpush1.bf16.xpose.msra.mxu0 %v3562
    %3566 = vmatprep.subr.bf16.mxu0 0
    %3567 = vmatpush1.bf16.xpose.msra.mxu0 0
    %3568 = vmatprep.subr.bf16.mxu0 0
    %3569 = vmatpush1.bf16.xpose.msra.mxu0 0
    %3570 = vmatprep.subr.bf16.mxu0 0
    %3571 = vmatpush1.bf16.xpose.msra.mxu0 0
    %3572 = vmatprep.subr.bf16.mxu0 0
    %3573 = vmatpush1.bf16.xpose.msra.mxu0 0
    %3574 = vmatprep.subr.bf16.mxu0 0
    %3575 = vmatpush1.bf16.xpose.msra.mxu0 0
    %3576 = vmatprep.subr.bf16.mxu0 0
    %3577 = vmatpush1.bf16.xpose.msra.mxu0 0
    %3578 = vmatprep.subr.bf16.mxu0 0
    %3579 = vmatpush1.bf16.xpose.msra.mxu0 0
    %3580 = vmatprep.subr.bf16.mxu0 0
    %3581 = vmatpush1.bf16.xpose.msra.mxu0 0
    %3582 = vmatprep.subr.bf16.mxu0 0
    %3583 = vmatpush1.bf16.xpose.msra.mxu0 0
    %3584 = vmatprep.subr.bf16.mxu0 0
    %3585 = vmatpush1.bf16.xpose.msra.mxu0 0
    %3586 = vmatprep.subr.bf16.mxu0 0
    %3587 = vmatpush1.bf16.xpose.msra.mxu0 0
    %3588 = vmatprep.subr.bf16.mxu0 0
    %3589 = vmatpush1.bf16.xpose.msra.mxu0 0
    %3590 = vmatprep.subr.bf16.mxu0 0
    %3591 = vmatpush1.bf16.xpose.msra.mxu0 0
    %3592 = vmatprep.subr.bf16.mxu0 0
    %3593 = vmatpush1.bf16.xpose.msra.mxu0 0
    %3594 = vmatprep.subr.bf16.mxu0 0
    %3595 = vmatpush1.bf16.xpose.msra.mxu0 0
    %3596 = vmatprep.mubr.bf16.mxu0 0
    %3597 = vmatmul.mubr.bf16.gmra.mrb[0].mxu0 %v3559
    %v3598 = vpop.f32.mrb[0].mxu0
    %v3599 = vadd.f32 0.0, %v3598
    %v3600 = vpop.f32.mrb[0].mxu0
    %v3601 = vpop.f32.mrb[0].mxu0
    %v3602 = vpop.f32.mrb[0].mxu0
    %3603 = vdwg.mxu0
    %v3604 = vsel %vm626, %v3599, -inf
    %3605 = vmax.xlane.f32.xlu0 %v3604
    %v3606 = vpop.xlane.xlu0 %3605
    %v3607 = vsub.f32 %v3599, %v3606
    %v3608 = vmul.f32 %v3607, 1.442695
    %v3609 = vpow.pop %v3608
    %v3610 = vsel %vm626, %v3609, 0.0
    %3611 = vadd.xlane.f32.xlu0 %v3610
    %v3612 = vpop.xlane.xlu0 %3611
    %v3613 = vrcp.pop %v3612
    %v3614 = vmul.f32 %v3609, %v3613
    %v3615 = vpack.c.bf16 %v3614, %v3614
    %v3616 = vrot.slane %v2876, 4
    %v3618 = vsel %vm626, %v3615, 0
    %v3621 = vsel %vm642, %v3616, 0
    %3623 = vmatprep.subr.bf16.mxu0 0
    %3624 = vmatpush1.bf16.msra.mxu0 %v3621
    %3625 = vmatprep.subr.bf16.mxu0 0
    %3626 = vmatpush1.bf16.msra.mxu0 0
    %3627 = vmatprep.subr.bf16.mxu0 0
    %3628 = vmatpush1.bf16.msra.mxu0 0
    %3629 = vmatprep.subr.bf16.mxu0 0
    %3630 = vmatpush1.bf16.msra.mxu0 0
    %3631 = vmatprep.subr.bf16.mxu0 0
    %3632 = vmatpush1.bf16.msra.mxu0 0
    %3633 = vmatprep.subr.bf16.mxu0 0
    %3634 = vmatpush1.bf16.msra.mxu0 0
    %3635 = vmatprep.subr.bf16.mxu0 0
    %3636 = vmatpush1.bf16.msra.mxu0 0
    %3637 = vmatprep.subr.bf16.mxu0 0
    %3638 = vmatpush1.bf16.msra.mxu0 0
    %3639 = vmatprep.subr.bf16.mxu0 0
    %3640 = vmatpush1.bf16.msra.mxu0 0
    %3641 = vmatprep.subr.bf16.mxu0 0
    %3642 = vmatpush1.bf16.msra.mxu0 0
    %3643 = vmatprep.subr.bf16.mxu0 0
    %3644 = vmatpush1.bf16.msra.mxu0 0
    %3645 = vmatprep.subr.bf16.mxu0 0
    %3646 = vmatpush1.bf16.msra.mxu0 0
    %3647 = vmatprep.subr.bf16.mxu0 0
    %3648 = vmatpush1.bf16.msra.mxu0 0
    %3649 = vmatprep.subr.bf16.mxu0 0
    %3650 = vmatpush1.bf16.msra.mxu0 0
    %3651 = vmatprep.subr.bf16.mxu0 0
    %3652 = vmatpush1.bf16.msra.mxu0 0
    %3653 = vmatprep.subr.bf16.mxu0 0
    %3654 = vmatpush1.bf16.msra.mxu0 0
    %3655 = vmatprep.mubr.bf16.mxu0 0
    %3656 = vmatmul.mubr.bf16.gmra.mrb[0].mxu0 %v3618
    %v3657 = vpop.f32.mrb[0].mxu0
    %v3658 = vadd.f32 0.0, %v3657
    %v3659 = vpop.f32.mrb[0].mxu0
    %v3660 = vpop.f32.mrb[0].mxu0
    %v3661 = vpop.f32.mrb[0].mxu0
    %3662 = vdwg.mxu0
    %v3663 = vpack.c.bf16 %v3658, %v3658
    %3664 = vrot.lane.b32.xlu0 %v3556, 96
    %v3665 = vpop.permute.xlu0 %3664
    %3666 = vrot.lane.b32.xlu0 %v3557, 96
    %v3667 = vpop.permute.xlu0 %3666
    %v3669 = vsel %vm579, %v3665, 0
    %v3672 = vsel %vm579, %v3667, 0
    %3674 = vmatprep.subr.bf16.mxu0 0
    %3675 = vmatpush1.bf16.xpose.msra.mxu0 %v3672
    %3676 = vmatprep.subr.bf16.mxu0 0
    %3677 = vmatpush1.bf16.xpose.msra.mxu0 0
    %3678 = vmatprep.subr.bf16.mxu0 0
    %3679 = vmatpush1.bf16.xpose.msra.mxu0 0
    %3680 = vmatprep.subr.bf16.mxu0 0
    %3681 = vmatpush1.bf16.xpose.msra.mxu0 0
    %3682 = vmatprep.subr.bf16.mxu0 0
    %3683 = vmatpush1.bf16.xpose.msra.mxu0 0
    %3684 = vmatprep.subr.bf16.mxu0 0
    %3685 = vmatpush1.bf16.xpose.msra.mxu0 0
    %3686 = vmatprep.subr.bf16.mxu0 0
    %3687 = vmatpush1.bf16.xpose.msra.mxu0 0
    %3688 = vmatprep.subr.bf16.mxu0 0
    %3689 = vmatpush1.bf16.xpose.msra.mxu0 0
    %3690 = vmatprep.subr.bf16.mxu0 0
    %3691 = vmatpush1.bf16.xpose.msra.mxu0 0
    %3692 = vmatprep.subr.bf16.mxu0 0
    %3693 = vmatpush1.bf16.xpose.msra.mxu0 0
    %3694 = vmatprep.subr.bf16.mxu0 0
    %3695 = vmatpush1.bf16.xpose.msra.mxu0 0
    %3696 = vmatprep.subr.bf16.mxu0 0
    %3697 = vmatpush1.bf16.xpose.msra.mxu0 0
    %3698 = vmatprep.subr.bf16.mxu0 0
    %3699 = vmatpush1.bf16.xpose.msra.mxu0 0
    %3700 = vmatprep.subr.bf16.mxu0 0
    %3701 = vmatpush1.bf16.xpose.msra.mxu0 0
    %3702 = vmatprep.subr.bf16.mxu0 0
    %3703 = vmatpush1.bf16.xpose.msra.mxu0 0
    %3704 = vmatprep.subr.bf16.mxu0 0
    %3705 = vmatpush1.bf16.xpose.msra.mxu0 0
    %3706 = vmatprep.mubr.bf16.mxu0 0
    %3707 = vmatmul.mubr.bf16.gmra.mrb[0].mxu0 %v3669
    %v3708 = vpop.f32.mrb[0].mxu0
    %v3709 = vadd.f32 0.0, %v3708
    %v3710 = vpop.f32.mrb[0].mxu0
    %v3711 = vpop.f32.mrb[0].mxu0
    %v3712 = vpop.f32.mrb[0].mxu0
    %3713 = vdwg.mxu0
    %v3714 = vsel %vm626, %v3709, -inf
    %3715 = vmax.xlane.f32.xlu0 %v3714
    %v3716 = vpop.xlane.xlu0 %3715
    %v3717 = vsub.f32 %v3709, %v3716
    %v3718 = vmul.f32 %v3717, 1.442695
    %v3719 = vpow.pop %v3718
    %v3720 = vsel %vm626, %v3719, 0.0
    %3721 = vadd.xlane.f32.xlu0 %v3720
    %v3722 = vpop.xlane.xlu0 %3721
    %v3723 = vrcp.pop %v3722
    %v3724 = vmul.f32 %v3719, %v3723
    %v3725 = vpack.c.bf16 %v3724, %v3724
    %3726 = vrot.lane.b32.xlu0 %v3616, 96
    %v3727 = vpop.permute.xlu0 %3726
    %v3729 = vsel %vm626, %v3725, 0
    %v3732 = vsel %vm642, %v3727, 0
    %3734 = vmatprep.subr.bf16.mxu0 0
    %3735 = vmatpush1.bf16.msra.mxu0 %v3732
    %3736 = vmatprep.subr.bf16.mxu0 0
    %3737 = vmatpush1.bf16.msra.mxu0 0
    %3738 = vmatprep.subr.bf16.mxu0 0
    %3739 = vmatpush1.bf16.msra.mxu0 0
    %3740 = vmatprep.subr.bf16.mxu0 0
    %3741 = vmatpush1.bf16.msra.mxu0 0
    %3742 = vmatprep.subr.bf16.mxu0 0
    %3743 = vmatpush1.bf16.msra.mxu0 0
    %3744 = vmatprep.subr.bf16.mxu0 0
    %3745 = vmatpush1.bf16.msra.mxu0 0
    %3746 = vmatprep.subr.bf16.mxu0 0
    %3747 = vmatpush1.bf16.msra.mxu0 0
    %3748 = vmatprep.subr.bf16.mxu0 0
    %3749 = vmatpush1.bf16.msra.mxu0 0
    %3750 = vmatprep.subr.bf16.mxu0 0
    %3751 = vmatpush1.bf16.msra.mxu0 0
    %3752 = vmatprep.subr.bf16.mxu0 0
    %3753 = vmatpush1.bf16.msra.mxu0 0
    %3754 = vmatprep.subr.bf16.mxu0 0
    %3755 = vmatpush1.bf16.msra.mxu0 0
    %3756 = vmatprep.subr.bf16.mxu0 0
    %3757 = vmatpush1.bf16.msra.mxu0 0
    %3758 = vmatprep.subr.bf16.mxu0 0
    %3759 = vmatpush1.bf16.msra.mxu0 0
    %3760 = vmatprep.subr.bf16.mxu0 0
    %3761 = vmatpush1.bf16.msra.mxu0 0
    %3762 = vmatprep.subr.bf16.mxu0 0
    %3763 = vmatpush1.bf16.msra.mxu0 0
    %3764 = vmatprep.subr.bf16.mxu0 0
    %3765 = vmatpush1.bf16.msra.mxu0 0
    %3766 = vmatprep.mubr.bf16.mxu0 0
    %3767 = vmatmul.mubr.bf16.gmra.mrb[0].mxu0 %v3729
    %v3768 = vpop.f32.mrb[0].mxu0
    %v3769 = vadd.f32 0.0, %v3768
    %v3770 = vpop.f32.mrb[0].mxu0
    %v3771 = vpop.f32.mrb[0].mxu0
    %v3772 = vpop.f32.mrb[0].mxu0
    %3773 = vdwg.mxu0
    %v3774 = vpack.c.bf16 %v3769, %v3769
    %v3776 = vsel %vm579, %v3774, 0
    %3778 = vmatprep.subr.bf16.mxu0 0
    %3779 = vmatpush1.bf16.msra.mxu0 %v3120
    %3780 = vmatprep.subr.bf16.mxu0 0
    %3781 = vmatpush1.bf16.msra.mxu0 %v3121
    %3782 = vmatprep.subr.bf16.mxu0 0
    %3783 = vmatpush1.bf16.msra.mxu0 0
    %3784 = vmatprep.subr.bf16.mxu0 0
    %3785 = vmatpush1.bf16.msra.mxu0 0
    %3786 = vmatprep.subr.bf16.mxu0 0
    %3787 = vmatpush1.bf16.msra.mxu0 0
    %3788 = vmatprep.subr.bf16.mxu0 0
    %3789 = vmatpush1.bf16.msra.mxu0 0
    %3790 = vmatprep.subr.bf16.mxu0 0
    %3791 = vmatpush1.bf16.msra.mxu0 0
    %3792 = vmatprep.subr.bf16.mxu0 0
    %3793 = vmatpush1.bf16.msra.mxu0 0
    %3794 = vmatprep.subr.bf16.mxu0 0
    %3795 = vmatpush1.bf16.msra.mxu0 0
    %3796 = vmatprep.subr.bf16.mxu0 0
    %3797 = vmatpush1.bf16.msra.mxu0 0
    %3798 = vmatprep.subr.bf16.mxu0 0
    %3799 = vmatpush1.bf16.msra.mxu0 0
    %3800 = vmatprep.subr.bf16.mxu0 0
    %3801 = vmatpush1.bf16.msra.mxu0 0
    %3802 = vmatprep.subr.bf16.mxu0 0
    %3803 = vmatpush1.bf16.msra.mxu0 0
    %3804 = vmatprep.subr.bf16.mxu0 0
    %3805 = vmatpush1.bf16.msra.mxu0 0
    %3806 = vmatprep.subr.bf16.mxu0 0
    %3807 = vmatpush1.bf16.msra.mxu0 0
    %3808 = vmatprep.subr.bf16.mxu0 0
    %3809 = vmatpush1.bf16.msra.mxu0 0
    %3810 = vmatprep.mubr.bf16.mxu0 0
    %3811 = vmatmul.mubr.bf16.gmra.mrb[0].mxu0 %v3776
    %v3812 = vpop.f32.mrb[0].mxu0
    %v3813 = vadd.f32 0.0, %v3812
    %v3814 = vpop.f32.mrb[0].mxu0
    %v3815 = vpop.f32.mrb[0].mxu0
    %v3816 = vpop.f32.mrb[0].mxu0
    %3817 = vdwg.mxu0
    %v3819 = vsel %vm579, %v3663, 0
    %3821 = vmatprep.subr.bf16.mxu0 0
    %3822 = vmatpush1.bf16.msra.mxu0 %v3175
    %3823 = vmatprep.subr.bf16.mxu0 0
    %3824 = vmatpush1.bf16.msra.mxu0 %v3176
    %3825 = vmatprep.subr.bf16.mxu0 0
    %3826 = vmatpush1.bf16.msra.mxu0 0
    %3827 = vmatprep.subr.bf16.mxu0 0
    %3828 = vmatpush1.bf16.msra.mxu0 0
    %3829 = vmatprep.subr.bf16.mxu0 0
    %3830 = vmatpush1.bf16.msra.mxu0 0
    %3831 = vmatprep.subr.bf16.mxu0 0
    %3832 = vmatpush1.bf16.msra.mxu0 0
    %3833 = vmatprep.subr.bf16.mxu0 0
    %3834 = vmatpush1.bf16.msra.mxu0 0
    %3835 = vmatprep.subr.bf16.mxu0 0
    %3836 = vmatpush1.bf16.msra.mxu0 0
    %3837 = vmatprep.subr.bf16.mxu0 0
    %3838 = vmatpush1.bf16.msra.mxu0 0
    %3839 = vmatprep.subr.bf16.mxu0 0
    %3840 = vmatpush1.bf16.msra.mxu0 0
    %3841 = vmatprep.subr.bf16.mxu0 0
    %3842 = vmatpush1.bf16.msra.mxu0 0
    %3843 = vmatprep.subr.bf16.mxu0 0
    %3844 = vmatpush1.bf16.msra.mxu0 0
    %3845 = vmatprep.subr.bf16.mxu0 0
    %3846 = vmatpush1.bf16.msra.mxu0 0
    %3847 = vmatprep.subr.bf16.mxu0 0
    %3848 = vmatpush1.bf16.msra.mxu0 0
    %3849 = vmatprep.subr.bf16.mxu0 0
    %3850 = vmatpush1.bf16.msra.mxu0 0
    %3851 = vmatprep.subr.bf16.mxu0 0
    %3852 = vmatpush1.bf16.msra.mxu0 0
    %3853 = vmatprep.mubr.bf16.mxu0 0
    %3854 = vmatmul.mubr.bf16.gmra.mrb[0].mxu0 %v3819
    %v3855 = vpop.f32.mrb[0].mxu0
    %v3856 = vadd.f32 %v3813, %v3855
    %v3857 = vpop.f32.mrb[0].mxu0
    %v3858 = vpop.f32.mrb[0].mxu0
    %v3859 = vpop.f32.mrb[0].mxu0
    %3860 = vdwg.mxu0
    %3861 = vrot.lane.b32.xlu0 %v3556, 64
    %v3862 = vpop.permute.xlu0 %3861
    %3863 = vrot.lane.b32.xlu0 %v3557, 64
    %v3864 = vpop.permute.xlu0 %3863
    %v3866 = vsel %vm579, %v3862, 0
    %v3869 = vsel %vm579, %v3864, 0
    %3871 = vmatprep.subr.bf16.mxu0 0
    %3872 = vmatpush1.bf16.xpose.msra.mxu0 %v3869
    %3873 = vmatprep.subr.bf16.mxu0 0
    %3874 = vmatpush1.bf16.xpose.msra.mxu0 0
    %3875 = vmatprep.subr.bf16.mxu0 0
    %3876 = vmatpush1.bf16.xpose.msra.mxu0 0
    %3877 = vmatprep.subr.bf16.mxu0 0
    %3878 = vmatpush1.bf16.xpose.msra.mxu0 0
    %3879 = vmatprep.subr.bf16.mxu0 0
    %3880 = vmatpush1.bf16.xpose.msra.mxu0 0
    %3881 = vmatprep.subr.bf16.mxu0 0
    %3882 = vmatpush1.bf16.xpose.msra.mxu0 0
    %3883 = vmatprep.subr.bf16.mxu0 0
    %3884 = vmatpush1.bf16.xpose.msra.mxu0 0
    %3885 = vmatprep.subr.bf16.mxu0 0
    %3886 = vmatpush1.bf16.xpose.msra.mxu0 0
    %3887 = vmatprep.subr.bf16.mxu0 0
    %3888 = vmatpush1.bf16.xpose.msra.mxu0 0
    %3889 = vmatprep.subr.bf16.mxu0 0
    %3890 = vmatpush1.bf16.xpose.msra.mxu0 0
    %3891 = vmatprep.subr.bf16.mxu0 0
    %3892 = vmatpush1.bf16.xpose.msra.mxu0 0
    %3893 = vmatprep.subr.bf16.mxu0 0
    %3894 = vmatpush1.bf16.xpose.msra.mxu0 0
    %3895 = vmatprep.subr.bf16.mxu0 0
    %3896 = vmatpush1.bf16.xpose.msra.mxu0 0
    %3897 = vmatprep.subr.bf16.mxu0 0
    %3898 = vmatpush1.bf16.xpose.msra.mxu0 0
    %3899 = vmatprep.subr.bf16.mxu0 0
    %3900 = vmatpush1.bf16.xpose.msra.mxu0 0
    %3901 = vmatprep.subr.bf16.mxu0 0
    %3902 = vmatpush1.bf16.xpose.msra.mxu0 0
    %3903 = vmatprep.mubr.bf16.mxu0 0
    %3904 = vmatmul.mubr.bf16.gmra.mrb[0].mxu0 %v3866
    %v3905 = vpop.f32.mrb[0].mxu0
    %v3906 = vadd.f32 0.0, %v3905
    %v3907 = vpop.f32.mrb[0].mxu0
    %v3908 = vpop.f32.mrb[0].mxu0
    %v3909 = vpop.f32.mrb[0].mxu0
    %3910 = vdwg.mxu0
    %v3911 = vsel %vm626, %v3906, -inf
    %3912 = vmax.xlane.f32.xlu0 %v3911
    %v3913 = vpop.xlane.xlu0 %3912
    %v3914 = vsub.f32 %v3906, %v3913
    %v3915 = vmul.f32 %v3914, 1.442695
    %v3916 = vpow.pop %v3915
    %v3917 = vsel %vm626, %v3916, 0.0
    %3918 = vadd.xlane.f32.xlu0 %v3917
    %v3919 = vpop.xlane.xlu0 %3918
    %v3920 = vrcp.pop %v3919
    %v3921 = vmul.f32 %v3916, %v3920
    %v3922 = vpack.c.bf16 %v3921, %v3921
    %3923 = vrot.lane.b32.xlu0 %v3616, 64
    %v3924 = vpop.permute.xlu0 %3923
    %v3926 = vsel %vm626, %v3922, 0
    %v3929 = vsel %vm642, %v3924, 0
    %3931 = vmatprep.subr.bf16.mxu0 0
    %3932 = vmatpush1.bf16.msra.mxu0 %v3929
    %3933 = vmatprep.subr.bf16.mxu0 0
    %3934 = vmatpush1.bf16.msra.mxu0 0
    %3935 = vmatprep.subr.bf16.mxu0 0
    %3936 = vmatpush1.bf16.msra.mxu0 0
    %3937 = vmatprep.subr.bf16.mxu0 0
    %3938 = vmatpush1.bf16.msra.mxu0 0
    %3939 = vmatprep.subr.bf16.mxu0 0
    %3940 = vmatpush1.bf16.msra.mxu0 0
    %3941 = vmatprep.subr.bf16.mxu0 0
    %3942 = vmatpush1.bf16.msra.mxu0 0
    %3943 = vmatprep.subr.bf16.mxu0 0
    %3944 = vmatpush1.bf16.msra.mxu0 0
    %3945 = vmatprep.subr.bf16.mxu0 0
    %3946 = vmatpush1.bf16.msra.mxu0 0
    %3947 = vmatprep.subr.bf16.mxu0 0
    %3948 = vmatpush1.bf16.msra.mxu0 0
    %3949 = vmatprep.subr.bf16.mxu0 0
    %3950 = vmatpush1.bf16.msra.mxu0 0
    %3951 = vmatprep.subr.bf16.mxu0 0
    %3952 = vmatpush1.bf16.msra.mxu0 0
    %3953 = vmatprep.subr.bf16.mxu0 0
    %3954 = vmatpush1.bf16.msra.mxu0 0
    %3955 = vmatprep.subr.bf16.mxu0 0
    %3956 = vmatpush1.bf16.msra.mxu0 0
    %3957 = vmatprep.subr.bf16.mxu0 0
    %3958 = vmatpush1.bf16.msra.mxu0 0
    %3959 = vmatprep.subr.bf16.mxu0 0
    %3960 = vmatpush1.bf16.msra.mxu0 0
    %3961 = vmatprep.subr.bf16.mxu0 0
    %3962 = vmatpush1.bf16.msra.mxu0 0
    %3963 = vmatprep.mubr.bf16.mxu0 0
    %3964 = vmatmul.mubr.bf16.gmra.mrb[0].mxu0 %v3926
    %v3965 = vpop.f32.mrb[0].mxu0
    %v3966 = vadd.f32 0.0, %v3965
    %v3967 = vpop.f32.mrb[0].mxu0
    %v3968 = vpop.f32.mrb[0].mxu0
    %v3969 = vpop.f32.mrb[0].mxu0
    %3970 = vdwg.mxu0
    %v3971 = vpack.c.bf16 %v3966, %v3966
    %v3973 = vsel %vm579, %v3971, 0
    %3975 = vmatprep.subr.bf16.mxu0 0
    %3976 = vmatpush1.bf16.msra.mxu0 %v3341
    %3977 = vmatprep.subr.bf16.mxu0 0
    %3978 = vmatpush1.bf16.msra.mxu0 %v3342
    %3979 = vmatprep.subr.bf16.mxu0 0
    %3980 = vmatpush1.bf16.msra.mxu0 0
    %3981 = vmatprep.subr.bf16.mxu0 0
    %3982 = vmatpush1.bf16.msra.mxu0 0
    %3983 = vmatprep.subr.bf16.mxu0 0
    %3984 = vmatpush1.bf16.msra.mxu0 0
    %3985 = vmatprep.subr.bf16.mxu0 0
    %3986 = vmatpush1.bf16.msra.mxu0 0
    %3987 = vmatprep.subr.bf16.mxu0 0
    %3988 = vmatpush1.bf16.msra.mxu0 0
    %3989 = vmatprep.subr.bf16.mxu0 0
    %3990 = vmatpush1.bf16.msra.mxu0 0
    %3991 = vmatprep.subr.bf16.mxu0 0
    %3992 = vmatpush1.bf16.msra.mxu0 0
    %3993 = vmatprep.subr.bf16.mxu0 0
    %3994 = vmatpush1.bf16.msra.mxu0 0
    %3995 = vmatprep.subr.bf16.mxu0 0
    %3996 = vmatpush1.bf16.msra.mxu0 0
    %3997 = vmatprep.subr.bf16.mxu0 0
    %3998 = vmatpush1.bf16.msra.mxu0 0
    %3999 = vmatprep.subr.bf16.mxu0 0
    %4000 = vmatpush1.bf16.msra.mxu0 0
    %4001 = vmatprep.subr.bf16.mxu0 0
    %4002 = vmatpush1.bf16.msra.mxu0 0
    %4003 = vmatprep.subr.bf16.mxu0 0
    %4004 = vmatpush1.bf16.msra.mxu0 0
    %4005 = vmatprep.subr.bf16.mxu0 0
    %4006 = vmatpush1.bf16.msra.mxu0 0
    %4007 = vmatprep.mubr.bf16.mxu0 0
    %4008 = vmatmul.mubr.bf16.gmra.mrb[0].mxu0 %v3973
    %v4009 = vpop.f32.mrb[0].mxu0
    %v4010 = vadd.f32 0.0, %v4009
    %v4011 = vpop.f32.mrb[0].mxu0
    %v4012 = vpop.f32.mrb[0].mxu0
    %v4013 = vpop.f32.mrb[0].mxu0
    %4014 = vdwg.mxu0
    %v4015 = vadd.f32 %v3856, %v4010
    %4016 = vrot.lane.b32.xlu0 %v3556, 32
    %v4017 = vpop.permute.xlu0 %4016
    %4018 = vrot.lane.b32.xlu0 %v3557, 32
    %v4019 = vpop.permute.xlu0 %4018
    %v4021 = vsel %vm579, %v4017, 0
    %v4024 = vsel %vm579, %v4019, 0
    %4026 = vmatprep.subr.bf16.mxu0 0
    %4027 = vmatpush1.bf16.xpose.msra.mxu0 %v4024
    %4028 = vmatprep.subr.bf16.mxu0 0
    %4029 = vmatpush1.bf16.xpose.msra.mxu0 0
    %4030 = vmatprep.subr.bf16.mxu0 0
    %4031 = vmatpush1.bf16.xpose.msra.mxu0 0
    %4032 = vmatprep.subr.bf16.mxu0 0
    %4033 = vmatpush1.bf16.xpose.msra.mxu0 0
    %4034 = vmatprep.subr.bf16.mxu0 0
    %4035 = vmatpush1.bf16.xpose.msra.mxu0 0
    %4036 = vmatprep.subr.bf16.mxu0 0
    %4037 = vmatpush1.bf16.xpose.msra.mxu0 0
    %4038 = vmatprep.subr.bf16.mxu0 0
    %4039 = vmatpush1.bf16.xpose.msra.mxu0 0
    %4040 = vmatprep.subr.bf16.mxu0 0
    %4041 = vmatpush1.bf16.xpose.msra.mxu0 0
    %4042 = vmatprep.subr.bf16.mxu0 0
    %4043 = vmatpush1.bf16.xpose.msra.mxu0 0
    %4044 = vmatprep.subr.bf16.mxu0 0
    %4045 = vmatpush1.bf16.xpose.msra.mxu0 0
    %4046 = vmatprep.subr.bf16.mxu0 0
    %4047 = vmatpush1.bf16.xpose.msra.mxu0 0
    %4048 = vmatprep.subr.bf16.mxu0 0
    %4049 = vmatpush1.bf16.xpose.msra.mxu0 0
    %4050 = vmatprep.subr.bf16.mxu0 0
    %4051 = vmatpush1.bf16.xpose.msra.mxu0 0
    %4052 = vmatprep.subr.bf16.mxu0 0
    %4053 = vmatpush1.bf16.xpose.msra.mxu0 0
    %4054 = vmatprep.subr.bf16.mxu0 0
    %4055 = vmatpush1.bf16.xpose.msra.mxu0 0
    %4056 = vmatprep.subr.bf16.mxu0 0
    %4057 = vmatpush1.bf16.xpose.msra.mxu0 0
    %4058 = vmatprep.mubr.bf16.mxu0 0
    %4059 = vmatmul.mubr.bf16.gmra.mrb[0].mxu0 %v4021
    %v4060 = vpop.f32.mrb[0].mxu0
    %v4061 = vadd.f32 0.0, %v4060
    %v4062 = vpop.f32.mrb[0].mxu0
    %v4063 = vpop.f32.mrb[0].mxu0
    %v4064 = vpop.f32.mrb[0].mxu0
    %4065 = vdwg.mxu0
    %v4066 = vsel %vm626, %v4061, -inf
    %4067 = vmax.xlane.f32.xlu0 %v4066
    %v4068 = vpop.xlane.xlu0 %4067
    %v4069 = vsub.f32 %v4061, %v4068
    %v4070 = vmul.f32 %v4069, 1.442695
    %v4071 = vpow.pop %v4070
    %v4072 = vsel %vm626, %v4071, 0.0
    %4073 = vadd.xlane.f32.xlu0 %v4072
    %v4074 = vpop.xlane.xlu0 %4073
    %v4075 = vrcp.pop %v4074
    %v4076 = vmul.f32 %v4071, %v4075
    %v4077 = vpack.c.bf16 %v4076, %v4076
    %4078 = vrot.lane.b32.xlu0 %v3616, 32
    %v4079 = vpop.permute.xlu0 %4078
    %v4081 = vsel %vm626, %v4077, 0
    %v4084 = vsel %vm642, %v4079, 0
    %4086 = vmatprep.subr.bf16.mxu0 0
    %4087 = vmatpush1.bf16.msra.mxu0 %v4084
    %4088 = vmatprep.subr.bf16.mxu0 0
    %4089 = vmatpush1.bf16.msra.mxu0 0
    %4090 = vmatprep.subr.bf16.mxu0 0
    %4091 = vmatpush1.bf16.msra.mxu0 0
    %4092 = vmatprep.subr.bf16.mxu0 0
    %4093 = vmatpush1.bf16.msra.mxu0 0
    %4094 = vmatprep.subr.bf16.mxu0 0
    %4095 = vmatpush1.bf16.msra.mxu0 0
    %4096 = vmatprep.subr.bf16.mxu0 0
    %4097 = vmatpush1.bf16.msra.mxu0 0
    %4098 = vmatprep.subr.bf16.mxu0 0
    %4099 = vmatpush1.bf16.msra.mxu0 0
    %4100 = vmatprep.subr.bf16.mxu0 0
    %4101 = vmatpush1.bf16.msra.mxu0 0
    %4102 = vmatprep.subr.bf16.mxu0 0
    %4103 = vmatpush1.bf16.msra.mxu0 0
    %4104 = vmatprep.subr.bf16.mxu0 0
    %4105 = vmatpush1.bf16.msra.mxu0 0
    %4106 = vmatprep.subr.bf16.mxu0 0
    %4107 = vmatpush1.bf16.msra.mxu0 0
    %4108 = vmatprep.subr.bf16.mxu0 0
    %4109 = vmatpush1.bf16.msra.mxu0 0
    %4110 = vmatprep.subr.bf16.mxu0 0
    %4111 = vmatpush1.bf16.msra.mxu0 0
    %4112 = vmatprep.subr.bf16.mxu0 0
    %4113 = vmatpush1.bf16.msra.mxu0 0
    %4114 = vmatprep.subr.bf16.mxu0 0
    %4115 = vmatpush1.bf16.msra.mxu0 0
    %4116 = vmatprep.subr.bf16.mxu0 0
    %4117 = vmatpush1.bf16.msra.mxu0 0
    %4118 = vmatprep.mubr.bf16.mxu0 0
    %4119 = vmatmul.mubr.bf16.gmra.mrb[0].mxu0 %v4081
    %v4120 = vpop.f32.mrb[0].mxu0
    %v4121 = vadd.f32 0.0, %v4120
    %v4122 = vpop.f32.mrb[0].mxu0
    %v4123 = vpop.f32.mrb[0].mxu0
    %v4124 = vpop.f32.mrb[0].mxu0
    %4125 = vdwg.mxu0
    %v4126 = vpack.c.bf16 %v4121, %v4121
    %v4128 = vsel %vm579, %v4126, 0
    %4130 = vmatprep.subr.bf16.mxu0 0
    %4131 = vmatpush1.bf16.msra.mxu0 %v3508
    %4132 = vmatprep.subr.bf16.mxu0 0
    %4133 = vmatpush1.bf16.msra.mxu0 %v3509
    %4134 = vmatprep.subr.bf16.mxu0 0
    %4135 = vmatpush1.bf16.msra.mxu0 0
    %4136 = vmatprep.subr.bf16.mxu0 0
    %4137 = vmatpush1.bf16.msra.mxu0 0
    %4138 = vmatprep.subr.bf16.mxu0 0
    %4139 = vmatpush1.bf16.msra.mxu0 0
    %4140 = vmatprep.subr.bf16.mxu0 0
    %4141 = vmatpush1.bf16.msra.mxu0 0
    %4142 = vmatprep.subr.bf16.mxu0 0
    %4143 = vmatpush1.bf16.msra.mxu0 0
    %4144 = vmatprep.subr.bf16.mxu0 0
    %4145 = vmatpush1.bf16.msra.mxu0 0
    %4146 = vmatprep.subr.bf16.mxu0 0
    %4147 = vmatpush1.bf16.msra.mxu0 0
    %4148 = vmatprep.subr.bf16.mxu0 0
    %4149 = vmatpush1.bf16.msra.mxu0 0
    %4150 = vmatprep.subr.bf16.mxu0 0
    %4151 = vmatpush1.bf16.msra.mxu0 0
    %4152 = vmatprep.subr.bf16.mxu0 0
    %4153 = vmatpush1.bf16.msra.mxu0 0
    %4154 = vmatprep.subr.bf16.mxu0 0
    %4155 = vmatpush1.bf16.msra.mxu0 0
    %4156 = vmatprep.subr.bf16.mxu0 0
    %4157 = vmatpush1.bf16.msra.mxu0 0
    %4158 = vmatprep.subr.bf16.mxu0 0
    %4159 = vmatpush1.bf16.msra.mxu0 0
    %4160 = vmatprep.subr.bf16.mxu0 0
    %4161 = vmatpush1.bf16.msra.mxu0 0
    %4162 = vmatprep.mubr.bf16.mxu0 0
    %4163 = vmatmul.mubr.bf16.gmra.mrb[0].mxu0 %v4128
    %v4164 = vpop.f32.mrb[0].mxu0
    %v4165 = vadd.f32 0.0, %v4164
    %v4166 = vpop.f32.mrb[0].mxu0
    %v4167 = vpop.f32.mrb[0].mxu0
    %v4168 = vpop.f32.mrb[0].mxu0
    %4169 = vdwg.mxu0
    %v4170 = vadd.f32 %v4015, %v4165
    %v4171 = vld [vmem:[%s33] sm:$0x1]
    %v4173 = vlaneseq
    %v4174 = vshrl.u32 %v4173, 7
    %v4175 = vsub.s32 0, %v4174
    %v4176 = vrot.slane %v4171, %v4175
    %v4178 = vadd.f32 %v3555, %v4176
    %v4179 = vadd.f32 %v4170, %v4176
    %v4180 = vadd.f32 %v2610, %v4178
    %v4181 = vadd.f32 %v2611, %v4179
    %v4182 = vld [vmem:[%s35] sm:$0x1]
    %v4183 = vld [vmem:[%s37] sm:$0x1]
    %4184 = vadd.xlane.f32.xlu0 %v4180
    %v4185 = vpop.xlane.xlu0 %4184
    %4186 = vadd.xlane.f32.xlu0 %v4181
    %v4187 = vpop.xlane.xlu0 %4186
    %v4188 = vmul.f32 %v4185, %v1877
    %v4189 = vmul.f32 %v4187, %v1877
    %v4190 = vsub.f32 %v4180, %v4188
    %v4191 = vsub.f32 %v4181, %v4189
    %v4192 = vmul.f32 %v4190, %v4190
    %v4193 = vmul.f32 %v4191, %v4191
    %4194 = vadd.xlane.f32.xlu0 %v4192
    %v4195 = vpop.xlane.xlu0 %4194
    %4196 = vadd.xlane.f32.xlu0 %v4193
    %v4197 = vpop.xlane.xlu0 %4196
    %v4198 = vmul.f32 %v4195, %v1877
    %v4199 = vmul.f32 %v4197, %v1877
    %v4200 = vadd.f32 %v4198, 1e-05
    %v4201 = vadd.f32 %v4199, 1e-05
    %v4202 = vrsqrt.pop %v4200
    %v4203 = vrsqrt.pop %v4201
    %v4204 = vmul.f32 %v4190, %v4202
    %v4205 = vmul.f32 %v4191, %v4203
    %v4207 = vlaneseq
    %v4208 = vshrl.u32 %v4207, 7
    %v4209 = vsub.s32 0, %v4208
    %v4210 = vrot.slane %v4182, %v4209
    %v4212 = vmul.f32 %v4204, %v4210
    %v4213 = vmul.f32 %v4205, %v4210
    %v4215 = vlaneseq
    %v4216 = vshrl.u32 %v4215, 7
    %v4217 = vsub.s32 0, %v4216
    %v4218 = vrot.slane %v4183, %v4217
    %v4220 = vadd.f32 %v4212, %v4218
    %v4221 = vadd.f32 %v4213, %v4218
    %v4222 = vpack.c.bf16 %v4221, %v4220
    %v4223 = vld [vmem:[#allocation17] sm:$0xff]
    %v4224 = vld [vmem:[#allocation17 + $0x8] sm:$0xff]
    %v4225 = vld [vmem:[#allocation17 + $0x10] sm:$0xff]
    %v4226 = vld [vmem:[#allocation17 + $0x18] sm:$0xff]
    %v4227 = vld [vmem:[#allocation17 + $0x20] sm:$0xff]
    %v4228 = vld [vmem:[#allocation17 + $0x28] sm:$0xff]
    %v4229 = vld [vmem:[#allocation17 + $0x30] sm:$0xff]
    %v4230 = vld [vmem:[#allocation17 + $0x38] sm:$0xff]
    %v4231 = vld [vmem:[#allocation17 + $0x40] sm:$0xff]
    %v4232 = vld [vmem:[#allocation17 + $0x48] sm:$0xff]
    %v4233 = vld [vmem:[#allocation17 + $0x50] sm:$0xff]
    %v4234 = vld [vmem:[#allocation17 + $0x58] sm:$0xff]
    %v4235 = vld [vmem:[#allocation17 + $0x60] sm:$0xff]
    %v4236 = vld [vmem:[#allocation17 + $0x68] sm:$0xff]
    %v4237 = vld [vmem:[#allocation17 + $0x70] sm:$0xff]
    %v4238 = vld [vmem:[#allocation17 + $0x78] sm:$0xff]
    %v4239 = vld [vmem:[#allocation17 + $0x80] sm:$0xff]
    %v4240 = vld [vmem:[#allocation17 + $0x88] sm:$0xff]
    %v4241 = vld [vmem:[#allocation17 + $0x90] sm:$0xff]
    %v4242 = vld [vmem:[#allocation17 + $0x98] sm:$0xff]
    %v4243 = vld [vmem:[#allocation17 + $0xa0] sm:$0xff]
    %v4244 = vld [vmem:[#allocation17 + $0xa8] sm:$0xff]
    %v4245 = vld [vmem:[#allocation17 + $0xb0] sm:$0xff]
    %v4246 = vld [vmem:[#allocation17 + $0xb8] sm:$0xff]
    %v4247 = vld [vmem:[#allocation17 + $0xc0] sm:$0xff]
    %v4248 = vld [vmem:[#allocation17 + $0xc8] sm:$0xff]
    %v4249 = vld [vmem:[#allocation17 + $0xd0] sm:$0xff]
    %v4250 = vld [vmem:[#allocation17 + $0xd8] sm:$0xff]
    %v4251 = vld [vmem:[#allocation17 + $0xe0] sm:$0xff]
    %v4252 = vld [vmem:[#allocation17 + $0xe8] sm:$0xff]
    %v4253 = vld [vmem:[#allocation17 + $0xf0] sm:$0xff]
    %v4254 = vld [vmem:[#allocation17 + $0xf8] sm:$0xff]
    %v4255 = vld [vmem:[%s41] sm:$0xf]
    %v4257 = vlaneseq
    %v4258 = vshrl.u32 %v4257, 7
    %v4259 = vsub.s32 0, %v4258
    %v4260 = vrot.slane %v4255, %v4259
    %v4261 = vlaneseq
    %v4262 = vshrl.u32 %v4261, 7
    %v4263 = vsub.s32 1, %v4262
    %v4264 = vrot.slane %v4255, %v4263
    %v4265 = vlaneseq
    %v4266 = vshrl.u32 %v4265, 7
    %v4267 = vsub.s32 2, %v4266
    %v4268 = vrot.slane %v4255, %v4267
    %v4269 = vlaneseq
    %v4270 = vshrl.u32 %v4269, 7
    %v4271 = vsub.s32 3, %v4270
    %v4272 = vrot.slane %v4255, %v4271
    %v4309 = vunpack.c.l.b16 %v4223
    %v4310 = vunpack.c.h.b16 %v4223
    %v4311 = vunpack.c.l.b16 %v4224
    %v4312 = vunpack.c.h.b16 %v4224
    %v4313 = vunpack.c.l.b16 %v4225
    %v4314 = vunpack.c.h.b16 %v4225
    %v4315 = vunpack.c.l.b16 %v4226
    %v4316 = vunpack.c.h.b16 %v4226
    %v4317 = vunpack.c.l.b16 %v4227
    %v4318 = vunpack.c.h.b16 %v4227
    %v4319 = vunpack.c.l.b16 %v4228
    %v4320 = vunpack.c.h.b16 %v4228
    %v4321 = vunpack.c.l.b16 %v4229
    %v4322 = vunpack.c.h.b16 %v4229
    %v4323 = vunpack.c.l.b16 %v4230
    %v4324 = vunpack.c.h.b16 %v4230
    %v4325 = vunpack.c.l.b16 %v4231
    %v4326 = vunpack.c.h.b16 %v4231
    %v4327 = vunpack.c.l.b16 %v4232
    %v4328 = vunpack.c.h.b16 %v4232
    %v4329 = vunpack.c.l.b16 %v4233
    %v4330 = vunpack.c.h.b16 %v4233
    %v4331 = vunpack.c.l.b16 %v4234
    %v4332 = vunpack.c.h.b16 %v4234
    %v4333 = vunpack.c.l.b16 %v4235
    %v4334 = vunpack.c.h.b16 %v4235
    %v4335 = vunpack.c.l.b16 %v4236
    %v4336 = vunpack.c.h.b16 %v4236
    %v4337 = vunpack.c.l.b16 %v4237
    %v4338 = vunpack.c.h.b16 %v4237
    %v4339 = vunpack.c.l.b16 %v4238
    %v4340 = vunpack.c.h.b16 %v4238
    %v4341 = vunpack.c.l.b16 %v4239
    %v4342 = vunpack.c.h.b16 %v4239
    %v4343 = vunpack.c.l.b16 %v4240
    %v4344 = vunpack.c.h.b16 %v4240
    %v4345 = vunpack.c.l.b16 %v4241
    %v4346 = vunpack.c.h.b16 %v4241
    %v4347 = vunpack.c.l.b16 %v4242
    %v4348 = vunpack.c.h.b16 %v4242
    %v4349 = vunpack.c.l.b16 %v4243
    %v4350 = vunpack.c.h.b16 %v4243
    %v4351 = vunpack.c.l.b16 %v4244
    %v4352 = vunpack.c.h.b16 %v4244
    %v4353 = vunpack.c.l.b16 %v4245
    %v4354 = vunpack.c.h.b16 %v4245
    %v4355 = vunpack.c.l.b16 %v4246
    %v4356 = vunpack.c.h.b16 %v4246
    %v4357 = vunpack.c.l.b16 %v4247
    %v4358 = vunpack.c.h.b16 %v4247
    %v4359 = vunpack.c.l.b16 %v4248
    %v4360 = vunpack.c.h.b16 %v4248
    %v4361 = vunpack.c.l.b16 %v4249
    %v4362 = vunpack.c.h.b16 %v4249
    %v4363 = vunpack.c.l.b16 %v4250
    %v4364 = vunpack.c.h.b16 %v4250
    %v4365 = vunpack.c.l.b16 %v4251
    %v4366 = vunpack.c.h.b16 %v4251
    %v4367 = vunpack.c.l.b16 %v4252
    %v4368 = vunpack.c.h.b16 %v4252
    %v4369 = vunpack.c.l.b16 %v4253
    %v4370 = vunpack.c.h.b16 %v4253
    %v4371 = vunpack.c.l.b16 %v4254
    %v4372 = vunpack.c.h.b16 %v4254
    %v4373 = vpack.c.b16 %v4313, %v4309
    %v4374 = vpack.c.b16 %v4314, %v4310
    %v4375 = vpack.c.b16 %v4315, %v4311
    %v4376 = vpack.c.b16 %v4316, %v4312
    %v4377 = vpack.c.b16 %v4321, %v4317
    %v4378 = vpack.c.b16 %v4322, %v4318
    %v4379 = vpack.c.b16 %v4323, %v4319
    %v4380 = vpack.c.b16 %v4324, %v4320
    %v4381 = vpack.c.b16 %v4329, %v4325
    %v4382 = vpack.c.b16 %v4330, %v4326
    %v4383 = vpack.c.b16 %v4331, %v4327
    %v4384 = vpack.c.b16 %v4332, %v4328
    %v4385 = vpack.c.b16 %v4337, %v4333
    %v4386 = vpack.c.b16 %v4338, %v4334
    %v4387 = vpack.c.b16 %v4339, %v4335
    %v4388 = vpack.c.b16 %v4340, %v4336
    %v4389 = vpack.c.b16 %v4345, %v4341
    %v4390 = vpack.c.b16 %v4346, %v4342
    %v4391 = vpack.c.b16 %v4347, %v4343
    %v4392 = vpack.c.b16 %v4348, %v4344
    %v4393 = vpack.c.b16 %v4353, %v4349
    %v4394 = vpack.c.b16 %v4354, %v4350
    %v4395 = vpack.c.b16 %v4355, %v4351
    %v4396 = vpack.c.b16 %v4356, %v4352
    %v4397 = vpack.c.b16 %v4361, %v4357
    %v4398 = vpack.c.b16 %v4362, %v4358
    %v4399 = vpack.c.b16 %v4363, %v4359
    %v4400 = vpack.c.b16 %v4364, %v4360
    %v4401 = vpack.c.b16 %v4369, %v4365
    %v4402 = vpack.c.b16 %v4370, %v4366
    %v4403 = vpack.c.b16 %v4371, %v4367
    %v4404 = vpack.c.b16 %v4372, %v4368
    %4437 = vmatprep.subr.bf16.mxu0 %v4374
    %4438 = vmatpush1.bf16.msra.mxu0 %v4373
    %4439 = vmatprep.subr.bf16.mxu0 %v4378
    %4440 = vmatpush1.bf16.msra.mxu0 %v4377
    %4441 = vmatprep.subr.bf16.mxu0 %v4382
    %4442 = vmatpush1.bf16.msra.mxu0 %v4381
    %4443 = vmatprep.subr.bf16.mxu0 %v4386
    %4444 = vmatpush1.bf16.msra.mxu0 %v4385
    %4445 = vmatprep.subr.bf16.mxu0 %v4390
    %4446 = vmatpush1.bf16.msra.mxu0 %v4389
    %4447 = vmatprep.subr.bf16.mxu0 %v4394
    %4448 = vmatpush1.bf16.msra.mxu0 %v4393
    %4449 = vmatprep.subr.bf16.mxu0 %v4398
    %4450 = vmatpush1.bf16.msra.mxu0 %v4397
    %4451 = vmatprep.subr.bf16.mxu0 %v4402
    %4452 = vmatpush1.bf16.msra.mxu0 %v4401
    %4453 = vmatprep.subr.bf16.mxu0 0
    %4454 = vmatpush1.bf16.msra.mxu0 0
    %4455 = vmatprep.subr.bf16.mxu0 0
    %4456 = vmatpush1.bf16.msra.mxu0 0
    %4457 = vmatprep.subr.bf16.mxu0 0
    %4458 = vmatpush1.bf16.msra.mxu0 0
    %4459 = vmatprep.subr.bf16.mxu0 0
    %4460 = vmatpush1.bf16.msra.mxu0 0
    %4461 = vmatprep.subr.bf16.mxu0 0
    %4462 = vmatpush1.bf16.msra.mxu0 0
    %4463 = vmatprep.subr.bf16.mxu0 0
    %4464 = vmatpush1.bf16.msra.mxu0 0
    %4465 = vmatprep.subr.bf16.mxu0 0
    %4466 = vmatpush1.bf16.msra.mxu0 0
    %4467 = vmatprep.subr.bf16.mxu0 0
    %4468 = vmatpush1.bf16.msra.mxu0 0
    %4469 = vmatprep.mubr.bf16.mxu0 0
    %4470 = vmatmul.mubr.bf16.gmra.mrb[0].mxu0 %v4222
    %v4471 = vpop.f32.mrb[0].mxu0
    %v4472 = vadd.f32 %v4260, %v4471
    %v4473 = vpop.f32.mrb[0].mxu0
    %v4474 = vadd.f32 %v4264, %v4473
    %v4475 = vpop.f32.mrb[0].mxu0
    %v4476 = vadd.f32 %v4260, %v4475
    %v4477 = vpop.f32.mrb[0].mxu0
    %v4478 = vadd.f32 %v4264, %v4477
    %4479 = vdwg.mxu0
    %4480 = vmatprep.subr.bf16.mxu0 %v4376
    %4481 = vmatpush1.bf16.msra.mxu0 %v4375
    %4482 = vmatprep.subr.bf16.mxu0 %v4380
    %4483 = vmatpush1.bf16.msra.mxu0 %v4379
    %4484 = vmatprep.subr.bf16.mxu0 %v4384
    %4485 = vmatpush1.bf16.msra.mxu0 %v4383
    %4486 = vmatprep.subr.bf16.mxu0 %v4388
    %4487 = vmatpush1.bf16.msra.mxu0 %v4387
    %4488 = vmatprep.subr.bf16.mxu0 %v4392
    %4489 = vmatpush1.bf16.msra.mxu0 %v4391
    %4490 = vmatprep.subr.bf16.mxu0 %v4396
    %4491 = vmatpush1.bf16.msra.mxu0 %v4395
    %4492 = vmatprep.subr.bf16.mxu0 %v4400
    %4493 = vmatpush1.bf16.msra.mxu0 %v4399
    %4494 = vmatprep.subr.bf16.mxu0 %v4404
    %4495 = vmatpush1.bf16.msra.mxu0 %v4403
    %4496 = vmatprep.subr.bf16.mxu0 0
    %4497 = vmatpush1.bf16.msra.mxu0 0
    %4498 = vmatprep.subr.bf16.mxu0 0
    %4499 = vmatpush1.bf16.msra.mxu0 0
    %4500 = vmatprep.subr.bf16.mxu0 0
    %4501 = vmatpush1.bf16.msra.mxu0 0
    %4502 = vmatprep.subr.bf16.mxu0 0
    %4503 = vmatpush1.bf16.msra.mxu0 0
    %4504 = vmatprep.subr.bf16.mxu0 0
    %4505 = vmatpush1.bf16.msra.mxu0 0
    %4506 = vmatprep.subr.bf16.mxu0 0
    %4507 = vmatpush1.bf16.msra.mxu0 0
    %4508 = vmatprep.subr.bf16.mxu0 0
    %4509 = vmatpush1.bf16.msra.mxu0 0
    %4510 = vmatprep.subr.bf16.mxu0 0
    %4511 = vmatpush1.bf16.msra.mxu0 0
    %4512 = vmatprep.mubr.bf16.mxu0 0
    %4513 = vmatmul.mubr.bf16.gmra.mrb[0].mxu0 %v4222
    %v4514 = vpop.f32.mrb[0].mxu0
    %v4515 = vadd.f32 %v4268, %v4514
    %v4516 = vpop.f32.mrb[0].mxu0
    %v4517 = vadd.f32 %v4272, %v4516
    %v4518 = vpop.f32.mrb[0].mxu0
    %v4519 = vadd.f32 %v4268, %v4518
    %v4520 = vpop.f32.mrb[0].mxu0
    %v4521 = vadd.f32 %v4272, %v4520
    %4522 = vdwg.mxu0
    %v4523 = vmax.f32 %v4472, 0.0
    %v4524 = vmax.f32 %v4474, 0.0
    %v4525 = vmax.f32 %v4515, 0.0
    %v4526 = vmax.f32 %v4517, 0.0
    %v4527 = vmax.f32 %v4476, 0.0
    %v4528 = vmax.f32 %v4478, 0.0
    %v4529 = vmax.f32 %v4519, 0.0
    %v4530 = vmax.f32 %v4521, 0.0
    %v4531 = vpack.c.bf16 %v4527, %v4523
    %v4532 = vpack.c.bf16 %v4528, %v4524
    %v4533 = vpack.c.bf16 %v4529, %v4525
    %v4534 = vpack.c.bf16 %v4530, %v4526
    %v4535 = vld [vmem:[#allocation19] sm:$0xf]
    %v4536 = vld [vmem:[#allocation19 + $0x4] sm:$0xf]
    %v4537 = vld [vmem:[#allocation19 + $0x8] sm:$0xf]
    %v4538 = vld [vmem:[#allocation19 + $0xc] sm:$0xf]
    %v4539 = vld [vmem:[#allocation19 + $0x10] sm:$0xf]
    %v4540 = vld [vmem:[#allocation19 + $0x14] sm:$0xf]
    %v4541 = vld [vmem:[#allocation19 + $0x18] sm:$0xf]
    %v4542 = vld [vmem:[#allocation19 + $0x1c] sm:$0xf]
    %v4543 = vld [vmem:[#allocation19 + $0x20] sm:$0xf]
    %v4544 = vld [vmem:[#allocation19 + $0x24] sm:$0xf]
    %v4545 = vld [vmem:[#allocation19 + $0x28] sm:$0xf]
    %v4546 = vld [vmem:[#allocation19 + $0x2c] sm:$0xf]
    %v4547 = vld [vmem:[#allocation19 + $0x30] sm:$0xf]
    %v4548 = vld [vmem:[#allocation19 + $0x34] sm:$0xf]
    %v4549 = vld [vmem:[#allocation19 + $0x38] sm:$0xf]
    %v4550 = vld [vmem:[#allocation19 + $0x3c] sm:$0xf]
    %v4551 = vld [vmem:[#allocation19 + $0x40] sm:$0xf]
    %v4552 = vld [vmem:[#allocation19 + $0x44] sm:$0xf]
    %v4553 = vld [vmem:[#allocation19 + $0x48] sm:$0xf]
    %v4554 = vld [vmem:[#allocation19 + $0x4c] sm:$0xf]
    %v4555 = vld [vmem:[#allocation19 + $0x50] sm:$0xf]
    %v4556 = vld [vmem:[#allocation19 + $0x54] sm:$0xf]
    %v4557 = vld [vmem:[#allocation19 + $0x58] sm:$0xf]
    %v4558 = vld [vmem:[#allocation19 + $0x5c] sm:$0xf]
    %v4559 = vld [vmem:[#allocation19 + $0x60] sm:$0xf]
    %v4560 = vld [vmem:[#allocation19 + $0x64] sm:$0xf]
    %v4561 = vld [vmem:[#allocation19 + $0x68] sm:$0xf]
    %v4562 = vld [vmem:[#allocation19 + $0x6c] sm:$0xf]
    %v4563 = vld [vmem:[#allocation19 + $0x70] sm:$0xf]
    %v4564 = vld [vmem:[#allocation19 + $0x74] sm:$0xf]
    %v4565 = vld [vmem:[#allocation19 + $0x78] sm:$0xf]
    %v4566 = vld [vmem:[#allocation19 + $0x7c] sm:$0xf]
    %v4567 = vld [vmem:[#allocation19 + $0x80] sm:$0xf]
    %v4568 = vld [vmem:[#allocation19 + $0x84] sm:$0xf]
    %v4569 = vld [vmem:[#allocation19 + $0x88] sm:$0xf]
    %v4570 = vld [vmem:[#allocation19 + $0x8c] sm:$0xf]
    %v4571 = vld [vmem:[#allocation19 + $0x90] sm:$0xf]
    %v4572 = vld [vmem:[#allocation19 + $0x94] sm:$0xf]
    %v4573 = vld [vmem:[#allocation19 + $0x98] sm:$0xf]
    %v4574 = vld [vmem:[#allocation19 + $0x9c] sm:$0xf]
    %v4575 = vld [vmem:[#allocation19 + $0xa0] sm:$0xf]
    %v4576 = vld [vmem:[#allocation19 + $0xa4] sm:$0xf]
    %v4577 = vld [vmem:[#allocation19 + $0xa8] sm:$0xf]
    %v4578 = vld [vmem:[#allocation19 + $0xac] sm:$0xf]
    %v4579 = vld [vmem:[#allocation19 + $0xb0] sm:$0xf]
    %v4580 = vld [vmem:[#allocation19 + $0xb4] sm:$0xf]
    %v4581 = vld [vmem:[#allocation19 + $0xb8] sm:$0xf]
    %v4582 = vld [vmem:[#allocation19 + $0xbc] sm:$0xf]
    %v4583 = vld [vmem:[#allocation19 + $0xc0] sm:$0xf]
    %v4584 = vld [vmem:[#allocation19 + $0xc4] sm:$0xf]
    %v4585 = vld [vmem:[#allocation19 + $0xc8] sm:$0xf]
    %v4586 = vld [vmem:[#allocation19 + $0xcc] sm:$0xf]
    %v4587 = vld [vmem:[#allocation19 + $0xd0] sm:$0xf]
    %v4588 = vld [vmem:[#allocation19 + $0xd4] sm:$0xf]
    %v4589 = vld [vmem:[#allocation19 + $0xd8] sm:$0xf]
    %v4590 = vld [vmem:[#allocation19 + $0xdc] sm:$0xf]
    %v4591 = vld [vmem:[#allocation19 + $0xe0] sm:$0xf]
    %v4592 = vld [vmem:[#allocation19 + $0xe4] sm:$0xf]
    %v4593 = vld [vmem:[#allocation19 + $0xe8] sm:$0xf]
    %v4594 = vld [vmem:[#allocation19 + $0xec] sm:$0xf]
    %v4595 = vld [vmem:[#allocation19 + $0xf0] sm:$0xf]
    %v4596 = vld [vmem:[#allocation19 + $0xf4] sm:$0xf]
    %v4597 = vld [vmem:[#allocation19 + $0xf8] sm:$0xf]
    %v4598 = vld [vmem:[#allocation19 + $0xfc] sm:$0xf]
    %v4599 = vld [vmem:[%s45] sm:$0x1]
    %v4601 = vlaneseq
    %v4602 = vshrl.u32 %v4601, 7
    %v4603 = vsub.s32 0, %v4602
    %v4604 = vrot.slane %v4599, %v4603
    %v4670 = vunpack.c.l.b16 %v4535
    %v4671 = vunpack.c.l.b16 %v4536
    %v4672 = vunpack.c.l.b16 %v4537
    %v4673 = vunpack.c.l.b16 %v4538
    %v4674 = vunpack.c.l.b16 %v4539
    %v4675 = vunpack.c.l.b16 %v4540
    %v4676 = vunpack.c.l.b16 %v4541
    %v4677 = vunpack.c.l.b16 %v4542
    %v4678 = vunpack.c.l.b16 %v4543
    %v4679 = vunpack.c.l.b16 %v4544
    %v4680 = vunpack.c.l.b16 %v4545
    %v4681 = vunpack.c.l.b16 %v4546
    %v4682 = vunpack.c.l.b16 %v4547
    %v4683 = vunpack.c.l.b16 %v4548
    %v4684 = vunpack.c.l.b16 %v4549
    %v4685 = vunpack.c.l.b16 %v4550
    %v4686 = vunpack.c.l.b16 %v4551
    %v4687 = vunpack.c.l.b16 %v4552
    %v4688 = vunpack.c.l.b16 %v4553
    %v4689 = vunpack.c.l.b16 %v4554
    %v4690 = vunpack.c.l.b16 %v4555
    %v4691 = vunpack.c.l.b16 %v4556
    %v4692 = vunpack.c.l.b16 %v4557
    %v4693 = vunpack.c.l.b16 %v4558
    %v4694 = vunpack.c.l.b16 %v4559
    %v4695 = vunpack.c.l.b16 %v4560
    %v4696 = vunpack.c.l.b16 %v4561
    %v4697 = vunpack.c.l.b16 %v4562
    %v4698 = vunpack.c.l.b16 %v4563
    %v4699 = vunpack.c.l.b16 %v4564
    %v4700 = vunpack.c.l.b16 %v4565
    %v4701 = vunpack.c.l.b16 %v4566
    %v4702 = vunpack.c.l.b16 %v4567
    %v4703 = vunpack.c.l.b16 %v4568
    %v4704 = vunpack.c.l.b16 %v4569
    %v4705 = vunpack.c.l.b16 %v4570
    %v4706 = vunpack.c.l.b16 %v4571
    %v4707 = vunpack.c.l.b16 %v4572
    %v4708 = vunpack.c.l.b16 %v4573
    %v4709 = vunpack.c.l.b16 %v4574
    %v4710 = vunpack.c.l.b16 %v4575
    %v4711 = vunpack.c.l.b16 %v4576
    %v4712 = vunpack.c.l.b16 %v4577
    %v4713 = vunpack.c.l.b16 %v4578
    %v4714 = vunpack.c.l.b16 %v4579
    %v4715 = vunpack.c.l.b16 %v4580
    %v4716 = vunpack.c.l.b16 %v4581
    %v4717 = vunpack.c.l.b16 %v4582
    %v4718 = vunpack.c.l.b16 %v4583
    %v4719 = vunpack.c.l.b16 %v4584
    %v4720 = vunpack.c.l.b16 %v4585
    %v4721 = vunpack.c.l.b16 %v4586
    %v4722 = vunpack.c.l.b16 %v4587
    %v4723 = vunpack.c.l.b16 %v4588
    %v4724 = vunpack.c.l.b16 %v4589
    %v4725 = vunpack.c.l.b16 %v4590
    %v4726 = vunpack.c.l.b16 %v4591
    %v4727 = vunpack.c.l.b16 %v4592
    %v4728 = vunpack.c.l.b16 %v4593
    %v4729 = vunpack.c.l.b16 %v4594
    %v4730 = vunpack.c.l.b16 %v4595
    %v4731 = vunpack.c.l.b16 %v4596
    %v4732 = vunpack.c.l.b16 %v4597
    %v4733 = vunpack.c.l.b16 %v4598
    %v4734 = vpack.c.b16 %v4671, %v4670
    %v4735 = vpack.c.b16 %v4673, %v4672
    %v4736 = vpack.c.b16 %v4675, %v4674
    %v4737 = vpack.c.b16 %v4677, %v4676
    %v4738 = vpack.c.b16 %v4679, %v4678
    %v4739 = vpack.c.b16 %v4681, %v4680
    %v4740 = vpack.c.b16 %v4683, %v4682
    %v4741 = vpack.c.b16 %v4685, %v4684
    %v4742 = vpack.c.b16 %v4687, %v4686
    %v4743 = vpack.c.b16 %v4689, %v4688
    %v4744 = vpack.c.b16 %v4691, %v4690
    %v4745 = vpack.c.b16 %v4693, %v4692
    %v4746 = vpack.c.b16 %v4695, %v4694
    %v4747 = vpack.c.b16 %v4697, %v4696
    %v4748 = vpack.c.b16 %v4699, %v4698
    %v4749 = vpack.c.b16 %v4701, %v4700
    %v4750 = vpack.c.b16 %v4703, %v4702
    %v4751 = vpack.c.b16 %v4705, %v4704
    %v4752 = vpack.c.b16 %v4707, %v4706
    %v4753 = vpack.c.b16 %v4709, %v4708
    %v4754 = vpack.c.b16 %v4711, %v4710
    %v4755 = vpack.c.b16 %v4713, %v4712
    %v4756 = vpack.c.b16 %v4715, %v4714
    %v4757 = vpack.c.b16 %v4717, %v4716
    %v4758 = vpack.c.b16 %v4719, %v4718
    %v4759 = vpack.c.b16 %v4721, %v4720
    %v4760 = vpack.c.b16 %v4723, %v4722
    %v4761 = vpack.c.b16 %v4725, %v4724
    %v4762 = vpack.c.b16 %v4727, %v4726
    %v4763 = vpack.c.b16 %v4729, %v4728
    %v4764 = vpack.c.b16 %v4731, %v4730
    %v4765 = vpack.c.b16 %v4733, %v4732
    %4798 = vmatprep.subr.bf16.mxu0 0
    %4799 = vmatpush1.bf16.msra.mxu0 %v4734
    %4800 = vmatprep.subr.bf16.mxu0 0
    %4801 = vmatpush1.bf16.msra.mxu0 %v4735
    %4802 = vmatprep.subr.bf16.mxu0 0
    %4803 = vmatpush1.bf16.msra.mxu0 %v4736
    %4804 = vmatprep.subr.bf16.mxu0 0
    %4805 = vmatpush1.bf16.msra.mxu0 %v4737
    %4806 = vmatprep.subr.bf16.mxu0 0
    %4807 = vmatpush1.bf16.msra.mxu0 %v4738
    %4808 = vmatprep.subr.bf16.mxu0 0
    %4809 = vmatpush1.bf16.msra.mxu0 %v4739
    %4810 = vmatprep.subr.bf16.mxu0 0
    %4811 = vmatpush1.bf16.msra.mxu0 %v4740
    %4812 = vmatprep.subr.bf16.mxu0 0
    %4813 = vmatpush1.bf16.msra.mxu0 %v4741
    %4814 = vmatprep.subr.bf16.mxu0 0
    %4815 = vmatpush1.bf16.msra.mxu0 %v4742
    %4816 = vmatprep.subr.bf16.mxu0 0
    %4817 = vmatpush1.bf16.msra.mxu0 %v4743
    %4818 = vmatprep.subr.bf16.mxu0 0
    %4819 = vmatpush1.bf16.msra.mxu0 %v4744
    %4820 = vmatprep.subr.bf16.mxu0 0
    %4821 = vmatpush1.bf16.msra.mxu0 %v4745
    %4822 = vmatprep.subr.bf16.mxu0 0
    %4823 = vmatpush1.bf16.msra.mxu0 %v4746
    %4824 = vmatprep.subr.bf16.mxu0 0
    %4825 = vmatpush1.bf16.msra.mxu0 %v4747
    %4826 = vmatprep.subr.bf16.mxu0 0
    %4827 = vmatpush1.bf16.msra.mxu0 %v4748
    %4828 = vmatprep.subr.bf16.mxu0 0
    %4829 = vmatpush1.bf16.msra.mxu0 %v4749
    %4830 = vmatprep.mubr.bf16.mxu0 %v4532
    %4831 = vmatmul.mubr.bf16.gmra.mrb[0].mxu0 %v4531
    %v4832 = vpop.f32.mrb[0].mxu0
    %v4833 = vadd.f32 %v4604, %v4832
    %v4834 = vpop.f32.mrb[0].mxu0
    %v4835 = vpop.f32.mrb[0].mxu0
    %v4836 = vpop.f32.mrb[0].mxu0
    %4837 = vdwg.mxu0
    %4838 = vmatprep.subr.bf16.mxu0 0
    %4839 = vmatpush1.bf16.msra.mxu0 %v4750
    %4840 = vmatprep.subr.bf16.mxu0 0
    %4841 = vmatpush1.bf16.msra.mxu0 %v4751
    %4842 = vmatprep.subr.bf16.mxu0 0
    %4843 = vmatpush1.bf16.msra.mxu0 %v4752
    %4844 = vmatprep.subr.bf16.mxu0 0
    %4845 = vmatpush1.bf16.msra.mxu0 %v4753
    %4846 = vmatprep.subr.bf16.mxu0 0
    %4847 = vmatpush1.bf16.msra.mxu0 %v4754
    %4848 = vmatprep.subr.bf16.mxu0 0
    %4849 = vmatpush1.bf16.msra.mxu0 %v4755
    %4850 = vmatprep.subr.bf16.mxu0 0
    %4851 = vmatpush1.bf16.msra.mxu0 %v4756
    %4852 = vmatprep.subr.bf16.mxu0 0
    %4853 = vmatpush1.bf16.msra.mxu0 %v4757
    %4854 = vmatprep.subr.bf16.mxu0 0
    %4855 = vmatpush1.bf16.msra.mxu0 %v4758
    %4856 = vmatprep.subr.bf16.mxu0 0
    %4857 = vmatpush1.bf16.msra.mxu0 %v4759
    %4858 = vmatprep.subr.bf16.mxu0 0
    %4859 = vmatpush1.bf16.msra.mxu0 %v4760
    %4860 = vmatprep.subr.bf16.mxu0 0
    %4861 = vmatpush1.bf16.msra.mxu0 %v4761
    %4862 = vmatprep.subr.bf16.mxu0 0
    %4863 = vmatpush1.bf16.msra.mxu0 %v4762
    %4864 = vmatprep.subr.bf16.mxu0 0
    %4865 = vmatpush1.bf16.msra.mxu0 %v4763
    %4866 = vmatprep.subr.bf16.mxu0 0
    %4867 = vmatpush1.bf16.msra.mxu0 %v4764
    %4868 = vmatprep.subr.bf16.mxu0 0
    %4869 = vmatpush1.bf16.msra.mxu0 %v4765
    %4870 = vmatprep.mubr.bf16.mxu0 %v4534
    %4871 = vmatmul.mubr.bf16.gmra.mrb[0].mxu0 %v4533
    %v4872 = vpop.f32.mrb[0].mxu0
    %v4873 = vadd.f32 %v4833, %v4872
    %v4874 = vpop.f32.mrb[0].mxu0
    %v4875 = vpop.f32.mrb[0].mxu0
    %v4876 = vpop.f32.mrb[0].mxu0
    %4877 = vdwg.mxu0
    %v4878 = vadd.f32 %v4220, %v4873
    %v4879 = vld [vmem:[%s47] sm:$0x1]
    %v4880 = vld [vmem:[%s49] sm:$0x1]
    %4881 = vadd.xlane.f32.xlu0 %v4878
    %v4882 = vpop.xlane.xlu0 %4881
    %v4883 = vmul.f32 %v4882, %v1877
    %v4884 = vsub.f32 %v4878, %v4883
    %v4885 = vmul.f32 %v4884, %v4884
    %4886 = vadd.xlane.f32.xlu0 %v4885
    %v4887 = vpop.xlane.xlu0 %4886
    %v4888 = vmul.f32 %v4887, %v1877
    %v4889 = vadd.f32 %v4888, 1e-05
    %v4890 = vrsqrt.pop %v4889
    %v4891 = vmul.f32 %v4884, %v4890
    %v4893 = vlaneseq
    %v4894 = vshrl.u32 %v4893, 7
    %v4895 = vsub.s32 0, %v4894
    %v4896 = vrot.slane %v4879, %v4895
    %v4898 = vmul.f32 %v4891, %v4896
    %v4900 = vlaneseq
    %v4901 = vshrl.u32 %v4900, 7
    %v4902 = vsub.s32 0, %v4901
    %v4903 = vrot.slane %v4880, %v4902
    %v4905 = vadd.f32 %v4898, %v4903
    %v4906 = vpack.c.bf16 %v4905, %v4905
    %v4907 = vld [vmem:[#allocation20] sm:$0xff]
    %v4908 = vld [vmem:[#allocation20 + $0x8] sm:$0xff]
    %v4909 = vld [vmem:[#allocation20 + $0x10] sm:$0xff]
    %v4910 = vld [vmem:[#allocation20 + $0x18] sm:$0xff]
    %v4911 = vld [vmem:[#allocation20 + $0x20] sm:$0xff]
    %v4912 = vld [vmem:[#allocation20 + $0x28] sm:$0xff]
    %v4913 = vld [vmem:[#allocation20 + $0x30] sm:$0xff]
    %v4914 = vld [vmem:[#allocation20 + $0x38] sm:$0xff]
    %v4915 = vld [vmem:[#allocation20 + $0x40] sm:$0xff]
    %v4916 = vld [vmem:[#allocation20 + $0x48] sm:$0xff]
    %v4917 = vld [vmem:[#allocation20 + $0x50] sm:$0xff]
    %v4918 = vld [vmem:[#allocation20 + $0x58] sm:$0xff]
    %v4919 = vld [vmem:[#allocation20 + $0x60] sm:$0xff]
    %v4920 = vld [vmem:[#allocation20 + $0x68] sm:$0xff]
    %v4921 = vld [vmem:[#allocation20 + $0x70] sm:$0xff]
    %v4922 = vld [vmem:[#allocation20 + $0x78] sm:$0xff]
    %v4923 = vld [vmem:[#allocation20 + $0x80] sm:$0xff]
    %v4924 = vld [vmem:[#allocation20 + $0x88] sm:$0xff]
    %v4925 = vld [vmem:[#allocation20 + $0x90] sm:$0xff]
    %v4926 = vld [vmem:[#allocation20 + $0x98] sm:$0xff]
    %v4927 = vld [vmem:[#allocation20 + $0xa0] sm:$0xff]
    %v4928 = vld [vmem:[#allocation20 + $0xa8] sm:$0xff]
    %v4929 = vld [vmem:[#allocation20 + $0xb0] sm:$0xff]
    %v4930 = vld [vmem:[#allocation20 + $0xb8] sm:$0xff]
    %v4931 = vld [vmem:[#allocation20 + $0xc0] sm:$0xff]
    %v4932 = vld [vmem:[#allocation20 + $0xc8] sm:$0xff]
    %v4933 = vld [vmem:[#allocation20 + $0xd0] sm:$0xff]
    %v4934 = vld [vmem:[#allocation20 + $0xd8] sm:$0xff]
    %v4935 = vld [vmem:[#allocation20 + $0xe0] sm:$0xff]
    %v4936 = vld [vmem:[#allocation20 + $0xe8] sm:$0xff]
    %v4937 = vld [vmem:[#allocation20 + $0xf0] sm:$0xff]
    %v4938 = vld [vmem:[#allocation20 + $0xf8] sm:$0xff]
    %v4939 = vld [vmem:[%s53] sm:$0xf]
    %v4941 = vlaneseq
    %v4942 = vshrl.u32 %v4941, 7
    %v4943 = vsub.s32 0, %v4942
    %v4944 = vrot.slane %v4939, %v4943
    %v4945 = vlaneseq
    %v4946 = vshrl.u32 %v4945, 7
    %v4947 = vsub.s32 1, %v4946
    %v4948 = vrot.slane %v4939, %v4947
    %v4949 = vlaneseq
    %v4950 = vshrl.u32 %v4949, 7
    %v4951 = vsub.s32 2, %v4950
    %v4952 = vrot.slane %v4939, %v4951
    %v4953 = vlaneseq
    %v4954 = vshrl.u32 %v4953, 7
    %v4955 = vsub.s32 3, %v4954
    %v4956 = vrot.slane %v4939, %v4955
    %v4993 = vunpack.c.l.b16 %v4907
    %v4994 = vunpack.c.h.b16 %v4907
    %v4995 = vunpack.c.l.b16 %v4908
    %v4996 = vunpack.c.h.b16 %v4908
    %v4997 = vunpack.c.l.b16 %v4909
    %v4998 = vunpack.c.h.b16 %v4909
    %v4999 = vunpack.c.l.b16 %v4910
    %v5000 = vunpack.c.h.b16 %v4910
    %v5001 = vunpack.c.l.b16 %v4911
    %v5002 = vunpack.c.h.b16 %v4911
    %v5003 = vunpack.c.l.b16 %v4912
    %v5004 = vunpack.c.h.b16 %v4912
    %v5005 = vunpack.c.l.b16 %v4913
    %v5006 = vunpack.c.h.b16 %v4913
    %v5007 = vunpack.c.l.b16 %v4914
    %v5008 = vunpack.c.h.b16 %v4914
    %v5009 = vunpack.c.l.b16 %v4915
    %v5010 = vunpack.c.h.b16 %v4915
    %v5011 = vunpack.c.l.b16 %v4916
    %v5012 = vunpack.c.h.b16 %v4916
    %v5013 = vunpack.c.l.b16 %v4917
    %v5014 = vunpack.c.h.b16 %v4917
    %v5015 = vunpack.c.l.b16 %v4918
    %v5016 = vunpack.c.h.b16 %v4918
    %v5017 = vunpack.c.l.b16 %v4919
    %v5018 = vunpack.c.h.b16 %v4919
    %v5019 = vunpack.c.l.b16 %v4920
    %v5020 = vunpack.c.h.b16 %v4920
    %v5021 = vunpack.c.l.b16 %v4921
    %v5022 = vunpack.c.h.b16 %v4921
    %v5023 = vunpack.c.l.b16 %v4922
    %v5024 = vunpack.c.h.b16 %v4922
    %v5025 = vunpack.c.l.b16 %v4923
    %v5026 = vunpack.c.h.b16 %v4923
    %v5027 = vunpack.c.l.b16 %v4924
    %v5028 = vunpack.c.h.b16 %v4924
    %v5029 = vunpack.c.l.b16 %v4925
    %v5030 = vunpack.c.h.b16 %v4925
    %v5031 = vunpack.c.l.b16 %v4926
    %v5032 = vunpack.c.h.b16 %v4926
    %v5033 = vunpack.c.l.b16 %v4927
    %v5034 = vunpack.c.h.b16 %v4927
    %v5035 = vunpack.c.l.b16 %v4928
    %v5036 = vunpack.c.h.b16 %v4928
    %v5037 = vunpack.c.l.b16 %v4929
    %v5038 = vunpack.c.h.b16 %v4929
    %v5039 = vunpack.c.l.b16 %v4930
    %v5040 = vunpack.c.h.b16 %v4930
    %v5041 = vunpack.c.l.b16 %v4931
    %v5042 = vunpack.c.h.b16 %v4931
    %v5043 = vunpack.c.l.b16 %v4932
    %v5044 = vunpack.c.h.b16 %v4932
    %v5045 = vunpack.c.l.b16 %v4933
    %v5046 = vunpack.c.h.b16 %v4933
    %v5047 = vunpack.c.l.b16 %v4934
    %v5048 = vunpack.c.h.b16 %v4934
    %v5049 = vunpack.c.l.b16 %v4935
    %v5050 = vunpack.c.h.b16 %v4935
    %v5051 = vunpack.c.l.b16 %v4936
    %v5052 = vunpack.c.h.b16 %v4936
    %v5053 = vunpack.c.l.b16 %v4937
    %v5054 = vunpack.c.h.b16 %v4937
    %v5055 = vunpack.c.l.b16 %v4938
    %v5056 = vunpack.c.h.b16 %v4938
    %v5057 = vpack.c.b16 %v4997, %v4993
    %v5058 = vpack.c.b16 %v4998, %v4994
    %v5059 = vpack.c.b16 %v4999, %v4995
    %v5060 = vpack.c.b16 %v5000, %v4996
    %v5061 = vpack.c.b16 %v5005, %v5001
    %v5062 = vpack.c.b16 %v5006, %v5002
    %v5063 = vpack.c.b16 %v5007, %v5003
    %v5064 = vpack.c.b16 %v5008, %v5004
    %v5065 = vpack.c.b16 %v5013, %v5009
    %v5066 = vpack.c.b16 %v5014, %v5010
    %v5067 = vpack.c.b16 %v5015, %v5011
    %v5068 = vpack.c.b16 %v5016, %v5012
    %v5069 = vpack.c.b16 %v5021, %v5017
    %v5070 = vpack.c.b16 %v5022, %v5018
    %v5071 = vpack.c.b16 %v5023, %v5019
    %v5072 = vpack.c.b16 %v5024, %v5020
    %v5073 = vpack.c.b16 %v5029, %v5025
    %v5074 = vpack.c.b16 %v5030, %v5026
    %v5075 = vpack.c.b16 %v5031, %v5027
    %v5076 = vpack.c.b16 %v5032, %v5028
    %v5077 = vpack.c.b16 %v5037, %v5033
    %v5078 = vpack.c.b16 %v5038, %v5034
    %v5079 = vpack.c.b16 %v5039, %v5035
    %v5080 = vpack.c.b16 %v5040, %v5036
    %v5081 = vpack.c.b16 %v5045, %v5041
    %v5082 = vpack.c.b16 %v5046, %v5042
    %v5083 = vpack.c.b16 %v5047, %v5043
    %v5084 = vpack.c.b16 %v5048, %v5044
    %v5085 = vpack.c.b16 %v5053, %v5049
    %v5086 = vpack.c.b16 %v5054, %v5050
    %v5087 = vpack.c.b16 %v5055, %v5051
    %v5088 = vpack.c.b16 %v5056, %v5052
    %5121 = vmatprep.subr.bf16.mxu0 %v5058
    %5122 = vmatpush1.bf16.msra.mxu0 %v5057
    %5123 = vmatprep.subr.bf16.mxu0 %v5062
    %5124 = vmatpush1.bf16.msra.mxu0 %v5061
    %5125 = vmatprep.subr.bf16.mxu0 %v5066
    %5126 = vmatpush1.bf16.msra.mxu0 %v5065
    %5127 = vmatprep.subr.bf16.mxu0 %v5070
    %5128 = vmatpush1.bf16.msra.mxu0 %v5069
    %5129 = vmatprep.subr.bf16.mxu0 %v5074
    %5130 = vmatpush1.bf16.msra.mxu0 %v5073
    %5131 = vmatprep.subr.bf16.mxu0 %v5078
    %5132 = vmatpush1.bf16.msra.mxu0 %v5077
    %5133 = vmatprep.subr.bf16.mxu0 %v5082
    %5134 = vmatpush1.bf16.msra.mxu0 %v5081
    %5135 = vmatprep.subr.bf16.mxu0 %v5086
    %5136 = vmatpush1.bf16.msra.mxu0 %v5085
    %5137 = vmatprep.subr.bf16.mxu0 0
    %5138 = vmatpush1.bf16.msra.mxu0 0
    %5139 = vmatprep.subr.bf16.mxu0 0
    %5140 = vmatpush1.bf16.msra.mxu0 0
    %5141 = vmatprep.subr.bf16.mxu0 0
    %5142 = vmatpush1.bf16.msra.mxu0 0
    %5143 = vmatprep.subr.bf16.mxu0 0
    %5144 = vmatpush1.bf16.msra.mxu0 0
    %5145 = vmatprep.subr.bf16.mxu0 0
    %5146 = vmatpush1.bf16.msra.mxu0 0
    %5147 = vmatprep.subr.bf16.mxu0 0
    %5148 = vmatpush1.bf16.msra.mxu0 0
    %5149 = vmatprep.subr.bf16.mxu0 0
    %5150 = vmatpush1.bf16.msra.mxu0 0
    %5151 = vmatprep.subr.bf16.mxu0 0
    %5152 = vmatpush1.bf16.msra.mxu0 0
    %5153 = vmatprep.mubr.bf16.mxu0 0
    %5154 = vmatmul.mubr.bf16.gmra.mrb[0].mxu0 %v4906
    %v5155 = vpop.f32.mrb[0].mxu0
    %v5156 = vadd.f32 %v4944, %v5155
    %v5157 = vpop.f32.mrb[0].mxu0
    %v5158 = vadd.f32 %v4948, %v5157
    %v5159 = vpop.f32.mrb[0].mxu0
    %v5160 = vpop.f32.mrb[0].mxu0
    %5161 = vdwg.mxu0
    %5162 = vmatprep.subr.bf16.mxu0 %v5060
    %5163 = vmatpush1.bf16.msra.mxu0 %v5059
    %5164 = vmatprep.subr.bf16.mxu0 %v5064
    %5165 = vmatpush1.bf16.msra.mxu0 %v5063
    %5166 = vmatprep.subr.bf16.mxu0 %v5068
    %5167 = vmatpush1.bf16.msra.mxu0 %v5067
    %5168 = vmatprep.subr.bf16.mxu0 %v5072
    %5169 = vmatpush1.bf16.msra.mxu0 %v5071
    %5170 = vmatprep.subr.bf16.mxu0 %v5076
    %5171 = vmatpush1.bf16.msra.mxu0 %v5075
    %5172 = vmatprep.subr.bf16.mxu0 %v5080
    %5173 = vmatpush1.bf16.msra.mxu0 %v5079
    %5174 = vmatprep.subr.bf16.mxu0 %v5084
    %5175 = vmatpush1.bf16.msra.mxu0 %v5083
    %5176 = vmatprep.subr.bf16.mxu0 %v5088
    %5177 = vmatpush1.bf16.msra.mxu0 %v5087
    %5178 = vmatprep.subr.bf16.mxu0 0
    %5179 = vmatpush1.bf16.msra.mxu0 0
    %5180 = vmatprep.subr.bf16.mxu0 0
    %5181 = vmatpush1.bf16.msra.mxu0 0
    %5182 = vmatprep.subr.bf16.mxu0 0
    %5183 = vmatpush1.bf16.msra.mxu0 0
    %5184 = vmatprep.subr.bf16.mxu0 0
    %5185 = vmatpush1.bf16.msra.mxu0 0
    %5186 = vmatprep.subr.bf16.mxu0 0
    %5187 = vmatpush1.bf16.msra.mxu0 0
    %5188 = vmatprep.subr.bf16.mxu0 0
    %5189 = vmatpush1.bf16.msra.mxu0 0
    %5190 = vmatprep.subr.bf16.mxu0 0
    %5191 = vmatpush1.bf16.msra.mxu0 0
    %5192 = vmatprep.subr.bf16.mxu0 0
    %5193 = vmatpush1.bf16.msra.mxu0 0
    %5194 = vmatprep.mubr.bf16.mxu0 0
    %5195 = vmatmul.mubr.bf16.gmra.mrb[0].mxu0 %v4906
    %v5196 = vpop.f32.mrb[0].mxu0
    %v5197 = vadd.f32 %v4952, %v5196
    %v5198 = vpop.f32.mrb[0].mxu0
    %v5199 = vadd.f32 %v4956, %v5198
    %v5200 = vpop.f32.mrb[0].mxu0
    %v5201 = vpop.f32.mrb[0].mxu0
    %5202 = vdwg.mxu0
    %v5203 = vmax.f32 %v5156, 0.0
    %v5204 = vmax.f32 %v5158, 0.0
    %v5205 = vmax.f32 %v5197, 0.0
    %v5206 = vmax.f32 %v5199, 0.0
    %v5207 = vpack.c.bf16 %v5203, %v5203
    %v5208 = vpack.c.bf16 %v5204, %v5204
    %v5209 = vpack.c.bf16 %v5205, %v5205
    %v5210 = vpack.c.bf16 %v5206, %v5206
    %v5211 = vld [vmem:[#allocation22] sm:$0xf]
    %v5212 = vld [vmem:[#allocation22 + $0x4] sm:$0xf]
    %v5213 = vld [vmem:[#allocation22 + $0x8] sm:$0xf]
    %v5214 = vld [vmem:[#allocation22 + $0xc] sm:$0xf]
    %v5215 = vld [vmem:[#allocation22 + $0x10] sm:$0xf]
    %v5216 = vld [vmem:[#allocation22 + $0x14] sm:$0xf]
    %v5217 = vld [vmem:[#allocation22 + $0x18] sm:$0xf]
    %v5218 = vld [vmem:[#allocation22 + $0x1c] sm:$0xf]
    %v5219 = vld [vmem:[#allocation22 + $0x20] sm:$0xf]
    %v5220 = vld [vmem:[#allocation22 + $0x24] sm:$0xf]
    %v5221 = vld [vmem:[#allocation22 + $0x28] sm:$0xf]
    %v5222 = vld [vmem:[#allocation22 + $0x2c] sm:$0xf]
    %v5223 = vld [vmem:[#allocation22 + $0x30] sm:$0xf]
    %v5224 = vld [vmem:[#allocation22 + $0x34] sm:$0xf]
    %v5225 = vld [vmem:[#allocation22 + $0x38] sm:$0xf]
    %v5226 = vld [vmem:[#allocation22 + $0x3c] sm:$0xf]
    %v5227 = vld [vmem:[#allocation22 + $0x40] sm:$0xf]
    %v5228 = vld [vmem:[#allocation22 + $0x44] sm:$0xf]
    %v5229 = vld [vmem:[#allocation22 + $0x48] sm:$0xf]
    %v5230 = vld [vmem:[#allocation22 + $0x4c] sm:$0xf]
    %v5231 = vld [vmem:[#allocation22 + $0x50] sm:$0xf]
    %v5232 = vld [vmem:[#allocation22 + $0x54] sm:$0xf]
    %v5233 = vld [vmem:[#allocation22 + $0x58] sm:$0xf]
    %v5234 = vld [vmem:[#allocation22 + $0x5c] sm:$0xf]
    %v5235 = vld [vmem:[#allocation22 + $0x60] sm:$0xf]
    %v5236 = vld [vmem:[#allocation22 + $0x64] sm:$0xf]
    %v5237 = vld [vmem:[#allocation22 + $0x68] sm:$0xf]
    %v5238 = vld [vmem:[#allocation22 + $0x6c] sm:$0xf]
    %v5239 = vld [vmem:[#allocation22 + $0x70] sm:$0xf]
    %v5240 = vld [vmem:[#allocation22 + $0x74] sm:$0xf]
    %v5241 = vld [vmem:[#allocation22 + $0x78] sm:$0xf]
    %v5242 = vld [vmem:[#allocation22 + $0x7c] sm:$0xf]
    %v5243 = vld [vmem:[#allocation22 + $0x80] sm:$0xf]
    %v5244 = vld [vmem:[#allocation22 + $0x84] sm:$0xf]
    %v5245 = vld [vmem:[#allocation22 + $0x88] sm:$0xf]
    %v5246 = vld [vmem:[#allocation22 + $0x8c] sm:$0xf]
    %v5247 = vld [vmem:[#allocation22 + $0x90] sm:$0xf]
    %v5248 = vld [vmem:[#allocation22 + $0x94] sm:$0xf]
    %v5249 = vld [vmem:[#allocation22 + $0x98] sm:$0xf]
    %v5250 = vld [vmem:[#allocation22 + $0x9c] sm:$0xf]
    %v5251 = vld [vmem:[#allocation22 + $0xa0] sm:$0xf]
    %v5252 = vld [vmem:[#allocation22 + $0xa4] sm:$0xf]
    %v5253 = vld [vmem:[#allocation22 + $0xa8] sm:$0xf]
    %v5254 = vld [vmem:[#allocation22 + $0xac] sm:$0xf]
    %v5255 = vld [vmem:[#allocation22 + $0xb0] sm:$0xf]
    %v5256 = vld [vmem:[#allocation22 + $0xb4] sm:$0xf]
    %v5257 = vld [vmem:[#allocation22 + $0xb8] sm:$0xf]
    %v5258 = vld [vmem:[#allocation22 + $0xbc] sm:$0xf]
    %v5259 = vld [vmem:[#allocation22 + $0xc0] sm:$0xf]
    %v5260 = vld [vmem:[#allocation22 + $0xc4] sm:$0xf]
    %v5261 = vld [vmem:[#allocation22 + $0xc8] sm:$0xf]
    %v5262 = vld [vmem:[#allocation22 + $0xcc] sm:$0xf]
    %v5263 = vld [vmem:[#allocation22 + $0xd0] sm:$0xf]
    %v5264 = vld [vmem:[#allocation22 + $0xd4] sm:$0xf]
    %v5265 = vld [vmem:[#allocation22 + $0xd8] sm:$0xf]
    %v5266 = vld [vmem:[#allocation22 + $0xdc] sm:$0xf]
    %v5267 = vld [vmem:[#allocation22 + $0xe0] sm:$0xf]
    %v5268 = vld [vmem:[#allocation22 + $0xe4] sm:$0xf]
    %v5269 = vld [vmem:[#allocation22 + $0xe8] sm:$0xf]
    %v5270 = vld [vmem:[#allocation22 + $0xec] sm:$0xf]
    %v5271 = vld [vmem:[#allocation22 + $0xf0] sm:$0xf]
    %v5272 = vld [vmem:[#allocation22 + $0xf4] sm:$0xf]
    %v5273 = vld [vmem:[#allocation22 + $0xf8] sm:$0xf]
    %v5274 = vld [vmem:[#allocation22 + $0xfc] sm:$0xf]
    %v5275 = vld [vmem:[%s57] sm:$0x1]
    %v5277 = vlaneseq
    %v5278 = vshrl.u32 %v5277, 7
    %v5279 = vsub.s32 0, %v5278
    %v5280 = vrot.slane %v5275, %v5279
    %v5346 = vunpack.c.l.b16 %v5211
    %v5347 = vunpack.c.l.b16 %v5212
    %v5348 = vunpack.c.l.b16 %v5213
    %v5349 = vunpack.c.l.b16 %v5214
    %v5350 = vunpack.c.l.b16 %v5215
    %v5351 = vunpack.c.l.b16 %v5216
    %v5352 = vunpack.c.l.b16 %v5217
    %v5353 = vunpack.c.l.b16 %v5218
    %v5354 = vunpack.c.l.b16 %v5219
    %v5355 = vunpack.c.l.b16 %v5220
    %v5356 = vunpack.c.l.b16 %v5221
    %v5357 = vunpack.c.l.b16 %v5222
    %v5358 = vunpack.c.l.b16 %v5223
    %v5359 = vunpack.c.l.b16 %v5224
    %v5360 = vunpack.c.l.b16 %v5225
    %v5361 = vunpack.c.l.b16 %v5226
    %v5362 = vunpack.c.l.b16 %v5227
    %v5363 = vunpack.c.l.b16 %v5228
    %v5364 = vunpack.c.l.b16 %v5229
    %v5365 = vunpack.c.l.b16 %v5230
    %v5366 = vunpack.c.l.b16 %v5231
    %v5367 = vunpack.c.l.b16 %v5232
    %v5368 = vunpack.c.l.b16 %v5233
    %v5369 = vunpack.c.l.b16 %v5234
    %v5370 = vunpack.c.l.b16 %v5235
    %v5371 = vunpack.c.l.b16 %v5236
    %v5372 = vunpack.c.l.b16 %v5237
    %v5373 = vunpack.c.l.b16 %v5238
    %v5374 = vunpack.c.l.b16 %v5239
    %v5375 = vunpack.c.l.b16 %v5240
    %v5376 = vunpack.c.l.b16 %v5241
    %v5377 = vunpack.c.l.b16 %v5242
    %v5378 = vunpack.c.l.b16 %v5243
    %v5379 = vunpack.c.l.b16 %v5244
    %v5380 = vunpack.c.l.b16 %v5245
    %v5381 = vunpack.c.l.b16 %v5246
    %v5382 = vunpack.c.l.b16 %v5247
    %v5383 = vunpack.c.l.b16 %v5248
    %v5384 = vunpack.c.l.b16 %v5249
    %v5385 = vunpack.c.l.b16 %v5250
    %v5386 = vunpack.c.l.b16 %v5251
    %v5387 = vunpack.c.l.b16 %v5252
    %v5388 = vunpack.c.l.b16 %v5253
    %v5389 = vunpack.c.l.b16 %v5254
    %v5390 = vunpack.c.l.b16 %v5255
    %v5391 = vunpack.c.l.b16 %v5256
    %v5392 = vunpack.c.l.b16 %v5257
    %v5393 = vunpack.c.l.b16 %v5258
    %v5394 = vunpack.c.l.b16 %v5259
    %v5395 = vunpack.c.l.b16 %v5260
    %v5396 = vunpack.c.l.b16 %v5261
    %v5397 = vunpack.c.l.b16 %v5262
    %v5398 = vunpack.c.l.b16 %v5263
    %v5399 = vunpack.c.l.b16 %v5264
    %v5400 = vunpack.c.l.b16 %v5265
    %v5401 = vunpack.c.l.b16 %v5266
    %v5402 = vunpack.c.l.b16 %v5267
    %v5403 = vunpack.c.l.b16 %v5268
    %v5404 = vunpack.c.l.b16 %v5269
    %v5405 = vunpack.c.l.b16 %v5270
    %v5406 = vunpack.c.l.b16 %v5271
    %v5407 = vunpack.c.l.b16 %v5272
    %v5408 = vunpack.c.l.b16 %v5273
    %v5409 = vunpack.c.l.b16 %v5274
    %v5410 = vpack.c.b16 %v5347, %v5346
    %v5411 = vpack.c.b16 %v5349, %v5348
    %v5412 = vpack.c.b16 %v5351, %v5350
    %v5413 = vpack.c.b16 %v5353, %v5352
    %v5414 = vpack.c.b16 %v5355, %v5354
    %v5415 = vpack.c.b16 %v5357, %v5356
    %v5416 = vpack.c.b16 %v5359, %v5358
    %v5417 = vpack.c.b16 %v5361, %v5360
    %v5418 = vpack.c.b16 %v5363, %v5362
    %v5419 = vpack.c.b16 %v5365, %v5364
    %v5420 = vpack.c.b16 %v5367, %v5366
    %v5421 = vpack.c.b16 %v5369, %v5368
    %v5422 = vpack.c.b16 %v5371, %v5370
    %v5423 = vpack.c.b16 %v5373, %v5372
    %v5424 = vpack.c.b16 %v5375, %v5374
    %v5425 = vpack.c.b16 %v5377, %v5376
    %v5426 = vpack.c.b16 %v5379, %v5378
    %v5427 = vpack.c.b16 %v5381, %v5380
    %v5428 = vpack.c.b16 %v5383, %v5382
    %v5429 = vpack.c.b16 %v5385, %v5384
    %v5430 = vpack.c.b16 %v5387, %v5386
    %v5431 = vpack.c.b16 %v5389, %v5388
    %v5432 = vpack.c.b16 %v5391, %v5390
    %v5433 = vpack.c.b16 %v5393, %v5392
    %v5434 = vpack.c.b16 %v5395, %v5394
    %v5435 = vpack.c.b16 %v5397, %v5396
    %v5436 = vpack.c.b16 %v5399, %v5398
    %v5437 = vpack.c.b16 %v5401, %v5400
    %v5438 = vpack.c.b16 %v5403, %v5402
    %v5439 = vpack.c.b16 %v5405, %v5404
    %v5440 = vpack.c.b16 %v5407, %v5406
    %v5441 = vpack.c.b16 %v5409, %v5408
    %5474 = vmatprep.subr.bf16.mxu0 0
    %5475 = vmatpush1.bf16.msra.mxu0 %v5410
    %5476 = vmatprep.subr.bf16.mxu0 0
    %5477 = vmatpush1.bf16.msra.mxu0 %v5411
    %5478 = vmatprep.subr.bf16.mxu0 0
    %5479 = vmatpush1.bf16.msra.mxu0 %v5412
    %5480 = vmatprep.subr.bf16.mxu0 0
    %5481 = vmatpush1.bf16.msra.mxu0 %v5413
    %5482 = vmatprep.subr.bf16.mxu0 0
    %5483 = vmatpush1.bf16.msra.mxu0 %v5414
    %5484 = vmatprep.subr.bf16.mxu0 0
    %5485 = vmatpush1.bf16.msra.mxu0 %v5415
    %5486 = vmatprep.subr.bf16.mxu0 0
    %5487 = vmatpush1.bf16.msra.mxu0 %v5416
    %5488 = vmatprep.subr.bf16.mxu0 0
    %5489 = vmatpush1.bf16.msra.mxu0 %v5417
    %5490 = vmatprep.subr.bf16.mxu0 0
    %5491 = vmatpush1.bf16.msra.mxu0 %v5418
    %5492 = vmatprep.subr.bf16.mxu0 0
    %5493 = vmatpush1.bf16.msra.mxu0 %v5419
    %5494 = vmatprep.subr.bf16.mxu0 0
    %5495 = vmatpush1.bf16.msra.mxu0 %v5420
    %5496 = vmatprep.subr.bf16.mxu0 0
    %5497 = vmatpush1.bf16.msra.mxu0 %v5421
    %5498 = vmatprep.subr.bf16.mxu0 0
    %5499 = vmatpush1.bf16.msra.mxu0 %v5422
    %5500 = vmatprep.subr.bf16.mxu0 0
    %5501 = vmatpush1.bf16.msra.mxu0 %v5423
    %5502 = vmatprep.subr.bf16.mxu0 0
    %5503 = vmatpush1.bf16.msra.mxu0 %v5424
    %5504 = vmatprep.subr.bf16.mxu0 0
    %5505 = vmatpush1.bf16.msra.mxu0 %v5425
    %5506 = vmatprep.mubr.bf16.mxu0 %v5208
    %5507 = vmatmul.mubr.bf16.gmra.mrb[0].mxu0 %v5207
    %v5508 = vpop.f32.mrb[0].mxu0
    %v5509 = vadd.f32 %v5280, %v5508
    %v5510 = vpop.f32.mrb[0].mxu0
    %v5511 = vpop.f32.mrb[0].mxu0
    %v5512 = vpop.f32.mrb[0].mxu0
    %5513 = vdwg.mxu0
    %5514 = vmatprep.subr.bf16.mxu0 0
    %5515 = vmatpush1.bf16.msra.mxu0 %v5426
    %5516 = vmatprep.subr.bf16.mxu0 0
    %5517 = vmatpush1.bf16.msra.mxu0 %v5427
    %5518 = vmatprep.subr.bf16.mxu0 0
    %5519 = vmatpush1.bf16.msra.mxu0 %v5428
    %5520 = vmatprep.subr.bf16.mxu0 0
    %5521 = vmatpush1.bf16.msra.mxu0 %v5429
    %5522 = vmatprep.subr.bf16.mxu0 0
    %5523 = vmatpush1.bf16.msra.mxu0 %v5430
    %5524 = vmatprep.subr.bf16.mxu0 0
    %5525 = vmatpush1.bf16.msra.mxu0 %v5431
    %5526 = vmatprep.subr.bf16.mxu0 0
    %5527 = vmatpush1.bf16.msra.mxu0 %v5432
    %5528 = vmatprep.subr.bf16.mxu0 0
    %5529 = vmatpush1.bf16.msra.mxu0 %v5433
    %5530 = vmatprep.subr.bf16.mxu0 0
    %5531 = vmatpush1.bf16.msra.mxu0 %v5434
    %5532 = vmatprep.subr.bf16.mxu0 0
    %5533 = vmatpush1.bf16.msra.mxu0 %v5435
    %5534 = vmatprep.subr.bf16.mxu0 0
    %5535 = vmatpush1.bf16.msra.mxu0 %v5436
    %5536 = vmatprep.subr.bf16.mxu0 0
    %5537 = vmatpush1.bf16.msra.mxu0 %v5437
    %5538 = vmatprep.subr.bf16.mxu0 0
    %5539 = vmatpush1.bf16.msra.mxu0 %v5438
    %5540 = vmatprep.subr.bf16.mxu0 0
    %5541 = vmatpush1.bf16.msra.mxu0 %v5439
    %5542 = vmatprep.subr.bf16.mxu0 0
    %5543 = vmatpush1.bf16.msra.mxu0 %v5440
    %5544 = vmatprep.subr.bf16.mxu0 0
    %5545 = vmatpush1.bf16.msra.mxu0 %v5441
    %5546 = vmatprep.mubr.bf16.mxu0 %v5210
    %5547 = vmatmul.mubr.bf16.gmra.mrb[0].mxu0 %v5209
    %v5548 = vpop.f32.mrb[0].mxu0
    %v5549 = vadd.f32 %v5509, %v5548
    %v5550 = vpop.f32.mrb[0].mxu0
    %v5551 = vpop.f32.mrb[0].mxu0
    %v5552 = vpop.f32.mrb[0].mxu0
    %5553 = vdwg.mxu0
    %5554 = vst [vmem:[#allocation23] sm:$0xff] %v5549
    // Predicated region
    $region170: #{tpu_custom_call.1} parent=1 // pred_check
      _
    $region171: #{tpu_custom_call.1} parent=1 // pred_check_branch
      %5556 = sbr.rel (0) target = $region173
    $region172: #{tpu_custom_call.1} parent=1 // pred_region
      %s5558 = ssub.s32 128, 128
      %5559 = vsyncadd [#allocation4], %s5558
      %s5561 = sshll.u32 [#allocation23], 4
      %s5562 = int_to_ptr.vmem [resolvable:$true] %s5561
      %5564 = dma.vmem_to_hbm [thread:$0]  %s5562, 128, %s59, [#allocation4]
    $region173: #{tpu_custom_call.1} parent=1 // pred_fallthru
      _
    // Predicated region
    $region174: #{tpu_custom_call.1} parent=1 // pred_check
      _
    $region175: #{tpu_custom_call.1} parent=1 // pred_check_branch
      %5566 = sbr.rel (0) target = $region177
    $region176: #{tpu_custom_call.1} parent=1 // pred_region
      %5567 = dma.done [#allocation4], 128
    $region177: #{tpu_custom_call.1} parent=1 // pred_fallthru
      _
    %5568 = vsyncpa [#allocation3], 1
    %5569 = vsyncpa [#allocation6], 1
    %5570 = vsyncpa [#allocation9], 1
    %5571 = vsyncpa [#allocation12], 1
    %5572 = vsyncpa [#allocation15], 1
    %5573 = vsyncpa [#allocation18], 1
    %5574 = vsyncpa [#allocation21], 1
    %5575 = vsyncpa [#allocation4], 1

</llo_original>
